<compile_context>
chip_gen: v6e
topology: v6e:2x2x1
jax: 0.10.0
libtpu: 0.0.40
codegen_flags: <defaults>
</compile_context>

<pallas_src>
import math
from functools import partial

import jax
import jax.numpy as jnp
from jax.experimental import pallas as pl
from jax.experimental.pallas import tpu as pltpu

_BN_EPS = 1e-5
_PARALLEL = pltpu.CompilerParams(dimension_semantics=("parallel",))


# ---------------------------------------------------------------------------
# tiling helpers
# ---------------------------------------------------------------------------

def _row_tile(m, target):
    """Largest divisor of m that is <= target and a multiple of 8 (or m itself)."""
    for d in range(min(m, target), 0, -1):
        if m % d == 0 and (d % 8 == 0 or d == m):
            return d
    return m


def _batch_tile(b, n, e, h, budget_bytes=8 << 20):
    """Batch elements per attention grid step: fill ~budget of VMEM, but keep
    >=2 grid steps when possible so v7x's two TensorCores both get work."""
    per_elem = (6 * n * e + h * n * n) * 4          # rough f32 footprint / element
    cap = max(1, budget_bytes // max(per_elem, 1))
    if b > 1:
        cap = min(cap, max(1, b // 2))
    for d in range(min(b, cap), 0, -1):
        if b % d == 0:
            return d
    return 1


def _full(shape):
    nd = len(shape)
    return pl.BlockSpec(shape, lambda *_, _nd=nd: (0,) * _nd)


# ---------------------------------------------------------------------------
# kernels
# ---------------------------------------------------------------------------

def _embed_kernel(x_ref, w_ref, b_ref, o_ref):
    o_ref[...] = (jnp.dot(x_ref[...], w_ref[...],
                          preferred_element_type=jnp.float32)
                  + b_ref[...]).astype(o_ref.dtype)


def _mha_kernel(x_ref, sc_ref, sh_ref, wqkv_ref, o_ref, *,
                head_num, matmul_dtype, approx_recip):
    bt, n, e = x_ref.shape
    dk = e // head_num
    # previous layer's BatchNorm folded to a per-feature affine, then one fused
    # QKV projection: (bt*n, E) @ (E, 3E)
    xn = x_ref[...].reshape(bt * n, e) * sc_ref[...] + sh_ref[...]
    qkv = jnp.dot(xn.astype(matmul_dtype), wqkv_ref[...].astype(matmul_dtype),
                  preferred_element_type=jnp.float32).reshape(bt, n, 3 * e)
    inv_sqrt_dk = 1.0 / math.sqrt(dk)
    for h in range(head_num):                       # static unroll over heads
        q = (qkv[:, :, h * dk:(h + 1) * dk] * inv_sqrt_dk).astype(matmul_dtype)
        k = qkv[:, :, e + h * dk:e + (h + 1) * dk].astype(matmul_dtype)
        v = qkv[:, :, 2 * e + h * dk:2 * e + (h + 1) * dk].astype(matmul_dtype)
        s = jnp.einsum("bnd,bmd->bnm", q, k,
                       preferred_element_type=jnp.float32)       # (bt, n, n)
        s_max = jnp.max(s, axis=-1, keepdims=True)
        p = jnp.exp(s - s_max)
        denom = jnp.sum(p, axis=-1, keepdims=True)
        if approx_recip:
            w_att = p * pl.reciprocal(denom, approx=True)        # EUP slot
        else:
            w_att = p / denom
        o_h = jnp.einsum("bnm,bmd->bnd", w_att.astype(matmul_dtype), v,
                         preferred_element_type=jnp.float32)     # (bt, n, dk)
        # heads written already concatenated -> lane-dense (bt, n, E) output
        o_ref[:, :, h * dk:(h + 1) * dk] = o_h.astype(o_ref.dtype)


def _combine_kernel(x_ref, sc_ref, sh_ref, attn_ref, wc_ref, bc_ref,
                    a_ref, st_ref, *, matmul_dtype):
    # residual input = previous layer's BN applied as the folded affine
    xn = x_ref[...] * sc_ref[...] + sh_ref[...]
    mh = jnp.dot(attn_ref[...].astype(matmul_dtype),
                 wc_ref[...].astype(matmul_dtype),
                 preferred_element_type=jnp.float32) + bc_ref[...]
    a = xn + mh                                     # pre-BN1 activation
    a_ref[...] = a.astype(a_ref.dtype)
    # per-tile partial statistics (reduced over all tiles in the wrapper)
    st_ref[0:1, :] = jnp.sum(a, axis=0, keepdims=True)
    st_ref[1:2, :] = jnp.sum(a * a, axis=0, keepdims=True)


def _bn_ff_kernel(a_ref, sc_ref, sh_ref, w1_ref, b1_ref, w2_ref, b2_ref,
                  a2_ref, st_ref, *, matmul_dtype):
    out1 = a_ref[...] * sc_ref[...] + sh_ref[...]   # BN1 applied (folded affine)
    h = jnp.dot(out1.astype(matmul_dtype), w1_ref[...].astype(matmul_dtype),
                preferred_element_type=jnp.float32) + b1_ref[...]
    h = jnp.maximum(h, 0.0)
    ff = jnp.dot(h.astype(matmul_dtype), w2_ref[...].astype(matmul_dtype),
                 preferred_element_type=jnp.float32) + b2_ref[...]
    a2 = out1 + ff                                  # pre-BN2 activation
    a2_ref[...] = a2.astype(a2_ref.dtype)
    st_ref[0:1, :] = jnp.sum(a2, axis=0, keepdims=True)
    st_ref[1:2, :] = jnp.sum(a2 * a2, axis=0, keepdims=True)


def _bn_apply_kernel(a_ref, sc_ref, sh_ref, o_ref):
    o_ref[...] = (a_ref[...] * sc_ref[...] + sh_ref[...]).astype(o_ref.dtype)


# ---------------------------------------------------------------------------
# pallas_call wrappers (row/batch-tiled, all grid axes "parallel")
# ---------------------------------------------------------------------------

def pallas_embed(x2, w, b, tm):
    m, c = x2.shape
    e = w.shape[1]
    return pl.pallas_call(
        _embed_kernel,
        out_shape=jax.ShapeDtypeStruct((m, e), jnp.float32),
        grid=(m // tm,),
        in_specs=[pl.BlockSpec((tm, c), lambda i: (i, 0)),
                  _full(w.shape), _full(b.shape)],
        out_specs=pl.BlockSpec((tm, e), lambda i: (i, 0)),
        compiler_params=_PARALLEL,
    )(x2, w, b)


def pallas_mha(x, scale, shift, wqkv, *, head_num, bt, matmul_dtype, approx_recip):
    b, n, e = x.shape
    blk = pl.BlockSpec((bt, n, e), lambda i: (i, 0, 0))
    return pl.pallas_call(
        partial(_mha_kernel, head_num=head_num, matmul_dtype=matmul_dtype,
                approx_recip=approx_recip),
        out_shape=jax.ShapeDtypeStruct((b, n, e), jnp.float32),
        grid=(b // bt,),
        in_specs=[blk, _full(scale.shape), _full(shift.shape), _full(wqkv.shape)],
        out_specs=blk,
        compiler_params=_PARALLEL,
    )(x, scale, shift, wqkv)


def pallas_combine(x, scale, shift, attn, wc, bc, *, tm, matmul_dtype):
    m, e = x.shape
    t = m // tm
    row = pl.BlockSpec((tm, e), lambda i: (i, 0))
    return pl.pallas_call(
        partial(_combine_kernel, matmul_dtype=matmul_dtype),
        out_shape=(jax.ShapeDtypeStruct((m, e), jnp.float32),
                   jax.ShapeDtypeStruct((t, 2, e), jnp.float32)),
        grid=(t,),
        in_specs=[row, _full(scale.shape), _full(shift.shape), row,
                  _full(wc.shape), _full(bc.shape)],
        out_specs=(row, pl.BlockSpec((None, 2, e), lambda i: (i, 0, 0))),
        compiler_params=_PARALLEL,
    )(x, scale, shift, attn, wc, bc)


def pallas_bn_ff(a1, scale, shift, w1, b1, w2, b2, *, tm, matmul_dtype):
    m, e = a1.shape
    t = m // tm
    row = pl.BlockSpec((tm, e), lambda i: (i, 0))
    return pl.pallas_call(
        partial(_bn_ff_kernel, matmul_dtype=matmul_dtype),
        out_shape=(jax.ShapeDtypeStruct((m, e), jnp.float32),
                   jax.ShapeDtypeStruct((t, 2, e), jnp.float32)),
        grid=(t,),
        in_specs=[row, _full(scale.shape), _full(shift.shape),
                  _full(w1.shape), _full(b1.shape),
                  _full(w2.shape), _full(b2.shape)],
        out_specs=(row, pl.BlockSpec((None, 2, e), lambda i: (i, 0, 0))),
        compiler_params=_PARALLEL,
    )(a1, scale, shift, w1, b1, w2, b2)


def pallas_bn_apply(a, scale, shift, *, tm):
    m, e = a.shape
    row = pl.BlockSpec((tm, e), lambda i: (i, 0))
    return pl.pallas_call(
        _bn_apply_kernel,
        out_shape=jax.ShapeDtypeStruct((m, e), jnp.float32),
        grid=(m // tm,),
        in_specs=[row, _full(scale.shape), _full(shift.shape)],
        out_specs=row,
        compiler_params=_PARALLEL,
    )(a, scale, shift)


# ---------------------------------------------------------------------------
# Encoder forward
# ---------------------------------------------------------------------------

def _bn_fold(stats, m, gamma, beta):
    """Full-batch BatchNorm1d (training-mode) folded into per-feature scale/shift."""
    s = jnp.sum(stats[:, 0, :], axis=0, keepdims=True)        # (1, E)
    ss = jnp.sum(stats[:, 1, :], axis=0, keepdims=True)
    mean = s / m
    var = jnp.maximum(ss / m - mean * mean, 0.0)               # biased variance
    scale = gamma * jax.lax.rsqrt(var + _BN_EPS)
    shift = beta - mean * scale
    return scale, shift


def encoder_forward(data, params, head_num, *, row_block=1024, batch_block=None,
                    fast=False):
    """fast=True -> bf16 MXU inputs + approx softmax reciprocal (v6e/v7x mode)."""
    matmul_dtype = jnp.bfloat16 if fast else jnp.float32
    b, n, _ = data.shape
    e = params["emb_W"].shape[1]
    m = b * n
    tm = _row_tile(m, row_block)
    bt = batch_block if batch_block is not None else _batch_tile(b, n, e, head_num)
    assert m % tm == 0 and b % bt == 0 and e % head_num == 0

    a = pallas_embed(data.reshape(m, 2), params["emb_W"], params["emb_b"], tm)
    scale = jnp.ones((1, e), jnp.float32)       # identity affine for the embedding
    shift = jnp.zeros((1, e), jnp.float32)

    for p in params["layers"]:
        attn = pallas_mha(a.reshape(b, n, e), scale, shift, p["Wqkv"],
                          head_num=head_num, bt=bt, matmul_dtype=matmul_dtype,
                          approx_recip=fast)
        a1, st1 = pallas_combine(a, scale, shift, attn.reshape(m, e),
                                 p["Wc"], p["bc"], tm=tm, matmul_dtype=matmul_dtype)
        sc1, sh1 = _bn_fold(st1, m, p["g1"], p["be1"])
        a, st2 = pallas_bn_ff(a1, sc1, sh1, p["W1"], p["b1"], p["W2"], p["b2"],
                              tm=tm, matmul_dtype=matmul_dtype)
        scale, shift = _bn_fold(st2, m, p["g2"], p["be2"])

    out = pallas_bn_apply(a, scale, shift, tm=tm)
    return out.reshape(b, n, e)


# ---------------------------------------------------------------------------
# parameter init / fusion + pure-JAX reference
# ---------------------------------------------------------------------------

def init_params(key, emb_dim, head_num, ff_dim, n_layers):
    def lin(k, fan_in, fan_out):
        return (jax.random.normal(k, (fan_in, fan_out), jnp.float32)
                / math.sqrt(fan_in))

    keys = jax.random.split(key, 2 + n_layers)
    params = {
        "emb_W": lin(keys[0], 2, emb_dim),
        "emb_b": jax.random.normal(keys[1], (emb_dim,), jnp.float32) * 0.01,
        "layers": [],
    }
    for li in range(n_layers):
        ks = jax.random.split(keys[2 + li], 12)
        params["layers"].append({
            "Wq": lin(ks[0], emb_dim, emb_dim),
            "Wk": lin(ks[1], emb_dim, emb_dim),
            "Wv": lin(ks[2], emb_dim, emb_dim),
            "Wc": lin(ks[3], emb_dim, emb_dim),
            "bc": jax.random.normal(ks[4], (emb_dim,), jnp.float32) * 0.01,
            "g1": 1.0 + 0.1 * jax.random.normal(ks[5], (emb_dim,), jnp.float32),
            "be1": 0.01 * jax.random.normal(ks[6], (emb_dim,), jnp.float32),
            "W1": lin(ks[7], emb_dim, ff_dim),
            "b1": jax.random.normal(ks[8], (ff_dim,), jnp.float32) * 0.01,
            "W2": lin(ks[9], ff_dim, emb_dim),
            "b2": jax.random.normal(ks[10], (emb_dim,), jnp.float32) * 0.01,
            "g2": 1.0 + 0.1 * jax.random.normal(ks[11], (emb_dim,), jnp.float32),
            "be2": jnp.zeros((emb_dim,), jnp.float32),
        })
    return params


def fuse_params(params):
    """Pre-fuse weights for the kernels: Wq|Wk|Wv concatenated to (E, 3E) and
    all biases / BN params reshaped to (1, dim) for lane-broadcast."""
    row = lambda v: v.reshape(1, -1)
    out = {"emb_W": params["emb_W"], "emb_b": row(params["emb_b"]), "layers": []}
    for p in params["layers"]:
        out["layers"].append({
            "Wqkv": jnp.concatenate([p["Wq"], p["Wk"], p["Wv"]], axis=1),
            "Wc": p["Wc"], "bc": row(p["bc"]),
            "g1": row(p["g1"]), "be1": row(p["be1"]),
            "W1": p["W1"], "b1": row(p["b1"]),
            "W2": p["W2"], "b2": row(p["b2"]),
            "g2": row(p["g2"]), "be2": row(p["be2"]),
        })
    return out


def _ref_forward(data, params, head_num):
    # plain-jnp reference mirroring the PyTorch module (training-mode BN)
    def bn(a, g, b):
        mean = a.mean(0, keepdims=True)
        var = ((a - mean) ** 2).mean(0, keepdims=True)
        return (a - mean) * jax.lax.rsqrt(var + _BN_EPS) * g + b

    B, N, _ = data.shape
    E = params["emb_W"].shape[1]
    dk = E // head_num
    x = data.reshape(B * N, 2) @ params["emb_W"] + params["emb_b"]
    x = x.reshape(B, N, E)
    for p in params["layers"]:
        xf = x.reshape(B * N, E)
        q = (xf @ p["Wq"]).reshape(B, N, head_num, dk).transpose(0, 2, 1, 3)
        k = (xf @ p["Wk"]).reshape(B, N, head_num, dk).transpose(0, 2, 1, 3)
        v = (xf @ p["Wv"]).reshape(B, N, head_num, dk).transpose(0, 2, 1, 3)
        s = jnp.einsum("bhnd,bhmd->bhnm", q, k) / math.sqrt(dk)
        w = jax.nn.softmax(s, axis=-1)
        o = jnp.einsum("bhnm,bhmd->bhnd", w, v)
        oc = o.transpose(0, 2, 1, 3).reshape(B * N, E)
        mh = oc @ p["Wc"] + p["bc"]
        out1 = bn(xf + mh, p["g1"], p["be1"])
        h = jnp.maximum(out1 @ p["W1"] + p["b1"], 0.0)
        out2 = h @ p["W2"] + p["b2"]
        x = bn(out1 + out2, p["g2"], p["be2"]).reshape(B, N, E)
    return x


# ---------------------------------------------------------------------------

if __name__ == "__main__":
    # Small TSP-style shapes: batch=4, graph_size=64, emb=128, heads=8, ff=512,
    # 3 layers.  row_block=128 splits the M=256 sample axis into 2 tiles so the
    # tiled (cross-tile) BatchNorm statistics path is exercised.
    B, N, E, H, FF, L = 4, 64, 128, 8, 512, 3

    params = init_params(jax.random.PRNGKey(0), E, H, FF, L)
    kparams = fuse_params(params)
    data = jax.random.uniform(jax.random.PRNGKey(0), (B, N, 2), dtype=jnp.float32)

    ref = _ref_forward(data, params, H)

    # exact mode: f32 matmuls + exact softmax division (matches PyTorch math)
    fwd = jax.jit(partial(encoder_forward, head_num=H, row_block=128, fast=False))
    out = jax.block_until_ready(fwd(data, kparams))
    assert out.shape == (B, N, E)
    assert jnp.allclose(out, ref, atol=5e-4, rtol=5e-4), "f32 mismatch vs reference"

    # fast mode (v6e/v7x): bf16 MXU inputs + approx EUP reciprocal in softmax;
    # accumulation, BN and elementwise math stay in f32.
    fwd_fast = jax.jit(partial(encoder_forward, head_num=H, row_block=128, fast=True))
    out_fast = jax.block_until_ready(fwd_fast(data, kparams))
    assert out_fast.shape == (B, N, E)
    assert jnp.allclose(out_fast, ref, atol=2.5e-1, rtol=5e-2), "bf16 fast-mode drift"

    # TODO(synk): BatchNorm1d running-mean/var buffer updates (training-time side
    # effect only) are not reproduced; they do not affect the forward output.
    print("KERNEL_OK")
</pallas_src>

<mosaic_0001>
module attributes {stable_mosaic.version = 11 : i64} {
  func.func @_embed_kernel(%arg0: i32, %arg1: memref<128x2xf32, #tpu.memory_space<vmem>>, %arg2: memref<2x128xf32, #tpu.memory_space<vmem>>, %arg3: memref<1x128xf32, #tpu.memory_space<vmem>>, %arg4: memref<128x128xf32, #tpu.memory_space<vmem>>) attributes {dimension_semantics = [#tpu.dimension_semantics<parallel>], iteration_bounds = array<i64: 2>, scalar_prefetch = 0 : i64, scratch_operands = 0 : i64, tpu.core_type = #tpu.core_type<tc>, window_params = [{transform_indices = @transform_0, window_bounds = array<i64: 128, 2>}, {pipeline_mode = #tpu.pipeline_mode<synchronous>, transform_indices = @transform_1, window_bounds = array<i64: 2, 128>}, {pipeline_mode = #tpu.pipeline_mode<synchronous>, transform_indices = @transform_2, window_bounds = array<i64: 1, 128>}, {transform_indices = @transform_3, window_bounds = array<i64: 128, 128>}]} {
    %c0 = arith.constant 0 : index
    %c0_0 = arith.constant 0 : index
    %0 = vector.load %arg1[%c0, %c0_0] : memref<128x2xf32, #tpu.memory_space<vmem>>, vector<128x2xf32>
    %c0_1 = arith.constant 0 : index
    %c0_2 = arith.constant 0 : index
    %1 = vector.load %arg2[%c0_1, %c0_2] : memref<2x128xf32, #tpu.memory_space<vmem>>, vector<2x128xf32>
    %cst = arith.constant dense<0.000000e+00> : vector<128x128xf32>
    %2 = tpu.matmul %0, %1, %cst {dimension_numbers = #tpu.dot_dimension_numbers<[1], [0], [0], [1], [0, 0, 1, 1], [], []>} : vector<128x2xf32>, vector<2x128xf32>, vector<128x128xf32> -> vector<128x128xf32>
    %c0_3 = arith.constant 0 : index
    %c0_4 = arith.constant 0 : index
    %3 = vector.load %arg3[%c0_3, %c0_4] : memref<1x128xf32, #tpu.memory_space<vmem>>, vector<1x128xf32>
    %4 = vector.broadcast %3 : vector<1x128xf32> to vector<128x128xf32>
    %5 = arith.addf %2, %4 : vector<128x128xf32>
    %c0_5 = arith.constant 0 : index
    %c0_6 = arith.constant 0 : index
    %6 = vector.load %arg4[%c0_5, %c0_6] : memref<128x128xf32, #tpu.memory_space<vmem>>, vector<128x128xf32>
    tpu.vector_store %arg4[%c0_5, %c0_6], %5 {strides = array<i32>} : memref<128x128xf32, #tpu.memory_space<vmem>>, vector<128x128xf32>,
    return
  }
  func.func @transform_0(%arg0: i32) -> (i32, i32) {
    %c0_i32 = arith.constant 0 : i32
    %c0_i32_0 = arith.constant 0 : i32
    return %arg0, %c0_i32 : i32, i32
  }
  func.func @transform_1(%arg0: i32) -> (i32, i32) {
    %c0_i32 = arith.constant 0 : i32
    %c0_i32_0 = arith.constant 0 : i32
    %c0_i32_1 = arith.constant 0 : i32
    return %c0_i32, %c0_i32_0 : i32, i32
  }
  func.func @transform_2(%arg0: i32) -> (i32, i32) {
    %c0_i32 = arith.constant 0 : i32
    %c0_i32_0 = arith.constant 0 : i32
    %c0_i32_1 = arith.constant 0 : i32
    return %c0_i32, %c0_i32_0 : i32, i32
  }
  func.func @transform_3(%arg0: i32) -> (i32, i32) {
    %c0_i32 = arith.constant 0 : i32
    %c0_i32_0 = arith.constant 0 : i32
    return %arg0, %c0_i32 : i32, i32
  }
}

module attributes {stable_mosaic.version = 11 : i64} {
  func.func @_mha_kernel(%arg0: i32, %arg1: memref<2x64x128xf32, #tpu.memory_space<vmem>>, %arg2: memref<1x128xf32, #tpu.memory_space<vmem>>, %arg3: memref<1x128xf32, #tpu.memory_space<vmem>>, %arg4: memref<128x384xf32, #tpu.memory_space<vmem>>, %arg5: memref<2x64x128xf32, #tpu.memory_space<vmem>>) attributes {dimension_semantics = [#tpu.dimension_semantics<parallel>], iteration_bounds = array<i64: 2>, scalar_prefetch = 0 : i64, scratch_operands = 0 : i64, tpu.core_type = #tpu.core_type<tc>, window_params = [{transform_indices = @transform_0, window_bounds = array<i64: 2, 64, 128>}, {pipeline_mode = #tpu.pipeline_mode<synchronous>, transform_indices = @transform_1, window_bounds = array<i64: 1, 128>}, {pipeline_mode = #tpu.pipeline_mode<synchronous>, transform_indices = @transform_2, window_bounds = array<i64: 1, 128>}, {pipeline_mode = #tpu.pipeline_mode<synchronous>, transform_indices = @transform_3, window_bounds = array<i64: 128, 384>}, {transform_indices = @transform_4, window_bounds = array<i64: 2, 64, 128>}]} {
    %c0 = arith.constant 0 : index
    %c0_0 = arith.constant 0 : index
    %c0_1 = arith.constant 0 : index
    %0 = vector.load %arg1[%c0, %c0_0, %c0_1] : memref<2x64x128xf32, #tpu.memory_space<vmem>>, vector<2x64x128xf32>
    %1 = vector.shape_cast %0 : vector<2x64x128xf32> to vector<128x128xf32>
    %c0_2 = arith.constant 0 : index
    %c0_3 = arith.constant 0 : index
    %2 = vector.load %arg2[%c0_2, %c0_3] : memref<1x128xf32, #tpu.memory_space<vmem>>, vector<1x128xf32>
    %3 = vector.broadcast %2 : vector<1x128xf32> to vector<128x128xf32>
    %4 = arith.mulf %1, %3 : vector<128x128xf32>
    %c0_4 = arith.constant 0 : index
    %c0_5 = arith.constant 0 : index
    %5 = vector.load %arg3[%c0_4, %c0_5] : memref<1x128xf32, #tpu.memory_space<vmem>>, vector<1x128xf32>
    %6 = vector.broadcast %5 : vector<1x128xf32> to vector<128x128xf32>
    %7 = arith.addf %4, %6 : vector<128x128xf32>
    %c0_6 = arith.constant 0 : index
    %c0_7 = arith.constant 0 : index
    %8 = vector.load %arg4[%c0_6, %c0_7] : memref<128x384xf32, #tpu.memory_space<vmem>>, vector<128x384xf32>
    %cst = arith.constant dense<0.000000e+00> : vector<128x384xf32>
    %9 = tpu.matmul %7, %8, %cst {dimension_numbers = #tpu.dot_dimension_numbers<[1], [0], [0], [1], [0, 0, 1, 1], [], []>} : vector<128x128xf32>, vector<128x384xf32>, vector<128x384xf32> -> vector<128x384xf32>
    %10 = vector.shape_cast %9 : vector<128x384xf32> to vector<2x64x384xf32>
    %11 = vector.extract_strided_slice %10 {offsets = [0, 0, 0], sizes = [2, 64, 16], strides = [1, 1, 1]} : vector<2x64x384xf32> to vector<2x64x16xf32>
    %cst_8 = arith.constant 2.500000e-01 : f32
    %12 = vector.broadcast %cst_8 : f32 to vector<2x64x16xf32>
    %13 = arith.mulf %11, %12 : vector<2x64x16xf32>
    %14 = vector.extract_strided_slice %10 {offsets = [0, 0, 128], sizes = [2, 64, 16], strides = [1, 1, 1]} : vector<2x64x384xf32> to vector<2x64x16xf32>
    %15 = vector.extract_strided_slice %10 {offsets = [0, 0, 256], sizes = [2, 64, 16], strides = [1, 1, 1]} : vector<2x64x384xf32> to vector<2x64x16xf32>
    "tpu.trace_start"() <{level = 10 : i32, message = "bnd,bmd->bnm"}> : () -> ()
    %cst_9 = arith.constant dense<0.000000e+00> : vector<2x64x64xf32>
    %16 = tpu.matmul %13, %14, %cst_9 {dimension_numbers = #tpu.dot_dimension_numbers<[2], [2], [1], [1], [0, 0, 0, 1, 1, 1], [0], [0]>} : vector<2x64x16xf32>, vector<2x64x16xf32>, vector<2x64x64xf32> -> vector<2x64x64xf32>
    "tpu.trace_stop"() : () -> ()
    %cst_10 = arith.constant dense<0xFF800000> : vector<2x64xf32>
    %17 = vector.multi_reduction <maximumf>, %16, %cst_10 [2] : vector<2x64x64xf32> to vector<2x64xf32>
    %18 = vector.shape_cast %17 : vector<2x64xf32> to vector<2x64x1xf32>
    %19 = vector.broadcast %18 : vector<2x64x1xf32> to vector<2x64x64xf32>
    %20 = arith.subf %16, %19 : vector<2x64x64xf32>
    %21 = math.exp %20 : vector<2x64x64xf32>
    %cst_11 = arith.constant dense<0.000000e+00> : vector<2x64xf32>
    %22 = vector.multi_reduction <add>, %21, %cst_11 [2] : vector<2x64x64xf32> to vector<2x64xf32>
    %23 = vector.shape_cast %22 : vector<2x64xf32> to vector<2x64x1xf32>
    %24 = vector.broadcast %23 : vector<2x64x1xf32> to vector<2x64x64xf32>
    %25 = arith.divf %21, %24 : vector<2x64x64xf32>
    "tpu.trace_start"() <{level = 10 : i32, message = "bnm,bmd->bnd"}> : () -> ()
    %cst_12 = arith.constant dense<0.000000e+00> : vector<2x64x16xf32>
    %26 = tpu.matmul %25, %15, %cst_12 {dimension_numbers = #tpu.dot_dimension_numbers<[2], [1], [1], [2], [0, 0, 0, 1, 1, 2], [0], [0]>} : vector<2x64x64xf32>, vector<2x64x16xf32>, vector<2x64x16xf32> -> vector<2x64x16xf32>
    "tpu.trace_stop"() : () -> ()
    %c0_13 = arith.constant 0 : index
    %c0_14 = arith.constant 0 : index
    %c0_15 = arith.constant 0 : index
    %27 = vector.load %arg5[%c0_13, %c0_14, %c0_15] : memref<2x64x128xf32, #tpu.memory_space<vmem>>, vector<2x64x16xf32>
    tpu.vector_store %arg5[%c0_13, %c0_14, %c0_15], %26 {strides = array<i32>} : memref<2x64x128xf32, #tpu.memory_space<vmem>>, vector<2x64x16xf32>,
    %28 = vector.extract_strided_slice %10 {offsets = [0, 0, 16], sizes = [2, 64, 16], strides = [1, 1, 1]} : vector<2x64x384xf32> to vector<2x64x16xf32>
    %cst_16 = arith.constant 2.500000e-01 : f32
    %29 = vector.broadcast %cst_16 : f32 to vector<2x64x16xf32>
    %30 = arith.mulf %28, %29 : vector<2x64x16xf32>
    %31 = vector.extract_strided_slice %10 {offsets = [0, 0, 144], sizes = [2, 64, 16], strides = [1, 1, 1]} : vector<2x64x384xf32> to vector<2x64x16xf32>
    %32 = vector.extract_strided_slice %10 {offsets = [0, 0, 272], sizes = [2, 64, 16], strides = [1, 1, 1]} : vector<2x64x384xf32> to vector<2x64x16xf32>
    "tpu.trace_start"() <{level = 10 : i32, message = "bnd,bmd->bnm"}> : () -> ()
    %cst_17 = arith.constant dense<0.000000e+00> : vector<2x64x64xf32>
    %33 = tpu.matmul %30, %31, %cst_17 {dimension_numbers = #tpu.dot_dimension_numbers<[2], [2], [1], [1], [0, 0, 0, 1, 1, 1], [0], [0]>} : vector<2x64x16xf32>, vector<2x64x16xf32>, vector<2x64x64xf32> -> vector<2x64x64xf32>
    "tpu.trace_stop"() : () -> ()
    %cst_18 = arith.constant dense<0xFF800000> : vector<2x64xf32>
    %34 = vector.multi_reduction <maximumf>, %33, %cst_18 [2] : vector<2x64x64xf32> to vector<2x64xf32>
    %35 = vector.shape_cast %34 : vector<2x64xf32> to vector<2x64x1xf32>
    %36 = vector.broadcast %35 : vector<2x64x1xf32> to vector<2x64x64xf32>
    %37 = arith.subf %33, %36 : vector<2x64x64xf32>
    %38 = math.exp %37 : vector<2x64x64xf32>
    %cst_19 = arith.constant dense<0.000000e+00> : vector<2x64xf32>
    %39 = vector.multi_reduction <add>, %38, %cst_19 [2] : vector<2x64x64xf32> to vector<2x64xf32>
    %40 = vector.shape_cast %39 : vector<2x64xf32> to vector<2x64x1xf32>
    %41 = vector.broadcast %40 : vector<2x64x1xf32> to vector<2x64x64xf32>
    %42 = arith.divf %38, %41 : vector<2x64x64xf32>
    "tpu.trace_start"() <{level = 10 : i32, message = "bnm,bmd->bnd"}> : () -> ()
    %cst_20 = arith.constant dense<0.000000e+00> : vector<2x64x16xf32>
    %43 = tpu.matmul %42, %32, %cst_20 {dimension_numbers = #tpu.dot_dimension_numbers<[2], [1], [1], [2], [0, 0, 0, 1, 1, 2], [0], [0]>} : vector<2x64x64xf32>, vector<2x64x16xf32>, vector<2x64x16xf32> -> vector<2x64x16xf32>
    "tpu.trace_stop"() : () -> ()
    %c0_21 = arith.constant 0 : index
    %c0_22 = arith.constant 0 : index
    %c16 = arith.constant 16 : index
    %44 = vector.load %arg5[%c0_21, %c0_22, %c16] : memref<2x64x128xf32, #tpu.memory_space<vmem>>, vector<2x64x16xf32>
    tpu.vector_store %arg5[%c0_21, %c0_22, %c16], %43 {strides = array<i32>} : memref<2x64x128xf32, #tpu.memory_space<vmem>>, vector<2x64x16xf32>,
    %45 = vector.extract_strided_slice %10 {offsets = [0, 0, 32], sizes = [2, 64, 16], strides = [1, 1, 1]} : vector<2x64x384xf32> to vector<2x64x16xf32>
    %cst_23 = arith.constant 2.500000e-01 : f32
    %46 = vector.broadcast %cst_23 : f32 to vector<2x64x16xf32>
    %47 = arith.mulf %45, %46 : vector<2x64x16xf32>
    %48 = vector.extract_strided_slice %10 {offsets = [0, 0, 160], sizes = [2, 64, 16], strides = [1, 1, 1]} : vector<2x64x384xf32> to vector<2x64x16xf32>
    %49 = vector.extract_strided_slice %10 {offsets = [0, 0, 288], sizes = [2, 64, 16], strides = [1, 1, 1]} : vector<2x64x384xf32> to vector<2x64x16xf32>
    "tpu.trace_start"() <{level = 10 : i32, message = "bnd,bmd->bnm"}> : () -> ()
    %cst_24 = arith.constant dense<0.000000e+00> : vector<2x64x64xf32>
    %50 = tpu.matmul %47, %48, %cst_24 {dimension_numbers = #tpu.dot_dimension_numbers<[2], [2], [1], [1], [0, 0, 0, 1, 1, 1], [0], [0]>} : vector<2x64x16xf32>, vector<2x64x16xf32>, vector<2x64x64xf32> -> vector<2x64x64xf32>
    "tpu.trace_stop"() : () -> ()
    %cst_25 = arith.constant dense<0xFF800000> : vector<2x64xf32>
    %51 = vector.multi_reduction <maximumf>, %50, %cst_25 [2] : vector<2x64x64xf32> to vector<2x64xf32>
    %52 = vector.shape_cast %51 : vector<2x64xf32> to vector<2x64x1xf32>
    %53 = vector.broadcast %52 : vector<2x64x1xf32> to vector<2x64x64xf32>
    %54 = arith.subf %50, %53 : vector<2x64x64xf32>
    %55 = math.exp %54 : vector<2x64x64xf32>
    %cst_26 = arith.constant dense<0.000000e+00> : vector<2x64xf32>
    %56 = vector.multi_reduction <add>, %55, %cst_26 [2] : vector<2x64x64xf32> to vector<2x64xf32>
    %57 = vector.shape_cast %56 : vector<2x64xf32> to vector<2x64x1xf32>
    %58 = vector.broadcast %57 : vector<2x64x1xf32> to vector<2x64x64xf32>
    %59 = arith.divf %55, %58 : vector<2x64x64xf32>
    "tpu.trace_start"() <{level = 10 : i32, message = "bnm,bmd->bnd"}> : () -> ()
    %cst_27 = arith.constant dense<0.000000e+00> : vector<2x64x16xf32>
    %60 = tpu.matmul %59, %49, %cst_27 {dimension_numbers = #tpu.dot_dimension_numbers<[2], [1], [1], [2], [0, 0, 0, 1, 1, 2], [0], [0]>} : vector<2x64x64xf32>, vector<2x64x16xf32>, vector<2x64x16xf32> -> vector<2x64x16xf32>
    "tpu.trace_stop"() : () -> ()
    %c0_28 = arith.constant 0 : index
    %c0_29 = arith.constant 0 : index
    %c32 = arith.constant 32 : index
    %61 = vector.load %arg5[%c0_28, %c0_29, %c32] : memref<2x64x128xf32, #tpu.memory_space<vmem>>, vector<2x64x16xf32>
    tpu.vector_store %arg5[%c0_28, %c0_29, %c32], %60 {strides = array<i32>} : memref<2x64x128xf32, #tpu.memory_space<vmem>>, vector<2x64x16xf32>,
    %62 = vector.extract_strided_slice %10 {offsets = [0, 0, 48], sizes = [2, 64, 16], strides = [1, 1, 1]} : vector<2x64x384xf32> to vector<2x64x16xf32>
    %cst_30 = arith.constant 2.500000e-01 : f32
    %63 = vector.broadcast %cst_30 : f32 to vector<2x64x16xf32>
    %64 = arith.mulf %62, %63 : vector<2x64x16xf32>
    %65 = vector.extract_strided_slice %10 {offsets = [0, 0, 176], sizes = [2, 64, 16], strides = [1, 1, 1]} : vector<2x64x384xf32> to vector<2x64x16xf32>
    %66 = vector.extract_strided_slice %10 {offsets = [0, 0, 304], sizes = [2, 64, 16], strides = [1, 1, 1]} : vector<2x64x384xf32> to vector<2x64x16xf32>
    "tpu.trace_start"() <{level = 10 : i32, message = "bnd,bmd->bnm"}> : () -> ()
    %cst_31 = arith.constant dense<0.000000e+00> : vector<2x64x64xf32>
    %67 = tpu.matmul %64, %65, %cst_31 {dimension_numbers = #tpu.dot_dimension_numbers<[2], [2], [1], [1], [0, 0, 0, 1, 1, 1], [0], [0]>} : vector<2x64x16xf32>, vector<2x64x16xf32>, vector<2x64x64xf32> -> vector<2x64x64xf32>
    "tpu.trace_stop"() : () -> ()
    %cst_32 = arith.constant dense<0xFF800000> : vector<2x64xf32>
    %68 = vector.multi_reduction <maximumf>, %67, %cst_32 [2] : vector<2x64x64xf32> to vector<2x64xf32>
    %69 = vector.shape_cast %68 : vector<2x64xf32> to vector<2x64x1xf32>
    %70 = vector.broadcast %69 : vector<2x64x1xf32> to vector<2x64x64xf32>
    %71 = arith.subf %67, %70 : vector<2x64x64xf32>
    %72 = math.exp %71 : vector<2x64x64xf32>
    %cst_33 = arith.constant dense<0.000000e+00> : vector<2x64xf32>
    %73 = vector.multi_reduction <add>, %72, %cst_33 [2] : vector<2x64x64xf32> to vector<2x64xf32>
    %74 = vector.shape_cast %73 : vector<2x64xf32> to vector<2x64x1xf32>
    %75 = vector.broadcast %74 : vector<2x64x1xf32> to vector<2x64x64xf32>
    %76 = arith.divf %72, %75 : vector<2x64x64xf32>
    "tpu.trace_start"() <{level = 10 : i32, message = "bnm,bmd->bnd"}> : () -> ()
    %cst_34 = arith.constant dense<0.000000e+00> : vector<2x64x16xf32>
    %77 = tpu.matmul %76, %66, %cst_34 {dimension_numbers = #tpu.dot_dimension_numbers<[2], [1], [1], [2], [0, 0, 0, 1, 1, 2], [0], [0]>} : vector<2x64x64xf32>, vector<2x64x16xf32>, vector<2x64x16xf32> -> vector<2x64x16xf32>
    "tpu.trace_stop"() : () -> ()
    %c0_35 = arith.constant 0 : index
    %c0_36 = arith.constant 0 : index
    %c48 = arith.constant 48 : index
    %78 = vector.load %arg5[%c0_35, %c0_36, %c48] : memref<2x64x128xf32, #tpu.memory_space<vmem>>, vector<2x64x16xf32>
    tpu.vector_store %arg5[%c0_35, %c0_36, %c48], %77 {strides = array<i32>} : memref<2x64x128xf32, #tpu.memory_space<vmem>>, vector<2x64x16xf32>,
    %79 = vector.extract_strided_slice %10 {offsets = [0, 0, 64], sizes = [2, 64, 16], strides = [1, 1, 1]} : vector<2x64x384xf32> to vector<2x64x16xf32>
    %cst_37 = arith.constant 2.500000e-01 : f32
    %80 = vector.broadcast %cst_37 : f32 to vector<2x64x16xf32>
    %81 = arith.mulf %79, %80 : vector<2x64x16xf32>
    %82 = vector.extract_strided_slice %10 {offsets = [0, 0, 192], sizes = [2, 64, 16], strides = [1, 1, 1]} : vector<2x64x384xf32> to vector<2x64x16xf32>
    %83 = vector.extract_strided_slice %10 {offsets = [0, 0, 320], sizes = [2, 64, 16], strides = [1, 1, 1]} : vector<2x64x384xf32> to vector<2x64x16xf32>
    "tpu.trace_start"() <{level = 10 : i32, message = "bnd,bmd->bnm"}> : () -> ()
    %cst_38 = arith.constant dense<0.000000e+00> : vector<2x64x64xf32>
    %84 = tpu.matmul %81, %82, %cst_38 {dimension_numbers = #tpu.dot_dimension_numbers<[2], [2], [1], [1], [0, 0, 0, 1, 1, 1], [0], [0]>} : vector<2x64x16xf32>, vector<2x64x16xf32>, vector<2x64x64xf32> -> vector<2x64x64xf32>
    "tpu.trace_stop"() : () -> ()
    %cst_39 = arith.constant dense<0xFF800000> : vector<2x64xf32>
    %85 = vector.multi_reduction <maximumf>, %84, %cst_39 [2] : vector<2x64x64xf32> to vector<2x64xf32>
    %86 = vector.shape_cast %85 : vector<2x64xf32> to vector<2x64x1xf32>
    %87 = vector.broadcast %86 : vector<2x64x1xf32> to vector<2x64x64xf32>
    %88 = arith.subf %84, %87 : vector<2x64x64xf32>
    %89 = math.exp %88 : vector<2x64x64xf32>
    %cst_40 = arith.constant dense<0.000000e+00> : vector<2x64xf32>
    %90 = vector.multi_reduction <add>, %89, %cst_40 [2] : vector<2x64x64xf32> to vector<2x64xf32>
    %91 = vector.shape_cast %90 : vector<2x64xf32> to vector<2x64x1xf32>
    %92 = vector.broadcast %91 : vector<2x64x1xf32> to vector<2x64x64xf32>
    %93 = arith.divf %89, %92 : vector<2x64x64xf32>
    "tpu.trace_start"() <{level = 10 : i32, message = "bnm,bmd->bnd"}> : () -> ()
    %cst_41 = arith.constant dense<0.000000e+00> : vector<2x64x16xf32>
    %94 = tpu.matmul %93, %83, %cst_41 {dimension_numbers = #tpu.dot_dimension_numbers<[2], [1], [1], [2], [0, 0, 0, 1, 1, 2], [0], [0]>} : vector<2x64x64xf32>, vector<2x64x16xf32>, vector<2x64x16xf32> -> vector<2x64x16xf32>
    "tpu.trace_stop"() : () -> ()
    %c0_42 = arith.constant 0 : index
    %c0_43 = arith.constant 0 : index
    %c64 = arith.constant 64 : index
    %95 = vector.load %arg5[%c0_42, %c0_43, %c64] : memref<2x64x128xf32, #tpu.memory_space<vmem>>, vector<2x64x16xf32>
    tpu.vector_store %arg5[%c0_42, %c0_43, %c64], %94 {strides = array<i32>} : memref<2x64x128xf32, #tpu.memory_space<vmem>>, vector<2x64x16xf32>,
    %96 = vector.extract_strided_slice %10 {offsets = [0, 0, 80], sizes = [2, 64, 16], strides = [1, 1, 1]} : vector<2x64x384xf32> to vector<2x64x16xf32>
    %cst_44 = arith.constant 2.500000e-01 : f32
    %97 = vector.broadcast %cst_44 : f32 to vector<2x64x16xf32>
    %98 = arith.mulf %96, %97 : vector<2x64x16xf32>
    %99 = vector.extract_strided_slice %10 {offsets = [0, 0, 208], sizes = [2, 64, 16], strides = [1, 1, 1]} : vector<2x64x384xf32> to vector<2x64x16xf32>
    %100 = vector.extract_strided_slice %10 {offsets = [0, 0, 336], sizes = [2, 64, 16], strides = [1, 1, 1]} : vector<2x64x384xf32> to vector<2x64x16xf32>
    "tpu.trace_start"() <{level = 10 : i32, message = "bnd,bmd->bnm"}> : () -> ()
    %cst_45 = arith.constant dense<0.000000e+00> : vector<2x64x64xf32>
    %101 = tpu.matmul %98, %99, %cst_45 {dimension_numbers = #tpu.dot_dimension_numbers<[2], [2], [1], [1], [0, 0, 0, 1, 1, 1], [0], [0]>} : vector<2x64x16xf32>, vector<2x64x16xf32>, vector<2x64x64xf32> -> vector<2x64x64xf32>
    "tpu.trace_stop"() : () -> ()
    %cst_46 = arith.constant dense<0xFF800000> : vector<2x64xf32>
    %102 = vector.multi_reduction <maximumf>, %101, %cst_46 [2] : vector<2x64x64xf32> to vector<2x64xf32>
    %103 = vector.shape_cast %102 : vector<2x64xf32> to vector<2x64x1xf32>
    %104 = vector.broadcast %103 : vector<2x64x1xf32> to vector<2x64x64xf32>
    %105 = arith.subf %101, %104 : vector<2x64x64xf32>
    %106 = math.exp %105 : vector<2x64x64xf32>
    %cst_47 = arith.constant dense<0.000000e+00> : vector<2x64xf32>
    %107 = vector.multi_reduction <add>, %106, %cst_47 [2] : vector<2x64x64xf32> to vector<2x64xf32>
    %108 = vector.shape_cast %107 : vector<2x64xf32> to vector<2x64x1xf32>
    %109 = vector.broadcast %108 : vector<2x64x1xf32> to vector<2x64x64xf32>
    %110 = arith.divf %106, %109 : vector<2x64x64xf32>
    "tpu.trace_start"() <{level = 10 : i32, message = "bnm,bmd->bnd"}> : () -> ()
    %cst_48 = arith.constant dense<0.000000e+00> : vector<2x64x16xf32>
    %111 = tpu.matmul %110, %100, %cst_48 {dimension_numbers = #tpu.dot_dimension_numbers<[2], [1], [1], [2], [0, 0, 0, 1, 1, 2], [0], [0]>} : vector<2x64x64xf32>, vector<2x64x16xf32>, vector<2x64x16xf32> -> vector<2x64x16xf32>
    "tpu.trace_stop"() : () -> ()
    %c0_49 = arith.constant 0 : index
    %c0_50 = arith.constant 0 : index
    %c80 = arith.constant 80 : index
    %112 = vector.load %arg5[%c0_49, %c0_50, %c80] : memref<2x64x128xf32, #tpu.memory_space<vmem>>, vector<2x64x16xf32>
    tpu.vector_store %arg5[%c0_49, %c0_50, %c80], %111 {strides = array<i32>} : memref<2x64x128xf32, #tpu.memory_space<vmem>>, vector<2x64x16xf32>,
    %113 = vector.extract_strided_slice %10 {offsets = [0, 0, 96], sizes = [2, 64, 16], strides = [1, 1, 1]} : vector<2x64x384xf32> to vector<2x64x16xf32>
    %cst_51 = arith.constant 2.500000e-01 : f32
    %114 = vector.broadcast %cst_51 : f32 to vector<2x64x16xf32>
    %115 = arith.mulf %113, %114 : vector<2x64x16xf32>
    %116 = vector.extract_strided_slice %10 {offsets = [0, 0, 224], sizes = [2, 64, 16], strides = [1, 1, 1]} : vector<2x64x384xf32> to vector<2x64x16xf32>
    %117 = vector.extract_strided_slice %10 {offsets = [0, 0, 352], sizes = [2, 64, 16], strides = [1, 1, 1]} : vector<2x64x384xf32> to vector<2x64x16xf32>
    "tpu.trace_start"() <{level = 10 : i32, message = "bnd,bmd->bnm"}> : () -> ()
    %cst_52 = arith.constant dense<0.000000e+00> : vector<2x64x64xf32>
    %118 = tpu.matmul %115, %116, %cst_52 {dimension_numbers = #tpu.dot_dimension_numbers<[2], [2], [1], [1], [0, 0, 0, 1, 1, 1], [0], [0]>} : vector<2x64x16xf32>, vector<2x64x16xf32>, vector<2x64x64xf32> -> vector<2x64x64xf32>
    "tpu.trace_stop"() : () -> ()
    %cst_53 = arith.constant dense<0xFF800000> : vector<2x64xf32>
    %119 = vector.multi_reduction <maximumf>, %118, %cst_53 [2] : vector<2x64x64xf32> to vector<2x64xf32>
    %120 = vector.shape_cast %119 : vector<2x64xf32> to vector<2x64x1xf32>
    %121 = vector.broadcast %120 : vector<2x64x1xf32> to vector<2x64x64xf32>
    %122 = arith.subf %118, %121 : vector<2x64x64xf32>
    %123 = math.exp %122 : vector<2x64x64xf32>
    %cst_54 = arith.constant dense<0.000000e+00> : vector<2x64xf32>
    %124 = vector.multi_reduction <add>, %123, %cst_54 [2] : vector<2x64x64xf32> to vector<2x64xf32>
    %125 = vector.shape_cast %124 : vector<2x64xf32> to vector<2x64x1xf32>
    %126 = vector.broadcast %125 : vector<2x64x1xf32> to vector<2x64x64xf32>
    %127 = arith.divf %123, %126 : vector<2x64x64xf32>
    "tpu.trace_start"() <{level = 10 : i32, message = "bnm,bmd->bnd"}> : () -> ()
    %cst_55 = arith.constant dense<0.000000e+00> : vector<2x64x16xf32>
    %128 = tpu.matmul %127, %117, %cst_55 {dimension_numbers = #tpu.dot_dimension_numbers<[2], [1], [1], [2], [0, 0, 0, 1, 1, 2], [0], [0]>} : vector<2x64x64xf32>, vector<2x64x16xf32>, vector<2x64x16xf32> -> vector<2x64x16xf32>
    "tpu.trace_stop"() : () -> ()
    %c0_56 = arith.constant 0 : index
    %c0_57 = arith.constant 0 : index
    %c96 = arith.constant 96 : index
    %129 = vector.load %arg5[%c0_56, %c0_57, %c96] : memref<2x64x128xf32, #tpu.memory_space<vmem>>, vector<2x64x16xf32>
    tpu.vector_store %arg5[%c0_56, %c0_57, %c96], %128 {strides = array<i32>} : memref<2x64x128xf32, #tpu.memory_space<vmem>>, vector<2x64x16xf32>,
    %130 = vector.extract_strided_slice %10 {offsets = [0, 0, 112], sizes = [2, 64, 16], strides = [1, 1, 1]} : vector<2x64x384xf32> to vector<2x64x16xf32>
    %cst_58 = arith.constant 2.500000e-01 : f32
    %131 = vector.broadcast %cst_58 : f32 to vector<2x64x16xf32>
    %132 = arith.mulf %130, %131 : vector<2x64x16xf32>
    %133 = vector.extract_strided_slice %10 {offsets = [0, 0, 240], sizes = [2, 64, 16], strides = [1, 1, 1]} : vector<2x64x384xf32> to vector<2x64x16xf32>
    %134 = vector.extract_strided_slice %10 {offsets = [0, 0, 368], sizes = [2, 64, 16], strides = [1, 1, 1]} : vector<2x64x384xf32> to vector<2x64x16xf32>
    "tpu.trace_start"() <{level = 10 : i32, message = "bnd,bmd->bnm"}> : () -> ()
    %cst_59 = arith.constant dense<0.000000e+00> : vector<2x64x64xf32>
    %135 = tpu.matmul %132, %133, %cst_59 {dimension_numbers = #tpu.dot_dimension_numbers<[2], [2], [1], [1], [0, 0, 0, 1, 1, 1], [0], [0]>} : vector<2x64x16xf32>, vector<2x64x16xf32>, vector<2x64x64xf32> -> vector<2x64x64xf32>
    "tpu.trace_stop"() : () -> ()
    %cst_60 = arith.constant dense<0xFF800000> : vector<2x64xf32>
    %136 = vector.multi_reduction <maximumf>, %135, %cst_60 [2] : vector<2x64x64xf32> to vector<2x64xf32>
    %137 = vector.shape_cast %136 : vector<2x64xf32> to vector<2x64x1xf32>
    %138 = vector.broadcast %137 : vector<2x64x1xf32> to vector<2x64x64xf32>
    %139 = arith.subf %135, %138 : vector<2x64x64xf32>
    %140 = math.exp %139 : vector<2x64x64xf32>
    %cst_61 = arith.constant dense<0.000000e+00> : vector<2x64xf32>
    %141 = vector.multi_reduction <add>, %140, %cst_61 [2] : vector<2x64x64xf32> to vector<2x64xf32>
    %142 = vector.shape_cast %141 : vector<2x64xf32> to vector<2x64x1xf32>
    %143 = vector.broadcast %142 : vector<2x64x1xf32> to vector<2x64x64xf32>
    %144 = arith.divf %140, %143 : vector<2x64x64xf32>
    "tpu.trace_start"() <{level = 10 : i32, message = "bnm,bmd->bnd"}> : () -> ()
    %cst_62 = arith.constant dense<0.000000e+00> : vector<2x64x16xf32>
    %145 = tpu.matmul %144, %134, %cst_62 {dimension_numbers = #tpu.dot_dimension_numbers<[2], [1], [1], [2], [0, 0, 0, 1, 1, 2], [0], [0]>} : vector<2x64x64xf32>, vector<2x64x16xf32>, vector<2x64x16xf32> -> vector<2x64x16xf32>
    "tpu.trace_stop"() : () -> ()
    %c0_63 = arith.constant 0 : index
    %c0_64 = arith.constant 0 : index
    %c112 = arith.constant 112 : index
    %146 = vector.load %arg5[%c0_63, %c0_64, %c112] : memref<2x64x128xf32, #tpu.memory_space<vmem>>, vector<2x64x16xf32>
    tpu.vector_store %arg5[%c0_63, %c0_64, %c112], %145 {strides = array<i32>} : memref<2x64x128xf32, #tpu.memory_space<vmem>>, vector<2x64x16xf32>,
    return
  }
  func.func @transform_0(%arg0: i32) -> (i32, i32, i32) {
    %c0_i32 = arith.constant 0 : i32
    %c0_i32_0 = arith.constant 0 : i32
    %c0_i32_1 = arith.constant 0 : i32
    return %arg0, %c0_i32, %c0_i32_0 : i32, i32, i32
  }
  func.func @transform_1(%arg0: i32) -> (i32, i32) {
    %c0_i32 = arith.constant 0 : i32
    %c0_i32_0 = arith.constant 0 : i32
    %c0_i32_1 = arith.constant 0 : i32
    return %c0_i32, %c0_i32_0 : i32, i32
  }
  func.func @transform_2(%arg0: i32) -> (i32, i32) {
    %c0_i32 = arith.constant 0 : i32
    %c0_i32_0 = arith.constant 0 : i32
    %c0_i32_1 = arith.constant 0 : i32
    return %c0_i32, %c0_i32_0 : i32, i32
  }
  func.func @transform_3(%arg0: i32) -> (i32, i32) {
    %c0_i32 = arith.constant 0 : i32
    %c0_i32_0 = arith.constant 0 : i32
    %c0_i32_1 = arith.constant 0 : i32
    return %c0_i32, %c0_i32_0 : i32, i32
  }
  func.func @transform_4(%arg0: i32) -> (i32, i32, i32) {
    %c0_i32 = arith.constant 0 : i32
    %c0_i32_0 = arith.constant 0 : i32
    %c0_i32_1 = arith.constant 0 : i32
    return %arg0, %c0_i32, %c0_i32_0 : i32, i32, i32
  }
}

module attributes {stable_mosaic.version = 11 : i64} {
  func.func @_combine_kernel(%arg0: i32, %arg1: memref<128x128xf32, #tpu.memory_space<vmem>>, %arg2: memref<1x128xf32, #tpu.memory_space<vmem>>, %arg3: memref<1x128xf32, #tpu.memory_space<vmem>>, %arg4: memref<128x128xf32, #tpu.memory_space<vmem>>, %arg5: memref<128x128xf32, #tpu.memory_space<vmem>>, %arg6: memref<1x128xf32, #tpu.memory_space<vmem>>, %arg7: memref<128x128xf32, #tpu.memory_space<vmem>>, %arg8: memref<1x2x128xf32, #tpu.memory_space<vmem>>) attributes {dimension_semantics = [#tpu.dimension_semantics<parallel>], iteration_bounds = array<i64: 2>, scalar_prefetch = 0 : i64, scratch_operands = 0 : i64, tpu.core_type = #tpu.core_type<tc>, window_params = [{transform_indices = @transform_0, window_bounds = array<i64: 128, 128>}, {pipeline_mode = #tpu.pipeline_mode<synchronous>, transform_indices = @transform_1, window_bounds = array<i64: 1, 128>}, {pipeline_mode = #tpu.pipeline_mode<synchronous>, transform_indices = @transform_2, window_bounds = array<i64: 1, 128>}, {transform_indices = @transform_3, window_bounds = array<i64: 128, 128>}, {pipeline_mode = #tpu.pipeline_mode<synchronous>, transform_indices = @transform_4, window_bounds = array<i64: 128, 128>}, {pipeline_mode = #tpu.pipeline_mode<synchronous>, transform_indices = @transform_5, window_bounds = array<i64: 1, 128>}, {transform_indices = @transform_6, window_bounds = array<i64: 128, 128>}, {transform_indices = @transform_7, window_bounds = array<i64: 1, 2, 128>}]} {
    %c0 = arith.constant 0 : index
    %c0_0 = arith.constant 0 : index
    %0 = vector.load %arg1[%c0, %c0_0] : memref<128x128xf32, #tpu.memory_space<vmem>>, vector<128x128xf32>
    %c0_1 = arith.constant 0 : index
    %c0_2 = arith.constant 0 : index
    %1 = vector.load %arg2[%c0_1, %c0_2] : memref<1x128xf32, #tpu.memory_space<vmem>>, vector<1x128xf32>
    %2 = vector.broadcast %1 : vector<1x128xf32> to vector<128x128xf32>
    %3 = arith.mulf %0, %2 : vector<128x128xf32>
    %c0_3 = arith.constant 0 : index
    %c0_4 = arith.constant 0 : index
    %4 = vector.load %arg3[%c0_3, %c0_4] : memref<1x128xf32, #tpu.memory_space<vmem>>, vector<1x128xf32>
    %5 = vector.broadcast %4 : vector<1x128xf32> to vector<128x128xf32>
    %6 = arith.addf %3, %5 : vector<128x128xf32>
    %c0_5 = arith.constant 0 : index
    %c0_6 = arith.constant 0 : index
    %7 = vector.load %arg4[%c0_5, %c0_6] : memref<128x128xf32, #tpu.memory_space<vmem>>, vector<128x128xf32>
    %c0_7 = arith.constant 0 : index
    %c0_8 = arith.constant 0 : index
    %8 = vector.load %arg5[%c0_7, %c0_8] : memref<128x128xf32, #tpu.memory_space<vmem>>, vector<128x128xf32>
    %cst = arith.constant dense<0.000000e+00> : vector<128x128xf32>
    %9 = tpu.matmul %7, %8, %cst {dimension_numbers = #tpu.dot_dimension_numbers<[1], [0], [0], [1], [0, 0, 1, 1], [], []>} : vector<128x128xf32>, vector<128x128xf32>, vector<128x128xf32> -> vector<128x128xf32>
    %c0_9 = arith.constant 0 : index
    %c0_10 = arith.constant 0 : index
    %10 = vector.load %arg6[%c0_9, %c0_10] : memref<1x128xf32, #tpu.memory_space<vmem>>, vector<1x128xf32>
    %11 = vector.broadcast %10 : vector<1x128xf32> to vector<128x128xf32>
    %12 = arith.addf %9, %11 : vector<128x128xf32>
    %13 = arith.addf %6, %12 : vector<128x128xf32>
    %c0_11 = arith.constant 0 : index
    %c0_12 = arith.constant 0 : index
    %14 = vector.load %arg7[%c0_11, %c0_12] : memref<128x128xf32, #tpu.memory_space<vmem>>, vector<128x128xf32>
    tpu.vector_store %arg7[%c0_11, %c0_12], %13 {strides = array<i32>} : memref<128x128xf32, #tpu.memory_space<vmem>>, vector<128x128xf32>,
    %cst_13 = arith.constant dense<0.000000e+00> : vector<128xf32>
    %15 = vector.multi_reduction <add>, %13, %cst_13 [0] : vector<128x128xf32> to vector<128xf32>
    %16 = vector.shape_cast %15 : vector<128xf32> to vector<1x128xf32>
    %c0_14 = arith.constant 0 : index
    %c0_15 = arith.constant 0 : index
    %c0_16 = arith.constant 0 : index
    %17 = vector.load %arg8[%c0_14, %c0_15, %c0_16] : memref<1x2x128xf32, #tpu.memory_space<vmem>>, vector<1x1x128xf32>
    %18 = vector.shape_cast %17 : vector<1x1x128xf32> to vector<1x128xf32>
    %19 = vector.shape_cast %16 : vector<1x128xf32> to vector<1x1x128xf32>
    tpu.vector_store %arg8[%c0_14, %c0_15, %c0_16], %19 {strides = array<i32>} : memref<1x2x128xf32, #tpu.memory_space<vmem>>, vector<1x1x128xf32>,
    %20 = arith.mulf %13, %13 : vector<128x128xf32>
    %cst_17 = arith.constant dense<0.000000e+00> : vector<128xf32>
    %21 = vector.multi_reduction <add>, %20, %cst_17 [0] : vector<128x128xf32> to vector<128xf32>
    %22 = vector.shape_cast %21 : vector<128xf32> to vector<1x128xf32>
    %c0_18 = arith.constant 0 : index
    %c1 = arith.constant 1 : index
    %c0_19 = arith.constant 0 : index
    %23 = vector.load %arg8[%c0_18, %c1, %c0_19] : memref<1x2x128xf32, #tpu.memory_space<vmem>>, vector<1x1x128xf32>
    %24 = vector.shape_cast %23 : vector<1x1x128xf32> to vector<1x128xf32>
    %25 = vector.shape_cast %22 : vector<1x128xf32> to vector<1x1x128xf32>
    tpu.vector_store %arg8[%c0_18, %c1, %c0_19], %25 {strides = array<i32>} : memref<1x2x128xf32, #tpu.memory_space<vmem>>, vector<1x1x128xf32>,
    return
  }
  func.func @transform_0(%arg0: i32) -> (i32, i32) {
    %c0_i32 = arith.constant 0 : i32
    %c0_i32_0 = arith.constant 0 : i32
    return %arg0, %c0_i32 : i32, i32
  }
  func.func @transform_1(%arg0: i32) -> (i32, i32) {
    %c0_i32 = arith.constant 0 : i32
    %c0_i32_0 = arith.constant 0 : i32
    %c0_i32_1 = arith.constant 0 : i32
    return %c0_i32, %c0_i32_0 : i32, i32
  }
  func.func @transform_2(%arg0: i32) -> (i32, i32) {
    %c0_i32 = arith.constant 0 : i32
    %c0_i32_0 = arith.constant 0 : i32
    %c0_i32_1 = arith.constant 0 : i32
    return %c0_i32, %c0_i32_0 : i32, i32
  }
  func.func @transform_3(%arg0: i32) -> (i32, i32) {
    %c0_i32 = arith.constant 0 : i32
    %c0_i32_0 = arith.constant 0 : i32
    return %arg0, %c0_i32 : i32, i32
  }
  func.func @transform_4(%arg0: i32) -> (i32, i32) {
    %c0_i32 = arith.constant 0 : i32
    %c0_i32_0 = arith.constant 0 : i32
    %c0_i32_1 = arith.constant 0 : i32
    return %c0_i32, %c0_i32_0 : i32, i32
  }
  func.func @transform_5(%arg0: i32) -> (i32, i32) {
    %c0_i32 = arith.constant 0 : i32
    %c0_i32_0 = arith.constant 0 : i32
    %c0_i32_1 = arith.constant 0 : i32
    return %c0_i32, %c0_i32_0 : i32, i32
  }
  func.func @transform_6(%arg0: i32) -> (i32, i32) {
    %c0_i32 = arith.constant 0 : i32
    %c0_i32_0 = arith.constant 0 : i32
    return %arg0, %c0_i32 : i32, i32
  }
  func.func @transform_7(%arg0: i32) -> (i32, i32, i32) {
    %c0_i32 = arith.constant 0 : i32
    %c0_i32_0 = arith.constant 0 : i32
    %c0_i32_1 = arith.constant 0 : i32
    return %arg0, %c0_i32, %c0_i32_0 : i32, i32, i32
  }
}

module attributes {stable_mosaic.version = 11 : i64} {
  func.func @_bn_ff_kernel(%arg0: i32, %arg1: memref<128x128xf32, #tpu.memory_space<vmem>>, %arg2: memref<1x128xf32, #tpu.memory_space<vmem>>, %arg3: memref<1x128xf32, #tpu.memory_space<vmem>>, %arg4: memref<128x512xf32, #tpu.memory_space<vmem>>, %arg5: memref<1x512xf32, #tpu.memory_space<vmem>>, %arg6: memref<512x128xf32, #tpu.memory_space<vmem>>, %arg7: memref<1x128xf32, #tpu.memory_space<vmem>>, %arg8: memref<128x128xf32, #tpu.memory_space<vmem>>, %arg9: memref<1x2x128xf32, #tpu.memory_space<vmem>>) attributes {dimension_semantics = [#tpu.dimension_semantics<parallel>], iteration_bounds = array<i64: 2>, scalar_prefetch = 0 : i64, scratch_operands = 0 : i64, tpu.core_type = #tpu.core_type<tc>, window_params = [{transform_indices = @transform_0, window_bounds = array<i64: 128, 128>}, {pipeline_mode = #tpu.pipeline_mode<synchronous>, transform_indices = @transform_1, window_bounds = array<i64: 1, 128>}, {pipeline_mode = #tpu.pipeline_mode<synchronous>, transform_indices = @transform_2, window_bounds = array<i64: 1, 128>}, {pipeline_mode = #tpu.pipeline_mode<synchronous>, transform_indices = @transform_3, window_bounds = array<i64: 128, 512>}, {pipeline_mode = #tpu.pipeline_mode<synchronous>, transform_indices = @transform_4, window_bounds = array<i64: 1, 512>}, {pipeline_mode = #tpu.pipeline_mode<synchronous>, transform_indices = @transform_5, window_bounds = array<i64: 512, 128>}, {pipeline_mode = #tpu.pipeline_mode<synchronous>, transform_indices = @transform_6, window_bounds = array<i64: 1, 128>}, {transform_indices = @transform_7, window_bounds = array<i64: 128, 128>}, {transform_indices = @transform_8, window_bounds = array<i64: 1, 2, 128>}]} {
    %c0 = arith.constant 0 : index
    %c0_0 = arith.constant 0 : index
    %0 = vector.load %arg1[%c0, %c0_0] : memref<128x128xf32, #tpu.memory_space<vmem>>, vector<128x128xf32>
    %c0_1 = arith.constant 0 : index
    %c0_2 = arith.constant 0 : index
    %1 = vector.load %arg2[%c0_1, %c0_2] : memref<1x128xf32, #tpu.memory_space<vmem>>, vector<1x128xf32>
    %2 = vector.broadcast %1 : vector<1x128xf32> to vector<128x128xf32>
    %3 = arith.mulf %0, %2 : vector<128x128xf32>
    %c0_3 = arith.constant 0 : index
    %c0_4 = arith.constant 0 : index
    %4 = vector.load %arg3[%c0_3, %c0_4] : memref<1x128xf32, #tpu.memory_space<vmem>>, vector<1x128xf32>
    %5 = vector.broadcast %4 : vector<1x128xf32> to vector<128x128xf32>
    %6 = arith.addf %3, %5 : vector<128x128xf32>
    %c0_5 = arith.constant 0 : index
    %c0_6 = arith.constant 0 : index
    %7 = vector.load %arg4[%c0_5, %c0_6] : memref<128x512xf32, #tpu.memory_space<vmem>>, vector<128x512xf32>
    %cst = arith.constant dense<0.000000e+00> : vector<128x512xf32>
    %8 = tpu.matmul %6, %7, %cst {dimension_numbers = #tpu.dot_dimension_numbers<[1], [0], [0], [1], [0, 0, 1, 1], [], []>} : vector<128x128xf32>, vector<128x512xf32>, vector<128x512xf32> -> vector<128x512xf32>
    %c0_7 = arith.constant 0 : index
    %c0_8 = arith.constant 0 : index
    %9 = vector.load %arg5[%c0_7, %c0_8] : memref<1x512xf32, #tpu.memory_space<vmem>>, vector<1x512xf32>
    %10 = vector.broadcast %9 : vector<1x512xf32> to vector<128x512xf32>
    %11 = arith.addf %8, %10 : vector<128x512xf32>
    %cst_9 = arith.constant 0.000000e+00 : f32
    %12 = vector.broadcast %cst_9 : f32 to vector<128x512xf32>
    %13 = arith.maximumf %11, %12 : vector<128x512xf32>
    %c0_10 = arith.constant 0 : index
    %c0_11 = arith.constant 0 : index
    %14 = vector.load %arg6[%c0_10, %c0_11] : memref<512x128xf32, #tpu.memory_space<vmem>>, vector<512x128xf32>
    %cst_12 = arith.constant dense<0.000000e+00> : vector<128x128xf32>
    %15 = tpu.matmul %13, %14, %cst_12 {dimension_numbers = #tpu.dot_dimension_numbers<[1], [0], [0], [1], [0, 0, 1, 1], [], []>} : vector<128x512xf32>, vector<512x128xf32>, vector<128x128xf32> -> vector<128x128xf32>
    %c0_13 = arith.constant 0 : index
    %c0_14 = arith.constant 0 : index
    %16 = vector.load %arg7[%c0_13, %c0_14] : memref<1x128xf32, #tpu.memory_space<vmem>>, vector<1x128xf32>
    %17 = vector.broadcast %16 : vector<1x128xf32> to vector<128x128xf32>
    %18 = arith.addf %15, %17 : vector<128x128xf32>
    %19 = arith.addf %6, %18 : vector<128x128xf32>
    %c0_15 = arith.constant 0 : index
    %c0_16 = arith.constant 0 : index
    %20 = vector.load %arg8[%c0_15, %c0_16] : memref<128x128xf32, #tpu.memory_space<vmem>>, vector<128x128xf32>
    tpu.vector_store %arg8[%c0_15, %c0_16], %19 {strides = array<i32>} : memref<128x128xf32, #tpu.memory_space<vmem>>, vector<128x128xf32>,
    %cst_17 = arith.constant dense<0.000000e+00> : vector<128xf32>
    %21 = vector.multi_reduction <add>, %19, %cst_17 [0] : vector<128x128xf32> to vector<128xf32>
    %22 = vector.shape_cast %21 : vector<128xf32> to vector<1x128xf32>
    %c0_18 = arith.constant 0 : index
    %c0_19 = arith.constant 0 : index
    %c0_20 = arith.constant 0 : index
    %23 = vector.load %arg9[%c0_18, %c0_19, %c0_20] : memref<1x2x128xf32, #tpu.memory_space<vmem>>, vector<1x1x128xf32>
    %24 = vector.shape_cast %23 : vector<1x1x128xf32> to vector<1x128xf32>
    %25 = vector.shape_cast %22 : vector<1x128xf32> to vector<1x1x128xf32>
    tpu.vector_store %arg9[%c0_18, %c0_19, %c0_20], %25 {strides = array<i32>} : memref<1x2x128xf32, #tpu.memory_space<vmem>>, vector<1x1x128xf32>,
    %26 = arith.mulf %19, %19 : vector<128x128xf32>
    %cst_21 = arith.constant dense<0.000000e+00> : vector<128xf32>
    %27 = vector.multi_reduction <add>, %26, %cst_21 [0] : vector<128x128xf32> to vector<128xf32>
    %28 = vector.shape_cast %27 : vector<128xf32> to vector<1x128xf32>
    %c0_22 = arith.constant 0 : index
    %c1 = arith.constant 1 : index
    %c0_23 = arith.constant 0 : index
    %29 = vector.load %arg9[%c0_22, %c1, %c0_23] : memref<1x2x128xf32, #tpu.memory_space<vmem>>, vector<1x1x128xf32>
    %30 = vector.shape_cast %29 : vector<1x1x128xf32> to vector<1x128xf32>
    %31 = vector.shape_cast %28 : vector<1x128xf32> to vector<1x1x128xf32>
    tpu.vector_store %arg9[%c0_22, %c1, %c0_23], %31 {strides = array<i32>} : memref<1x2x128xf32, #tpu.memory_space<vmem>>, vector<1x1x128xf32>,
    return
  }
  func.func @transform_0(%arg0: i32) -> (i32, i32) {
    %c0_i32 = arith.constant 0 : i32
    %c0_i32_0 = arith.constant 0 : i32
    return %arg0, %c0_i32 : i32, i32
  }
  func.func @transform_1(%arg0: i32) -> (i32, i32) {
    %c0_i32 = arith.constant 0 : i32
    %c0_i32_0 = arith.constant 0 : i32
    %c0_i32_1 = arith.constant 0 : i32
    return %c0_i32, %c0_i32_0 : i32, i32
  }
  func.func @transform_2(%arg0: i32) -> (i32, i32) {
    %c0_i32 = arith.constant 0 : i32
    %c0_i32_0 = arith.constant 0 : i32
    %c0_i32_1 = arith.constant 0 : i32
    return %c0_i32, %c0_i32_0 : i32, i32
  }
  func.func @transform_3(%arg0: i32) -> (i32, i32) {
    %c0_i32 = arith.constant 0 : i32
    %c0_i32_0 = arith.constant 0 : i32
    %c0_i32_1 = arith.constant 0 : i32
    return %c0_i32, %c0_i32_0 : i32, i32
  }
  func.func @transform_4(%arg0: i32) -> (i32, i32) {
    %c0_i32 = arith.constant 0 : i32
    %c0_i32_0 = arith.constant 0 : i32
    %c0_i32_1 = arith.constant 0 : i32
    return %c0_i32, %c0_i32_0 : i32, i32
  }
  func.func @transform_5(%arg0: i32) -> (i32, i32) {
    %c0_i32 = arith.constant 0 : i32
    %c0_i32_0 = arith.constant 0 : i32
    %c0_i32_1 = arith.constant 0 : i32
    return %c0_i32, %c0_i32_0 : i32, i32
  }
  func.func @transform_6(%arg0: i32) -> (i32, i32) {
    %c0_i32 = arith.constant 0 : i32
    %c0_i32_0 = arith.constant 0 : i32
    %c0_i32_1 = arith.constant 0 : i32
    return %c0_i32, %c0_i32_0 : i32, i32
  }
  func.func @transform_7(%arg0: i32) -> (i32, i32) {
    %c0_i32 = arith.constant 0 : i32
    %c0_i32_0 = arith.constant 0 : i32
    return %arg0, %c0_i32 : i32, i32
  }
  func.func @transform_8(%arg0: i32) -> (i32, i32, i32) {
    %c0_i32 = arith.constant 0 : i32
    %c0_i32_0 = arith.constant 0 : i32
    %c0_i32_1 = arith.constant 0 : i32
    return %arg0, %c0_i32, %c0_i32_0 : i32, i32, i32
  }
}

module attributes {stable_mosaic.version = 11 : i64} {
  func.func @_bn_apply_kernel(%arg0: i32, %arg1: memref<128x128xf32, #tpu.memory_space<vmem>>, %arg2: memref<1x128xf32, #tpu.memory_space<vmem>>, %arg3: memref<1x128xf32, #tpu.memory_space<vmem>>, %arg4: memref<128x128xf32, #tpu.memory_space<vmem>>) attributes {dimension_semantics = [#tpu.dimension_semantics<parallel>], iteration_bounds = array<i64: 2>, scalar_prefetch = 0 : i64, scratch_operands = 0 : i64, tpu.core_type = #tpu.core_type<tc>, window_params = [{transform_indices = @transform_0, window_bounds = array<i64: 128, 128>}, {pipeline_mode = #tpu.pipeline_mode<synchronous>, transform_indices = @transform_1, window_bounds = array<i64: 1, 128>}, {pipeline_mode = #tpu.pipeline_mode<synchronous>, transform_indices = @transform_2, window_bounds = array<i64: 1, 128>}, {transform_indices = @transform_3, window_bounds = array<i64: 128, 128>}]} {
    %c0 = arith.constant 0 : index
    %c0_0 = arith.constant 0 : index
    %0 = vector.load %arg1[%c0, %c0_0] : memref<128x128xf32, #tpu.memory_space<vmem>>, vector<128x128xf32>
    %c0_1 = arith.constant 0 : index
    %c0_2 = arith.constant 0 : index
    %1 = vector.load %arg2[%c0_1, %c0_2] : memref<1x128xf32, #tpu.memory_space<vmem>>, vector<1x128xf32>
    %2 = vector.broadcast %1 : vector<1x128xf32> to vector<128x128xf32>
    %3 = arith.mulf %0, %2 : vector<128x128xf32>
    %c0_3 = arith.constant 0 : index
    %c0_4 = arith.constant 0 : index
    %4 = vector.load %arg3[%c0_3, %c0_4] : memref<1x128xf32, #tpu.memory_space<vmem>>, vector<1x128xf32>
    %5 = vector.broadcast %4 : vector<1x128xf32> to vector<128x128xf32>
    %6 = arith.addf %3, %5 : vector<128x128xf32>
    %c0_5 = arith.constant 0 : index
    %c0_6 = arith.constant 0 : index
    %7 = vector.load %arg4[%c0_5, %c0_6] : memref<128x128xf32, #tpu.memory_space<vmem>>, vector<128x128xf32>
    tpu.vector_store %arg4[%c0_5, %c0_6], %6 {strides = array<i32>} : memref<128x128xf32, #tpu.memory_space<vmem>>, vector<128x128xf32>,
    return
  }
  func.func @transform_0(%arg0: i32) -> (i32, i32) {
    %c0_i32 = arith.constant 0 : i32
    %c0_i32_0 = arith.constant 0 : i32
    return %arg0, %c0_i32 : i32, i32
  }
  func.func @transform_1(%arg0: i32) -> (i32, i32) {
    %c0_i32 = arith.constant 0 : i32
    %c0_i32_0 = arith.constant 0 : i32
    %c0_i32_1 = arith.constant 0 : i32
    return %c0_i32, %c0_i32_0 : i32, i32
  }
  func.func @transform_2(%arg0: i32) -> (i32, i32) {
    %c0_i32 = arith.constant 0 : i32
    %c0_i32_0 = arith.constant 0 : i32
    %c0_i32_1 = arith.constant 0 : i32
    return %c0_i32, %c0_i32_0 : i32, i32
  }
  func.func @transform_3(%arg0: i32) -> (i32, i32) {
    %c0_i32 = arith.constant 0 : i32
    %c0_i32_0 = arith.constant 0 : i32
    return %arg0, %c0_i32 : i32, i32
  }
}

</mosaic_0001>

<llo_original>
// kernel: encoder_forward.11
$region0: #{encoder_forward.11}
  #allocation0 [shape = 'u32[]', space=smem, size = 0x4, offset = 0x4, fixed_abs, tag = 'smem constant byte address 0x4 - core index']
  #allocation1 [shape = 'u32[144,128]{1,0:T(1,128)}', space=vmem, size = 0x12000, scoped, tag = 'internal scratch']
  %s0 = inlined_call_operand.vmem [shape: f32[256,2], index: 0, kind: input, shape index: {}]
  %s1 = inlined_call_operand.hbm [shape: f32[2,128], index: 1, kind: input, shape index: {}]
  %s2 = inlined_call_operand.vmem [shape: f32[1,128], index: 2, kind: input, shape index: {}]
  %s3 = inlined_call_operand.vmem [shape: f32[256,128], index: 3, kind: output, shape index: {}]
  %s4 = sld [smem:[#allocation0]]
  $region49: #{encoder_forward.11} parent=0
    _
  %s6 = ssub.s32 1, %s4
  %s7 = scalar_select 0, %s6, %s4
  $region1: #{encoder_forward.11} parent=0
    #allocation2 [shape = 'u8[1024]{0}', space=vmem, size = 0x400, scoped, tag = 'input window, operand 1, single buffered']
    #allocation3 [shape = 's32[2]{0}', space=sflag, size = 0x8, scoped, tag = 'scoped memory for encoder_forward.11']
    %8 = vsyncpa [#allocation3], 0
    loop: start=0, step=1, limit=4
    $region2: #{encoder_forward.11} parent=1 // loop_pre_header
      _
    $region3: #{encoder_forward.11} parent=1 // loop_header
      %s10 = sphi 0, %s14
      %p11 = scmp.ge.s32.totalorder %s10, 4
      %s20 = sphi 0, %s22
      %s23 = sphi 0, %s20
      %s24 = sphi 0, %s23
      %s40 = sphi 0, %s24
      %s44 = sphi 0, %s44
      %s46 = sphi 0, %s44
      %s47 = sphi 0, %s46
      %s61 = sphi 0, %s47
      %s65 = sphi 0, %s65
      %s67 = sphi 0, %s65
      %s68 = sphi 0, %s67
      %s82 = sphi 0, %s68
      %s88 = sphi 0, %s90
      %s91 = sphi 0, %s88
      %s92 = sphi 0, %s91
      %s108 = sphi 0, %s92
    $region4: #{encoder_forward.11} parent=1 // loop_header_branch
      %13 = sbr.rel (%p11) target = $region8
    $region5: #{encoder_forward.11} parent=1 // loop_body
      %s15 = ssub.s32 %s10, 1
      %s16 = ssub.s32 %s10, 2
      %s17 = sadd.s32 %s10, 1
      %s18 = ssub.s32 %s10, %s17
      %p19 = scmp.eq.s32.totalorder %s18, 0
      %s21 = sadd.s32 %s20, 1
      %s22 = scalar_select %p19, %s20, %s21
      %p25 = pneg %p19
      %p26 = scmp.eq.s32.totalorder %s10, 1
      %p27 = por %p25, %p26
      %p28 = scmp.ne.s32.totalorder %s20, %s23
      %p29 = scmp.eq.s32.totalorder %s10, 0
      %p30 = por %p28, %p29
      %p31 = scmp.ne.s32.totalorder %s20, %s23
      %p32 = scmp.eq.s32.totalorder %s15, 1
      %p33 = por %p31, %p32
      %p34 = scmp.ne.s32.totalorder %s23, %s24
      %p35 = scmp.eq.s32.totalorder %s15, 0
      %p36 = por %p34, %p35
      %p37 = scmp.ne.s32.totalorder %s23, %s24
      %p38 = scmp.eq.s32.totalorder %s16, 1
      %p39 = por %p37, %p38
      %p41 = scmp.ne.s32.totalorder %s24, %s40
      %p42 = scmp.eq.s32.totalorder %s16, 0
      %p43 = por %p41, %p42
      %s45 = sadd.s32 %s44, 1
      %p48 = scmp.eq.s32.totalorder %s10, 1
      %p49 = scmp.ne.s32.totalorder %s44, %s46
      %p50 = scmp.eq.s32.totalorder %s10, 0
      %p51 = por %p49, %p50
      %p52 = scmp.ne.s32.totalorder %s44, %s46
      %p53 = scmp.eq.s32.totalorder %s15, 1
      %p54 = por %p52, %p53
      %p55 = scmp.ne.s32.totalorder %s46, %s47
      %p56 = scmp.eq.s32.totalorder %s15, 0
      %p57 = por %p55, %p56
      %p58 = scmp.ne.s32.totalorder %s46, %s47
      %p59 = scmp.eq.s32.totalorder %s16, 1
      %p60 = por %p58, %p59
      %p62 = scmp.ne.s32.totalorder %s47, %s61
      %p63 = scmp.eq.s32.totalorder %s16, 0
      %p64 = por %p62, %p63
      %s66 = sadd.s32 %s65, 1
      %p69 = scmp.eq.s32.totalorder %s10, 1
      %p70 = scmp.ne.s32.totalorder %s65, %s67
      %p71 = scmp.eq.s32.totalorder %s10, 0
      %p72 = por %p70, %p71
      %p73 = scmp.ne.s32.totalorder %s65, %s67
      %p74 = scmp.eq.s32.totalorder %s15, 1
      %p75 = por %p73, %p74
      %p76 = scmp.ne.s32.totalorder %s67, %s68
      %p77 = scmp.eq.s32.totalorder %s15, 0
      %p78 = por %p76, %p77
      %p79 = scmp.ne.s32.totalorder %s67, %s68
      %p80 = scmp.eq.s32.totalorder %s16, 1
      %p81 = por %p79, %p80
      %p83 = scmp.ne.s32.totalorder %s68, %s82
      %p84 = scmp.eq.s32.totalorder %s16, 0
      %p85 = por %p83, %p84
      %s86 = ssub.s32 %s10, %s17
      %p87 = scmp.eq.s32.totalorder %s86, 0
      %s89 = sadd.s32 %s88, 1
      %s90 = scalar_select %p87, %s88, %s89
      %p93 = pneg %p87
      %p94 = scmp.eq.s32.totalorder %s10, 1
      %p95 = por %p93, %p94
      %p96 = scmp.ne.s32.totalorder %s88, %s91
      %p97 = scmp.eq.s32.totalorder %s10, 0
      %p98 = por %p96, %p97
      %p99 = scmp.ne.s32.totalorder %s88, %s91
      %p100 = scmp.eq.s32.totalorder %s15, 1
      %p101 = por %p99, %p100
      %p102 = scmp.ne.s32.totalorder %s91, %s92
      %p103 = scmp.eq.s32.totalorder %s15, 0
      %p104 = por %p102, %p103
      %p105 = scmp.ne.s32.totalorder %s91, %s92
      %p106 = scmp.eq.s32.totalorder %s16, 1
      %p107 = por %p105, %p106
      %p109 = scmp.ne.s32.totalorder %s92, %s108
      %p110 = scmp.eq.s32.totalorder %s16, 0
      %p111 = por %p109, %p110
      %p112 = scmp.le.s32.totalorder 1, %s10
      %p113 = scmp.lt.s32.totalorder %s10, 3
      %p114 = pnand %p112, %p113
      %p115 = pneg %p114
      // Predicated region
      $region9: #{encoder_forward.11} parent=5 // pred_check
        _
      $region10: #{encoder_forward.11} parent=5 // pred_check_branch
        %117 = sbr.rel (%p114) target = $region12
      $region11: #{encoder_forward.11} parent=5 // pred_region
        %s118 = ssub.s32 %s10, 1
        // Predicated region
        $region13: #{encoder_forward.11} parent=11 // pred_check
          %p119 = pneg %p57
        $region14: #{encoder_forward.11} parent=11 // pred_check_branch
          %121 = sbr.rel (%p119) target = $region16
        $region15: #{encoder_forward.11} parent=11 // pred_region
          %s123 = ssub.s32 32, 32
          %124 = vsyncadd [#allocation3], %s123
          %s126 = sshll.u32 [#allocation2], 4
          %s127 = int_to_ptr.vmem [resolvable:$true] %s126
          %129 = dma.hbm_to_vmem [thread:$0]  %s1, 32, %s127, [#allocation3]
        $region16: #{encoder_forward.11} parent=11 // pred_fallthru
          _
        // Predicated region
        $region17: #{encoder_forward.11} parent=11 // pred_check
          %p130 = pneg %p78
        $region18: #{encoder_forward.11} parent=11 // pred_check_branch
          %132 = sbr.rel (%p130) target = $region20
        $region19: #{encoder_forward.11} parent=11 // pred_region
          _
        $region20: #{encoder_forward.11} parent=11 // pred_fallthru
          _
      $region12: #{encoder_forward.11} parent=5 // pred_fallthru
        _
      %p133 = scmp.lt.s32.totalorder %s10, 2
      // Predicated region
      $region21: #{encoder_forward.11} parent=5 // pred_check
        %p134 = pneg %p133
      $region22: #{encoder_forward.11} parent=5 // pred_check_branch
        %136 = sbr.rel (%p134) target = $region24
      $region23: #{encoder_forward.11} parent=5 // pred_region
        // Predicated region
        $region25: #{encoder_forward.11} parent=23 // pred_check
          %p137 = pneg %p30
        $region26: #{encoder_forward.11} parent=23 // pred_check_branch
          %139 = sbr.rel (%p137) target = $region28
        $region27: #{encoder_forward.11} parent=23 // pred_region
          %s140 = smul.u32 16, %s10
          %p141 = scmp.lt.s32.totalorder %s140, 31
          %s142 = scalar_select %p141, %s140, 31
          %s143 = smul.addr %s142, 8
          %s144 = scalar_lea.vmem %s0, %s143
          %s145 = smul.u32 16, %s10
        $region28: #{encoder_forward.11} parent=23 // pred_fallthru
          _
      $region24: #{encoder_forward.11} parent=5 // pred_fallthru
        _
      %p146 = scmp.le.s32.totalorder 1, %s10
      %p147 = scmp.lt.s32.totalorder %s10, 3
      %p148 = pnand %p146, %p147
      %p149 = pneg %p148
      // Predicated region
      $region29: #{encoder_forward.11} parent=5 // pred_check
        _
      $region30: #{encoder_forward.11} parent=5 // pred_check_branch
        %151 = sbr.rel (%p148) target = $region32
      $region31: #{encoder_forward.11} parent=5 // pred_region
        %s152 = ssub.s32 %s10, 1
        // Predicated region
        $region33: #{encoder_forward.11} parent=31 // pred_check
          %p153 = pneg %p57
        $region34: #{encoder_forward.11} parent=31 // pred_check_branch
          %155 = sbr.rel (%p153) target = $region36
        $region35: #{encoder_forward.11} parent=31 // pred_region
          %156 = dma.done [#allocation3], 32
        $region36: #{encoder_forward.11} parent=31 // pred_fallthru
          _
        %s157 = smul.u32 16, %s15
        %p158 = scmp.lt.s32.totalorder %s157, 31
        %s159 = scalar_select %p158, %s157, 31
        %s160 = smul.addr %s159, 8
        %s161 = scalar_lea.vmem %s0, %s160
        %p162 = pneg %p36
        %p163 = pneg %p33
        %p164 = pneg %p57
        %p165 = pneg %p54
        %p166 = pneg %p78
        %p167 = pneg %p75
        %p168 = pneg %p104
        %p169 = pneg %p101
        %s170 = smul.u32 16, %s15
        %p171 = scmp.lt.s32.totalorder %s170, 31
        %s172 = scalar_select %p171, %s170, 31
        %s173 = smul.addr %s172, 8
        %s174 = scalar_lea.vmem %s3, %s173
        %s175 = smul.u32 16, %s15
        %p176 = scmp.lt.s32.totalorder %s175, 31
        %s177 = scalar_select %p176, %s175, 31
        %s178 = smul.addr %s177, 8
        %s179 = scalar_lea.vmem %s0, %s178
        %s180 = smul.u32 16, %s15
        %s181 = smul.u32 16, %s15
        %p182 = scmp.lt.s32.totalorder %s181, 31
        %s183 = scalar_select %p182, %s181, 31
        %s184 = smul.addr %s183, 8
        %s185 = scalar_lea.vmem %s3, %s184
        %s186 = smul.u32 16, %s15
        %v187 = vld [vmem:[%s179] sm:$0xff]
        %v188 = vld [vmem:[%s179 + $0x8] sm:$0xff]
        %v189 = vld [vmem:[%s179 + $0x10] sm:$0xff]
        %v190 = vld [vmem:[%s179 + $0x18] sm:$0xff]
        %v191 = vld [vmem:[%s179 + $0x20] sm:$0xff]
        %v192 = vld [vmem:[%s179 + $0x28] sm:$0xff]
        %v193 = vld [vmem:[%s179 + $0x30] sm:$0xff]
        %v194 = vld [vmem:[%s179 + $0x38] sm:$0xff]
        %v195 = vld [vmem:[%s179 + $0x40] sm:$0xff]
        %v196 = vld [vmem:[%s179 + $0x48] sm:$0xff]
        %v197 = vld [vmem:[%s179 + $0x50] sm:$0xff]
        %v198 = vld [vmem:[%s179 + $0x58] sm:$0xff]
        %v199 = vld [vmem:[%s179 + $0x60] sm:$0xff]
        %v200 = vld [vmem:[%s179 + $0x68] sm:$0xff]
        %v201 = vld [vmem:[%s179 + $0x70] sm:$0xff]
        %v202 = vld [vmem:[%s179 + $0x78] sm:$0xff]
        %v203 = vld [vmem:[#allocation2] sm:$0x3]
        %v204 = vld [vmem:[%s2] sm:$0x1]
        %v206 = vlaneseq
        %v207 = vshrl.u32 %v206, 7
        %v208 = vsub.s32 0, %v207
        %v209 = vrot.slane %v204, %v208
        %vm211 = vcmask 15360
        %v213 = vsel %vm211, %v187, 0
        %v216 = vsel %vm211, %v188, 0
        %v219 = vsel %vm211, %v189, 0
        %v222 = vsel %vm211, %v190, 0
        %v225 = vsel %vm211, %v191, 0
        %v228 = vsel %vm211, %v192, 0
        %v231 = vsel %vm211, %v193, 0
        %v234 = vsel %vm211, %v194, 0
        %v237 = vsel %vm211, %v195, 0
        %v240 = vsel %vm211, %v196, 0
        %v243 = vsel %vm211, %v197, 0
        %v246 = vsel %vm211, %v198, 0
        %v249 = vsel %vm211, %v199, 0
        %v252 = vsel %vm211, %v200, 0
        %v255 = vsel %vm211, %v201, 0
        %v258 = vsel %vm211, %v202, 0
        %vm260 = vcmask 1041408
        %v262 = vsel %vm260, %v203, 0
        %264 = vmatprep.subr.mxu0 0.0
        %265 = vmatpush1.msra.mxu0 0.0
        %266 = vmatprep.subr.mxu0 0.0
        %267 = vmatpush1.msra.mxu0 0.0
        %268 = vmatprep.subr.mxu0 0.0
        %269 = vmatpush1.msra.mxu0 0.0
        %270 = vmatprep.subr.mxu0 0.0
        %271 = vmatpush1.msra.mxu0 0.0
        %272 = vmatprep.subr.mxu0 0.0
        %273 = vmatpush1.msra.mxu0 0.0
        %274 = vmatprep.subr.mxu0 0.0
        %275 = vmatpush1.msra.mxu0 0.0
        %276 = vmatprep.subr.mxu0 0.0
        %277 = vmatpush1.msra.mxu0 0.0
        %278 = vmatprep.subr.mxu0 0.0
        %279 = vmatpush1.msra.mxu0 0.0
        %280 = vmatprep.subr.mxu0 0.0
        %281 = vmatpush1.msra.mxu0 0.0
        %282 = vmatprep.subr.mxu0 0.0
        %283 = vmatpush1.msra.mxu0 0.0
        %284 = vmatprep.subr.mxu0 0.0
        %285 = vmatpush1.msra.mxu0 0.0
        %286 = vmatprep.subr.mxu0 0.0
        %287 = vmatpush1.msra.mxu0 0.0
        %288 = vmatprep.subr.mxu0 0.0
        %289 = vmatpush1.msra.mxu0 0.0
        %290 = vmatprep.subr.mxu0 0.0
        %291 = vmatpush1.msra.mxu0 0.0
        %292 = vmatprep.subr.mxu0 0.0
        %293 = vmatpush1.msra.mxu0 0.0
        %294 = vmatprep.subr.mxu0 0.0
        %295 = vmatpush1.msra.mxu0 %v262
        %296 = vmatprep.subr.mxu0 0.0
        %297 = vmatpush2.msra.mxu0 0.0
        %298 = vmatprep.subr.mxu0 0.0
        %299 = vmatpush2.msra.mxu0 0.0
        %300 = vmatprep.subr.mxu0 0.0
        %301 = vmatpush2.msra.mxu0 0.0
        %302 = vmatprep.subr.mxu0 0.0
        %303 = vmatpush2.msra.mxu0 0.0
        %304 = vmatprep.subr.mxu0 0.0
        %305 = vmatpush2.msra.mxu0 0.0
        %306 = vmatprep.subr.mxu0 0.0
        %307 = vmatpush2.msra.mxu0 0.0
        %308 = vmatprep.subr.mxu0 0.0
        %309 = vmatpush2.msra.mxu0 0.0
        %310 = vmatprep.subr.mxu0 0.0
        %311 = vmatpush2.msra.mxu0 0.0
        %312 = vmatprep.subr.mxu0 0.0
        %313 = vmatpush2.msra.mxu0 0.0
        %314 = vmatprep.subr.mxu0 0.0
        %315 = vmatpush2.msra.mxu0 0.0
        %316 = vmatprep.subr.mxu0 0.0
        %317 = vmatpush2.msra.mxu0 0.0
        %318 = vmatprep.subr.mxu0 0.0
        %319 = vmatpush2.msra.mxu0 0.0
        %320 = vmatprep.subr.mxu0 0.0
        %321 = vmatpush2.msra.mxu0 0.0
        %322 = vmatprep.subr.mxu0 0.0
        %323 = vmatpush2.msra.mxu0 0.0
        %324 = vmatprep.subr.mxu0 0.0
        %325 = vmatpush2.msra.mxu0 0.0
        %326 = vmatprep.subr.mxu0 0.0
        %327 = vmatpush2.msra.mxu0 0.0
        %328 = vmatprep.mubr.f32.mxu0 0.0
        %329 = vmatmul.mubr.f32.gmra.mxu0 %v213
        %v330 = vpop.f32.mrf.mxu0
        %v331 = vadd.f32 %v209, %v330
        %v332 = vpop.f32.mrf.mxu0
        %333 = vmatprep.mubr.f32.mxu0 0.0
        %334 = vmatmul.mubr.f32.gmra.mxu0 %v216
        %v335 = vpop.f32.mrf.mxu0
        %v336 = vadd.f32 %v209, %v335
        %v337 = vpop.f32.mrf.mxu0
        %338 = vmatprep.mubr.f32.mxu0 0.0
        %339 = vmatmul.mubr.f32.gmra.mxu0 %v219
        %v340 = vpop.f32.mrf.mxu0
        %v341 = vadd.f32 %v209, %v340
        %v342 = vpop.f32.mrf.mxu0
        %343 = vmatprep.mubr.f32.mxu0 0.0
        %344 = vmatmul.mubr.f32.gmra.mxu0 %v222
        %v345 = vpop.f32.mrf.mxu0
        %v346 = vadd.f32 %v209, %v345
        %v347 = vpop.f32.mrf.mxu0
        %348 = vmatprep.mubr.f32.mxu0 0.0
        %349 = vmatmul.mubr.f32.gmra.mxu0 %v225
        %v350 = vpop.f32.mrf.mxu0
        %v351 = vadd.f32 %v209, %v350
        %v352 = vpop.f32.mrf.mxu0
        %353 = vmatprep.mubr.f32.mxu0 0.0
        %354 = vmatmul.mubr.f32.gmra.mxu0 %v228
        %v355 = vpop.f32.mrf.mxu0
        %v356 = vadd.f32 %v209, %v355
        %v357 = vpop.f32.mrf.mxu0
        %358 = vmatprep.mubr.f32.mxu0 0.0
        %359 = vmatmul.mubr.f32.gmra.mxu0 %v231
        %v360 = vpop.f32.mrf.mxu0
        %v361 = vadd.f32 %v209, %v360
        %v362 = vpop.f32.mrf.mxu0
        %363 = vmatprep.mubr.f32.mxu0 0.0
        %364 = vmatmul.mubr.f32.gmra.mxu0 %v234
        %v365 = vpop.f32.mrf.mxu0
        %v366 = vadd.f32 %v209, %v365
        %v367 = vpop.f32.mrf.mxu0
        %368 = vmatprep.mubr.f32.mxu0 0.0
        %369 = vmatmul.mubr.f32.gmra.mxu0 %v237
        %v370 = vpop.f32.mrf.mxu0
        %v371 = vadd.f32 %v209, %v370
        %v372 = vpop.f32.mrf.mxu0
        %373 = vmatprep.mubr.f32.mxu0 0.0
        %374 = vmatmul.mubr.f32.gmra.mxu0 %v240
        %v375 = vpop.f32.mrf.mxu0
        %v376 = vadd.f32 %v209, %v375
        %v377 = vpop.f32.mrf.mxu0
        %378 = vmatprep.mubr.f32.mxu0 0.0
        %379 = vmatmul.mubr.f32.gmra.mxu0 %v243
        %v380 = vpop.f32.mrf.mxu0
        %v381 = vadd.f32 %v209, %v380
        %v382 = vpop.f32.mrf.mxu0
        %383 = vmatprep.mubr.f32.mxu0 0.0
        %384 = vmatmul.mubr.f32.gmra.mxu0 %v246
        %v385 = vpop.f32.mrf.mxu0
        %v386 = vadd.f32 %v209, %v385
        %v387 = vpop.f32.mrf.mxu0
        %388 = vmatprep.mubr.f32.mxu0 0.0
        %389 = vmatmul.mubr.f32.gmra.mxu0 %v249
        %v390 = vpop.f32.mrf.mxu0
        %v391 = vadd.f32 %v209, %v390
        %v392 = vpop.f32.mrf.mxu0
        %393 = vmatprep.mubr.f32.mxu0 0.0
        %394 = vmatmul.mubr.f32.gmra.mxu0 %v252
        %v395 = vpop.f32.mrf.mxu0
        %v396 = vadd.f32 %v209, %v395
        %v397 = vpop.f32.mrf.mxu0
        %398 = vmatprep.mubr.f32.mxu0 0.0
        %399 = vmatmul.mubr.f32.gmra.mxu0 %v255
        %v400 = vpop.f32.mrf.mxu0
        %v401 = vadd.f32 %v209, %v400
        %v402 = vpop.f32.mrf.mxu0
        %403 = vmatprep.mubr.f32.mxu0 0.0
        %404 = vmatmul.mubr.f32.gmra.mxu0 %v258
        %v405 = vpop.f32.mrf.mxu0
        %v406 = vadd.f32 %v209, %v405
        %v407 = vpop.f32.mrf.mxu0
        %408 = vdwg.mxu0
        %409 = vst [vmem:[%s185] sm:$0xff] %v331
        %410 = vst [vmem:[%s185 + $0x8] sm:$0xff] %v336
        %411 = vst [vmem:[%s185 + $0x10] sm:$0xff] %v341
        %412 = vst [vmem:[%s185 + $0x18] sm:$0xff] %v346
        %413 = vst [vmem:[%s185 + $0x20] sm:$0xff] %v351
        %414 = vst [vmem:[%s185 + $0x28] sm:$0xff] %v356
        %415 = vst [vmem:[%s185 + $0x30] sm:$0xff] %v361
        %416 = vst [vmem:[%s185 + $0x38] sm:$0xff] %v366
        %417 = vst [vmem:[%s185 + $0x40] sm:$0xff] %v371
        %418 = vst [vmem:[%s185 + $0x48] sm:$0xff] %v376
        %419 = vst [vmem:[%s185 + $0x50] sm:$0xff] %v381
        %420 = vst [vmem:[%s185 + $0x58] sm:$0xff] %v386
        %421 = vst [vmem:[%s185 + $0x60] sm:$0xff] %v391
        %422 = vst [vmem:[%s185 + $0x68] sm:$0xff] %v396
        %423 = vst [vmem:[%s185 + $0x70] sm:$0xff] %v401
        %424 = vst [vmem:[%s185 + $0x78] sm:$0xff] %v406
        %s425 = smul.u32 16, %s15
        %p426 = scmp.lt.s32.totalorder %s425, 31
        %s427 = scalar_select %p426, %s425, 31
        %s428 = smul.addr %s427, 8
        %s429 = scalar_lea.vmem %s3, %s428
        // Predicated region
        $region37: #{encoder_forward.11} parent=31 // pred_check
          %p430 = pneg %p101
        $region38: #{encoder_forward.11} parent=31 // pred_check_branch
          %432 = sbr.rel (%p430) target = $region40
        $region39: #{encoder_forward.11} parent=31 // pred_region
          %s433 = smul.u32 16, %s15
        $region40: #{encoder_forward.11} parent=31 // pred_fallthru
          _
      $region32: #{encoder_forward.11} parent=5 // pred_fallthru
        _
      %p434 = scmp.le.s32.totalorder 2, %s10
      // Predicated region
      $region41: #{encoder_forward.11} parent=5 // pred_check
        %p435 = pneg %p434
      $region42: #{encoder_forward.11} parent=5 // pred_check_branch
        %437 = sbr.rel (%p435) target = $region44
      $region43: #{encoder_forward.11} parent=5 // pred_region
        %s438 = ssub.s32 %s10, 2
        // Predicated region
        $region45: #{encoder_forward.11} parent=43 // pred_check
          %p439 = pneg %p107
        $region46: #{encoder_forward.11} parent=43 // pred_check_branch
          %441 = sbr.rel (%p439) target = $region48
        $region47: #{encoder_forward.11} parent=43 // pred_region
          %s442 = smul.u32 16, %s16
          %p443 = scmp.lt.s32.totalorder %s442, 31
          %s444 = scalar_select %p443, %s442, 31
          %s445 = smul.addr %s444, 8
          %s446 = scalar_lea.vmem %s3, %s445
        $region48: #{encoder_forward.11} parent=43 // pred_fallthru
          _
      $region44: #{encoder_forward.11} parent=5 // pred_fallthru
        _
    $region6: #{encoder_forward.11} parent=1 // loop_footer
      %s14 = sadd.s32 1, %s10
    $region7: #{encoder_forward.11} parent=1 // loop_footer_branch
      %9 = sbr.rel target = $region3
    $region8: #{encoder_forward.11} parent=1 // loop_exit
      _
    %447 = vsyncpa [#allocation3], 1
    %s448 = scalar_lea.sflag [#allocation3], 1
    %449 = vsyncpa %s448, 1

// kernel: encoder_forward.13
$region0: #{encoder_forward.13}
  #allocation0 [shape = 'u32[]', space=smem, size = 0x4, offset = 0x4, fixed_abs, tag = 'smem constant byte address 0x4 - core index']
  #allocation1 [shape = 'u32[144,128]{1,0:T(1,128)}', space=vmem, size = 0x12000, scoped, tag = 'internal scratch']
  %s0 = inlined_call_operand.vmem [shape: f32[256,128], index: 0, kind: input, shape index: {}]
  %s1 = inlined_call_operand.vmem [shape: f32[1,128], index: 1, kind: input, shape index: {}]
  %s2 = inlined_call_operand.vmem [shape: f32[1,128], index: 2, kind: input, shape index: {}]
  %s3 = inlined_call_operand.vmem [shape: f32[256,128], index: 3, kind: input, shape index: {}]
  %s4 = inlined_call_operand.vmem [shape: f32[128,128], index: 4, kind: input, shape index: {}]
  %s5 = inlined_call_operand.vmem [shape: f32[1,128], index: 5, kind: input, shape index: {}]
  %s6 = inlined_call_operand.vmem [shape: f32[256,128], index: 6, kind: output, shape index: {0}]
  %s7 = inlined_call_operand.vmem [shape: f32[2,2,128], index: 7, kind: output, shape index: {1}]
  %8 = xla_tuple %s6, %s7
  %s9 = sld [smem:[#allocation0]]
  $region65: #{encoder_forward.13} parent=0
    _
  %s11 = ssub.s32 1, %s9
  %s12 = scalar_select 0, %s11, %s9
  loop: start=0, step=1, limit=4
  $region2: #{encoder_forward.13} parent=0 // loop_pre_header
    _
  $region3: #{encoder_forward.13} parent=0 // loop_header
    %s14 = sphi 0, %s18
    %p15 = scmp.ge.s32.totalorder %s14, 4
    %s24 = sphi 0, %s26
    %s27 = sphi 0, %s24
    %s28 = sphi 0, %s27
    %s44 = sphi 0, %s28
    %s48 = sphi 0, %s48
    %s50 = sphi 0, %s48
    %s51 = sphi 0, %s50
    %s65 = sphi 0, %s51
    %s69 = sphi 0, %s69
    %s71 = sphi 0, %s69
    %s72 = sphi 0, %s71
    %s86 = sphi 0, %s72
    %s92 = sphi 0, %s94
    %s95 = sphi 0, %s92
    %s96 = sphi 0, %s95
    %s112 = sphi 0, %s96
    %s116 = sphi 0, %s116
    %s118 = sphi 0, %s116
    %s119 = sphi 0, %s118
    %s133 = sphi 0, %s119
    %s137 = sphi 0, %s137
    %s139 = sphi 0, %s137
    %s140 = sphi 0, %s139
    %s154 = sphi 0, %s140
    %s160 = sphi 0, %s162
    %s163 = sphi 0, %s160
    %s164 = sphi 0, %s163
    %s180 = sphi 0, %s164
    %s186 = sphi 0, %s188
    %s189 = sphi 0, %s186
    %s190 = sphi 0, %s189
    %s206 = sphi 0, %s190
  $region4: #{encoder_forward.13} parent=0 // loop_header_branch
    %17 = sbr.rel (%p15) target = $region8
  $region5: #{encoder_forward.13} parent=0 // loop_body
    %s19 = ssub.s32 %s14, 1
    %s20 = ssub.s32 %s14, 2
    %s21 = sadd.s32 %s14, 1
    %s22 = ssub.s32 %s14, %s21
    %p23 = scmp.eq.s32.totalorder %s22, 0
    %s25 = sadd.s32 %s24, 1
    %s26 = scalar_select %p23, %s24, %s25
    %p29 = pneg %p23
    %p30 = scmp.eq.s32.totalorder %s14, 1
    %p31 = por %p29, %p30
    %p32 = scmp.ne.s32.totalorder %s24, %s27
    %p33 = scmp.eq.s32.totalorder %s14, 0
    %p34 = por %p32, %p33
    %p35 = scmp.ne.s32.totalorder %s24, %s27
    %p36 = scmp.eq.s32.totalorder %s19, 1
    %p37 = por %p35, %p36
    %p38 = scmp.ne.s32.totalorder %s27, %s28
    %p39 = scmp.eq.s32.totalorder %s19, 0
    %p40 = por %p38, %p39
    %p41 = scmp.ne.s32.totalorder %s27, %s28
    %p42 = scmp.eq.s32.totalorder %s20, 1
    %p43 = por %p41, %p42
    %p45 = scmp.ne.s32.totalorder %s28, %s44
    %p46 = scmp.eq.s32.totalorder %s20, 0
    %p47 = por %p45, %p46
    %s49 = sadd.s32 %s48, 1
    %p52 = scmp.eq.s32.totalorder %s14, 1
    %p53 = scmp.ne.s32.totalorder %s48, %s50
    %p54 = scmp.eq.s32.totalorder %s14, 0
    %p55 = por %p53, %p54
    %p56 = scmp.ne.s32.totalorder %s48, %s50
    %p57 = scmp.eq.s32.totalorder %s19, 1
    %p58 = por %p56, %p57
    %p59 = scmp.ne.s32.totalorder %s50, %s51
    %p60 = scmp.eq.s32.totalorder %s19, 0
    %p61 = por %p59, %p60
    %p62 = scmp.ne.s32.totalorder %s50, %s51
    %p63 = scmp.eq.s32.totalorder %s20, 1
    %p64 = por %p62, %p63
    %p66 = scmp.ne.s32.totalorder %s51, %s65
    %p67 = scmp.eq.s32.totalorder %s20, 0
    %p68 = por %p66, %p67
    %s70 = sadd.s32 %s69, 1
    %p73 = scmp.eq.s32.totalorder %s14, 1
    %p74 = scmp.ne.s32.totalorder %s69, %s71
    %p75 = scmp.eq.s32.totalorder %s14, 0
    %p76 = por %p74, %p75
    %p77 = scmp.ne.s32.totalorder %s69, %s71
    %p78 = scmp.eq.s32.totalorder %s19, 1
    %p79 = por %p77, %p78
    %p80 = scmp.ne.s32.totalorder %s71, %s72
    %p81 = scmp.eq.s32.totalorder %s19, 0
    %p82 = por %p80, %p81
    %p83 = scmp.ne.s32.totalorder %s71, %s72
    %p84 = scmp.eq.s32.totalorder %s20, 1
    %p85 = por %p83, %p84
    %p87 = scmp.ne.s32.totalorder %s72, %s86
    %p88 = scmp.eq.s32.totalorder %s20, 0
    %p89 = por %p87, %p88
    %s90 = ssub.s32 %s14, %s21
    %p91 = scmp.eq.s32.totalorder %s90, 0
    %s93 = sadd.s32 %s92, 1
    %s94 = scalar_select %p91, %s92, %s93
    %p97 = pneg %p91
    %p98 = scmp.eq.s32.totalorder %s14, 1
    %p99 = por %p97, %p98
    %p100 = scmp.ne.s32.totalorder %s92, %s95
    %p101 = scmp.eq.s32.totalorder %s14, 0
    %p102 = por %p100, %p101
    %p103 = scmp.ne.s32.totalorder %s92, %s95
    %p104 = scmp.eq.s32.totalorder %s19, 1
    %p105 = por %p103, %p104
    %p106 = scmp.ne.s32.totalorder %s95, %s96
    %p107 = scmp.eq.s32.totalorder %s19, 0
    %p108 = por %p106, %p107
    %p109 = scmp.ne.s32.totalorder %s95, %s96
    %p110 = scmp.eq.s32.totalorder %s20, 1
    %p111 = por %p109, %p110
    %p113 = scmp.ne.s32.totalorder %s96, %s112
    %p114 = scmp.eq.s32.totalorder %s20, 0
    %p115 = por %p113, %p114
    %s117 = sadd.s32 %s116, 1
    %p120 = scmp.eq.s32.totalorder %s14, 1
    %p121 = scmp.ne.s32.totalorder %s116, %s118
    %p122 = scmp.eq.s32.totalorder %s14, 0
    %p123 = por %p121, %p122
    %p124 = scmp.ne.s32.totalorder %s116, %s118
    %p125 = scmp.eq.s32.totalorder %s19, 1
    %p126 = por %p124, %p125
    %p127 = scmp.ne.s32.totalorder %s118, %s119
    %p128 = scmp.eq.s32.totalorder %s19, 0
    %p129 = por %p127, %p128
    %p130 = scmp.ne.s32.totalorder %s118, %s119
    %p131 = scmp.eq.s32.totalorder %s20, 1
    %p132 = por %p130, %p131
    %p134 = scmp.ne.s32.totalorder %s119, %s133
    %p135 = scmp.eq.s32.totalorder %s20, 0
    %p136 = por %p134, %p135
    %s138 = sadd.s32 %s137, 1
    %p141 = scmp.eq.s32.totalorder %s14, 1
    %p142 = scmp.ne.s32.totalorder %s137, %s139
    %p143 = scmp.eq.s32.totalorder %s14, 0
    %p144 = por %p142, %p143
    %p145 = scmp.ne.s32.totalorder %s137, %s139
    %p146 = scmp.eq.s32.totalorder %s19, 1
    %p147 = por %p145, %p146
    %p148 = scmp.ne.s32.totalorder %s139, %s140
    %p149 = scmp.eq.s32.totalorder %s19, 0
    %p150 = por %p148, %p149
    %p151 = scmp.ne.s32.totalorder %s139, %s140
    %p152 = scmp.eq.s32.totalorder %s20, 1
    %p153 = por %p151, %p152
    %p155 = scmp.ne.s32.totalorder %s140, %s154
    %p156 = scmp.eq.s32.totalorder %s20, 0
    %p157 = por %p155, %p156
    %s158 = ssub.s32 %s14, %s21
    %p159 = scmp.eq.s32.totalorder %s158, 0
    %s161 = sadd.s32 %s160, 1
    %s162 = scalar_select %p159, %s160, %s161
    %p165 = pneg %p159
    %p166 = scmp.eq.s32.totalorder %s14, 1
    %p167 = por %p165, %p166
    %p168 = scmp.ne.s32.totalorder %s160, %s163
    %p169 = scmp.eq.s32.totalorder %s14, 0
    %p170 = por %p168, %p169
    %p171 = scmp.ne.s32.totalorder %s160, %s163
    %p172 = scmp.eq.s32.totalorder %s19, 1
    %p173 = por %p171, %p172
    %p174 = scmp.ne.s32.totalorder %s163, %s164
    %p175 = scmp.eq.s32.totalorder %s19, 0
    %p176 = por %p174, %p175
    %p177 = scmp.ne.s32.totalorder %s163, %s164
    %p178 = scmp.eq.s32.totalorder %s20, 1
    %p179 = por %p177, %p178
    %p181 = scmp.ne.s32.totalorder %s164, %s180
    %p182 = scmp.eq.s32.totalorder %s20, 0
    %p183 = por %p181, %p182
    %s184 = ssub.s32 %s14, %s21
    %p185 = scmp.eq.s32.totalorder %s184, 0
    %s187 = sadd.s32 %s186, 1
    %s188 = scalar_select %p185, %s186, %s187
    %p191 = pneg %p185
    %p192 = scmp.eq.s32.totalorder %s14, 1
    %p193 = por %p191, %p192
    %p194 = scmp.ne.s32.totalorder %s186, %s189
    %p195 = scmp.eq.s32.totalorder %s14, 0
    %p196 = por %p194, %p195
    %p197 = scmp.ne.s32.totalorder %s186, %s189
    %p198 = scmp.eq.s32.totalorder %s19, 1
    %p199 = por %p197, %p198
    %p200 = scmp.ne.s32.totalorder %s189, %s190
    %p201 = scmp.eq.s32.totalorder %s19, 0
    %p202 = por %p200, %p201
    %p203 = scmp.ne.s32.totalorder %s189, %s190
    %p204 = scmp.eq.s32.totalorder %s20, 1
    %p205 = por %p203, %p204
    %p207 = scmp.ne.s32.totalorder %s190, %s206
    %p208 = scmp.eq.s32.totalorder %s20, 0
    %p209 = por %p207, %p208
    %p210 = scmp.le.s32.totalorder 1, %s14
    %p211 = scmp.lt.s32.totalorder %s14, 3
    %p212 = pnand %p210, %p211
    %p213 = pneg %p212
    // Predicated region
    $region9: #{encoder_forward.13} parent=5 // pred_check
      _
    $region10: #{encoder_forward.13} parent=5 // pred_check_branch
      %215 = sbr.rel (%p212) target = $region12
    $region11: #{encoder_forward.13} parent=5 // pred_region
      %s216 = ssub.s32 %s14, 1
      // Predicated region
      $region13: #{encoder_forward.13} parent=11 // pred_check
        %p217 = pneg %p61
      $region14: #{encoder_forward.13} parent=11 // pred_check_branch
        %219 = sbr.rel (%p217) target = $region16
      $region15: #{encoder_forward.13} parent=11 // pred_region
        _
      $region16: #{encoder_forward.13} parent=11 // pred_fallthru
        _
      // Predicated region
      $region17: #{encoder_forward.13} parent=11 // pred_check
        %p220 = pneg %p82
      $region18: #{encoder_forward.13} parent=11 // pred_check_branch
        %222 = sbr.rel (%p220) target = $region20
      $region19: #{encoder_forward.13} parent=11 // pred_region
        _
      $region20: #{encoder_forward.13} parent=11 // pred_fallthru
        _
      // Predicated region
      $region21: #{encoder_forward.13} parent=11 // pred_check
        %p223 = pneg %p129
      $region22: #{encoder_forward.13} parent=11 // pred_check_branch
        %225 = sbr.rel (%p223) target = $region24
      $region23: #{encoder_forward.13} parent=11 // pred_region
        _
      $region24: #{encoder_forward.13} parent=11 // pred_fallthru
        _
      // Predicated region
      $region25: #{encoder_forward.13} parent=11 // pred_check
        %p226 = pneg %p150
      $region26: #{encoder_forward.13} parent=11 // pred_check_branch
        %228 = sbr.rel (%p226) target = $region28
      $region27: #{encoder_forward.13} parent=11 // pred_region
        _
      $region28: #{encoder_forward.13} parent=11 // pred_fallthru
        _
    $region12: #{encoder_forward.13} parent=5 // pred_fallthru
      _
    %p229 = scmp.lt.s32.totalorder %s14, 2
    // Predicated region
    $region29: #{encoder_forward.13} parent=5 // pred_check
      %p230 = pneg %p229
    $region30: #{encoder_forward.13} parent=5 // pred_check_branch
      %232 = sbr.rel (%p230) target = $region32
    $region31: #{encoder_forward.13} parent=5 // pred_region
      // Predicated region
      $region33: #{encoder_forward.13} parent=31 // pred_check
        %p233 = pneg %p34
      $region34: #{encoder_forward.13} parent=31 // pred_check_branch
        %235 = sbr.rel (%p233) target = $region36
      $region35: #{encoder_forward.13} parent=31 // pred_region
        %s236 = smul.u32 16, %s14
        %p237 = scmp.lt.s32.totalorder %s236, 31
        %s238 = scalar_select %p237, %s236, 31
        %s239 = smul.addr %s238, 8
        %s240 = scalar_lea.vmem %s0, %s239
        %s241 = smul.u32 16, %s14
      $region36: #{encoder_forward.13} parent=31 // pred_fallthru
        _
      // Predicated region
      $region37: #{encoder_forward.13} parent=31 // pred_check
        %p242 = pneg %p102
      $region38: #{encoder_forward.13} parent=31 // pred_check_branch
        %244 = sbr.rel (%p242) target = $region40
      $region39: #{encoder_forward.13} parent=31 // pred_region
        %s245 = smul.u32 16, %s14
        %p246 = scmp.lt.s32.totalorder %s245, 31
        %s247 = scalar_select %p246, %s245, 31
        %s248 = smul.addr %s247, 8
        %s249 = scalar_lea.vmem %s3, %s248
        %s250 = smul.u32 16, %s14
      $region40: #{encoder_forward.13} parent=31 // pred_fallthru
        _
    $region32: #{encoder_forward.13} parent=5 // pred_fallthru
      _
    %p251 = scmp.le.s32.totalorder 1, %s14
    %p252 = scmp.lt.s32.totalorder %s14, 3
    %p253 = pnand %p251, %p252
    %p254 = pneg %p253
    // Predicated region
    $region41: #{encoder_forward.13} parent=5 // pred_check
      _
    $region42: #{encoder_forward.13} parent=5 // pred_check_branch
      %256 = sbr.rel (%p253) target = $region44
    $region43: #{encoder_forward.13} parent=5 // pred_region
      %s257 = ssub.s32 %s14, 1
      %s258 = smul.u32 16, %s19
      %p259 = scmp.lt.s32.totalorder %s258, 31
      %s260 = scalar_select %p259, %s258, 31
      %s261 = smul.addr %s260, 8
      %s262 = scalar_lea.vmem %s0, %s261
      %p263 = pneg %p40
      %p264 = pneg %p37
      %p265 = pneg %p61
      %p266 = pneg %p58
      %p267 = pneg %p82
      %p268 = pneg %p79
      %s269 = smul.u32 16, %s19
      %p270 = scmp.lt.s32.totalorder %s269, 31
      %s271 = scalar_select %p270, %s269, 31
      %s272 = smul.addr %s271, 8
      %s273 = scalar_lea.vmem %s3, %s272
      %p274 = pneg %p108
      %p275 = pneg %p105
      %p276 = pneg %p129
      %p277 = pneg %p126
      %p278 = pneg %p150
      %p279 = pneg %p147
      %p280 = pneg %p176
      %p281 = pneg %p173
      %s282 = smul.u32 16, %s19
      %p283 = scmp.lt.s32.totalorder %s282, 31
      %s284 = scalar_select %p283, %s282, 31
      %s285 = smul.addr %s284, 8
      %s286 = scalar_lea.vmem %s6, %s285
      %p287 = pneg %p202
      %p288 = pneg %p199
      %p289 = scmp.lt.s32.totalorder %s19, 1
      %s290 = scalar_select %p289, %s19, 1
      %s291 = smul.addr %s290, 2
      %s292 = scalar_lea.vmem %s7, %s291
      %s293 = smul.u32 16, %s19
      %p294 = scmp.lt.s32.totalorder %s293, 31
      %s295 = scalar_select %p294, %s293, 31
      %s296 = smul.addr %s295, 8
      %s297 = scalar_lea.vmem %s0, %s296
      %s298 = smul.u32 16, %s19
      %s299 = smul.u32 16, %s19
      %p300 = scmp.lt.s32.totalorder %s299, 31
      %s301 = scalar_select %p300, %s299, 31
      %s302 = smul.addr %s301, 8
      %s303 = scalar_lea.vmem %s3, %s302
      %s304 = smul.u32 16, %s19
      %s305 = smul.u32 16, %s19
      %p306 = scmp.lt.s32.totalorder %s305, 31
      %s307 = scalar_select %p306, %s305, 31
      %s308 = smul.addr %s307, 8
      %s309 = scalar_lea.vmem %s6, %s308
      %s310 = smul.u32 16, %s19
      %p311 = scmp.lt.s32.totalorder %s19, 1
      %s312 = scalar_select %p311, %s19, 1
      %s313 = smul.addr %s312, 2
      %s314 = scalar_lea.vmem %s7, %s313
      %v315 = vld [vmem:[%s297] sm:$0xff]
      %v316 = vld [vmem:[%s297 + $0x8] sm:$0xff]
      %v317 = vld [vmem:[%s297 + $0x10] sm:$0xff]
      %v318 = vld [vmem:[%s297 + $0x18] sm:$0xff]
      %v319 = vld [vmem:[%s297 + $0x20] sm:$0xff]
      %v320 = vld [vmem:[%s297 + $0x28] sm:$0xff]
      %v321 = vld [vmem:[%s297 + $0x30] sm:$0xff]
      %v322 = vld [vmem:[%s297 + $0x38] sm:$0xff]
      %v323 = vld [vmem:[%s297 + $0x40] sm:$0xff]
      %v324 = vld [vmem:[%s297 + $0x48] sm:$0xff]
      %v325 = vld [vmem:[%s297 + $0x50] sm:$0xff]
      %v326 = vld [vmem:[%s297 + $0x58] sm:$0xff]
      %v327 = vld [vmem:[%s297 + $0x60] sm:$0xff]
      %v328 = vld [vmem:[%s297 + $0x68] sm:$0xff]
      %v329 = vld [vmem:[%s297 + $0x70] sm:$0xff]
      %v330 = vld [vmem:[%s297 + $0x78] sm:$0xff]
      %v331 = vld [vmem:[%s1] sm:$0x1]
      %v333 = vlaneseq
      %v334 = vshrl.u32 %v333, 7
      %v335 = vsub.s32 0, %v334
      %v336 = vrot.slane %v331, %v335
      %v338 = vmul.f32 %v315, %v336
      %v339 = vmul.f32 %v316, %v336
      %v340 = vmul.f32 %v317, %v336
      %v341 = vmul.f32 %v318, %v336
      %v342 = vmul.f32 %v319, %v336
      %v343 = vmul.f32 %v320, %v336
      %v344 = vmul.f32 %v321, %v336
      %v345 = vmul.f32 %v322, %v336
      %v346 = vmul.f32 %v323, %v336
      %v347 = vmul.f32 %v324, %v336
      %v348 = vmul.f32 %v325, %v336
      %v349 = vmul.f32 %v326, %v336
      %v350 = vmul.f32 %v327, %v336
      %v351 = vmul.f32 %v328, %v336
      %v352 = vmul.f32 %v329, %v336
      %v353 = vmul.f32 %v330, %v336
      %v354 = vld [vmem:[%s2] sm:$0x1]
      %v356 = vlaneseq
      %v357 = vshrl.u32 %v356, 7
      %v358 = vsub.s32 0, %v357
      %v359 = vrot.slane %v354, %v358
      %v361 = vadd.f32 %v338, %v359
      %v362 = vadd.f32 %v339, %v359
      %v363 = vadd.f32 %v340, %v359
      %v364 = vadd.f32 %v341, %v359
      %v365 = vadd.f32 %v342, %v359
      %v366 = vadd.f32 %v343, %v359
      %v367 = vadd.f32 %v344, %v359
      %v368 = vadd.f32 %v345, %v359
      %v369 = vadd.f32 %v346, %v359
      %v370 = vadd.f32 %v347, %v359
      %v371 = vadd.f32 %v348, %v359
      %v372 = vadd.f32 %v349, %v359
      %v373 = vadd.f32 %v350, %v359
      %v374 = vadd.f32 %v351, %v359
      %v375 = vadd.f32 %v352, %v359
      %v376 = vadd.f32 %v353, %v359
      %v377 = vld [vmem:[%s303] sm:$0xff]
      %v378 = vld [vmem:[%s303 + $0x8] sm:$0xff]
      %v379 = vld [vmem:[%s303 + $0x10] sm:$0xff]
      %v380 = vld [vmem:[%s303 + $0x18] sm:$0xff]
      %v381 = vld [vmem:[%s303 + $0x20] sm:$0xff]
      %v382 = vld [vmem:[%s303 + $0x28] sm:$0xff]
      %v383 = vld [vmem:[%s303 + $0x30] sm:$0xff]
      %v384 = vld [vmem:[%s303 + $0x38] sm:$0xff]
      %v385 = vld [vmem:[%s303 + $0x40] sm:$0xff]
      %v386 = vld [vmem:[%s303 + $0x48] sm:$0xff]
      %v387 = vld [vmem:[%s303 + $0x50] sm:$0xff]
      %v388 = vld [vmem:[%s303 + $0x58] sm:$0xff]
      %v389 = vld [vmem:[%s303 + $0x60] sm:$0xff]
      %v390 = vld [vmem:[%s303 + $0x68] sm:$0xff]
      %v391 = vld [vmem:[%s303 + $0x70] sm:$0xff]
      %v392 = vld [vmem:[%s303 + $0x78] sm:$0xff]
      %v393 = vld [vmem:[%s4] sm:$0xff]
      %v394 = vld [vmem:[%s4 + $0x8] sm:$0xff]
      %v395 = vld [vmem:[%s4 + $0x10] sm:$0xff]
      %v396 = vld [vmem:[%s4 + $0x18] sm:$0xff]
      %v397 = vld [vmem:[%s4 + $0x20] sm:$0xff]
      %v398 = vld [vmem:[%s4 + $0x28] sm:$0xff]
      %v399 = vld [vmem:[%s4 + $0x30] sm:$0xff]
      %v400 = vld [vmem:[%s4 + $0x38] sm:$0xff]
      %v401 = vld [vmem:[%s4 + $0x40] sm:$0xff]
      %v402 = vld [vmem:[%s4 + $0x48] sm:$0xff]
      %v403 = vld [vmem:[%s4 + $0x50] sm:$0xff]
      %v404 = vld [vmem:[%s4 + $0x58] sm:$0xff]
      %v405 = vld [vmem:[%s4 + $0x60] sm:$0xff]
      %v406 = vld [vmem:[%s4 + $0x68] sm:$0xff]
      %v407 = vld [vmem:[%s4 + $0x70] sm:$0xff]
      %v408 = vld [vmem:[%s4 + $0x78] sm:$0xff]
      %v409 = vld [vmem:[%s5] sm:$0x1]
      %v411 = vlaneseq
      %v412 = vshrl.u32 %v411, 7
      %v413 = vsub.s32 0, %v412
      %v414 = vrot.slane %v409, %v413
      %416 = vmatprep.subr.mxu0 0.0
      %417 = vmatpush1.msra.mxu0 %v408
      %418 = vmatprep.subr.mxu0 0.0
      %419 = vmatpush1.msra.mxu0 %v407
      %420 = vmatprep.subr.mxu0 0.0
      %421 = vmatpush1.msra.mxu0 %v406
      %422 = vmatprep.subr.mxu0 0.0
      %423 = vmatpush1.msra.mxu0 %v405
      %424 = vmatprep.subr.mxu0 0.0
      %425 = vmatpush1.msra.mxu0 %v404
      %426 = vmatprep.subr.mxu0 0.0
      %427 = vmatpush1.msra.mxu0 %v403
      %428 = vmatprep.subr.mxu0 0.0
      %429 = vmatpush1.msra.mxu0 %v402
      %430 = vmatprep.subr.mxu0 0.0
      %431 = vmatpush1.msra.mxu0 %v401
      %432 = vmatprep.subr.mxu0 0.0
      %433 = vmatpush1.msra.mxu0 %v400
      %434 = vmatprep.subr.mxu0 0.0
      %435 = vmatpush1.msra.mxu0 %v399
      %436 = vmatprep.subr.mxu0 0.0
      %437 = vmatpush1.msra.mxu0 %v398
      %438 = vmatprep.subr.mxu0 0.0
      %439 = vmatpush1.msra.mxu0 %v397
      %440 = vmatprep.subr.mxu0 0.0
      %441 = vmatpush1.msra.mxu0 %v396
      %442 = vmatprep.subr.mxu0 0.0
      %443 = vmatpush1.msra.mxu0 %v395
      %444 = vmatprep.subr.mxu0 0.0
      %445 = vmatpush1.msra.mxu0 %v394
      %446 = vmatprep.subr.mxu0 0.0
      %447 = vmatpush1.msra.mxu0 %v393
      %448 = vmatprep.subr.mxu0 0.0
      %449 = vmatpush2.msra.mxu0 0.0
      %450 = vmatprep.subr.mxu0 0.0
      %451 = vmatpush2.msra.mxu0 0.0
      %452 = vmatprep.subr.mxu0 0.0
      %453 = vmatpush2.msra.mxu0 0.0
      %454 = vmatprep.subr.mxu0 0.0
      %455 = vmatpush2.msra.mxu0 0.0
      %456 = vmatprep.subr.mxu0 0.0
      %457 = vmatpush2.msra.mxu0 0.0
      %458 = vmatprep.subr.mxu0 0.0
      %459 = vmatpush2.msra.mxu0 0.0
      %460 = vmatprep.subr.mxu0 0.0
      %461 = vmatpush2.msra.mxu0 0.0
      %462 = vmatprep.subr.mxu0 0.0
      %463 = vmatpush2.msra.mxu0 0.0
      %464 = vmatprep.subr.mxu0 0.0
      %465 = vmatpush2.msra.mxu0 0.0
      %466 = vmatprep.subr.mxu0 0.0
      %467 = vmatpush2.msra.mxu0 0.0
      %468 = vmatprep.subr.mxu0 0.0
      %469 = vmatpush2.msra.mxu0 0.0
      %470 = vmatprep.subr.mxu0 0.0
      %471 = vmatpush2.msra.mxu0 0.0
      %472 = vmatprep.subr.mxu0 0.0
      %473 = vmatpush2.msra.mxu0 0.0
      %474 = vmatprep.subr.mxu0 0.0
      %475 = vmatpush2.msra.mxu0 0.0
      %476 = vmatprep.subr.mxu0 0.0
      %477 = vmatpush2.msra.mxu0 0.0
      %478 = vmatprep.subr.mxu0 0.0
      %479 = vmatpush2.msra.mxu0 0.0
      %480 = vmatprep.mubr.f32.mxu0 0.0
      %481 = vmatmul.mubr.f32.gmra.mxu0 %v377
      %v482 = vpop.f32.mrf.mxu0
      %v483 = vadd.f32 %v414, %v482
      %v484 = vpop.f32.mrf.mxu0
      %485 = vmatprep.mubr.f32.mxu0 0.0
      %486 = vmatmul.mubr.f32.gmra.mxu0 %v378
      %v487 = vpop.f32.mrf.mxu0
      %v488 = vadd.f32 %v414, %v487
      %v489 = vpop.f32.mrf.mxu0
      %490 = vmatprep.mubr.f32.mxu0 0.0
      %491 = vmatmul.mubr.f32.gmra.mxu0 %v379
      %v492 = vpop.f32.mrf.mxu0
      %v493 = vadd.f32 %v414, %v492
      %v494 = vpop.f32.mrf.mxu0
      %495 = vmatprep.mubr.f32.mxu0 0.0
      %496 = vmatmul.mubr.f32.gmra.mxu0 %v380
      %v497 = vpop.f32.mrf.mxu0
      %v498 = vadd.f32 %v414, %v497
      %v499 = vpop.f32.mrf.mxu0
      %500 = vmatprep.mubr.f32.mxu0 0.0
      %501 = vmatmul.mubr.f32.gmra.mxu0 %v381
      %v502 = vpop.f32.mrf.mxu0
      %v503 = vadd.f32 %v414, %v502
      %v504 = vpop.f32.mrf.mxu0
      %505 = vmatprep.mubr.f32.mxu0 0.0
      %506 = vmatmul.mubr.f32.gmra.mxu0 %v382
      %v507 = vpop.f32.mrf.mxu0
      %v508 = vadd.f32 %v414, %v507
      %v509 = vpop.f32.mrf.mxu0
      %510 = vmatprep.mubr.f32.mxu0 0.0
      %511 = vmatmul.mubr.f32.gmra.mxu0 %v383
      %v512 = vpop.f32.mrf.mxu0
      %v513 = vadd.f32 %v414, %v512
      %v514 = vpop.f32.mrf.mxu0
      %515 = vmatprep.mubr.f32.mxu0 0.0
      %516 = vmatmul.mubr.f32.gmra.mxu0 %v384
      %v517 = vpop.f32.mrf.mxu0
      %v518 = vadd.f32 %v414, %v517
      %v519 = vpop.f32.mrf.mxu0
      %520 = vmatprep.mubr.f32.mxu0 0.0
      %521 = vmatmul.mubr.f32.gmra.mxu0 %v385
      %v522 = vpop.f32.mrf.mxu0
      %v523 = vadd.f32 %v414, %v522
      %v524 = vpop.f32.mrf.mxu0
      %525 = vmatprep.mubr.f32.mxu0 0.0
      %526 = vmatmul.mubr.f32.gmra.mxu0 %v386
      %v527 = vpop.f32.mrf.mxu0
      %v528 = vadd.f32 %v414, %v527
      %v529 = vpop.f32.mrf.mxu0
      %530 = vmatprep.mubr.f32.mxu0 0.0
      %531 = vmatmul.mubr.f32.gmra.mxu0 %v387
      %v532 = vpop.f32.mrf.mxu0
      %v533 = vadd.f32 %v414, %v532
      %v534 = vpop.f32.mrf.mxu0
      %535 = vmatprep.mubr.f32.mxu0 0.0
      %536 = vmatmul.mubr.f32.gmra.mxu0 %v388
      %v537 = vpop.f32.mrf.mxu0
      %v538 = vadd.f32 %v414, %v537
      %v539 = vpop.f32.mrf.mxu0
      %540 = vmatprep.mubr.f32.mxu0 0.0
      %541 = vmatmul.mubr.f32.gmra.mxu0 %v389
      %v542 = vpop.f32.mrf.mxu0
      %v543 = vadd.f32 %v414, %v542
      %v544 = vpop.f32.mrf.mxu0
      %545 = vmatprep.mubr.f32.mxu0 0.0
      %546 = vmatmul.mubr.f32.gmra.mxu0 %v390
      %v547 = vpop.f32.mrf.mxu0
      %v548 = vadd.f32 %v414, %v547
      %v549 = vpop.f32.mrf.mxu0
      %550 = vmatprep.mubr.f32.mxu0 0.0
      %551 = vmatmul.mubr.f32.gmra.mxu0 %v391
      %v552 = vpop.f32.mrf.mxu0
      %v553 = vadd.f32 %v414, %v552
      %v554 = vpop.f32.mrf.mxu0
      %555 = vmatprep.mubr.f32.mxu0 0.0
      %556 = vmatmul.mubr.f32.gmra.mxu0 %v392
      %v557 = vpop.f32.mrf.mxu0
      %v558 = vadd.f32 %v414, %v557
      %v559 = vpop.f32.mrf.mxu0
      %560 = vdwg.mxu0
      %v561 = vadd.f32 %v361, %v483
      %v562 = vadd.f32 %v362, %v488
      %v563 = vadd.f32 %v363, %v493
      %v564 = vadd.f32 %v364, %v498
      %v565 = vadd.f32 %v365, %v503
      %v566 = vadd.f32 %v366, %v508
      %v567 = vadd.f32 %v367, %v513
      %v568 = vadd.f32 %v368, %v518
      %v569 = vadd.f32 %v369, %v523
      %v570 = vadd.f32 %v370, %v528
      %v571 = vadd.f32 %v371, %v533
      %v572 = vadd.f32 %v372, %v538
      %v573 = vadd.f32 %v373, %v543
      %v574 = vadd.f32 %v374, %v548
      %v575 = vadd.f32 %v375, %v553
      %v576 = vadd.f32 %v376, %v558
      %577 = vst [vmem:[%s309] sm:$0xff] %v561
      %578 = vst [vmem:[%s309 + $0x8] sm:$0xff] %v562
      %579 = vst [vmem:[%s309 + $0x10] sm:$0xff] %v563
      %580 = vst [vmem:[%s309 + $0x18] sm:$0xff] %v564
      %581 = vst [vmem:[%s309 + $0x20] sm:$0xff] %v565
      %582 = vst [vmem:[%s309 + $0x28] sm:$0xff] %v566
      %583 = vst [vmem:[%s309 + $0x30] sm:$0xff] %v567
      %584 = vst [vmem:[%s309 + $0x38] sm:$0xff] %v568
      %585 = vst [vmem:[%s309 + $0x40] sm:$0xff] %v569
      %586 = vst [vmem:[%s309 + $0x48] sm:$0xff] %v570
      %587 = vst [vmem:[%s309 + $0x50] sm:$0xff] %v571
      %588 = vst [vmem:[%s309 + $0x58] sm:$0xff] %v572
      %589 = vst [vmem:[%s309 + $0x60] sm:$0xff] %v573
      %590 = vst [vmem:[%s309 + $0x68] sm:$0xff] %v574
      %591 = vst [vmem:[%s309 + $0x70] sm:$0xff] %v575
      %592 = vst [vmem:[%s309 + $0x78] sm:$0xff] %v576
      %v593 = vadd.f32 %v561, %v562
      %v594 = vadd.f32 %v593, %v563
      %v595 = vadd.f32 %v594, %v564
      %v596 = vadd.f32 %v595, %v565
      %v597 = vadd.f32 %v596, %v566
      %v598 = vadd.f32 %v597, %v567
      %v599 = vadd.f32 %v598, %v568
      %v600 = vadd.f32 %v599, %v569
      %v601 = vadd.f32 %v600, %v570
      %v602 = vadd.f32 %v601, %v571
      %v603 = vadd.f32 %v602, %v572
      %v604 = vadd.f32 %v603, %v573
      %v605 = vadd.f32 %v604, %v574
      %v606 = vadd.f32 %v605, %v575
      %v607 = vadd.f32 %v606, %v576
      %v608 = vrot.slane %v607, 4
      %v609 = vadd.f32 %v607, %v608
      %v610 = vrot.slane %v609, 2
      %v611 = vadd.f32 %v609, %v610
      %v612 = vrot.slane %v611, 1
      %v613 = vadd.f32 %v611, %v612
      %614 = vst [vmem:[%s314] sm:$0x1] %v613
      %v615 = vmul.f32 %v561, %v561
      %v616 = vmul.f32 %v562, %v562
      %v617 = vmul.f32 %v563, %v563
      %v618 = vmul.f32 %v564, %v564
      %v619 = vmul.f32 %v565, %v565
      %v620 = vmul.f32 %v566, %v566
      %v621 = vmul.f32 %v567, %v567
      %v622 = vmul.f32 %v568, %v568
      %v623 = vmul.f32 %v569, %v569
      %v624 = vmul.f32 %v570, %v570
      %v625 = vmul.f32 %v571, %v571
      %v626 = vmul.f32 %v572, %v572
      %v627 = vmul.f32 %v573, %v573
      %v628 = vmul.f32 %v574, %v574
      %v629 = vmul.f32 %v575, %v575
      %v630 = vmul.f32 %v576, %v576
      %v631 = vadd.f32 %v615, %v616
      %v632 = vadd.f32 %v631, %v617
      %v633 = vadd.f32 %v632, %v618
      %v634 = vadd.f32 %v633, %v619
      %v635 = vadd.f32 %v634, %v620
      %v636 = vadd.f32 %v635, %v621
      %v637 = vadd.f32 %v636, %v622
      %v638 = vadd.f32 %v637, %v623
      %v639 = vadd.f32 %v638, %v624
      %v640 = vadd.f32 %v639, %v625
      %v641 = vadd.f32 %v640, %v626
      %v642 = vadd.f32 %v641, %v627
      %v643 = vadd.f32 %v642, %v628
      %v644 = vadd.f32 %v643, %v629
      %v645 = vadd.f32 %v644, %v630
      %v646 = vrot.slane %v645, 4
      %v647 = vadd.f32 %v645, %v646
      %v648 = vrot.slane %v647, 2
      %v649 = vadd.f32 %v647, %v648
      %v650 = vrot.slane %v649, 1
      %v651 = vadd.f32 %v649, %v650
      %652 = vst [vmem:[%s314 + $0x1] sm:$0x1] %v651
      %s653 = smul.u32 16, %s19
      %p654 = scmp.lt.s32.totalorder %s653, 31
      %s655 = scalar_select %p654, %s653, 31
      %s656 = smul.addr %s655, 8
      %s657 = scalar_lea.vmem %s6, %s656
      %p658 = scmp.lt.s32.totalorder %s19, 1
      %s659 = scalar_select %p658, %s19, 1
      %s660 = smul.addr %s659, 2
      %s661 = scalar_lea.vmem %s7, %s660
      // Predicated region
      $region45: #{encoder_forward.13} parent=43 // pred_check
        %p662 = pneg %p173
      $region46: #{encoder_forward.13} parent=43 // pred_check_branch
        %664 = sbr.rel (%p662) target = $region48
      $region47: #{encoder_forward.13} parent=43 // pred_region
        %s665 = smul.u32 16, %s19
      $region48: #{encoder_forward.13} parent=43 // pred_fallthru
        _
      // Predicated region
      $region49: #{encoder_forward.13} parent=43 // pred_check
        %p666 = pneg %p199
      $region50: #{encoder_forward.13} parent=43 // pred_check_branch
        %668 = sbr.rel (%p666) target = $region52
      $region51: #{encoder_forward.13} parent=43 // pred_region
        _
      $region52: #{encoder_forward.13} parent=43 // pred_fallthru
        _
    $region44: #{encoder_forward.13} parent=5 // pred_fallthru
      _
    %p669 = scmp.le.s32.totalorder 2, %s14
    // Predicated region
    $region53: #{encoder_forward.13} parent=5 // pred_check
      %p670 = pneg %p669
    $region54: #{encoder_forward.13} parent=5 // pred_check_branch
      %672 = sbr.rel (%p670) target = $region56
    $region55: #{encoder_forward.13} parent=5 // pred_region
      %s673 = ssub.s32 %s14, 2
      // Predicated region
      $region57: #{encoder_forward.13} parent=55 // pred_check
        %p674 = pneg %p179
      $region58: #{encoder_forward.13} parent=55 // pred_check_branch
        %676 = sbr.rel (%p674) target = $region60
      $region59: #{encoder_forward.13} parent=55 // pred_region
        %s677 = smul.u32 16, %s20
        %p678 = scmp.lt.s32.totalorder %s677, 31
        %s679 = scalar_select %p678, %s677, 31
        %s680 = smul.addr %s679, 8
        %s681 = scalar_lea.vmem %s6, %s680
      $region60: #{encoder_forward.13} parent=55 // pred_fallthru
        _
      // Predicated region
      $region61: #{encoder_forward.13} parent=55 // pred_check
        %p682 = pneg %p205
      $region62: #{encoder_forward.13} parent=55 // pred_check_branch
        %684 = sbr.rel (%p682) target = $region64
      $region63: #{encoder_forward.13} parent=55 // pred_region
        %p685 = scmp.lt.s32.totalorder %s20, 1
        %s686 = scalar_select %p685, %s20, 1
        %s687 = smul.addr %s686, 2
        %s688 = scalar_lea.vmem %s7, %s687
      $region64: #{encoder_forward.13} parent=55 // pred_fallthru
        _
    $region56: #{encoder_forward.13} parent=5 // pred_fallthru
      _
  $region6: #{encoder_forward.13} parent=0 // loop_footer
    %s18 = sadd.s32 1, %s14
  $region7: #{encoder_forward.13} parent=0 // loop_footer_branch
    %13 = sbr.rel target = $region3
  $region8: #{encoder_forward.13} parent=0 // loop_exit
    _

// kernel: encoder_forward.14
$region0: #{encoder_forward.14}
  #allocation0 [shape = 'u32[]', space=smem, size = 0x4, offset = 0x4, fixed_abs, tag = 'smem constant byte address 0x4 - core index']
  #allocation1 [shape = 'u32[144,128]{1,0:T(1,128)}', space=vmem, size = 0x12000, scoped, tag = 'internal scratch']
  %s0 = inlined_call_operand.vmem [shape: f32[256,128], index: 0, kind: input, shape index: {}]
  %s1 = inlined_call_operand.vmem [shape: f32[1,128], index: 1, kind: input, shape index: {}]
  %s2 = inlined_call_operand.vmem [shape: f32[1,128], index: 2, kind: input, shape index: {}]
  %s3 = inlined_call_operand.vmem [shape: f32[128,512], index: 3, kind: input, shape index: {}]
  %s4 = inlined_call_operand.vmem [shape: f32[1,512], index: 4, kind: input, shape index: {}]
  %s5 = inlined_call_operand.vmem [shape: f32[512,128], index: 5, kind: input, shape index: {}]
  %s6 = inlined_call_operand.vmem [shape: f32[1,128], index: 6, kind: input, shape index: {}]
  %s7 = inlined_call_operand.vmem [shape: f32[256,128], index: 7, kind: output, shape index: {0}]
  %s8 = inlined_call_operand.vmem [shape: f32[2,2,128], index: 8, kind: output, shape index: {1}]
  %9 = xla_tuple %s7, %s8
  %s10 = sld [smem:[#allocation0]]
  $region69: #{encoder_forward.14} parent=0
    _
  %s12 = ssub.s32 1, %s10
  %s13 = scalar_select 0, %s12, %s10
  loop: start=0, step=1, limit=4
  $region2: #{encoder_forward.14} parent=0 // loop_pre_header
    _
  $region3: #{encoder_forward.14} parent=0 // loop_header
    %s15 = sphi 0, %s19
    %p16 = scmp.ge.s32.totalorder %s15, 4
    %s25 = sphi 0, %s27
    %s28 = sphi 0, %s25
    %s29 = sphi 0, %s28
    %s45 = sphi 0, %s29
    %s49 = sphi 0, %s49
    %s51 = sphi 0, %s49
    %s52 = sphi 0, %s51
    %s66 = sphi 0, %s52
    %s70 = sphi 0, %s70
    %s72 = sphi 0, %s70
    %s73 = sphi 0, %s72
    %s87 = sphi 0, %s73
    %s91 = sphi 0, %s91
    %s93 = sphi 0, %s91
    %s94 = sphi 0, %s93
    %s108 = sphi 0, %s94
    %s112 = sphi 0, %s112
    %s114 = sphi 0, %s112
    %s115 = sphi 0, %s114
    %s129 = sphi 0, %s115
    %s133 = sphi 0, %s133
    %s135 = sphi 0, %s133
    %s136 = sphi 0, %s135
    %s150 = sphi 0, %s136
    %s154 = sphi 0, %s154
    %s156 = sphi 0, %s154
    %s157 = sphi 0, %s156
    %s171 = sphi 0, %s157
    %s177 = sphi 0, %s179
    %s180 = sphi 0, %s177
    %s181 = sphi 0, %s180
    %s197 = sphi 0, %s181
    %s203 = sphi 0, %s205
    %s206 = sphi 0, %s203
    %s207 = sphi 0, %s206
    %s223 = sphi 0, %s207
  $region4: #{encoder_forward.14} parent=0 // loop_header_branch
    %18 = sbr.rel (%p16) target = $region8
  $region5: #{encoder_forward.14} parent=0 // loop_body
    %s20 = ssub.s32 %s15, 1
    %s21 = ssub.s32 %s15, 2
    %s22 = sadd.s32 %s15, 1
    %s23 = ssub.s32 %s15, %s22
    %p24 = scmp.eq.s32.totalorder %s23, 0
    %s26 = sadd.s32 %s25, 1
    %s27 = scalar_select %p24, %s25, %s26
    %p30 = pneg %p24
    %p31 = scmp.eq.s32.totalorder %s15, 1
    %p32 = por %p30, %p31
    %p33 = scmp.ne.s32.totalorder %s25, %s28
    %p34 = scmp.eq.s32.totalorder %s15, 0
    %p35 = por %p33, %p34
    %p36 = scmp.ne.s32.totalorder %s25, %s28
    %p37 = scmp.eq.s32.totalorder %s20, 1
    %p38 = por %p36, %p37
    %p39 = scmp.ne.s32.totalorder %s28, %s29
    %p40 = scmp.eq.s32.totalorder %s20, 0
    %p41 = por %p39, %p40
    %p42 = scmp.ne.s32.totalorder %s28, %s29
    %p43 = scmp.eq.s32.totalorder %s21, 1
    %p44 = por %p42, %p43
    %p46 = scmp.ne.s32.totalorder %s29, %s45
    %p47 = scmp.eq.s32.totalorder %s21, 0
    %p48 = por %p46, %p47
    %s50 = sadd.s32 %s49, 1
    %p53 = scmp.eq.s32.totalorder %s15, 1
    %p54 = scmp.ne.s32.totalorder %s49, %s51
    %p55 = scmp.eq.s32.totalorder %s15, 0
    %p56 = por %p54, %p55
    %p57 = scmp.ne.s32.totalorder %s49, %s51
    %p58 = scmp.eq.s32.totalorder %s20, 1
    %p59 = por %p57, %p58
    %p60 = scmp.ne.s32.totalorder %s51, %s52
    %p61 = scmp.eq.s32.totalorder %s20, 0
    %p62 = por %p60, %p61
    %p63 = scmp.ne.s32.totalorder %s51, %s52
    %p64 = scmp.eq.s32.totalorder %s21, 1
    %p65 = por %p63, %p64
    %p67 = scmp.ne.s32.totalorder %s52, %s66
    %p68 = scmp.eq.s32.totalorder %s21, 0
    %p69 = por %p67, %p68
    %s71 = sadd.s32 %s70, 1
    %p74 = scmp.eq.s32.totalorder %s15, 1
    %p75 = scmp.ne.s32.totalorder %s70, %s72
    %p76 = scmp.eq.s32.totalorder %s15, 0
    %p77 = por %p75, %p76
    %p78 = scmp.ne.s32.totalorder %s70, %s72
    %p79 = scmp.eq.s32.totalorder %s20, 1
    %p80 = por %p78, %p79
    %p81 = scmp.ne.s32.totalorder %s72, %s73
    %p82 = scmp.eq.s32.totalorder %s20, 0
    %p83 = por %p81, %p82
    %p84 = scmp.ne.s32.totalorder %s72, %s73
    %p85 = scmp.eq.s32.totalorder %s21, 1
    %p86 = por %p84, %p85
    %p88 = scmp.ne.s32.totalorder %s73, %s87
    %p89 = scmp.eq.s32.totalorder %s21, 0
    %p90 = por %p88, %p89
    %s92 = sadd.s32 %s91, 1
    %p95 = scmp.eq.s32.totalorder %s15, 1
    %p96 = scmp.ne.s32.totalorder %s91, %s93
    %p97 = scmp.eq.s32.totalorder %s15, 0
    %p98 = por %p96, %p97
    %p99 = scmp.ne.s32.totalorder %s91, %s93
    %p100 = scmp.eq.s32.totalorder %s20, 1
    %p101 = por %p99, %p100
    %p102 = scmp.ne.s32.totalorder %s93, %s94
    %p103 = scmp.eq.s32.totalorder %s20, 0
    %p104 = por %p102, %p103
    %p105 = scmp.ne.s32.totalorder %s93, %s94
    %p106 = scmp.eq.s32.totalorder %s21, 1
    %p107 = por %p105, %p106
    %p109 = scmp.ne.s32.totalorder %s94, %s108
    %p110 = scmp.eq.s32.totalorder %s21, 0
    %p111 = por %p109, %p110
    %s113 = sadd.s32 %s112, 1
    %p116 = scmp.eq.s32.totalorder %s15, 1
    %p117 = scmp.ne.s32.totalorder %s112, %s114
    %p118 = scmp.eq.s32.totalorder %s15, 0
    %p119 = por %p117, %p118
    %p120 = scmp.ne.s32.totalorder %s112, %s114
    %p121 = scmp.eq.s32.totalorder %s20, 1
    %p122 = por %p120, %p121
    %p123 = scmp.ne.s32.totalorder %s114, %s115
    %p124 = scmp.eq.s32.totalorder %s20, 0
    %p125 = por %p123, %p124
    %p126 = scmp.ne.s32.totalorder %s114, %s115
    %p127 = scmp.eq.s32.totalorder %s21, 1
    %p128 = por %p126, %p127
    %p130 = scmp.ne.s32.totalorder %s115, %s129
    %p131 = scmp.eq.s32.totalorder %s21, 0
    %p132 = por %p130, %p131
    %s134 = sadd.s32 %s133, 1
    %p137 = scmp.eq.s32.totalorder %s15, 1
    %p138 = scmp.ne.s32.totalorder %s133, %s135
    %p139 = scmp.eq.s32.totalorder %s15, 0
    %p140 = por %p138, %p139
    %p141 = scmp.ne.s32.totalorder %s133, %s135
    %p142 = scmp.eq.s32.totalorder %s20, 1
    %p143 = por %p141, %p142
    %p144 = scmp.ne.s32.totalorder %s135, %s136
    %p145 = scmp.eq.s32.totalorder %s20, 0
    %p146 = por %p144, %p145
    %p147 = scmp.ne.s32.totalorder %s135, %s136
    %p148 = scmp.eq.s32.totalorder %s21, 1
    %p149 = por %p147, %p148
    %p151 = scmp.ne.s32.totalorder %s136, %s150
    %p152 = scmp.eq.s32.totalorder %s21, 0
    %p153 = por %p151, %p152
    %s155 = sadd.s32 %s154, 1
    %p158 = scmp.eq.s32.totalorder %s15, 1
    %p159 = scmp.ne.s32.totalorder %s154, %s156
    %p160 = scmp.eq.s32.totalorder %s15, 0
    %p161 = por %p159, %p160
    %p162 = scmp.ne.s32.totalorder %s154, %s156
    %p163 = scmp.eq.s32.totalorder %s20, 1
    %p164 = por %p162, %p163
    %p165 = scmp.ne.s32.totalorder %s156, %s157
    %p166 = scmp.eq.s32.totalorder %s20, 0
    %p167 = por %p165, %p166
    %p168 = scmp.ne.s32.totalorder %s156, %s157
    %p169 = scmp.eq.s32.totalorder %s21, 1
    %p170 = por %p168, %p169
    %p172 = scmp.ne.s32.totalorder %s157, %s171
    %p173 = scmp.eq.s32.totalorder %s21, 0
    %p174 = por %p172, %p173
    %s175 = ssub.s32 %s15, %s22
    %p176 = scmp.eq.s32.totalorder %s175, 0
    %s178 = sadd.s32 %s177, 1
    %s179 = scalar_select %p176, %s177, %s178
    %p182 = pneg %p176
    %p183 = scmp.eq.s32.totalorder %s15, 1
    %p184 = por %p182, %p183
    %p185 = scmp.ne.s32.totalorder %s177, %s180
    %p186 = scmp.eq.s32.totalorder %s15, 0
    %p187 = por %p185, %p186
    %p188 = scmp.ne.s32.totalorder %s177, %s180
    %p189 = scmp.eq.s32.totalorder %s20, 1
    %p190 = por %p188, %p189
    %p191 = scmp.ne.s32.totalorder %s180, %s181
    %p192 = scmp.eq.s32.totalorder %s20, 0
    %p193 = por %p191, %p192
    %p194 = scmp.ne.s32.totalorder %s180, %s181
    %p195 = scmp.eq.s32.totalorder %s21, 1
    %p196 = por %p194, %p195
    %p198 = scmp.ne.s32.totalorder %s181, %s197
    %p199 = scmp.eq.s32.totalorder %s21, 0
    %p200 = por %p198, %p199
    %s201 = ssub.s32 %s15, %s22
    %p202 = scmp.eq.s32.totalorder %s201, 0
    %s204 = sadd.s32 %s203, 1
    %s205 = scalar_select %p202, %s203, %s204
    %p208 = pneg %p202
    %p209 = scmp.eq.s32.totalorder %s15, 1
    %p210 = por %p208, %p209
    %p211 = scmp.ne.s32.totalorder %s203, %s206
    %p212 = scmp.eq.s32.totalorder %s15, 0
    %p213 = por %p211, %p212
    %p214 = scmp.ne.s32.totalorder %s203, %s206
    %p215 = scmp.eq.s32.totalorder %s20, 1
    %p216 = por %p214, %p215
    %p217 = scmp.ne.s32.totalorder %s206, %s207
    %p218 = scmp.eq.s32.totalorder %s20, 0
    %p219 = por %p217, %p218
    %p220 = scmp.ne.s32.totalorder %s206, %s207
    %p221 = scmp.eq.s32.totalorder %s21, 1
    %p222 = por %p220, %p221
    %p224 = scmp.ne.s32.totalorder %s207, %s223
    %p225 = scmp.eq.s32.totalorder %s21, 0
    %p226 = por %p224, %p225
    %p227 = scmp.le.s32.totalorder 1, %s15
    %p228 = scmp.lt.s32.totalorder %s15, 3
    %p229 = pnand %p227, %p228
    %p230 = pneg %p229
    // Predicated region
    $region9: #{encoder_forward.14} parent=5 // pred_check
      _
    $region10: #{encoder_forward.14} parent=5 // pred_check_branch
      %232 = sbr.rel (%p229) target = $region12
    $region11: #{encoder_forward.14} parent=5 // pred_region
      %s233 = ssub.s32 %s15, 1
      // Predicated region
      $region13: #{encoder_forward.14} parent=11 // pred_check
        %p234 = pneg %p62
      $region14: #{encoder_forward.14} parent=11 // pred_check_branch
        %236 = sbr.rel (%p234) target = $region16
      $region15: #{encoder_forward.14} parent=11 // pred_region
        _
      $region16: #{encoder_forward.14} parent=11 // pred_fallthru
        _
      // Predicated region
      $region17: #{encoder_forward.14} parent=11 // pred_check
        %p237 = pneg %p83
      $region18: #{encoder_forward.14} parent=11 // pred_check_branch
        %239 = sbr.rel (%p237) target = $region20
      $region19: #{encoder_forward.14} parent=11 // pred_region
        _
      $region20: #{encoder_forward.14} parent=11 // pred_fallthru
        _
      // Predicated region
      $region21: #{encoder_forward.14} parent=11 // pred_check
        %p240 = pneg %p104
      $region22: #{encoder_forward.14} parent=11 // pred_check_branch
        %242 = sbr.rel (%p240) target = $region24
      $region23: #{encoder_forward.14} parent=11 // pred_region
        _
      $region24: #{encoder_forward.14} parent=11 // pred_fallthru
        _
      // Predicated region
      $region25: #{encoder_forward.14} parent=11 // pred_check
        %p243 = pneg %p125
      $region26: #{encoder_forward.14} parent=11 // pred_check_branch
        %245 = sbr.rel (%p243) target = $region28
      $region27: #{encoder_forward.14} parent=11 // pred_region
        _
      $region28: #{encoder_forward.14} parent=11 // pred_fallthru
        _
      // Predicated region
      $region29: #{encoder_forward.14} parent=11 // pred_check
        %p246 = pneg %p146
      $region30: #{encoder_forward.14} parent=11 // pred_check_branch
        %248 = sbr.rel (%p246) target = $region32
      $region31: #{encoder_forward.14} parent=11 // pred_region
        _
      $region32: #{encoder_forward.14} parent=11 // pred_fallthru
        _
      // Predicated region
      $region33: #{encoder_forward.14} parent=11 // pred_check
        %p249 = pneg %p167
      $region34: #{encoder_forward.14} parent=11 // pred_check_branch
        %251 = sbr.rel (%p249) target = $region36
      $region35: #{encoder_forward.14} parent=11 // pred_region
        _
      $region36: #{encoder_forward.14} parent=11 // pred_fallthru
        _
    $region12: #{encoder_forward.14} parent=5 // pred_fallthru
      _
    %p252 = scmp.lt.s32.totalorder %s15, 2
    // Predicated region
    $region37: #{encoder_forward.14} parent=5 // pred_check
      %p253 = pneg %p252
    $region38: #{encoder_forward.14} parent=5 // pred_check_branch
      %255 = sbr.rel (%p253) target = $region40
    $region39: #{encoder_forward.14} parent=5 // pred_region
      // Predicated region
      $region41: #{encoder_forward.14} parent=39 // pred_check
        %p256 = pneg %p35
      $region42: #{encoder_forward.14} parent=39 // pred_check_branch
        %258 = sbr.rel (%p256) target = $region44
      $region43: #{encoder_forward.14} parent=39 // pred_region
        %s259 = smul.u32 16, %s15
        %p260 = scmp.lt.s32.totalorder %s259, 31
        %s261 = scalar_select %p260, %s259, 31
        %s262 = smul.addr %s261, 8
        %s263 = scalar_lea.vmem %s0, %s262
        %s264 = smul.u32 16, %s15
      $region44: #{encoder_forward.14} parent=39 // pred_fallthru
        _
    $region40: #{encoder_forward.14} parent=5 // pred_fallthru
      _
    %p265 = scmp.le.s32.totalorder 1, %s15
    %p266 = scmp.lt.s32.totalorder %s15, 3
    %p267 = pnand %p265, %p266
    %p268 = pneg %p267
    // Predicated region
    $region45: #{encoder_forward.14} parent=5 // pred_check
      _
    $region46: #{encoder_forward.14} parent=5 // pred_check_branch
      %270 = sbr.rel (%p267) target = $region48
    $region47: #{encoder_forward.14} parent=5 // pred_region
      %s271 = ssub.s32 %s15, 1
      %s272 = smul.u32 16, %s20
      %p273 = scmp.lt.s32.totalorder %s272, 31
      %s274 = scalar_select %p273, %s272, 31
      %s275 = smul.addr %s274, 8
      %s276 = scalar_lea.vmem %s0, %s275
      %p277 = pneg %p41
      %p278 = pneg %p38
      %p279 = pneg %p62
      %p280 = pneg %p59
      %p281 = pneg %p83
      %p282 = pneg %p80
      %p283 = pneg %p104
      %p284 = pneg %p101
      %p285 = pneg %p125
      %p286 = pneg %p122
      %p287 = pneg %p146
      %p288 = pneg %p143
      %p289 = pneg %p167
      %p290 = pneg %p164
      %p291 = pneg %p193
      %p292 = pneg %p190
      %s293 = smul.u32 16, %s20
      %p294 = scmp.lt.s32.totalorder %s293, 31
      %s295 = scalar_select %p294, %s293, 31
      %s296 = smul.addr %s295, 8
      %s297 = scalar_lea.vmem %s7, %s296
      %p298 = pneg %p219
      %p299 = pneg %p216
      %p300 = scmp.lt.s32.totalorder %s20, 1
      %s301 = scalar_select %p300, %s20, 1
      %s302 = smul.addr %s301, 2
      %s303 = scalar_lea.vmem %s8, %s302
      %s304 = smul.u32 16, %s20
      %p305 = scmp.lt.s32.totalorder %s304, 31
      %s306 = scalar_select %p305, %s304, 31
      %s307 = smul.addr %s306, 8
      %s308 = scalar_lea.vmem %s0, %s307
      %s309 = smul.u32 16, %s20
      %s310 = smul.u32 16, %s20
      %p311 = scmp.lt.s32.totalorder %s310, 31
      %s312 = scalar_select %p311, %s310, 31
      %s313 = smul.addr %s312, 8
      %s314 = scalar_lea.vmem %s7, %s313
      %s315 = smul.u32 16, %s20
      %p316 = scmp.lt.s32.totalorder %s20, 1
      %s317 = scalar_select %p316, %s20, 1
      %s318 = smul.addr %s317, 2
      %s319 = scalar_lea.vmem %s8, %s318
      %v320 = vld [vmem:[%s308] sm:$0xff]
      %v321 = vld [vmem:[%s308 + $0x8] sm:$0xff]
      %v322 = vld [vmem:[%s308 + $0x10] sm:$0xff]
      %v323 = vld [vmem:[%s308 + $0x18] sm:$0xff]
      %v324 = vld [vmem:[%s308 + $0x20] sm:$0xff]
      %v325 = vld [vmem:[%s308 + $0x28] sm:$0xff]
      %v326 = vld [vmem:[%s308 + $0x30] sm:$0xff]
      %v327 = vld [vmem:[%s308 + $0x38] sm:$0xff]
      %v328 = vld [vmem:[%s308 + $0x40] sm:$0xff]
      %v329 = vld [vmem:[%s308 + $0x48] sm:$0xff]
      %v330 = vld [vmem:[%s308 + $0x50] sm:$0xff]
      %v331 = vld [vmem:[%s308 + $0x58] sm:$0xff]
      %v332 = vld [vmem:[%s308 + $0x60] sm:$0xff]
      %v333 = vld [vmem:[%s308 + $0x68] sm:$0xff]
      %v334 = vld [vmem:[%s308 + $0x70] sm:$0xff]
      %v335 = vld [vmem:[%s308 + $0x78] sm:$0xff]
      %v336 = vld [vmem:[%s1] sm:$0x1]
      %v338 = vlaneseq
      %v339 = vshrl.u32 %v338, 7
      %v340 = vsub.s32 0, %v339
      %v341 = vrot.slane %v336, %v340
      %v343 = vmul.f32 %v320, %v341
      %v344 = vmul.f32 %v321, %v341
      %v345 = vmul.f32 %v322, %v341
      %v346 = vmul.f32 %v323, %v341
      %v347 = vmul.f32 %v324, %v341
      %v348 = vmul.f32 %v325, %v341
      %v349 = vmul.f32 %v326, %v341
      %v350 = vmul.f32 %v327, %v341
      %v351 = vmul.f32 %v328, %v341
      %v352 = vmul.f32 %v329, %v341
      %v353 = vmul.f32 %v330, %v341
      %v354 = vmul.f32 %v331, %v341
      %v355 = vmul.f32 %v332, %v341
      %v356 = vmul.f32 %v333, %v341
      %v357 = vmul.f32 %v334, %v341
      %v358 = vmul.f32 %v335, %v341
      %v359 = vld [vmem:[%s2] sm:$0x1]
      %v361 = vlaneseq
      %v362 = vshrl.u32 %v361, 7
      %v363 = vsub.s32 0, %v362
      %v364 = vrot.slane %v359, %v363
      %v366 = vadd.f32 %v343, %v364
      %v367 = vadd.f32 %v344, %v364
      %v368 = vadd.f32 %v345, %v364
      %v369 = vadd.f32 %v346, %v364
      %v370 = vadd.f32 %v347, %v364
      %v371 = vadd.f32 %v348, %v364
      %v372 = vadd.f32 %v349, %v364
      %v373 = vadd.f32 %v350, %v364
      %v374 = vadd.f32 %v351, %v364
      %v375 = vadd.f32 %v352, %v364
      %v376 = vadd.f32 %v353, %v364
      %v377 = vadd.f32 %v354, %v364
      %v378 = vadd.f32 %v355, %v364
      %v379 = vadd.f32 %v356, %v364
      %v380 = vadd.f32 %v357, %v364
      %v381 = vadd.f32 %v358, %v364
      %v382 = vld [vmem:[%s3] sm:$0xff]
      %v383 = vld [vmem:[%s3 + $0x8] sm:$0xff]
      %v384 = vld [vmem:[%s3 + $0x10] sm:$0xff]
      %v385 = vld [vmem:[%s3 + $0x18] sm:$0xff]
      %v386 = vld [vmem:[%s3 + $0x20] sm:$0xff]
      %v387 = vld [vmem:[%s3 + $0x28] sm:$0xff]
      %v388 = vld [vmem:[%s3 + $0x30] sm:$0xff]
      %v389 = vld [vmem:[%s3 + $0x38] sm:$0xff]
      %v390 = vld [vmem:[%s3 + $0x40] sm:$0xff]
      %v391 = vld [vmem:[%s3 + $0x48] sm:$0xff]
      %v392 = vld [vmem:[%s3 + $0x50] sm:$0xff]
      %v393 = vld [vmem:[%s3 + $0x58] sm:$0xff]
      %v394 = vld [vmem:[%s3 + $0x60] sm:$0xff]
      %v395 = vld [vmem:[%s3 + $0x68] sm:$0xff]
      %v396 = vld [vmem:[%s3 + $0x70] sm:$0xff]
      %v397 = vld [vmem:[%s3 + $0x78] sm:$0xff]
      %v398 = vld [vmem:[%s3 + $0x80] sm:$0xff]
      %v399 = vld [vmem:[%s3 + $0x88] sm:$0xff]
      %v400 = vld [vmem:[%s3 + $0x90] sm:$0xff]
      %v401 = vld [vmem:[%s3 + $0x98] sm:$0xff]
      %v402 = vld [vmem:[%s3 + $0xa0] sm:$0xff]
      %v403 = vld [vmem:[%s3 + $0xa8] sm:$0xff]
      %v404 = vld [vmem:[%s3 + $0xb0] sm:$0xff]
      %v405 = vld [vmem:[%s3 + $0xb8] sm:$0xff]
      %v406 = vld [vmem:[%s3 + $0xc0] sm:$0xff]
      %v407 = vld [vmem:[%s3 + $0xc8] sm:$0xff]
      %v408 = vld [vmem:[%s3 + $0xd0] sm:$0xff]
      %v409 = vld [vmem:[%s3 + $0xd8] sm:$0xff]
      %v410 = vld [vmem:[%s3 + $0xe0] sm:$0xff]
      %v411 = vld [vmem:[%s3 + $0xe8] sm:$0xff]
      %v412 = vld [vmem:[%s3 + $0xf0] sm:$0xff]
      %v413 = vld [vmem:[%s3 + $0xf8] sm:$0xff]
      %v414 = vld [vmem:[%s3 + $0x100] sm:$0xff]
      %v415 = vld [vmem:[%s3 + $0x108] sm:$0xff]
      %v416 = vld [vmem:[%s3 + $0x110] sm:$0xff]
      %v417 = vld [vmem:[%s3 + $0x118] sm:$0xff]
      %v418 = vld [vmem:[%s3 + $0x120] sm:$0xff]
      %v419 = vld [vmem:[%s3 + $0x128] sm:$0xff]
      %v420 = vld [vmem:[%s3 + $0x130] sm:$0xff]
      %v421 = vld [vmem:[%s3 + $0x138] sm:$0xff]
      %v422 = vld [vmem:[%s3 + $0x140] sm:$0xff]
      %v423 = vld [vmem:[%s3 + $0x148] sm:$0xff]
      %v424 = vld [vmem:[%s3 + $0x150] sm:$0xff]
      %v425 = vld [vmem:[%s3 + $0x158] sm:$0xff]
      %v426 = vld [vmem:[%s3 + $0x160] sm:$0xff]
      %v427 = vld [vmem:[%s3 + $0x168] sm:$0xff]
      %v428 = vld [vmem:[%s3 + $0x170] sm:$0xff]
      %v429 = vld [vmem:[%s3 + $0x178] sm:$0xff]
      %v430 = vld [vmem:[%s3 + $0x180] sm:$0xff]
      %v431 = vld [vmem:[%s3 + $0x188] sm:$0xff]
      %v432 = vld [vmem:[%s3 + $0x190] sm:$0xff]
      %v433 = vld [vmem:[%s3 + $0x198] sm:$0xff]
      %v434 = vld [vmem:[%s3 + $0x1a0] sm:$0xff]
      %v435 = vld [vmem:[%s3 + $0x1a8] sm:$0xff]
      %v436 = vld [vmem:[%s3 + $0x1b0] sm:$0xff]
      %v437 = vld [vmem:[%s3 + $0x1b8] sm:$0xff]
      %v438 = vld [vmem:[%s3 + $0x1c0] sm:$0xff]
      %v439 = vld [vmem:[%s3 + $0x1c8] sm:$0xff]
      %v440 = vld [vmem:[%s3 + $0x1d0] sm:$0xff]
      %v441 = vld [vmem:[%s3 + $0x1d8] sm:$0xff]
      %v442 = vld [vmem:[%s3 + $0x1e0] sm:$0xff]
      %v443 = vld [vmem:[%s3 + $0x1e8] sm:$0xff]
      %v444 = vld [vmem:[%s3 + $0x1f0] sm:$0xff]
      %v445 = vld [vmem:[%s3 + $0x1f8] sm:$0xff]
      %v446 = vld [vmem:[%s4] sm:$0xf]
      %v448 = vlaneseq
      %v449 = vshrl.u32 %v448, 7
      %v450 = vsub.s32 0, %v449
      %v451 = vrot.slane %v446, %v450
      %v452 = vlaneseq
      %v453 = vshrl.u32 %v452, 7
      %v454 = vsub.s32 1, %v453
      %v455 = vrot.slane %v446, %v454
      %v456 = vlaneseq
      %v457 = vshrl.u32 %v456, 7
      %v458 = vsub.s32 2, %v457
      %v459 = vrot.slane %v446, %v458
      %v460 = vlaneseq
      %v461 = vshrl.u32 %v460, 7
      %v462 = vsub.s32 3, %v461
      %v463 = vrot.slane %v446, %v462
      %468 = vmatprep.subr.mxu0 %v443
      %469 = vmatpush1.msra.mxu0 %v442
      %470 = vmatprep.subr.mxu0 %v439
      %471 = vmatpush1.msra.mxu0 %v438
      %472 = vmatprep.subr.mxu0 %v435
      %473 = vmatpush1.msra.mxu0 %v434
      %474 = vmatprep.subr.mxu0 %v431
      %475 = vmatpush1.msra.mxu0 %v430
      %476 = vmatprep.subr.mxu0 %v427
      %477 = vmatpush1.msra.mxu0 %v426
      %478 = vmatprep.subr.mxu0 %v423
      %479 = vmatpush1.msra.mxu0 %v422
      %480 = vmatprep.subr.mxu0 %v419
      %481 = vmatpush1.msra.mxu0 %v418
      %482 = vmatprep.subr.mxu0 %v415
      %483 = vmatpush1.msra.mxu0 %v414
      %484 = vmatprep.subr.mxu0 %v411
      %485 = vmatpush1.msra.mxu0 %v410
      %486 = vmatprep.subr.mxu0 %v407
      %487 = vmatpush1.msra.mxu0 %v406
      %488 = vmatprep.subr.mxu0 %v403
      %489 = vmatpush1.msra.mxu0 %v402
      %490 = vmatprep.subr.mxu0 %v399
      %491 = vmatpush1.msra.mxu0 %v398
      %492 = vmatprep.subr.mxu0 %v395
      %493 = vmatpush1.msra.mxu0 %v394
      %494 = vmatprep.subr.mxu0 %v391
      %495 = vmatpush1.msra.mxu0 %v390
      %496 = vmatprep.subr.mxu0 %v387
      %497 = vmatpush1.msra.mxu0 %v386
      %498 = vmatprep.subr.mxu0 %v383
      %499 = vmatpush1.msra.mxu0 %v382
      %500 = vmatprep.subr.mxu0 0.0
      %501 = vmatpush2.msra.mxu0 0.0
      %502 = vmatprep.subr.mxu0 0.0
      %503 = vmatpush2.msra.mxu0 0.0
      %504 = vmatprep.subr.mxu0 0.0
      %505 = vmatpush2.msra.mxu0 0.0
      %506 = vmatprep.subr.mxu0 0.0
      %507 = vmatpush2.msra.mxu0 0.0
      %508 = vmatprep.subr.mxu0 0.0
      %509 = vmatpush2.msra.mxu0 0.0
      %510 = vmatprep.subr.mxu0 0.0
      %511 = vmatpush2.msra.mxu0 0.0
      %512 = vmatprep.subr.mxu0 0.0
      %513 = vmatpush2.msra.mxu0 0.0
      %514 = vmatprep.subr.mxu0 0.0
      %515 = vmatpush2.msra.mxu0 0.0
      %516 = vmatprep.subr.mxu0 0.0
      %517 = vmatpush2.msra.mxu0 0.0
      %518 = vmatprep.subr.mxu0 0.0
      %519 = vmatpush2.msra.mxu0 0.0
      %520 = vmatprep.subr.mxu0 0.0
      %521 = vmatpush2.msra.mxu0 0.0
      %522 = vmatprep.subr.mxu0 0.0
      %523 = vmatpush2.msra.mxu0 0.0
      %524 = vmatprep.subr.mxu0 0.0
      %525 = vmatpush2.msra.mxu0 0.0
      %526 = vmatprep.subr.mxu0 0.0
      %527 = vmatpush2.msra.mxu0 0.0
      %528 = vmatprep.subr.mxu0 0.0
      %529 = vmatpush2.msra.mxu0 0.0
      %530 = vmatprep.subr.mxu0 0.0
      %531 = vmatpush2.msra.mxu0 0.0
      %532 = vmatprep.mubr.f32.mxu0 0.0
      %533 = vmatmul.mubr.f32.gmra.mxu0 %v366
      %v534 = vpop.f32.mrf.mxu0
      %v535 = vadd.f32 %v451, %v534
      %v536 = vpop.f32.mrf.mxu0
      %v537 = vadd.f32 %v455, %v536
      %538 = vmatprep.mubr.f32.mxu0 0.0
      %539 = vmatmul.mubr.f32.gmra.mxu0 %v367
      %v540 = vpop.f32.mrf.mxu0
      %v541 = vadd.f32 %v451, %v540
      %v542 = vpop.f32.mrf.mxu0
      %v543 = vadd.f32 %v455, %v542
      %544 = vmatprep.mubr.f32.mxu0 0.0
      %545 = vmatmul.mubr.f32.gmra.mxu0 %v368
      %v546 = vpop.f32.mrf.mxu0
      %v547 = vadd.f32 %v451, %v546
      %v548 = vpop.f32.mrf.mxu0
      %v549 = vadd.f32 %v455, %v548
      %550 = vmatprep.mubr.f32.mxu0 0.0
      %551 = vmatmul.mubr.f32.gmra.mxu0 %v369
      %v552 = vpop.f32.mrf.mxu0
      %v553 = vadd.f32 %v451, %v552
      %v554 = vpop.f32.mrf.mxu0
      %v555 = vadd.f32 %v455, %v554
      %556 = vmatprep.mubr.f32.mxu0 0.0
      %557 = vmatmul.mubr.f32.gmra.mxu0 %v370
      %v558 = vpop.f32.mrf.mxu0
      %v559 = vadd.f32 %v451, %v558
      %v560 = vpop.f32.mrf.mxu0
      %v561 = vadd.f32 %v455, %v560
      %562 = vmatprep.mubr.f32.mxu0 0.0
      %563 = vmatmul.mubr.f32.gmra.mxu0 %v371
      %v564 = vpop.f32.mrf.mxu0
      %v565 = vadd.f32 %v451, %v564
      %v566 = vpop.f32.mrf.mxu0
      %v567 = vadd.f32 %v455, %v566
      %568 = vmatprep.mubr.f32.mxu0 0.0
      %569 = vmatmul.mubr.f32.gmra.mxu0 %v372
      %v570 = vpop.f32.mrf.mxu0
      %v571 = vadd.f32 %v451, %v570
      %v572 = vpop.f32.mrf.mxu0
      %v573 = vadd.f32 %v455, %v572
      %574 = vmatprep.mubr.f32.mxu0 0.0
      %575 = vmatmul.mubr.f32.gmra.mxu0 %v373
      %v576 = vpop.f32.mrf.mxu0
      %v577 = vadd.f32 %v451, %v576
      %v578 = vpop.f32.mrf.mxu0
      %v579 = vadd.f32 %v455, %v578
      %580 = vmatprep.mubr.f32.mxu0 0.0
      %581 = vmatmul.mubr.f32.gmra.mxu0 %v374
      %v582 = vpop.f32.mrf.mxu0
      %v583 = vadd.f32 %v451, %v582
      %v584 = vpop.f32.mrf.mxu0
      %v585 = vadd.f32 %v455, %v584
      %586 = vmatprep.mubr.f32.mxu0 0.0
      %587 = vmatmul.mubr.f32.gmra.mxu0 %v375
      %v588 = vpop.f32.mrf.mxu0
      %v589 = vadd.f32 %v451, %v588
      %v590 = vpop.f32.mrf.mxu0
      %v591 = vadd.f32 %v455, %v590
      %592 = vmatprep.mubr.f32.mxu0 0.0
      %593 = vmatmul.mubr.f32.gmra.mxu0 %v376
      %v594 = vpop.f32.mrf.mxu0
      %v595 = vadd.f32 %v451, %v594
      %v596 = vpop.f32.mrf.mxu0
      %v597 = vadd.f32 %v455, %v596
      %598 = vmatprep.mubr.f32.mxu0 0.0
      %599 = vmatmul.mubr.f32.gmra.mxu0 %v377
      %v600 = vpop.f32.mrf.mxu0
      %v601 = vadd.f32 %v451, %v600
      %v602 = vpop.f32.mrf.mxu0
      %v603 = vadd.f32 %v455, %v602
      %604 = vmatprep.mubr.f32.mxu0 0.0
      %605 = vmatmul.mubr.f32.gmra.mxu0 %v378
      %v606 = vpop.f32.mrf.mxu0
      %v607 = vadd.f32 %v451, %v606
      %v608 = vpop.f32.mrf.mxu0
      %v609 = vadd.f32 %v455, %v608
      %610 = vmatprep.mubr.f32.mxu0 0.0
      %611 = vmatmul.mubr.f32.gmra.mxu0 %v379
      %v612 = vpop.f32.mrf.mxu0
      %v613 = vadd.f32 %v451, %v612
      %v614 = vpop.f32.mrf.mxu0
      %v615 = vadd.f32 %v455, %v614
      %616 = vmatprep.mubr.f32.mxu0 0.0
      %617 = vmatmul.mubr.f32.gmra.mxu0 %v380
      %v618 = vpop.f32.mrf.mxu0
      %v619 = vadd.f32 %v451, %v618
      %v620 = vpop.f32.mrf.mxu0
      %v621 = vadd.f32 %v455, %v620
      %622 = vmatprep.mubr.f32.mxu0 0.0
      %623 = vmatmul.mubr.f32.gmra.mxu0 %v381
      %v624 = vpop.f32.mrf.mxu0
      %v625 = vadd.f32 %v451, %v624
      %v626 = vpop.f32.mrf.mxu0
      %v627 = vadd.f32 %v455, %v626
      %628 = vdwg.mxu0
      %629 = vmatprep.subr.mxu0 %v445
      %630 = vmatpush1.msra.mxu0 %v444
      %631 = vmatprep.subr.mxu0 %v441
      %632 = vmatpush1.msra.mxu0 %v440
      %633 = vmatprep.subr.mxu0 %v437
      %634 = vmatpush1.msra.mxu0 %v436
      %635 = vmatprep.subr.mxu0 %v433
      %636 = vmatpush1.msra.mxu0 %v432
      %637 = vmatprep.subr.mxu0 %v429
      %638 = vmatpush1.msra.mxu0 %v428
      %639 = vmatprep.subr.mxu0 %v425
      %640 = vmatpush1.msra.mxu0 %v424
      %641 = vmatprep.subr.mxu0 %v421
      %642 = vmatpush1.msra.mxu0 %v420
      %643 = vmatprep.subr.mxu0 %v417
      %644 = vmatpush1.msra.mxu0 %v416
      %645 = vmatprep.subr.mxu0 %v413
      %646 = vmatpush1.msra.mxu0 %v412
      %647 = vmatprep.subr.mxu0 %v409
      %648 = vmatpush1.msra.mxu0 %v408
      %649 = vmatprep.subr.mxu0 %v405
      %650 = vmatpush1.msra.mxu0 %v404
      %651 = vmatprep.subr.mxu0 %v401
      %652 = vmatpush1.msra.mxu0 %v400
      %653 = vmatprep.subr.mxu0 %v397
      %654 = vmatpush1.msra.mxu0 %v396
      %655 = vmatprep.subr.mxu0 %v393
      %656 = vmatpush1.msra.mxu0 %v392
      %657 = vmatprep.subr.mxu0 %v389
      %658 = vmatpush1.msra.mxu0 %v388
      %659 = vmatprep.subr.mxu0 %v385
      %660 = vmatpush1.msra.mxu0 %v384
      %661 = vmatprep.subr.mxu0 0.0
      %662 = vmatpush2.msra.mxu0 0.0
      %663 = vmatprep.subr.mxu0 0.0
      %664 = vmatpush2.msra.mxu0 0.0
      %665 = vmatprep.subr.mxu0 0.0
      %666 = vmatpush2.msra.mxu0 0.0
      %667 = vmatprep.subr.mxu0 0.0
      %668 = vmatpush2.msra.mxu0 0.0
      %669 = vmatprep.subr.mxu0 0.0
      %670 = vmatpush2.msra.mxu0 0.0
      %671 = vmatprep.subr.mxu0 0.0
      %672 = vmatpush2.msra.mxu0 0.0
      %673 = vmatprep.subr.mxu0 0.0
      %674 = vmatpush2.msra.mxu0 0.0
      %675 = vmatprep.subr.mxu0 0.0
      %676 = vmatpush2.msra.mxu0 0.0
      %677 = vmatprep.subr.mxu0 0.0
      %678 = vmatpush2.msra.mxu0 0.0
      %679 = vmatprep.subr.mxu0 0.0
      %680 = vmatpush2.msra.mxu0 0.0
      %681 = vmatprep.subr.mxu0 0.0
      %682 = vmatpush2.msra.mxu0 0.0
      %683 = vmatprep.subr.mxu0 0.0
      %684 = vmatpush2.msra.mxu0 0.0
      %685 = vmatprep.subr.mxu0 0.0
      %686 = vmatpush2.msra.mxu0 0.0
      %687 = vmatprep.subr.mxu0 0.0
      %688 = vmatpush2.msra.mxu0 0.0
      %689 = vmatprep.subr.mxu0 0.0
      %690 = vmatpush2.msra.mxu0 0.0
      %691 = vmatprep.subr.mxu0 0.0
      %692 = vmatpush2.msra.mxu0 0.0
      %693 = vmatprep.mubr.f32.mxu0 0.0
      %694 = vmatmul.mubr.f32.gmra.mxu0 %v366
      %v695 = vpop.f32.mrf.mxu0
      %v696 = vadd.f32 %v459, %v695
      %v697 = vpop.f32.mrf.mxu0
      %v698 = vadd.f32 %v463, %v697
      %699 = vmatprep.mubr.f32.mxu0 0.0
      %700 = vmatmul.mubr.f32.gmra.mxu0 %v367
      %v701 = vpop.f32.mrf.mxu0
      %v702 = vadd.f32 %v459, %v701
      %v703 = vpop.f32.mrf.mxu0
      %v704 = vadd.f32 %v463, %v703
      %705 = vmatprep.mubr.f32.mxu0 0.0
      %706 = vmatmul.mubr.f32.gmra.mxu0 %v368
      %v707 = vpop.f32.mrf.mxu0
      %v708 = vadd.f32 %v459, %v707
      %v709 = vpop.f32.mrf.mxu0
      %v710 = vadd.f32 %v463, %v709
      %711 = vmatprep.mubr.f32.mxu0 0.0
      %712 = vmatmul.mubr.f32.gmra.mxu0 %v369
      %v713 = vpop.f32.mrf.mxu0
      %v714 = vadd.f32 %v459, %v713
      %v715 = vpop.f32.mrf.mxu0
      %v716 = vadd.f32 %v463, %v715
      %717 = vmatprep.mubr.f32.mxu0 0.0
      %718 = vmatmul.mubr.f32.gmra.mxu0 %v370
      %v719 = vpop.f32.mrf.mxu0
      %v720 = vadd.f32 %v459, %v719
      %v721 = vpop.f32.mrf.mxu0
      %v722 = vadd.f32 %v463, %v721
      %723 = vmatprep.mubr.f32.mxu0 0.0
      %724 = vmatmul.mubr.f32.gmra.mxu0 %v371
      %v725 = vpop.f32.mrf.mxu0
      %v726 = vadd.f32 %v459, %v725
      %v727 = vpop.f32.mrf.mxu0
      %v728 = vadd.f32 %v463, %v727
      %729 = vmatprep.mubr.f32.mxu0 0.0
      %730 = vmatmul.mubr.f32.gmra.mxu0 %v372
      %v731 = vpop.f32.mrf.mxu0
      %v732 = vadd.f32 %v459, %v731
      %v733 = vpop.f32.mrf.mxu0
      %v734 = vadd.f32 %v463, %v733
      %735 = vmatprep.mubr.f32.mxu0 0.0
      %736 = vmatmul.mubr.f32.gmra.mxu0 %v373
      %v737 = vpop.f32.mrf.mxu0
      %v738 = vadd.f32 %v459, %v737
      %v739 = vpop.f32.mrf.mxu0
      %v740 = vadd.f32 %v463, %v739
      %741 = vmatprep.mubr.f32.mxu0 0.0
      %742 = vmatmul.mubr.f32.gmra.mxu0 %v374
      %v743 = vpop.f32.mrf.mxu0
      %v744 = vadd.f32 %v459, %v743
      %v745 = vpop.f32.mrf.mxu0
      %v746 = vadd.f32 %v463, %v745
      %747 = vmatprep.mubr.f32.mxu0 0.0
      %748 = vmatmul.mubr.f32.gmra.mxu0 %v375
      %v749 = vpop.f32.mrf.mxu0
      %v750 = vadd.f32 %v459, %v749
      %v751 = vpop.f32.mrf.mxu0
      %v752 = vadd.f32 %v463, %v751
      %753 = vmatprep.mubr.f32.mxu0 0.0
      %754 = vmatmul.mubr.f32.gmra.mxu0 %v376
      %v755 = vpop.f32.mrf.mxu0
      %v756 = vadd.f32 %v459, %v755
      %v757 = vpop.f32.mrf.mxu0
      %v758 = vadd.f32 %v463, %v757
      %759 = vmatprep.mubr.f32.mxu0 0.0
      %760 = vmatmul.mubr.f32.gmra.mxu0 %v377
      %v761 = vpop.f32.mrf.mxu0
      %v762 = vadd.f32 %v459, %v761
      %v763 = vpop.f32.mrf.mxu0
      %v764 = vadd.f32 %v463, %v763
      %765 = vmatprep.mubr.f32.mxu0 0.0
      %766 = vmatmul.mubr.f32.gmra.mxu0 %v378
      %v767 = vpop.f32.mrf.mxu0
      %v768 = vadd.f32 %v459, %v767
      %v769 = vpop.f32.mrf.mxu0
      %v770 = vadd.f32 %v463, %v769
      %771 = vmatprep.mubr.f32.mxu0 0.0
      %772 = vmatmul.mubr.f32.gmra.mxu0 %v379
      %v773 = vpop.f32.mrf.mxu0
      %v774 = vadd.f32 %v459, %v773
      %v775 = vpop.f32.mrf.mxu0
      %v776 = vadd.f32 %v463, %v775
      %777 = vmatprep.mubr.f32.mxu0 0.0
      %778 = vmatmul.mubr.f32.gmra.mxu0 %v380
      %v779 = vpop.f32.mrf.mxu0
      %v780 = vadd.f32 %v459, %v779
      %v781 = vpop.f32.mrf.mxu0
      %v782 = vadd.f32 %v463, %v781
      %783 = vmatprep.mubr.f32.mxu0 0.0
      %784 = vmatmul.mubr.f32.gmra.mxu0 %v381
      %v785 = vpop.f32.mrf.mxu0
      %v786 = vadd.f32 %v459, %v785
      %v787 = vpop.f32.mrf.mxu0
      %v788 = vadd.f32 %v463, %v787
      %789 = vdwg.mxu0
      %v790 = vmax.f32 %v535, 0.0
      %v791 = vmax.f32 %v537, 0.0
      %v792 = vmax.f32 %v696, 0.0
      %v793 = vmax.f32 %v698, 0.0
      %v794 = vmax.f32 %v541, 0.0
      %v795 = vmax.f32 %v543, 0.0
      %v796 = vmax.f32 %v702, 0.0
      %v797 = vmax.f32 %v704, 0.0
      %v798 = vmax.f32 %v547, 0.0
      %v799 = vmax.f32 %v549, 0.0
      %v800 = vmax.f32 %v708, 0.0
      %v801 = vmax.f32 %v710, 0.0
      %v802 = vmax.f32 %v553, 0.0
      %v803 = vmax.f32 %v555, 0.0
      %v804 = vmax.f32 %v714, 0.0
      %v805 = vmax.f32 %v716, 0.0
      %v806 = vmax.f32 %v559, 0.0
      %v807 = vmax.f32 %v561, 0.0
      %v808 = vmax.f32 %v720, 0.0
      %v809 = vmax.f32 %v722, 0.0
      %v810 = vmax.f32 %v565, 0.0
      %v811 = vmax.f32 %v567, 0.0
      %v812 = vmax.f32 %v726, 0.0
      %v813 = vmax.f32 %v728, 0.0
      %v814 = vmax.f32 %v571, 0.0
      %v815 = vmax.f32 %v573, 0.0
      %v816 = vmax.f32 %v732, 0.0
      %v817 = vmax.f32 %v734, 0.0
      %v818 = vmax.f32 %v577, 0.0
      %v819 = vmax.f32 %v579, 0.0
      %v820 = vmax.f32 %v738, 0.0
      %v821 = vmax.f32 %v740, 0.0
      %v822 = vmax.f32 %v583, 0.0
      %v823 = vmax.f32 %v585, 0.0
      %v824 = vmax.f32 %v744, 0.0
      %v825 = vmax.f32 %v746, 0.0
      %v826 = vmax.f32 %v589, 0.0
      %v827 = vmax.f32 %v591, 0.0
      %v828 = vmax.f32 %v750, 0.0
      %v829 = vmax.f32 %v752, 0.0
      %v830 = vmax.f32 %v595, 0.0
      %v831 = vmax.f32 %v597, 0.0
      %v832 = vmax.f32 %v756, 0.0
      %v833 = vmax.f32 %v758, 0.0
      %v834 = vmax.f32 %v601, 0.0
      %v835 = vmax.f32 %v603, 0.0
      %v836 = vmax.f32 %v762, 0.0
      %v837 = vmax.f32 %v764, 0.0
      %v838 = vmax.f32 %v607, 0.0
      %v839 = vmax.f32 %v609, 0.0
      %v840 = vmax.f32 %v768, 0.0
      %v841 = vmax.f32 %v770, 0.0
      %v842 = vmax.f32 %v613, 0.0
      %v843 = vmax.f32 %v615, 0.0
      %v844 = vmax.f32 %v774, 0.0
      %v845 = vmax.f32 %v776, 0.0
      %v846 = vmax.f32 %v619, 0.0
      %v847 = vmax.f32 %v621, 0.0
      %v848 = vmax.f32 %v780, 0.0
      %v849 = vmax.f32 %v782, 0.0
      %v850 = vmax.f32 %v625, 0.0
      %v851 = vmax.f32 %v627, 0.0
      %v852 = vmax.f32 %v786, 0.0
      %v853 = vmax.f32 %v788, 0.0
      %v854 = vld [vmem:[%s5] sm:$0xff]
      %v855 = vld [vmem:[%s5 + $0x8] sm:$0xff]
      %v856 = vld [vmem:[%s5 + $0x10] sm:$0xff]
      %v857 = vld [vmem:[%s5 + $0x18] sm:$0xff]
      %v858 = vld [vmem:[%s5 + $0x20] sm:$0xff]
      %v859 = vld [vmem:[%s5 + $0x28] sm:$0xff]
      %v860 = vld [vmem:[%s5 + $0x30] sm:$0xff]
      %v861 = vld [vmem:[%s5 + $0x38] sm:$0xff]
      %v862 = vld [vmem:[%s5 + $0x40] sm:$0xff]
      %v863 = vld [vmem:[%s5 + $0x48] sm:$0xff]
      %v864 = vld [vmem:[%s5 + $0x50] sm:$0xff]
      %v865 = vld [vmem:[%s5 + $0x58] sm:$0xff]
      %v866 = vld [vmem:[%s5 + $0x60] sm:$0xff]
      %v867 = vld [vmem:[%s5 + $0x68] sm:$0xff]
      %v868 = vld [vmem:[%s5 + $0x70] sm:$0xff]
      %v869 = vld [vmem:[%s5 + $0x78] sm:$0xff]
      %v870 = vld [vmem:[%s5 + $0x80] sm:$0xff]
      %v871 = vld [vmem:[%s5 + $0x88] sm:$0xff]
      %v872 = vld [vmem:[%s5 + $0x90] sm:$0xff]
      %v873 = vld [vmem:[%s5 + $0x98] sm:$0xff]
      %v874 = vld [vmem:[%s5 + $0xa0] sm:$0xff]
      %v875 = vld [vmem:[%s5 + $0xa8] sm:$0xff]
      %v876 = vld [vmem:[%s5 + $0xb0] sm:$0xff]
      %v877 = vld [vmem:[%s5 + $0xb8] sm:$0xff]
      %v878 = vld [vmem:[%s5 + $0xc0] sm:$0xff]
      %v879 = vld [vmem:[%s5 + $0xc8] sm:$0xff]
      %v880 = vld [vmem:[%s5 + $0xd0] sm:$0xff]
      %v881 = vld [vmem:[%s5 + $0xd8] sm:$0xff]
      %v882 = vld [vmem:[%s5 + $0xe0] sm:$0xff]
      %v883 = vld [vmem:[%s5 + $0xe8] sm:$0xff]
      %v884 = vld [vmem:[%s5 + $0xf0] sm:$0xff]
      %v885 = vld [vmem:[%s5 + $0xf8] sm:$0xff]
      %v886 = vld [vmem:[%s5 + $0x100] sm:$0xff]
      %v887 = vld [vmem:[%s5 + $0x108] sm:$0xff]
      %v888 = vld [vmem:[%s5 + $0x110] sm:$0xff]
      %v889 = vld [vmem:[%s5 + $0x118] sm:$0xff]
      %v890 = vld [vmem:[%s5 + $0x120] sm:$0xff]
      %v891 = vld [vmem:[%s5 + $0x128] sm:$0xff]
      %v892 = vld [vmem:[%s5 + $0x130] sm:$0xff]
      %v893 = vld [vmem:[%s5 + $0x138] sm:$0xff]
      %v894 = vld [vmem:[%s5 + $0x140] sm:$0xff]
      %v895 = vld [vmem:[%s5 + $0x148] sm:$0xff]
      %v896 = vld [vmem:[%s5 + $0x150] sm:$0xff]
      %v897 = vld [vmem:[%s5 + $0x158] sm:$0xff]
      %v898 = vld [vmem:[%s5 + $0x160] sm:$0xff]
      %v899 = vld [vmem:[%s5 + $0x168] sm:$0xff]
      %v900 = vld [vmem:[%s5 + $0x170] sm:$0xff]
      %v901 = vld [vmem:[%s5 + $0x178] sm:$0xff]
      %v902 = vld [vmem:[%s5 + $0x180] sm:$0xff]
      %v903 = vld [vmem:[%s5 + $0x188] sm:$0xff]
      %v904 = vld [vmem:[%s5 + $0x190] sm:$0xff]
      %v905 = vld [vmem:[%s5 + $0x198] sm:$0xff]
      %v906 = vld [vmem:[%s5 + $0x1a0] sm:$0xff]
      %v907 = vld [vmem:[%s5 + $0x1a8] sm:$0xff]
      %v908 = vld [vmem:[%s5 + $0x1b0] sm:$0xff]
      %v909 = vld [vmem:[%s5 + $0x1b8] sm:$0xff]
      %v910 = vld [vmem:[%s5 + $0x1c0] sm:$0xff]
      %v911 = vld [vmem:[%s5 + $0x1c8] sm:$0xff]
      %v912 = vld [vmem:[%s5 + $0x1d0] sm:$0xff]
      %v913 = vld [vmem:[%s5 + $0x1d8] sm:$0xff]
      %v914 = vld [vmem:[%s5 + $0x1e0] sm:$0xff]
      %v915 = vld [vmem:[%s5 + $0x1e8] sm:$0xff]
      %v916 = vld [vmem:[%s5 + $0x1f0] sm:$0xff]
      %v917 = vld [vmem:[%s5 + $0x1f8] sm:$0xff]
      %v918 = vld [vmem:[%s6] sm:$0x1]
      %v920 = vlaneseq
      %v921 = vshrl.u32 %v920, 7
      %v922 = vsub.s32 0, %v921
      %v923 = vrot.slane %v918, %v922
      %925 = vmatprep.subr.mxu0 0.0
      %926 = vmatpush1.msra.mxu0 %v869
      %927 = vmatprep.subr.mxu0 0.0
      %928 = vmatpush1.msra.mxu0 %v868
      %929 = vmatprep.subr.mxu0 0.0
      %930 = vmatpush1.msra.mxu0 %v867
      %931 = vmatprep.subr.mxu0 0.0
      %932 = vmatpush1.msra.mxu0 %v866
      %933 = vmatprep.subr.mxu0 0.0
      %934 = vmatpush1.msra.mxu0 %v865
      %935 = vmatprep.subr.mxu0 0.0
      %936 = vmatpush1.msra.mxu0 %v864
      %937 = vmatprep.subr.mxu0 0.0
      %938 = vmatpush1.msra.mxu0 %v863
      %939 = vmatprep.subr.mxu0 0.0
      %940 = vmatpush1.msra.mxu0 %v862
      %941 = vmatprep.subr.mxu0 0.0
      %942 = vmatpush1.msra.mxu0 %v861
      %943 = vmatprep.subr.mxu0 0.0
      %944 = vmatpush1.msra.mxu0 %v860
      %945 = vmatprep.subr.mxu0 0.0
      %946 = vmatpush1.msra.mxu0 %v859
      %947 = vmatprep.subr.mxu0 0.0
      %948 = vmatpush1.msra.mxu0 %v858
      %949 = vmatprep.subr.mxu0 0.0
      %950 = vmatpush1.msra.mxu0 %v857
      %951 = vmatprep.subr.mxu0 0.0
      %952 = vmatpush1.msra.mxu0 %v856
      %953 = vmatprep.subr.mxu0 0.0
      %954 = vmatpush1.msra.mxu0 %v855
      %955 = vmatprep.subr.mxu0 0.0
      %956 = vmatpush1.msra.mxu0 %v854
      %957 = vmatprep.subr.mxu0 0.0
      %958 = vmatpush2.msra.mxu0 %v885
      %959 = vmatprep.subr.mxu0 0.0
      %960 = vmatpush2.msra.mxu0 %v884
      %961 = vmatprep.subr.mxu0 0.0
      %962 = vmatpush2.msra.mxu0 %v883
      %963 = vmatprep.subr.mxu0 0.0
      %964 = vmatpush2.msra.mxu0 %v882
      %965 = vmatprep.subr.mxu0 0.0
      %966 = vmatpush2.msra.mxu0 %v881
      %967 = vmatprep.subr.mxu0 0.0
      %968 = vmatpush2.msra.mxu0 %v880
      %969 = vmatprep.subr.mxu0 0.0
      %970 = vmatpush2.msra.mxu0 %v879
      %971 = vmatprep.subr.mxu0 0.0
      %972 = vmatpush2.msra.mxu0 %v878
      %973 = vmatprep.subr.mxu0 0.0
      %974 = vmatpush2.msra.mxu0 %v877
      %975 = vmatprep.subr.mxu0 0.0
      %976 = vmatpush2.msra.mxu0 %v876
      %977 = vmatprep.subr.mxu0 0.0
      %978 = vmatpush2.msra.mxu0 %v875
      %979 = vmatprep.subr.mxu0 0.0
      %980 = vmatpush2.msra.mxu0 %v874
      %981 = vmatprep.subr.mxu0 0.0
      %982 = vmatpush2.msra.mxu0 %v873
      %983 = vmatprep.subr.mxu0 0.0
      %984 = vmatpush2.msra.mxu0 %v872
      %985 = vmatprep.subr.mxu0 0.0
      %986 = vmatpush2.msra.mxu0 %v871
      %987 = vmatprep.subr.mxu0 0.0
      %988 = vmatpush2.msra.mxu0 %v870
      %989 = vmatprep.mubr.f32.mxu0 %v791
      %990 = vmatmul.mubr.f32.gmra.mxu0 %v790
      %v991 = vpop.f32.mrf.mxu0
      %v992 = vadd.f32 %v923, %v991
      %v993 = vpop.f32.mrf.mxu0
      %994 = vmatprep.mubr.f32.mxu0 %v795
      %995 = vmatmul.mubr.f32.gmra.mxu0 %v794
      %v996 = vpop.f32.mrf.mxu0
      %v997 = vadd.f32 %v923, %v996
      %v998 = vpop.f32.mrf.mxu0
      %999 = vmatprep.mubr.f32.mxu0 %v799
      %1000 = vmatmul.mubr.f32.gmra.mxu0 %v798
      %v1001 = vpop.f32.mrf.mxu0
      %v1002 = vadd.f32 %v923, %v1001
      %v1003 = vpop.f32.mrf.mxu0
      %1004 = vmatprep.mubr.f32.mxu0 %v803
      %1005 = vmatmul.mubr.f32.gmra.mxu0 %v802
      %v1006 = vpop.f32.mrf.mxu0
      %v1007 = vadd.f32 %v923, %v1006
      %v1008 = vpop.f32.mrf.mxu0
      %1009 = vmatprep.mubr.f32.mxu0 %v807
      %1010 = vmatmul.mubr.f32.gmra.mxu0 %v806
      %v1011 = vpop.f32.mrf.mxu0
      %v1012 = vadd.f32 %v923, %v1011
      %v1013 = vpop.f32.mrf.mxu0
      %1014 = vmatprep.mubr.f32.mxu0 %v811
      %1015 = vmatmul.mubr.f32.gmra.mxu0 %v810
      %v1016 = vpop.f32.mrf.mxu0
      %v1017 = vadd.f32 %v923, %v1016
      %v1018 = vpop.f32.mrf.mxu0
      %1019 = vmatprep.mubr.f32.mxu0 %v815
      %1020 = vmatmul.mubr.f32.gmra.mxu0 %v814
      %v1021 = vpop.f32.mrf.mxu0
      %v1022 = vadd.f32 %v923, %v1021
      %v1023 = vpop.f32.mrf.mxu0
      %1024 = vmatprep.mubr.f32.mxu0 %v819
      %1025 = vmatmul.mubr.f32.gmra.mxu0 %v818
      %v1026 = vpop.f32.mrf.mxu0
      %v1027 = vadd.f32 %v923, %v1026
      %v1028 = vpop.f32.mrf.mxu0
      %1029 = vmatprep.mubr.f32.mxu0 %v823
      %1030 = vmatmul.mubr.f32.gmra.mxu0 %v822
      %v1031 = vpop.f32.mrf.mxu0
      %v1032 = vadd.f32 %v923, %v1031
      %v1033 = vpop.f32.mrf.mxu0
      %1034 = vmatprep.mubr.f32.mxu0 %v827
      %1035 = vmatmul.mubr.f32.gmra.mxu0 %v826
      %v1036 = vpop.f32.mrf.mxu0
      %v1037 = vadd.f32 %v923, %v1036
      %v1038 = vpop.f32.mrf.mxu0
      %1039 = vmatprep.mubr.f32.mxu0 %v831
      %1040 = vmatmul.mubr.f32.gmra.mxu0 %v830
      %v1041 = vpop.f32.mrf.mxu0
      %v1042 = vadd.f32 %v923, %v1041
      %v1043 = vpop.f32.mrf.mxu0
      %1044 = vmatprep.mubr.f32.mxu0 %v835
      %1045 = vmatmul.mubr.f32.gmra.mxu0 %v834
      %v1046 = vpop.f32.mrf.mxu0
      %v1047 = vadd.f32 %v923, %v1046
      %v1048 = vpop.f32.mrf.mxu0
      %1049 = vmatprep.mubr.f32.mxu0 %v839
      %1050 = vmatmul.mubr.f32.gmra.mxu0 %v838
      %v1051 = vpop.f32.mrf.mxu0
      %v1052 = vadd.f32 %v923, %v1051
      %v1053 = vpop.f32.mrf.mxu0
      %1054 = vmatprep.mubr.f32.mxu0 %v843
      %1055 = vmatmul.mubr.f32.gmra.mxu0 %v842
      %v1056 = vpop.f32.mrf.mxu0
      %v1057 = vadd.f32 %v923, %v1056
      %v1058 = vpop.f32.mrf.mxu0
      %1059 = vmatprep.mubr.f32.mxu0 %v847
      %1060 = vmatmul.mubr.f32.gmra.mxu0 %v846
      %v1061 = vpop.f32.mrf.mxu0
      %v1062 = vadd.f32 %v923, %v1061
      %v1063 = vpop.f32.mrf.mxu0
      %1064 = vmatprep.mubr.f32.mxu0 %v851
      %1065 = vmatmul.mubr.f32.gmra.mxu0 %v850
      %v1066 = vpop.f32.mrf.mxu0
      %v1067 = vadd.f32 %v923, %v1066
      %v1068 = vpop.f32.mrf.mxu0
      %1069 = vdwg.mxu0
      %1070 = vmatprep.subr.mxu0 0.0
      %1071 = vmatpush1.msra.mxu0 %v901
      %1072 = vmatprep.subr.mxu0 0.0
      %1073 = vmatpush1.msra.mxu0 %v900
      %1074 = vmatprep.subr.mxu0 0.0
      %1075 = vmatpush1.msra.mxu0 %v899
      %1076 = vmatprep.subr.mxu0 0.0
      %1077 = vmatpush1.msra.mxu0 %v898
      %1078 = vmatprep.subr.mxu0 0.0
      %1079 = vmatpush1.msra.mxu0 %v897
      %1080 = vmatprep.subr.mxu0 0.0
      %1081 = vmatpush1.msra.mxu0 %v896
      %1082 = vmatprep.subr.mxu0 0.0
      %1083 = vmatpush1.msra.mxu0 %v895
      %1084 = vmatprep.subr.mxu0 0.0
      %1085 = vmatpush1.msra.mxu0 %v894
      %1086 = vmatprep.subr.mxu0 0.0
      %1087 = vmatpush1.msra.mxu0 %v893
      %1088 = vmatprep.subr.mxu0 0.0
      %1089 = vmatpush1.msra.mxu0 %v892
      %1090 = vmatprep.subr.mxu0 0.0
      %1091 = vmatpush1.msra.mxu0 %v891
      %1092 = vmatprep.subr.mxu0 0.0
      %1093 = vmatpush1.msra.mxu0 %v890
      %1094 = vmatprep.subr.mxu0 0.0
      %1095 = vmatpush1.msra.mxu0 %v889
      %1096 = vmatprep.subr.mxu0 0.0
      %1097 = vmatpush1.msra.mxu0 %v888
      %1098 = vmatprep.subr.mxu0 0.0
      %1099 = vmatpush1.msra.mxu0 %v887
      %1100 = vmatprep.subr.mxu0 0.0
      %1101 = vmatpush1.msra.mxu0 %v886
      %1102 = vmatprep.subr.mxu0 0.0
      %1103 = vmatpush2.msra.mxu0 %v917
      %1104 = vmatprep.subr.mxu0 0.0
      %1105 = vmatpush2.msra.mxu0 %v916
      %1106 = vmatprep.subr.mxu0 0.0
      %1107 = vmatpush2.msra.mxu0 %v915
      %1108 = vmatprep.subr.mxu0 0.0
      %1109 = vmatpush2.msra.mxu0 %v914
      %1110 = vmatprep.subr.mxu0 0.0
      %1111 = vmatpush2.msra.mxu0 %v913
      %1112 = vmatprep.subr.mxu0 0.0
      %1113 = vmatpush2.msra.mxu0 %v912
      %1114 = vmatprep.subr.mxu0 0.0
      %1115 = vmatpush2.msra.mxu0 %v911
      %1116 = vmatprep.subr.mxu0 0.0
      %1117 = vmatpush2.msra.mxu0 %v910
      %1118 = vmatprep.subr.mxu0 0.0
      %1119 = vmatpush2.msra.mxu0 %v909
      %1120 = vmatprep.subr.mxu0 0.0
      %1121 = vmatpush2.msra.mxu0 %v908
      %1122 = vmatprep.subr.mxu0 0.0
      %1123 = vmatpush2.msra.mxu0 %v907
      %1124 = vmatprep.subr.mxu0 0.0
      %1125 = vmatpush2.msra.mxu0 %v906
      %1126 = vmatprep.subr.mxu0 0.0
      %1127 = vmatpush2.msra.mxu0 %v905
      %1128 = vmatprep.subr.mxu0 0.0
      %1129 = vmatpush2.msra.mxu0 %v904
      %1130 = vmatprep.subr.mxu0 0.0
      %1131 = vmatpush2.msra.mxu0 %v903
      %1132 = vmatprep.subr.mxu0 0.0
      %1133 = vmatpush2.msra.mxu0 %v902
      %1134 = vmatprep.mubr.f32.mxu0 %v793
      %1135 = vmatmul.mubr.f32.gmra.mxu0 %v792
      %v1136 = vpop.f32.mrf.mxu0
      %v1137 = vadd.f32 %v992, %v1136
      %v1138 = vpop.f32.mrf.mxu0
      %1139 = vmatprep.mubr.f32.mxu0 %v797
      %1140 = vmatmul.mubr.f32.gmra.mxu0 %v796
      %v1141 = vpop.f32.mrf.mxu0
      %v1142 = vadd.f32 %v997, %v1141
      %v1143 = vpop.f32.mrf.mxu0
      %1144 = vmatprep.mubr.f32.mxu0 %v801
      %1145 = vmatmul.mubr.f32.gmra.mxu0 %v800
      %v1146 = vpop.f32.mrf.mxu0
      %v1147 = vadd.f32 %v1002, %v1146
      %v1148 = vpop.f32.mrf.mxu0
      %1149 = vmatprep.mubr.f32.mxu0 %v805
      %1150 = vmatmul.mubr.f32.gmra.mxu0 %v804
      %v1151 = vpop.f32.mrf.mxu0
      %v1152 = vadd.f32 %v1007, %v1151
      %v1153 = vpop.f32.mrf.mxu0
      %1154 = vmatprep.mubr.f32.mxu0 %v809
      %1155 = vmatmul.mubr.f32.gmra.mxu0 %v808
      %v1156 = vpop.f32.mrf.mxu0
      %v1157 = vadd.f32 %v1012, %v1156
      %v1158 = vpop.f32.mrf.mxu0
      %1159 = vmatprep.mubr.f32.mxu0 %v813
      %1160 = vmatmul.mubr.f32.gmra.mxu0 %v812
      %v1161 = vpop.f32.mrf.mxu0
      %v1162 = vadd.f32 %v1017, %v1161
      %v1163 = vpop.f32.mrf.mxu0
      %1164 = vmatprep.mubr.f32.mxu0 %v817
      %1165 = vmatmul.mubr.f32.gmra.mxu0 %v816
      %v1166 = vpop.f32.mrf.mxu0
      %v1167 = vadd.f32 %v1022, %v1166
      %v1168 = vpop.f32.mrf.mxu0
      %1169 = vmatprep.mubr.f32.mxu0 %v821
      %1170 = vmatmul.mubr.f32.gmra.mxu0 %v820
      %v1171 = vpop.f32.mrf.mxu0
      %v1172 = vadd.f32 %v1027, %v1171
      %v1173 = vpop.f32.mrf.mxu0
      %1174 = vmatprep.mubr.f32.mxu0 %v825
      %1175 = vmatmul.mubr.f32.gmra.mxu0 %v824
      %v1176 = vpop.f32.mrf.mxu0
      %v1177 = vadd.f32 %v1032, %v1176
      %v1178 = vpop.f32.mrf.mxu0
      %1179 = vmatprep.mubr.f32.mxu0 %v829
      %1180 = vmatmul.mubr.f32.gmra.mxu0 %v828
      %v1181 = vpop.f32.mrf.mxu0
      %v1182 = vadd.f32 %v1037, %v1181
      %v1183 = vpop.f32.mrf.mxu0
      %1184 = vmatprep.mubr.f32.mxu0 %v833
      %1185 = vmatmul.mubr.f32.gmra.mxu0 %v832
      %v1186 = vpop.f32.mrf.mxu0
      %v1187 = vadd.f32 %v1042, %v1186
      %v1188 = vpop.f32.mrf.mxu0
      %1189 = vmatprep.mubr.f32.mxu0 %v837
      %1190 = vmatmul.mubr.f32.gmra.mxu0 %v836
      %v1191 = vpop.f32.mrf.mxu0
      %v1192 = vadd.f32 %v1047, %v1191
      %v1193 = vpop.f32.mrf.mxu0
      %1194 = vmatprep.mubr.f32.mxu0 %v841
      %1195 = vmatmul.mubr.f32.gmra.mxu0 %v840
      %v1196 = vpop.f32.mrf.mxu0
      %v1197 = vadd.f32 %v1052, %v1196
      %v1198 = vpop.f32.mrf.mxu0
      %1199 = vmatprep.mubr.f32.mxu0 %v845
      %1200 = vmatmul.mubr.f32.gmra.mxu0 %v844
      %v1201 = vpop.f32.mrf.mxu0
      %v1202 = vadd.f32 %v1057, %v1201
      %v1203 = vpop.f32.mrf.mxu0
      %1204 = vmatprep.mubr.f32.mxu0 %v849
      %1205 = vmatmul.mubr.f32.gmra.mxu0 %v848
      %v1206 = vpop.f32.mrf.mxu0
      %v1207 = vadd.f32 %v1062, %v1206
      %v1208 = vpop.f32.mrf.mxu0
      %1209 = vmatprep.mubr.f32.mxu0 %v853
      %1210 = vmatmul.mubr.f32.gmra.mxu0 %v852
      %v1211 = vpop.f32.mrf.mxu0
      %v1212 = vadd.f32 %v1067, %v1211
      %v1213 = vpop.f32.mrf.mxu0
      %1214 = vdwg.mxu0
      %v1215 = vadd.f32 %v366, %v1137
      %v1216 = vadd.f32 %v367, %v1142
      %v1217 = vadd.f32 %v368, %v1147
      %v1218 = vadd.f32 %v369, %v1152
      %v1219 = vadd.f32 %v370, %v1157
      %v1220 = vadd.f32 %v371, %v1162
      %v1221 = vadd.f32 %v372, %v1167
      %v1222 = vadd.f32 %v373, %v1172
      %v1223 = vadd.f32 %v374, %v1177
      %v1224 = vadd.f32 %v375, %v1182
      %v1225 = vadd.f32 %v376, %v1187
      %v1226 = vadd.f32 %v377, %v1192
      %v1227 = vadd.f32 %v378, %v1197
      %v1228 = vadd.f32 %v379, %v1202
      %v1229 = vadd.f32 %v380, %v1207
      %v1230 = vadd.f32 %v381, %v1212
      %1231 = vst [vmem:[%s314] sm:$0xff] %v1215
      %1232 = vst [vmem:[%s314 + $0x8] sm:$0xff] %v1216
      %1233 = vst [vmem:[%s314 + $0x10] sm:$0xff] %v1217
      %1234 = vst [vmem:[%s314 + $0x18] sm:$0xff] %v1218
      %1235 = vst [vmem:[%s314 + $0x20] sm:$0xff] %v1219
      %1236 = vst [vmem:[%s314 + $0x28] sm:$0xff] %v1220
      %1237 = vst [vmem:[%s314 + $0x30] sm:$0xff] %v1221
      %1238 = vst [vmem:[%s314 + $0x38] sm:$0xff] %v1222
      %1239 = vst [vmem:[%s314 + $0x40] sm:$0xff] %v1223
      %1240 = vst [vmem:[%s314 + $0x48] sm:$0xff] %v1224
      %1241 = vst [vmem:[%s314 + $0x50] sm:$0xff] %v1225
      %1242 = vst [vmem:[%s314 + $0x58] sm:$0xff] %v1226
      %1243 = vst [vmem:[%s314 + $0x60] sm:$0xff] %v1227
      %1244 = vst [vmem:[%s314 + $0x68] sm:$0xff] %v1228
      %1245 = vst [vmem:[%s314 + $0x70] sm:$0xff] %v1229
      %1246 = vst [vmem:[%s314 + $0x78] sm:$0xff] %v1230
      %v1247 = vadd.f32 %v1215, %v1216
      %v1248 = vadd.f32 %v1247, %v1217
      %v1249 = vadd.f32 %v1248, %v1218
      %v1250 = vadd.f32 %v1249, %v1219
      %v1251 = vadd.f32 %v1250, %v1220
      %v1252 = vadd.f32 %v1251, %v1221
      %v1253 = vadd.f32 %v1252, %v1222
      %v1254 = vadd.f32 %v1253, %v1223
      %v1255 = vadd.f32 %v1254, %v1224
      %v1256 = vadd.f32 %v1255, %v1225
      %v1257 = vadd.f32 %v1256, %v1226
      %v1258 = vadd.f32 %v1257, %v1227
      %v1259 = vadd.f32 %v1258, %v1228
      %v1260 = vadd.f32 %v1259, %v1229
      %v1261 = vadd.f32 %v1260, %v1230
      %v1262 = vrot.slane %v1261, 4
      %v1263 = vadd.f32 %v1261, %v1262
      %v1264 = vrot.slane %v1263, 2
      %v1265 = vadd.f32 %v1263, %v1264
      %v1266 = vrot.slane %v1265, 1
      %v1267 = vadd.f32 %v1265, %v1266
      %1268 = vst [vmem:[%s319] sm:$0x1] %v1267
      %v1269 = vmul.f32 %v1215, %v1215
      %v1270 = vmul.f32 %v1216, %v1216
      %v1271 = vmul.f32 %v1217, %v1217
      %v1272 = vmul.f32 %v1218, %v1218
      %v1273 = vmul.f32 %v1219, %v1219
      %v1274 = vmul.f32 %v1220, %v1220
      %v1275 = vmul.f32 %v1221, %v1221
      %v1276 = vmul.f32 %v1222, %v1222
      %v1277 = vmul.f32 %v1223, %v1223
      %v1278 = vmul.f32 %v1224, %v1224
      %v1279 = vmul.f32 %v1225, %v1225
      %v1280 = vmul.f32 %v1226, %v1226
      %v1281 = vmul.f32 %v1227, %v1227
      %v1282 = vmul.f32 %v1228, %v1228
      %v1283 = vmul.f32 %v1229, %v1229
      %v1284 = vmul.f32 %v1230, %v1230
      %v1285 = vadd.f32 %v1269, %v1270
      %v1286 = vadd.f32 %v1285, %v1271
      %v1287 = vadd.f32 %v1286, %v1272
      %v1288 = vadd.f32 %v1287, %v1273
      %v1289 = vadd.f32 %v1288, %v1274
      %v1290 = vadd.f32 %v1289, %v1275
      %v1291 = vadd.f32 %v1290, %v1276
      %v1292 = vadd.f32 %v1291, %v1277
      %v1293 = vadd.f32 %v1292, %v1278
      %v1294 = vadd.f32 %v1293, %v1279
      %v1295 = vadd.f32 %v1294, %v1280
      %v1296 = vadd.f32 %v1295, %v1281
      %v1297 = vadd.f32 %v1296, %v1282
      %v1298 = vadd.f32 %v1297, %v1283
      %v1299 = vadd.f32 %v1298, %v1284
      %v1300 = vrot.slane %v1299, 4
      %v1301 = vadd.f32 %v1299, %v1300
      %v1302 = vrot.slane %v1301, 2
      %v1303 = vadd.f32 %v1301, %v1302
      %v1304 = vrot.slane %v1303, 1
      %v1305 = vadd.f32 %v1303, %v1304
      %1306 = vst [vmem:[%s319 + $0x1] sm:$0x1] %v1305
      %s1307 = smul.u32 16, %s20
      %p1308 = scmp.lt.s32.totalorder %s1307, 31
      %s1309 = scalar_select %p1308, %s1307, 31
      %s1310 = smul.addr %s1309, 8
      %s1311 = scalar_lea.vmem %s7, %s1310
      %p1312 = scmp.lt.s32.totalorder %s20, 1
      %s1313 = scalar_select %p1312, %s20, 1
      %s1314 = smul.addr %s1313, 2
      %s1315 = scalar_lea.vmem %s8, %s1314
      // Predicated region
      $region49: #{encoder_forward.14} parent=47 // pred_check
        %p1316 = pneg %p190
      $region50: #{encoder_forward.14} parent=47 // pred_check_branch
        %1318 = sbr.rel (%p1316) target = $region52
      $region51: #{encoder_forward.14} parent=47 // pred_region
        %s1319 = smul.u32 16, %s20
      $region52: #{encoder_forward.14} parent=47 // pred_fallthru
        _
      // Predicated region
      $region53: #{encoder_forward.14} parent=47 // pred_check
        %p1320 = pneg %p216
      $region54: #{encoder_forward.14} parent=47 // pred_check_branch
        %1322 = sbr.rel (%p1320) target = $region56
      $region55: #{encoder_forward.14} parent=47 // pred_region
        _
      $region56: #{encoder_forward.14} parent=47 // pred_fallthru
        _
    $region48: #{encoder_forward.14} parent=5 // pred_fallthru
      _
    %p1323 = scmp.le.s32.totalorder 2, %s15
    // Predicated region
    $region57: #{encoder_forward.14} parent=5 // pred_check
      %p1324 = pneg %p1323
    $region58: #{encoder_forward.14} parent=5 // pred_check_branch
      %1326 = sbr.rel (%p1324) target = $region60
    $region59: #{encoder_forward.14} parent=5 // pred_region
      %s1327 = ssub.s32 %s15, 2
      // Predicated region
      $region61: #{encoder_forward.14} parent=59 // pred_check
        %p1328 = pneg %p196
      $region62: #{encoder_forward.14} parent=59 // pred_check_branch
        %1330 = sbr.rel (%p1328) target = $region64
      $region63: #{encoder_forward.14} parent=59 // pred_region
        %s1331 = smul.u32 16, %s21
        %p1332 = scmp.lt.s32.totalorder %s1331, 31
        %s1333 = scalar_select %p1332, %s1331, 31
        %s1334 = smul.addr %s1333, 8
        %s1335 = scalar_lea.vmem %s7, %s1334
      $region64: #{encoder_forward.14} parent=59 // pred_fallthru
        _
      // Predicated region
      $region65: #{encoder_forward.14} parent=59 // pred_check
        %p1336 = pneg %p222
      $region66: #{encoder_forward.14} parent=59 // pred_check_branch
        %1338 = sbr.rel (%p1336) target = $region68
      $region67: #{encoder_forward.14} parent=59 // pred_region
        %p1339 = scmp.lt.s32.totalorder %s21, 1
        %s1340 = scalar_select %p1339, %s21, 1
        %s1341 = smul.addr %s1340, 2
        %s1342 = scalar_lea.vmem %s8, %s1341
      $region68: #{encoder_forward.14} parent=59 // pred_fallthru
        _
    $region60: #{encoder_forward.14} parent=5 // pred_fallthru
      _
  $region6: #{encoder_forward.14} parent=0 // loop_footer
    %s19 = sadd.s32 1, %s15
  $region7: #{encoder_forward.14} parent=0 // loop_footer_branch
    %14 = sbr.rel target = $region3
  $region8: #{encoder_forward.14} parent=0 // loop_exit
    _

// kernel: encoder_forward.21
$region0: #{encoder_forward.21}
  #allocation0 [shape = 'u32[]', space=smem, size = 0x4, offset = 0x4, fixed_abs, tag = 'smem constant byte address 0x4 - core index']
  #allocation1 [shape = 'u32[144,128]{1,0:T(1,128)}', space=vmem, size = 0x12000, scoped, tag = 'internal scratch']
  %s0 = inlined_call_operand.vmem [shape: f32[256,128], index: 0, kind: input, shape index: {}]
  %s1 = inlined_call_operand.vmem [shape: f32[1,128], index: 1, kind: input, shape index: {}]
  %s2 = inlined_call_operand.vmem [shape: f32[1,128], index: 2, kind: input, shape index: {}]
  %s3 = inlined_call_operand.hbm [shape: f32[256,128], index: 3, kind: output, shape index: {}]
  %s4 = sld [smem:[#allocation0]]
  $region45: #{encoder_forward.21} parent=0
    _
  %s6 = ssub.s32 1, %s4
  %s7 = scalar_select 0, %s6, %s4
  $region1: #{encoder_forward.21} parent=0
    #allocation2 [shape = 'u8[131072]{0}', space=vmem, size = 0x20000, scoped, tag = 'output window, operand 0']
    #allocation3 [shape = 's32[2]{0}', space=sflag, size = 0x8, scoped, tag = 'scoped memory for encoder_forward.21']
    %8 = vsyncpa [#allocation3], 0
    %s9 = scalar_lea.sflag [#allocation3], 1
    %10 = vsyncpa %s9, 0
    loop: start=0, step=1, limit=4
    $region2: #{encoder_forward.21} parent=1 // loop_pre_header
      _
    $region3: #{encoder_forward.21} parent=1 // loop_header
      %s12 = sphi 0, %s16
      %p13 = scmp.ge.s32.totalorder %s12, 4
      %s22 = sphi 0, %s24
      %s25 = sphi 0, %s22
      %s26 = sphi 0, %s25
      %s42 = sphi 0, %s26
      %s46 = sphi 0, %s46
      %s48 = sphi 0, %s46
      %s49 = sphi 0, %s48
      %s63 = sphi 0, %s49
      %s67 = sphi 0, %s67
      %s69 = sphi 0, %s67
      %s70 = sphi 0, %s69
      %s84 = sphi 0, %s70
      %s90 = sphi 0, %s92
      %s93 = sphi 0, %s90
      %s94 = sphi 0, %s93
      %s110 = sphi 0, %s94
    $region4: #{encoder_forward.21} parent=1 // loop_header_branch
      %15 = sbr.rel (%p13) target = $region8
    $region5: #{encoder_forward.21} parent=1 // loop_body
      %s17 = ssub.s32 %s12, 1
      %s18 = ssub.s32 %s12, 2
      %s19 = sadd.s32 %s12, 1
      %s20 = ssub.s32 %s12, %s19
      %p21 = scmp.eq.s32.totalorder %s20, 0
      %s23 = sadd.s32 %s22, 1
      %s24 = scalar_select %p21, %s22, %s23
      %p27 = pneg %p21
      %p28 = scmp.eq.s32.totalorder %s12, 1
      %p29 = por %p27, %p28
      %p30 = scmp.ne.s32.totalorder %s22, %s25
      %p31 = scmp.eq.s32.totalorder %s12, 0
      %p32 = por %p30, %p31
      %p33 = scmp.ne.s32.totalorder %s22, %s25
      %p34 = scmp.eq.s32.totalorder %s17, 1
      %p35 = por %p33, %p34
      %p36 = scmp.ne.s32.totalorder %s25, %s26
      %p37 = scmp.eq.s32.totalorder %s17, 0
      %p38 = por %p36, %p37
      %p39 = scmp.ne.s32.totalorder %s25, %s26
      %p40 = scmp.eq.s32.totalorder %s18, 1
      %p41 = por %p39, %p40
      %p43 = scmp.ne.s32.totalorder %s26, %s42
      %p44 = scmp.eq.s32.totalorder %s18, 0
      %p45 = por %p43, %p44
      %s47 = sadd.s32 %s46, 1
      %p50 = scmp.eq.s32.totalorder %s12, 1
      %p51 = scmp.ne.s32.totalorder %s46, %s48
      %p52 = scmp.eq.s32.totalorder %s12, 0
      %p53 = por %p51, %p52
      %p54 = scmp.ne.s32.totalorder %s46, %s48
      %p55 = scmp.eq.s32.totalorder %s17, 1
      %p56 = por %p54, %p55
      %p57 = scmp.ne.s32.totalorder %s48, %s49
      %p58 = scmp.eq.s32.totalorder %s17, 0
      %p59 = por %p57, %p58
      %p60 = scmp.ne.s32.totalorder %s48, %s49
      %p61 = scmp.eq.s32.totalorder %s18, 1
      %p62 = por %p60, %p61
      %p64 = scmp.ne.s32.totalorder %s49, %s63
      %p65 = scmp.eq.s32.totalorder %s18, 0
      %p66 = por %p64, %p65
      %s68 = sadd.s32 %s67, 1
      %p71 = scmp.eq.s32.totalorder %s12, 1
      %p72 = scmp.ne.s32.totalorder %s67, %s69
      %p73 = scmp.eq.s32.totalorder %s12, 0
      %p74 = por %p72, %p73
      %p75 = scmp.ne.s32.totalorder %s67, %s69
      %p76 = scmp.eq.s32.totalorder %s17, 1
      %p77 = por %p75, %p76
      %p78 = scmp.ne.s32.totalorder %s69, %s70
      %p79 = scmp.eq.s32.totalorder %s17, 0
      %p80 = por %p78, %p79
      %p81 = scmp.ne.s32.totalorder %s69, %s70
      %p82 = scmp.eq.s32.totalorder %s18, 1
      %p83 = por %p81, %p82
      %p85 = scmp.ne.s32.totalorder %s70, %s84
      %p86 = scmp.eq.s32.totalorder %s18, 0
      %p87 = por %p85, %p86
      %s88 = ssub.s32 %s12, %s19
      %p89 = scmp.eq.s32.totalorder %s88, 0
      %s91 = sadd.s32 %s90, 1
      %s92 = scalar_select %p89, %s90, %s91
      %p95 = pneg %p89
      %p96 = scmp.eq.s32.totalorder %s12, 1
      %p97 = por %p95, %p96
      %p98 = scmp.ne.s32.totalorder %s90, %s93
      %p99 = scmp.eq.s32.totalorder %s12, 0
      %p100 = por %p98, %p99
      %p101 = scmp.ne.s32.totalorder %s90, %s93
      %p102 = scmp.eq.s32.totalorder %s17, 1
      %p103 = por %p101, %p102
      %p104 = scmp.ne.s32.totalorder %s93, %s94
      %p105 = scmp.eq.s32.totalorder %s17, 0
      %p106 = por %p104, %p105
      %p107 = scmp.ne.s32.totalorder %s93, %s94
      %p108 = scmp.eq.s32.totalorder %s18, 1
      %p109 = por %p107, %p108
      %p111 = scmp.ne.s32.totalorder %s94, %s110
      %p112 = scmp.eq.s32.totalorder %s18, 0
      %p113 = por %p111, %p112
      %p114 = scmp.le.s32.totalorder 1, %s12
      %p115 = scmp.lt.s32.totalorder %s12, 3
      %p116 = pnand %p114, %p115
      %p117 = pneg %p116
      // Predicated region
      $region9: #{encoder_forward.21} parent=5 // pred_check
        _
      $region10: #{encoder_forward.21} parent=5 // pred_check_branch
        %119 = sbr.rel (%p116) target = $region12
      $region11: #{encoder_forward.21} parent=5 // pred_region
        %s120 = ssub.s32 %s12, 1
        // Predicated region
        $region13: #{encoder_forward.21} parent=11 // pred_check
          %p121 = pneg %p59
        $region14: #{encoder_forward.21} parent=11 // pred_check_branch
          %123 = sbr.rel (%p121) target = $region16
        $region15: #{encoder_forward.21} parent=11 // pred_region
          _
        $region16: #{encoder_forward.21} parent=11 // pred_fallthru
          _
        // Predicated region
        $region17: #{encoder_forward.21} parent=11 // pred_check
          %p124 = pneg %p80
        $region18: #{encoder_forward.21} parent=11 // pred_check_branch
          %126 = sbr.rel (%p124) target = $region20
        $region19: #{encoder_forward.21} parent=11 // pred_region
          _
        $region20: #{encoder_forward.21} parent=11 // pred_fallthru
          _
      $region12: #{encoder_forward.21} parent=5 // pred_fallthru
        _
      %p127 = scmp.lt.s32.totalorder %s12, 2
      // Predicated region
      $region21: #{encoder_forward.21} parent=5 // pred_check
        %p128 = pneg %p127
      $region22: #{encoder_forward.21} parent=5 // pred_check_branch
        %130 = sbr.rel (%p128) target = $region24
      $region23: #{encoder_forward.21} parent=5 // pred_region
        // Predicated region
        $region25: #{encoder_forward.21} parent=23 // pred_check
          %p131 = pneg %p32
        $region26: #{encoder_forward.21} parent=23 // pred_check_branch
          %133 = sbr.rel (%p131) target = $region28
        $region27: #{encoder_forward.21} parent=23 // pred_region
          %s134 = smul.u32 16, %s12
          %p135 = scmp.lt.s32.totalorder %s134, 31
          %s136 = scalar_select %p135, %s134, 31
          %s137 = smul.addr %s136, 8
          %s138 = scalar_lea.vmem %s0, %s137
          %s139 = smul.u32 16, %s12
        $region28: #{encoder_forward.21} parent=23 // pred_fallthru
          _
      $region24: #{encoder_forward.21} parent=5 // pred_fallthru
        _
      %p140 = scmp.le.s32.totalorder 1, %s12
      %p141 = scmp.lt.s32.totalorder %s12, 3
      %p142 = pnand %p140, %p141
      %p143 = pneg %p142
      // Predicated region
      $region29: #{encoder_forward.21} parent=5 // pred_check
        _
      $region30: #{encoder_forward.21} parent=5 // pred_check_branch
        %145 = sbr.rel (%p142) target = $region32
      $region31: #{encoder_forward.21} parent=5 // pred_region
        %s146 = ssub.s32 %s12, 1
        %s147 = smul.u32 16, %s17
        %p148 = scmp.lt.s32.totalorder %s147, 31
        %s149 = scalar_select %p148, %s147, 31
        %s150 = smul.addr %s149, 8
        %s151 = scalar_lea.vmem %s0, %s150
        %p152 = pneg %p38
        %p153 = pneg %p35
        %p154 = pneg %p59
        %p155 = pneg %p56
        %p156 = pneg %p80
        %p157 = pneg %p77
        %p158 = pneg %p106
        %p159 = pneg %p103
        %s160 = sand.u32 %s93, 1
        %s161 = scalar_lea.sflag [#allocation3], %s160
        %s162 = sand.u32 %s93, 1
        %s163 = smul.addr %s162, 128
        %s164 = scalar_lea.vmem [#allocation2], %s163
        %s165 = smul.u32 16, %s17
        %p166 = scmp.lt.s32.totalorder %s165, 31
        %s167 = scalar_select %p166, %s165, 31
        %s168 = smul.addr %s167, 8
        %s169 = scalar_lea.vmem %s0, %s168
        %s170 = smul.u32 16, %s17
        %s171 = smul.u32 16, %s17
        %v172 = vld [vmem:[%s169] sm:$0xff]
        %v173 = vld [vmem:[%s169 + $0x8] sm:$0xff]
        %v174 = vld [vmem:[%s169 + $0x10] sm:$0xff]
        %v175 = vld [vmem:[%s169 + $0x18] sm:$0xff]
        %v176 = vld [vmem:[%s169 + $0x20] sm:$0xff]
        %v177 = vld [vmem:[%s169 + $0x28] sm:$0xff]
        %v178 = vld [vmem:[%s169 + $0x30] sm:$0xff]
        %v179 = vld [vmem:[%s169 + $0x38] sm:$0xff]
        %v180 = vld [vmem:[%s169 + $0x40] sm:$0xff]
        %v181 = vld [vmem:[%s169 + $0x48] sm:$0xff]
        %v182 = vld [vmem:[%s169 + $0x50] sm:$0xff]
        %v183 = vld [vmem:[%s169 + $0x58] sm:$0xff]
        %v184 = vld [vmem:[%s169 + $0x60] sm:$0xff]
        %v185 = vld [vmem:[%s169 + $0x68] sm:$0xff]
        %v186 = vld [vmem:[%s169 + $0x70] sm:$0xff]
        %v187 = vld [vmem:[%s169 + $0x78] sm:$0xff]
        %v188 = vld [vmem:[%s1] sm:$0x1]
        %v190 = vlaneseq
        %v191 = vshrl.u32 %v190, 7
        %v192 = vsub.s32 0, %v191
        %v193 = vrot.slane %v188, %v192
        %v195 = vmul.f32 %v172, %v193
        %v196 = vmul.f32 %v173, %v193
        %v197 = vmul.f32 %v174, %v193
        %v198 = vmul.f32 %v175, %v193
        %v199 = vmul.f32 %v176, %v193
        %v200 = vmul.f32 %v177, %v193
        %v201 = vmul.f32 %v178, %v193
        %v202 = vmul.f32 %v179, %v193
        %v203 = vmul.f32 %v180, %v193
        %v204 = vmul.f32 %v181, %v193
        %v205 = vmul.f32 %v182, %v193
        %v206 = vmul.f32 %v183, %v193
        %v207 = vmul.f32 %v184, %v193
        %v208 = vmul.f32 %v185, %v193
        %v209 = vmul.f32 %v186, %v193
        %v210 = vmul.f32 %v187, %v193
        %v211 = vld [vmem:[%s2] sm:$0x1]
        %v213 = vlaneseq
        %v214 = vshrl.u32 %v213, 7
        %v215 = vsub.s32 0, %v214
        %v216 = vrot.slane %v211, %v215
        %v218 = vadd.f32 %v195, %v216
        %v219 = vadd.f32 %v196, %v216
        %v220 = vadd.f32 %v197, %v216
        %v221 = vadd.f32 %v198, %v216
        %v222 = vadd.f32 %v199, %v216
        %v223 = vadd.f32 %v200, %v216
        %v224 = vadd.f32 %v201, %v216
        %v225 = vadd.f32 %v202, %v216
        %v226 = vadd.f32 %v203, %v216
        %v227 = vadd.f32 %v204, %v216
        %v228 = vadd.f32 %v205, %v216
        %v229 = vadd.f32 %v206, %v216
        %v230 = vadd.f32 %v207, %v216
        %v231 = vadd.f32 %v208, %v216
        %v232 = vadd.f32 %v209, %v216
        %v233 = vadd.f32 %v210, %v216
        %234 = vst [vmem:[%s164] sm:$0xff] %v218
        %235 = vst [vmem:[%s164 + $0x8] sm:$0xff] %v219
        %236 = vst [vmem:[%s164 + $0x10] sm:$0xff] %v220
        %237 = vst [vmem:[%s164 + $0x18] sm:$0xff] %v221
        %238 = vst [vmem:[%s164 + $0x20] sm:$0xff] %v222
        %239 = vst [vmem:[%s164 + $0x28] sm:$0xff] %v223
        %240 = vst [vmem:[%s164 + $0x30] sm:$0xff] %v224
        %241 = vst [vmem:[%s164 + $0x38] sm:$0xff] %v225
        %242 = vst [vmem:[%s164 + $0x40] sm:$0xff] %v226
        %243 = vst [vmem:[%s164 + $0x48] sm:$0xff] %v227
        %244 = vst [vmem:[%s164 + $0x50] sm:$0xff] %v228
        %245 = vst [vmem:[%s164 + $0x58] sm:$0xff] %v229
        %246 = vst [vmem:[%s164 + $0x60] sm:$0xff] %v230
        %247 = vst [vmem:[%s164 + $0x68] sm:$0xff] %v231
        %248 = vst [vmem:[%s164 + $0x70] sm:$0xff] %v232
        %249 = vst [vmem:[%s164 + $0x78] sm:$0xff] %v233
        %s250 = sand.u32 %s93, 1
        %s251 = scalar_lea.sflag [#allocation3], %s250
        %s252 = sand.u32 %s93, 1
        %s253 = smul.addr %s252, 128
        %s254 = scalar_lea.vmem [#allocation2], %s253
        // Predicated region
        $region33: #{encoder_forward.21} parent=31 // pred_check
          %p255 = pneg %p103
        $region34: #{encoder_forward.21} parent=31 // pred_check_branch
          %257 = sbr.rel (%p255) target = $region36
        $region35: #{encoder_forward.21} parent=31 // pred_region
          %s258 = smul.u32 16, %s17
          %s260 = ssub.s32 2048, 2048
          %261 = vsyncadd %s251, %s260
          %s262 = smul.addr %s258, 128
          %s263 = scalar_lea.hbm %s3, %s262
          %s264 = sshll.u32 %s254, 4
          %s265 = int_to_ptr.vmem [resolvable:$true] %s264
          %270 = dma.vmem_to_hbm [thread:$0]  %s265, 2048, %s263, %s251, 128, 128, 8
        $region36: #{encoder_forward.21} parent=31 // pred_fallthru
          _
      $region32: #{encoder_forward.21} parent=5 // pred_fallthru
        _
      %p271 = scmp.le.s32.totalorder 2, %s12
      // Predicated region
      $region37: #{encoder_forward.21} parent=5 // pred_check
        %p272 = pneg %p271
      $region38: #{encoder_forward.21} parent=5 // pred_check_branch
        %274 = sbr.rel (%p272) target = $region40
      $region39: #{encoder_forward.21} parent=5 // pred_region
        %s275 = ssub.s32 %s12, 2
        // Predicated region
        $region41: #{encoder_forward.21} parent=39 // pred_check
          %p276 = pneg %p109
        $region42: #{encoder_forward.21} parent=39 // pred_check_branch
          %278 = sbr.rel (%p276) target = $region44
        $region43: #{encoder_forward.21} parent=39 // pred_region
          %s279 = sand.u32 %s94, 1
          %s280 = scalar_lea.sflag [#allocation3], %s279
          %s281 = sand.u32 %s94, 1
          %s282 = smul.addr %s281, 128
          %s283 = scalar_lea.vmem [#allocation2], %s282
          %284 = dma.done %s280, 2048
        $region44: #{encoder_forward.21} parent=39 // pred_fallthru
          _
      $region40: #{encoder_forward.21} parent=5 // pred_fallthru
        _
    $region6: #{encoder_forward.21} parent=1 // loop_footer
      %s16 = sadd.s32 1, %s12
    $region7: #{encoder_forward.21} parent=1 // loop_footer_branch
      %11 = sbr.rel target = $region3
    $region8: #{encoder_forward.21} parent=1 // loop_exit
      _
    %285 = vsyncpa [#allocation3], 1
    %s286 = scalar_lea.sflag [#allocation3], 1
    %287 = vsyncpa %s286, 1

// kernel: encoder_forward.12
$region0: #{encoder_forward.12}
  #allocation0 [shape = 'u32[]', space=smem, size = 0x4, offset = 0x4, fixed_abs, tag = 'smem constant byte address 0x4 - core index']
  #allocation1 [shape = 'u32[144,128]{1,0:T(1,128)}', space=vmem, size = 0x12000, scoped, tag = 'internal scratch']
  %s0 = inlined_call_operand.vmem [shape: f32[4,64,128], index: 0, kind: input, shape index: {}]
  %s1 = inlined_call_operand.vmem [shape: f32[1,128], index: 1, kind: input, shape index: {}]
  %s2 = inlined_call_operand.vmem [shape: f32[1,128], index: 2, kind: input, shape index: {}]
  %s3 = inlined_call_operand.vmem [shape: f32[128,384], index: 3, kind: input, shape index: {}]
  %s4 = inlined_call_operand.vmem [shape: f32[4,64,128], index: 4, kind: output, shape index: {}]
  %s5 = sld [smem:[#allocation0]]
  $region49: #{encoder_forward.12} parent=0
    _
  %s7 = ssub.s32 1, %s5
  %s8 = scalar_select 0, %s7, %s5
  loop: start=0, step=1, limit=4
  $region2: #{encoder_forward.12} parent=0 // loop_pre_header
    _
  $region3: #{encoder_forward.12} parent=0 // loop_header
    %s10 = sphi 0, %s14
    %p11 = scmp.ge.s32.totalorder %s10, 4
    %s20 = sphi 0, %s22
    %s23 = sphi 0, %s20
    %s24 = sphi 0, %s23
    %s40 = sphi 0, %s24
    %s44 = sphi 0, %s44
    %s46 = sphi 0, %s44
    %s47 = sphi 0, %s46
    %s61 = sphi 0, %s47
    %s65 = sphi 0, %s65
    %s67 = sphi 0, %s65
    %s68 = sphi 0, %s67
    %s82 = sphi 0, %s68
    %s86 = sphi 0, %s86
    %s88 = sphi 0, %s86
    %s89 = sphi 0, %s88
    %s103 = sphi 0, %s89
    %s109 = sphi 0, %s111
    %s112 = sphi 0, %s109
    %s113 = sphi 0, %s112
    %s129 = sphi 0, %s113
  $region4: #{encoder_forward.12} parent=0 // loop_header_branch
    %13 = sbr.rel (%p11) target = $region8
  $region5: #{encoder_forward.12} parent=0 // loop_body
    %s15 = ssub.s32 %s10, 1
    %s16 = ssub.s32 %s10, 2
    %s17 = sadd.s32 %s10, 1
    %s18 = ssub.s32 %s10, %s17
    %p19 = scmp.eq.s32.totalorder %s18, 0
    %s21 = sadd.s32 %s20, 1
    %s22 = scalar_select %p19, %s20, %s21
    %p25 = pneg %p19
    %p26 = scmp.eq.s32.totalorder %s10, 1
    %p27 = por %p25, %p26
    %p28 = scmp.ne.s32.totalorder %s20, %s23
    %p29 = scmp.eq.s32.totalorder %s10, 0
    %p30 = por %p28, %p29
    %p31 = scmp.ne.s32.totalorder %s20, %s23
    %p32 = scmp.eq.s32.totalorder %s15, 1
    %p33 = por %p31, %p32
    %p34 = scmp.ne.s32.totalorder %s23, %s24
    %p35 = scmp.eq.s32.totalorder %s15, 0
    %p36 = por %p34, %p35
    %p37 = scmp.ne.s32.totalorder %s23, %s24
    %p38 = scmp.eq.s32.totalorder %s16, 1
    %p39 = por %p37, %p38
    %p41 = scmp.ne.s32.totalorder %s24, %s40
    %p42 = scmp.eq.s32.totalorder %s16, 0
    %p43 = por %p41, %p42
    %s45 = sadd.s32 %s44, 1
    %p48 = scmp.eq.s32.totalorder %s10, 1
    %p49 = scmp.ne.s32.totalorder %s44, %s46
    %p50 = scmp.eq.s32.totalorder %s10, 0
    %p51 = por %p49, %p50
    %p52 = scmp.ne.s32.totalorder %s44, %s46
    %p53 = scmp.eq.s32.totalorder %s15, 1
    %p54 = por %p52, %p53
    %p55 = scmp.ne.s32.totalorder %s46, %s47
    %p56 = scmp.eq.s32.totalorder %s15, 0
    %p57 = por %p55, %p56
    %p58 = scmp.ne.s32.totalorder %s46, %s47
    %p59 = scmp.eq.s32.totalorder %s16, 1
    %p60 = por %p58, %p59
    %p62 = scmp.ne.s32.totalorder %s47, %s61
    %p63 = scmp.eq.s32.totalorder %s16, 0
    %p64 = por %p62, %p63
    %s66 = sadd.s32 %s65, 1
    %p69 = scmp.eq.s32.totalorder %s10, 1
    %p70 = scmp.ne.s32.totalorder %s65, %s67
    %p71 = scmp.eq.s32.totalorder %s10, 0
    %p72 = por %p70, %p71
    %p73 = scmp.ne.s32.totalorder %s65, %s67
    %p74 = scmp.eq.s32.totalorder %s15, 1
    %p75 = por %p73, %p74
    %p76 = scmp.ne.s32.totalorder %s67, %s68
    %p77 = scmp.eq.s32.totalorder %s15, 0
    %p78 = por %p76, %p77
    %p79 = scmp.ne.s32.totalorder %s67, %s68
    %p80 = scmp.eq.s32.totalorder %s16, 1
    %p81 = por %p79, %p80
    %p83 = scmp.ne.s32.totalorder %s68, %s82
    %p84 = scmp.eq.s32.totalorder %s16, 0
    %p85 = por %p83, %p84
    %s87 = sadd.s32 %s86, 1
    %p90 = scmp.eq.s32.totalorder %s10, 1
    %p91 = scmp.ne.s32.totalorder %s86, %s88
    %p92 = scmp.eq.s32.totalorder %s10, 0
    %p93 = por %p91, %p92
    %p94 = scmp.ne.s32.totalorder %s86, %s88
    %p95 = scmp.eq.s32.totalorder %s15, 1
    %p96 = por %p94, %p95
    %p97 = scmp.ne.s32.totalorder %s88, %s89
    %p98 = scmp.eq.s32.totalorder %s15, 0
    %p99 = por %p97, %p98
    %p100 = scmp.ne.s32.totalorder %s88, %s89
    %p101 = scmp.eq.s32.totalorder %s16, 1
    %p102 = por %p100, %p101
    %p104 = scmp.ne.s32.totalorder %s89, %s103
    %p105 = scmp.eq.s32.totalorder %s16, 0
    %p106 = por %p104, %p105
    %s107 = ssub.s32 %s10, %s17
    %p108 = scmp.eq.s32.totalorder %s107, 0
    %s110 = sadd.s32 %s109, 1
    %s111 = scalar_select %p108, %s109, %s110
    %p114 = pneg %p108
    %p115 = scmp.eq.s32.totalorder %s10, 1
    %p116 = por %p114, %p115
    %p117 = scmp.ne.s32.totalorder %s109, %s112
    %p118 = scmp.eq.s32.totalorder %s10, 0
    %p119 = por %p117, %p118
    %p120 = scmp.ne.s32.totalorder %s109, %s112
    %p121 = scmp.eq.s32.totalorder %s15, 1
    %p122 = por %p120, %p121
    %p123 = scmp.ne.s32.totalorder %s112, %s113
    %p124 = scmp.eq.s32.totalorder %s15, 0
    %p125 = por %p123, %p124
    %p126 = scmp.ne.s32.totalorder %s112, %s113
    %p127 = scmp.eq.s32.totalorder %s16, 1
    %p128 = por %p126, %p127
    %p130 = scmp.ne.s32.totalorder %s113, %s129
    %p131 = scmp.eq.s32.totalorder %s16, 0
    %p132 = por %p130, %p131
    %p133 = scmp.le.s32.totalorder 1, %s10
    %p134 = scmp.lt.s32.totalorder %s10, 3
    %p135 = pnand %p133, %p134
    %p136 = pneg %p135
    // Predicated region
    $region9: #{encoder_forward.12} parent=5 // pred_check
      _
    $region10: #{encoder_forward.12} parent=5 // pred_check_branch
      %138 = sbr.rel (%p135) target = $region12
    $region11: #{encoder_forward.12} parent=5 // pred_region
      %s139 = ssub.s32 %s10, 1
      // Predicated region
      $region13: #{encoder_forward.12} parent=11 // pred_check
        %p140 = pneg %p57
      $region14: #{encoder_forward.12} parent=11 // pred_check_branch
        %142 = sbr.rel (%p140) target = $region16
      $region15: #{encoder_forward.12} parent=11 // pred_region
        _
      $region16: #{encoder_forward.12} parent=11 // pred_fallthru
        _
      // Predicated region
      $region17: #{encoder_forward.12} parent=11 // pred_check
        %p143 = pneg %p78
      $region18: #{encoder_forward.12} parent=11 // pred_check_branch
        %145 = sbr.rel (%p143) target = $region20
      $region19: #{encoder_forward.12} parent=11 // pred_region
        _
      $region20: #{encoder_forward.12} parent=11 // pred_fallthru
        _
      // Predicated region
      $region21: #{encoder_forward.12} parent=11 // pred_check
        %p146 = pneg %p99
      $region22: #{encoder_forward.12} parent=11 // pred_check_branch
        %148 = sbr.rel (%p146) target = $region24
      $region23: #{encoder_forward.12} parent=11 // pred_region
        _
      $region24: #{encoder_forward.12} parent=11 // pred_fallthru
        _
    $region12: #{encoder_forward.12} parent=5 // pred_fallthru
      _
    %p149 = scmp.lt.s32.totalorder %s10, 2
    // Predicated region
    $region25: #{encoder_forward.12} parent=5 // pred_check
      %p150 = pneg %p149
    $region26: #{encoder_forward.12} parent=5 // pred_check_branch
      %152 = sbr.rel (%p150) target = $region28
    $region27: #{encoder_forward.12} parent=5 // pred_region
      // Predicated region
      $region29: #{encoder_forward.12} parent=27 // pred_check
        %p153 = pneg %p30
      $region30: #{encoder_forward.12} parent=27 // pred_check_branch
        %155 = sbr.rel (%p153) target = $region32
      $region31: #{encoder_forward.12} parent=27 // pred_region
        %s156 = smul.u32 2, %s10
        %p157 = scmp.lt.s32.totalorder %s156, 3
        %s158 = scalar_select %p157, %s156, 3
        %s159 = smul.addr %s158, 8
        %s160 = smul.addr %s159, 8
        %s161 = scalar_lea.vmem %s0, %s160
        %s162 = smul.u32 2, %s10
      $region32: #{encoder_forward.12} parent=27 // pred_fallthru
        _
    $region28: #{encoder_forward.12} parent=5 // pred_fallthru
      _
    %p163 = scmp.le.s32.totalorder 1, %s10
    %p164 = scmp.lt.s32.totalorder %s10, 3
    %p165 = pnand %p163, %p164
    %p166 = pneg %p165
    // Predicated region
    $region33: #{encoder_forward.12} parent=5 // pred_check
      _
    $region34: #{encoder_forward.12} parent=5 // pred_check_branch
      %168 = sbr.rel (%p165) target = $region36
    $region35: #{encoder_forward.12} parent=5 // pred_region
      %s169 = ssub.s32 %s10, 1
      %s170 = smul.u32 2, %s15
      %p171 = scmp.lt.s32.totalorder %s170, 3
      %s172 = scalar_select %p171, %s170, 3
      %s173 = smul.addr %s172, 8
      %s174 = smul.addr %s173, 8
      %s175 = scalar_lea.vmem %s0, %s174
      %p176 = pneg %p36
      %p177 = pneg %p33
      %p178 = pneg %p57
      %p179 = pneg %p54
      %p180 = pneg %p78
      %p181 = pneg %p75
      %p182 = pneg %p99
      %p183 = pneg %p96
      %p184 = pneg %p125
      %p185 = pneg %p122
      %s186 = smul.u32 2, %s15
      %p187 = scmp.lt.s32.totalorder %s186, 3
      %s188 = scalar_select %p187, %s186, 3
      %s189 = smul.addr %s188, 8
      %s190 = smul.addr %s189, 8
      %s191 = scalar_lea.vmem %s4, %s190
      %s192 = smul.u32 2, %s15
      %p193 = scmp.lt.s32.totalorder %s192, 3
      %s194 = scalar_select %p193, %s192, 3
      %s195 = smul.addr %s194, 8
      %s196 = smul.addr %s195, 8
      %s197 = scalar_lea.vmem %s0, %s196
      %s198 = smul.u32 2, %s15
      %s199 = smul.u32 2, %s15
      %p200 = scmp.lt.s32.totalorder %s199, 3
      %s201 = scalar_select %p200, %s199, 3
      %s202 = smul.addr %s201, 8
      %s203 = smul.addr %s202, 8
      %s204 = scalar_lea.vmem %s4, %s203
      %s205 = smul.u32 2, %s15
      %v206 = vld [vmem:[%s197] sm:$0xff]
      %v207 = vld [vmem:[%s197 + $0x8] sm:$0xff]
      %v208 = vld [vmem:[%s197 + $0x10] sm:$0xff]
      %v209 = vld [vmem:[%s197 + $0x18] sm:$0xff]
      %v210 = vld [vmem:[%s197 + $0x20] sm:$0xff]
      %v211 = vld [vmem:[%s197 + $0x28] sm:$0xff]
      %v212 = vld [vmem:[%s197 + $0x30] sm:$0xff]
      %v213 = vld [vmem:[%s197 + $0x38] sm:$0xff]
      %v214 = vld [vmem:[%s197 + $0x40] sm:$0xff]
      %v215 = vld [vmem:[%s197 + $0x48] sm:$0xff]
      %v216 = vld [vmem:[%s197 + $0x50] sm:$0xff]
      %v217 = vld [vmem:[%s197 + $0x58] sm:$0xff]
      %v218 = vld [vmem:[%s197 + $0x60] sm:$0xff]
      %v219 = vld [vmem:[%s197 + $0x68] sm:$0xff]
      %v220 = vld [vmem:[%s197 + $0x70] sm:$0xff]
      %v221 = vld [vmem:[%s197 + $0x78] sm:$0xff]
      %v222 = vld [vmem:[%s1] sm:$0x1]
      %v224 = vlaneseq
      %v225 = vshrl.u32 %v224, 7
      %v226 = vsub.s32 0, %v225
      %v227 = vrot.slane %v222, %v226
      %v229 = vmul.f32 %v206, %v227
      %v230 = vmul.f32 %v207, %v227
      %v231 = vmul.f32 %v208, %v227
      %v232 = vmul.f32 %v209, %v227
      %v233 = vmul.f32 %v210, %v227
      %v234 = vmul.f32 %v211, %v227
      %v235 = vmul.f32 %v212, %v227
      %v236 = vmul.f32 %v213, %v227
      %v237 = vmul.f32 %v214, %v227
      %v238 = vmul.f32 %v215, %v227
      %v239 = vmul.f32 %v216, %v227
      %v240 = vmul.f32 %v217, %v227
      %v241 = vmul.f32 %v218, %v227
      %v242 = vmul.f32 %v219, %v227
      %v243 = vmul.f32 %v220, %v227
      %v244 = vmul.f32 %v221, %v227
      %v245 = vld [vmem:[%s2] sm:$0x1]
      %v247 = vlaneseq
      %v248 = vshrl.u32 %v247, 7
      %v249 = vsub.s32 0, %v248
      %v250 = vrot.slane %v245, %v249
      %v252 = vadd.f32 %v229, %v250
      %v253 = vadd.f32 %v230, %v250
      %v254 = vadd.f32 %v231, %v250
      %v255 = vadd.f32 %v232, %v250
      %v256 = vadd.f32 %v233, %v250
      %v257 = vadd.f32 %v234, %v250
      %v258 = vadd.f32 %v235, %v250
      %v259 = vadd.f32 %v236, %v250
      %v260 = vadd.f32 %v237, %v250
      %v261 = vadd.f32 %v238, %v250
      %v262 = vadd.f32 %v239, %v250
      %v263 = vadd.f32 %v240, %v250
      %v264 = vadd.f32 %v241, %v250
      %v265 = vadd.f32 %v242, %v250
      %v266 = vadd.f32 %v243, %v250
      %v267 = vadd.f32 %v244, %v250
      %v268 = vld [vmem:[%s3] sm:$0xff]
      %v269 = vld [vmem:[%s3 + $0x8] sm:$0xff]
      %v270 = vld [vmem:[%s3 + $0x10] sm:$0xff]
      %v271 = vld [vmem:[%s3 + $0x18] sm:$0xff]
      %v272 = vld [vmem:[%s3 + $0x20] sm:$0xff]
      %v273 = vld [vmem:[%s3 + $0x28] sm:$0xff]
      %v274 = vld [vmem:[%s3 + $0x30] sm:$0xff]
      %v275 = vld [vmem:[%s3 + $0x38] sm:$0xff]
      %v276 = vld [vmem:[%s3 + $0x40] sm:$0xff]
      %v277 = vld [vmem:[%s3 + $0x48] sm:$0xff]
      %v278 = vld [vmem:[%s3 + $0x50] sm:$0xff]
      %v279 = vld [vmem:[%s3 + $0x58] sm:$0xff]
      %v280 = vld [vmem:[%s3 + $0x60] sm:$0xff]
      %v281 = vld [vmem:[%s3 + $0x68] sm:$0xff]
      %v282 = vld [vmem:[%s3 + $0x70] sm:$0xff]
      %v283 = vld [vmem:[%s3 + $0x78] sm:$0xff]
      %v284 = vld [vmem:[%s3 + $0x80] sm:$0xff]
      %v285 = vld [vmem:[%s3 + $0x88] sm:$0xff]
      %v286 = vld [vmem:[%s3 + $0x90] sm:$0xff]
      %v287 = vld [vmem:[%s3 + $0x98] sm:$0xff]
      %v288 = vld [vmem:[%s3 + $0xa0] sm:$0xff]
      %v289 = vld [vmem:[%s3 + $0xa8] sm:$0xff]
      %v290 = vld [vmem:[%s3 + $0xb0] sm:$0xff]
      %v291 = vld [vmem:[%s3 + $0xb8] sm:$0xff]
      %v292 = vld [vmem:[%s3 + $0xc0] sm:$0xff]
      %v293 = vld [vmem:[%s3 + $0xc8] sm:$0xff]
      %v294 = vld [vmem:[%s3 + $0xd0] sm:$0xff]
      %v295 = vld [vmem:[%s3 + $0xd8] sm:$0xff]
      %v296 = vld [vmem:[%s3 + $0xe0] sm:$0xff]
      %v297 = vld [vmem:[%s3 + $0xe8] sm:$0xff]
      %v298 = vld [vmem:[%s3 + $0xf0] sm:$0xff]
      %v299 = vld [vmem:[%s3 + $0xf8] sm:$0xff]
      %v300 = vld [vmem:[%s3 + $0x100] sm:$0xff]
      %v301 = vld [vmem:[%s3 + $0x108] sm:$0xff]
      %v302 = vld [vmem:[%s3 + $0x110] sm:$0xff]
      %v303 = vld [vmem:[%s3 + $0x118] sm:$0xff]
      %v304 = vld [vmem:[%s3 + $0x120] sm:$0xff]
      %v305 = vld [vmem:[%s3 + $0x128] sm:$0xff]
      %v306 = vld [vmem:[%s3 + $0x130] sm:$0xff]
      %v307 = vld [vmem:[%s3 + $0x138] sm:$0xff]
      %v308 = vld [vmem:[%s3 + $0x140] sm:$0xff]
      %v309 = vld [vmem:[%s3 + $0x148] sm:$0xff]
      %v310 = vld [vmem:[%s3 + $0x150] sm:$0xff]
      %v311 = vld [vmem:[%s3 + $0x158] sm:$0xff]
      %v312 = vld [vmem:[%s3 + $0x160] sm:$0xff]
      %v313 = vld [vmem:[%s3 + $0x168] sm:$0xff]
      %v314 = vld [vmem:[%s3 + $0x170] sm:$0xff]
      %v315 = vld [vmem:[%s3 + $0x178] sm:$0xff]
      %316 = vmatprep.subr.mxu0 %v314
      %317 = vmatpush1.msra.mxu0 %v313
      %318 = vmatprep.subr.mxu0 %v311
      %319 = vmatpush1.msra.mxu0 %v310
      %320 = vmatprep.subr.mxu0 %v308
      %321 = vmatpush1.msra.mxu0 %v307
      %322 = vmatprep.subr.mxu0 %v305
      %323 = vmatpush1.msra.mxu0 %v304
      %324 = vmatprep.subr.mxu0 %v302
      %325 = vmatpush1.msra.mxu0 %v301
      %326 = vmatprep.subr.mxu0 %v299
      %327 = vmatpush1.msra.mxu0 %v298
      %328 = vmatprep.subr.mxu0 %v296
      %329 = vmatpush1.msra.mxu0 %v295
      %330 = vmatprep.subr.mxu0 %v293
      %331 = vmatpush1.msra.mxu0 %v292
      %332 = vmatprep.subr.mxu0 %v290
      %333 = vmatpush1.msra.mxu0 %v289
      %334 = vmatprep.subr.mxu0 %v287
      %335 = vmatpush1.msra.mxu0 %v286
      %336 = vmatprep.subr.mxu0 %v284
      %337 = vmatpush1.msra.mxu0 %v283
      %338 = vmatprep.subr.mxu0 %v281
      %339 = vmatpush1.msra.mxu0 %v280
      %340 = vmatprep.subr.mxu0 %v278
      %341 = vmatpush1.msra.mxu0 %v277
      %342 = vmatprep.subr.mxu0 %v275
      %343 = vmatpush1.msra.mxu0 %v274
      %344 = vmatprep.subr.mxu0 %v272
      %345 = vmatpush1.msra.mxu0 %v271
      %346 = vmatprep.subr.mxu0 %v269
      %347 = vmatpush1.msra.mxu0 %v268
      %348 = vmatprep.subr.mxu0 0.0
      %349 = vmatpush2.msra.mxu0 0.0
      %350 = vmatprep.subr.mxu0 0.0
      %351 = vmatpush2.msra.mxu0 0.0
      %352 = vmatprep.subr.mxu0 0.0
      %353 = vmatpush2.msra.mxu0 0.0
      %354 = vmatprep.subr.mxu0 0.0
      %355 = vmatpush2.msra.mxu0 0.0
      %356 = vmatprep.subr.mxu0 0.0
      %357 = vmatpush2.msra.mxu0 0.0
      %358 = vmatprep.subr.mxu0 0.0
      %359 = vmatpush2.msra.mxu0 0.0
      %360 = vmatprep.subr.mxu0 0.0
      %361 = vmatpush2.msra.mxu0 0.0
      %362 = vmatprep.subr.mxu0 0.0
      %363 = vmatpush2.msra.mxu0 0.0
      %364 = vmatprep.subr.mxu0 0.0
      %365 = vmatpush2.msra.mxu0 0.0
      %366 = vmatprep.subr.mxu0 0.0
      %367 = vmatpush2.msra.mxu0 0.0
      %368 = vmatprep.subr.mxu0 0.0
      %369 = vmatpush2.msra.mxu0 0.0
      %370 = vmatprep.subr.mxu0 0.0
      %371 = vmatpush2.msra.mxu0 0.0
      %372 = vmatprep.subr.mxu0 0.0
      %373 = vmatpush2.msra.mxu0 0.0
      %374 = vmatprep.subr.mxu0 0.0
      %375 = vmatpush2.msra.mxu0 0.0
      %376 = vmatprep.subr.mxu0 0.0
      %377 = vmatpush2.msra.mxu0 0.0
      %378 = vmatprep.subr.mxu0 0.0
      %379 = vmatpush2.msra.mxu0 0.0
      %380 = vmatprep.mubr.f32.mxu0 0.0
      %381 = vmatmul.mubr.f32.gmra.mxu0 %v252
      %v382 = vpop.f32.mrf.mxu0
      %v383 = vadd.f32 0.0, %v382
      %v384 = vpop.f32.mrf.mxu0
      %v385 = vadd.f32 0.0, %v384
      %386 = vmatprep.mubr.f32.mxu0 0.0
      %387 = vmatmul.mubr.f32.gmra.mxu0 %v253
      %v388 = vpop.f32.mrf.mxu0
      %v389 = vadd.f32 0.0, %v388
      %v390 = vpop.f32.mrf.mxu0
      %v391 = vadd.f32 0.0, %v390
      %392 = vmatprep.mubr.f32.mxu0 0.0
      %393 = vmatmul.mubr.f32.gmra.mxu0 %v254
      %v394 = vpop.f32.mrf.mxu0
      %v395 = vadd.f32 0.0, %v394
      %v396 = vpop.f32.mrf.mxu0
      %v397 = vadd.f32 0.0, %v396
      %398 = vmatprep.mubr.f32.mxu0 0.0
      %399 = vmatmul.mubr.f32.gmra.mxu0 %v255
      %v400 = vpop.f32.mrf.mxu0
      %v401 = vadd.f32 0.0, %v400
      %v402 = vpop.f32.mrf.mxu0
      %v403 = vadd.f32 0.0, %v402
      %404 = vmatprep.mubr.f32.mxu0 0.0
      %405 = vmatmul.mubr.f32.gmra.mxu0 %v256
      %v406 = vpop.f32.mrf.mxu0
      %v407 = vadd.f32 0.0, %v406
      %v408 = vpop.f32.mrf.mxu0
      %v409 = vadd.f32 0.0, %v408
      %410 = vmatprep.mubr.f32.mxu0 0.0
      %411 = vmatmul.mubr.f32.gmra.mxu0 %v257
      %v412 = vpop.f32.mrf.mxu0
      %v413 = vadd.f32 0.0, %v412
      %v414 = vpop.f32.mrf.mxu0
      %v415 = vadd.f32 0.0, %v414
      %416 = vmatprep.mubr.f32.mxu0 0.0
      %417 = vmatmul.mubr.f32.gmra.mxu0 %v258
      %v418 = vpop.f32.mrf.mxu0
      %v419 = vadd.f32 0.0, %v418
      %v420 = vpop.f32.mrf.mxu0
      %v421 = vadd.f32 0.0, %v420
      %422 = vmatprep.mubr.f32.mxu0 0.0
      %423 = vmatmul.mubr.f32.gmra.mxu0 %v259
      %v424 = vpop.f32.mrf.mxu0
      %v425 = vadd.f32 0.0, %v424
      %v426 = vpop.f32.mrf.mxu0
      %v427 = vadd.f32 0.0, %v426
      %428 = vmatprep.mubr.f32.mxu0 0.0
      %429 = vmatmul.mubr.f32.gmra.mxu0 %v260
      %v430 = vpop.f32.mrf.mxu0
      %v431 = vadd.f32 0.0, %v430
      %v432 = vpop.f32.mrf.mxu0
      %v433 = vadd.f32 0.0, %v432
      %434 = vmatprep.mubr.f32.mxu0 0.0
      %435 = vmatmul.mubr.f32.gmra.mxu0 %v261
      %v436 = vpop.f32.mrf.mxu0
      %v437 = vadd.f32 0.0, %v436
      %v438 = vpop.f32.mrf.mxu0
      %v439 = vadd.f32 0.0, %v438
      %440 = vmatprep.mubr.f32.mxu0 0.0
      %441 = vmatmul.mubr.f32.gmra.mxu0 %v262
      %v442 = vpop.f32.mrf.mxu0
      %v443 = vadd.f32 0.0, %v442
      %v444 = vpop.f32.mrf.mxu0
      %v445 = vadd.f32 0.0, %v444
      %446 = vmatprep.mubr.f32.mxu0 0.0
      %447 = vmatmul.mubr.f32.gmra.mxu0 %v263
      %v448 = vpop.f32.mrf.mxu0
      %v449 = vadd.f32 0.0, %v448
      %v450 = vpop.f32.mrf.mxu0
      %v451 = vadd.f32 0.0, %v450
      %452 = vmatprep.mubr.f32.mxu0 0.0
      %453 = vmatmul.mubr.f32.gmra.mxu0 %v264
      %v454 = vpop.f32.mrf.mxu0
      %v455 = vadd.f32 0.0, %v454
      %v456 = vpop.f32.mrf.mxu0
      %v457 = vadd.f32 0.0, %v456
      %458 = vmatprep.mubr.f32.mxu0 0.0
      %459 = vmatmul.mubr.f32.gmra.mxu0 %v265
      %v460 = vpop.f32.mrf.mxu0
      %v461 = vadd.f32 0.0, %v460
      %v462 = vpop.f32.mrf.mxu0
      %v463 = vadd.f32 0.0, %v462
      %464 = vmatprep.mubr.f32.mxu0 0.0
      %465 = vmatmul.mubr.f32.gmra.mxu0 %v266
      %v466 = vpop.f32.mrf.mxu0
      %v467 = vadd.f32 0.0, %v466
      %v468 = vpop.f32.mrf.mxu0
      %v469 = vadd.f32 0.0, %v468
      %470 = vmatprep.mubr.f32.mxu0 0.0
      %471 = vmatmul.mubr.f32.gmra.mxu0 %v267
      %v472 = vpop.f32.mrf.mxu0
      %v473 = vadd.f32 0.0, %v472
      %v474 = vpop.f32.mrf.mxu0
      %v475 = vadd.f32 0.0, %v474
      %476 = vdwg.mxu0
      %477 = vmatprep.subr.mxu0 0.0
      %478 = vmatpush1.msra.mxu0 %v315
      %479 = vmatprep.subr.mxu0 0.0
      %480 = vmatpush1.msra.mxu0 %v312
      %481 = vmatprep.subr.mxu0 0.0
      %482 = vmatpush1.msra.mxu0 %v309
      %483 = vmatprep.subr.mxu0 0.0
      %484 = vmatpush1.msra.mxu0 %v306
      %485 = vmatprep.subr.mxu0 0.0
      %486 = vmatpush1.msra.mxu0 %v303
      %487 = vmatprep.subr.mxu0 0.0
      %488 = vmatpush1.msra.mxu0 %v300
      %489 = vmatprep.subr.mxu0 0.0
      %490 = vmatpush1.msra.mxu0 %v297
      %491 = vmatprep.subr.mxu0 0.0
      %492 = vmatpush1.msra.mxu0 %v294
      %493 = vmatprep.subr.mxu0 0.0
      %494 = vmatpush1.msra.mxu0 %v291
      %495 = vmatprep.subr.mxu0 0.0
      %496 = vmatpush1.msra.mxu0 %v288
      %497 = vmatprep.subr.mxu0 0.0
      %498 = vmatpush1.msra.mxu0 %v285
      %499 = vmatprep.subr.mxu0 0.0
      %500 = vmatpush1.msra.mxu0 %v282
      %501 = vmatprep.subr.mxu0 0.0
      %502 = vmatpush1.msra.mxu0 %v279
      %503 = vmatprep.subr.mxu0 0.0
      %504 = vmatpush1.msra.mxu0 %v276
      %505 = vmatprep.subr.mxu0 0.0
      %506 = vmatpush1.msra.mxu0 %v273
      %507 = vmatprep.subr.mxu0 0.0
      %508 = vmatpush1.msra.mxu0 %v270
      %509 = vmatprep.subr.mxu0 0.0
      %510 = vmatpush2.msra.mxu0 0.0
      %511 = vmatprep.subr.mxu0 0.0
      %512 = vmatpush2.msra.mxu0 0.0
      %513 = vmatprep.subr.mxu0 0.0
      %514 = vmatpush2.msra.mxu0 0.0
      %515 = vmatprep.subr.mxu0 0.0
      %516 = vmatpush2.msra.mxu0 0.0
      %517 = vmatprep.subr.mxu0 0.0
      %518 = vmatpush2.msra.mxu0 0.0
      %519 = vmatprep.subr.mxu0 0.0
      %520 = vmatpush2.msra.mxu0 0.0
      %521 = vmatprep.subr.mxu0 0.0
      %522 = vmatpush2.msra.mxu0 0.0
      %523 = vmatprep.subr.mxu0 0.0
      %524 = vmatpush2.msra.mxu0 0.0
      %525 = vmatprep.subr.mxu0 0.0
      %526 = vmatpush2.msra.mxu0 0.0
      %527 = vmatprep.subr.mxu0 0.0
      %528 = vmatpush2.msra.mxu0 0.0
      %529 = vmatprep.subr.mxu0 0.0
      %530 = vmatpush2.msra.mxu0 0.0
      %531 = vmatprep.subr.mxu0 0.0
      %532 = vmatpush2.msra.mxu0 0.0
      %533 = vmatprep.subr.mxu0 0.0
      %534 = vmatpush2.msra.mxu0 0.0
      %535 = vmatprep.subr.mxu0 0.0
      %536 = vmatpush2.msra.mxu0 0.0
      %537 = vmatprep.subr.mxu0 0.0
      %538 = vmatpush2.msra.mxu0 0.0
      %539 = vmatprep.subr.mxu0 0.0
      %540 = vmatpush2.msra.mxu0 0.0
      %541 = vmatprep.mubr.f32.mxu0 0.0
      %542 = vmatmul.mubr.f32.gmra.mxu0 %v252
      %v543 = vpop.f32.mrf.mxu0
      %v544 = vadd.f32 0.0, %v543
      %v545 = vpop.f32.mrf.mxu0
      %546 = vmatprep.mubr.f32.mxu0 0.0
      %547 = vmatmul.mubr.f32.gmra.mxu0 %v253
      %v548 = vpop.f32.mrf.mxu0
      %v549 = vadd.f32 0.0, %v548
      %v550 = vpop.f32.mrf.mxu0
      %551 = vmatprep.mubr.f32.mxu0 0.0
      %552 = vmatmul.mubr.f32.gmra.mxu0 %v254
      %v553 = vpop.f32.mrf.mxu0
      %v554 = vadd.f32 0.0, %v553
      %v555 = vpop.f32.mrf.mxu0
      %556 = vmatprep.mubr.f32.mxu0 0.0
      %557 = vmatmul.mubr.f32.gmra.mxu0 %v255
      %v558 = vpop.f32.mrf.mxu0
      %v559 = vadd.f32 0.0, %v558
      %v560 = vpop.f32.mrf.mxu0
      %561 = vmatprep.mubr.f32.mxu0 0.0
      %562 = vmatmul.mubr.f32.gmra.mxu0 %v256
      %v563 = vpop.f32.mrf.mxu0
      %v564 = vadd.f32 0.0, %v563
      %v565 = vpop.f32.mrf.mxu0
      %566 = vmatprep.mubr.f32.mxu0 0.0
      %567 = vmatmul.mubr.f32.gmra.mxu0 %v257
      %v568 = vpop.f32.mrf.mxu0
      %v569 = vadd.f32 0.0, %v568
      %v570 = vpop.f32.mrf.mxu0
      %571 = vmatprep.mubr.f32.mxu0 0.0
      %572 = vmatmul.mubr.f32.gmra.mxu0 %v258
      %v573 = vpop.f32.mrf.mxu0
      %v574 = vadd.f32 0.0, %v573
      %v575 = vpop.f32.mrf.mxu0
      %576 = vmatprep.mubr.f32.mxu0 0.0
      %577 = vmatmul.mubr.f32.gmra.mxu0 %v259
      %v578 = vpop.f32.mrf.mxu0
      %v579 = vadd.f32 0.0, %v578
      %v580 = vpop.f32.mrf.mxu0
      %581 = vmatprep.mubr.f32.mxu0 0.0
      %582 = vmatmul.mubr.f32.gmra.mxu0 %v260
      %v583 = vpop.f32.mrf.mxu0
      %v584 = vadd.f32 0.0, %v583
      %v585 = vpop.f32.mrf.mxu0
      %586 = vmatprep.mubr.f32.mxu0 0.0
      %587 = vmatmul.mubr.f32.gmra.mxu0 %v261
      %v588 = vpop.f32.mrf.mxu0
      %v589 = vadd.f32 0.0, %v588
      %v590 = vpop.f32.mrf.mxu0
      %591 = vmatprep.mubr.f32.mxu0 0.0
      %592 = vmatmul.mubr.f32.gmra.mxu0 %v262
      %v593 = vpop.f32.mrf.mxu0
      %v594 = vadd.f32 0.0, %v593
      %v595 = vpop.f32.mrf.mxu0
      %596 = vmatprep.mubr.f32.mxu0 0.0
      %597 = vmatmul.mubr.f32.gmra.mxu0 %v263
      %v598 = vpop.f32.mrf.mxu0
      %v599 = vadd.f32 0.0, %v598
      %v600 = vpop.f32.mrf.mxu0
      %601 = vmatprep.mubr.f32.mxu0 0.0
      %602 = vmatmul.mubr.f32.gmra.mxu0 %v264
      %v603 = vpop.f32.mrf.mxu0
      %v604 = vadd.f32 0.0, %v603
      %v605 = vpop.f32.mrf.mxu0
      %606 = vmatprep.mubr.f32.mxu0 0.0
      %607 = vmatmul.mubr.f32.gmra.mxu0 %v265
      %v608 = vpop.f32.mrf.mxu0
      %v609 = vadd.f32 0.0, %v608
      %v610 = vpop.f32.mrf.mxu0
      %611 = vmatprep.mubr.f32.mxu0 0.0
      %612 = vmatmul.mubr.f32.gmra.mxu0 %v266
      %v613 = vpop.f32.mrf.mxu0
      %v614 = vadd.f32 0.0, %v613
      %v615 = vpop.f32.mrf.mxu0
      %616 = vmatprep.mubr.f32.mxu0 0.0
      %617 = vmatmul.mubr.f32.gmra.mxu0 %v267
      %v618 = vpop.f32.mrf.mxu0
      %v619 = vadd.f32 0.0, %v618
      %v620 = vpop.f32.mrf.mxu0
      %621 = vdwg.mxu0
      %v622 = vmul.f32 %v383, 0.25
      %v623 = vmul.f32 %v389, 0.25
      %v624 = vmul.f32 %v395, 0.25
      %v625 = vmul.f32 %v401, 0.25
      %v626 = vmul.f32 %v407, 0.25
      %v627 = vmul.f32 %v413, 0.25
      %v628 = vmul.f32 %v419, 0.25
      %v629 = vmul.f32 %v425, 0.25
      %v630 = vmul.f32 %v431, 0.25
      %v631 = vmul.f32 %v437, 0.25
      %v632 = vmul.f32 %v443, 0.25
      %v633 = vmul.f32 %v449, 0.25
      %v634 = vmul.f32 %v455, 0.25
      %v635 = vmul.f32 %v461, 0.25
      %v636 = vmul.f32 %v467, 0.25
      %v637 = vmul.f32 %v473, 0.25
      %vm638 = vcmask 130048
      %v640 = vsel %vm638, %v622, 0
      %v643 = vsel %vm638, %v623, 0
      %v646 = vsel %vm638, %v624, 0
      %v649 = vsel %vm638, %v625, 0
      %v652 = vsel %vm638, %v626, 0
      %v655 = vsel %vm638, %v627, 0
      %v658 = vsel %vm638, %v628, 0
      %v661 = vsel %vm638, %v629, 0
      %v664 = vsel %vm638, %v385, 0
      %v667 = vsel %vm638, %v391, 0
      %v670 = vsel %vm638, %v397, 0
      %v673 = vsel %vm638, %v403, 0
      %v676 = vsel %vm638, %v409, 0
      %v679 = vsel %vm638, %v415, 0
      %v682 = vsel %vm638, %v421, 0
      %v685 = vsel %vm638, %v427, 0
      %687 = vmatprep.subr.mxu0 0.0
      %688 = vmatpush1.xpose.msra.mxu0 0.0
      %689 = vmatprep.subr.mxu0 0.0
      %690 = vmatpush1.xpose.msra.mxu0 0.0
      %691 = vmatprep.subr.mxu0 0.0
      %692 = vmatpush1.xpose.msra.mxu0 0.0
      %693 = vmatprep.subr.mxu0 0.0
      %694 = vmatpush1.xpose.msra.mxu0 0.0
      %695 = vmatprep.subr.mxu0 0.0
      %696 = vmatpush1.xpose.msra.mxu0 0.0
      %697 = vmatprep.subr.mxu0 0.0
      %698 = vmatpush1.xpose.msra.mxu0 0.0
      %699 = vmatprep.subr.mxu0 0.0
      %700 = vmatpush1.xpose.msra.mxu0 0.0
      %701 = vmatprep.subr.mxu0 0.0
      %702 = vmatpush1.xpose.msra.mxu0 0.0
      %703 = vmatprep.subr.mxu0 0.0
      %704 = vmatpush1.xpose.msra.mxu0 %v685
      %705 = vmatprep.subr.mxu0 0.0
      %706 = vmatpush1.xpose.msra.mxu0 %v682
      %707 = vmatprep.subr.mxu0 0.0
      %708 = vmatpush1.xpose.msra.mxu0 %v679
      %709 = vmatprep.subr.mxu0 0.0
      %710 = vmatpush1.xpose.msra.mxu0 %v676
      %711 = vmatprep.subr.mxu0 0.0
      %712 = vmatpush1.xpose.msra.mxu0 %v673
      %713 = vmatprep.subr.mxu0 0.0
      %714 = vmatpush1.xpose.msra.mxu0 %v670
      %715 = vmatprep.subr.mxu0 0.0
      %716 = vmatpush1.xpose.msra.mxu0 %v667
      %717 = vmatprep.subr.mxu0 0.0
      %718 = vmatpush1.xpose.msra.mxu0 %v664
      %719 = vmatprep.subr.mxu0 0.0
      %720 = vmatpush2.xpose.msra.mxu0 0.0
      %721 = vmatprep.subr.mxu0 0.0
      %722 = vmatpush2.xpose.msra.mxu0 0.0
      %723 = vmatprep.subr.mxu0 0.0
      %724 = vmatpush2.xpose.msra.mxu0 0.0
      %725 = vmatprep.subr.mxu0 0.0
      %726 = vmatpush2.xpose.msra.mxu0 0.0
      %727 = vmatprep.subr.mxu0 0.0
      %728 = vmatpush2.xpose.msra.mxu0 0.0
      %729 = vmatprep.subr.mxu0 0.0
      %730 = vmatpush2.xpose.msra.mxu0 0.0
      %731 = vmatprep.subr.mxu0 0.0
      %732 = vmatpush2.xpose.msra.mxu0 0.0
      %733 = vmatprep.subr.mxu0 0.0
      %734 = vmatpush2.xpose.msra.mxu0 0.0
      %735 = vmatprep.subr.mxu0 0.0
      %736 = vmatpush2.xpose.msra.mxu0 0.0
      %737 = vmatprep.subr.mxu0 0.0
      %738 = vmatpush2.xpose.msra.mxu0 0.0
      %739 = vmatprep.subr.mxu0 0.0
      %740 = vmatpush2.xpose.msra.mxu0 0.0
      %741 = vmatprep.subr.mxu0 0.0
      %742 = vmatpush2.xpose.msra.mxu0 0.0
      %743 = vmatprep.subr.mxu0 0.0
      %744 = vmatpush2.xpose.msra.mxu0 0.0
      %745 = vmatprep.subr.mxu0 0.0
      %746 = vmatpush2.xpose.msra.mxu0 0.0
      %747 = vmatprep.subr.mxu0 0.0
      %748 = vmatpush2.xpose.msra.mxu0 0.0
      %749 = vmatprep.subr.mxu0 0.0
      %750 = vmatpush2.xpose.msra.mxu0 0.0
      %751 = vmatprep.mubr.f32.mxu0 0.0
      %752 = vmatmul.mubr.f32.gmra.mxu0 %v640
      %v753 = vpop.f32.mrf.mxu0
      %v754 = vadd.f32 0.0, %v753
      %v755 = vpop.f32.mrf.mxu0
      %756 = vmatprep.mubr.f32.mxu0 0.0
      %757 = vmatmul.mubr.f32.gmra.mxu0 %v643
      %v758 = vpop.f32.mrf.mxu0
      %v759 = vadd.f32 0.0, %v758
      %v760 = vpop.f32.mrf.mxu0
      %761 = vmatprep.mubr.f32.mxu0 0.0
      %762 = vmatmul.mubr.f32.gmra.mxu0 %v646
      %v763 = vpop.f32.mrf.mxu0
      %v764 = vadd.f32 0.0, %v763
      %v765 = vpop.f32.mrf.mxu0
      %766 = vmatprep.mubr.f32.mxu0 0.0
      %767 = vmatmul.mubr.f32.gmra.mxu0 %v649
      %v768 = vpop.f32.mrf.mxu0
      %v769 = vadd.f32 0.0, %v768
      %v770 = vpop.f32.mrf.mxu0
      %771 = vmatprep.mubr.f32.mxu0 0.0
      %772 = vmatmul.mubr.f32.gmra.mxu0 %v652
      %v773 = vpop.f32.mrf.mxu0
      %v774 = vadd.f32 0.0, %v773
      %v775 = vpop.f32.mrf.mxu0
      %776 = vmatprep.mubr.f32.mxu0 0.0
      %777 = vmatmul.mubr.f32.gmra.mxu0 %v655
      %v778 = vpop.f32.mrf.mxu0
      %v779 = vadd.f32 0.0, %v778
      %v780 = vpop.f32.mrf.mxu0
      %781 = vmatprep.mubr.f32.mxu0 0.0
      %782 = vmatmul.mubr.f32.gmra.mxu0 %v658
      %v783 = vpop.f32.mrf.mxu0
      %v784 = vadd.f32 0.0, %v783
      %v785 = vpop.f32.mrf.mxu0
      %786 = vmatprep.mubr.f32.mxu0 0.0
      %787 = vmatmul.mubr.f32.gmra.mxu0 %v661
      %v788 = vpop.f32.mrf.mxu0
      %v789 = vadd.f32 0.0, %v788
      %v790 = vpop.f32.mrf.mxu0
      %791 = vdwg.mxu0
      %v793 = vsel %vm638, %v630, 0
      %v796 = vsel %vm638, %v631, 0
      %v799 = vsel %vm638, %v632, 0
      %v802 = vsel %vm638, %v633, 0
      %v805 = vsel %vm638, %v634, 0
      %v808 = vsel %vm638, %v635, 0
      %v811 = vsel %vm638, %v636, 0
      %v814 = vsel %vm638, %v637, 0
      %v817 = vsel %vm638, %v433, 0
      %v820 = vsel %vm638, %v439, 0
      %v823 = vsel %vm638, %v445, 0
      %v826 = vsel %vm638, %v451, 0
      %v829 = vsel %vm638, %v457, 0
      %v832 = vsel %vm638, %v463, 0
      %v835 = vsel %vm638, %v469, 0
      %v838 = vsel %vm638, %v475, 0
      %840 = vmatprep.subr.mxu0 0.0
      %841 = vmatpush1.xpose.msra.mxu0 0.0
      %842 = vmatprep.subr.mxu0 0.0
      %843 = vmatpush1.xpose.msra.mxu0 0.0
      %844 = vmatprep.subr.mxu0 0.0
      %845 = vmatpush1.xpose.msra.mxu0 0.0
      %846 = vmatprep.subr.mxu0 0.0
      %847 = vmatpush1.xpose.msra.mxu0 0.0
      %848 = vmatprep.subr.mxu0 0.0
      %849 = vmatpush1.xpose.msra.mxu0 0.0
      %850 = vmatprep.subr.mxu0 0.0
      %851 = vmatpush1.xpose.msra.mxu0 0.0
      %852 = vmatprep.subr.mxu0 0.0
      %853 = vmatpush1.xpose.msra.mxu0 0.0
      %854 = vmatprep.subr.mxu0 0.0
      %855 = vmatpush1.xpose.msra.mxu0 0.0
      %856 = vmatprep.subr.mxu0 0.0
      %857 = vmatpush1.xpose.msra.mxu0 %v838
      %858 = vmatprep.subr.mxu0 0.0
      %859 = vmatpush1.xpose.msra.mxu0 %v835
      %860 = vmatprep.subr.mxu0 0.0
      %861 = vmatpush1.xpose.msra.mxu0 %v832
      %862 = vmatprep.subr.mxu0 0.0
      %863 = vmatpush1.xpose.msra.mxu0 %v829
      %864 = vmatprep.subr.mxu0 0.0
      %865 = vmatpush1.xpose.msra.mxu0 %v826
      %866 = vmatprep.subr.mxu0 0.0
      %867 = vmatpush1.xpose.msra.mxu0 %v823
      %868 = vmatprep.subr.mxu0 0.0
      %869 = vmatpush1.xpose.msra.mxu0 %v820
      %870 = vmatprep.subr.mxu0 0.0
      %871 = vmatpush1.xpose.msra.mxu0 %v817
      %872 = vmatprep.subr.mxu0 0.0
      %873 = vmatpush2.xpose.msra.mxu0 0.0
      %874 = vmatprep.subr.mxu0 0.0
      %875 = vmatpush2.xpose.msra.mxu0 0.0
      %876 = vmatprep.subr.mxu0 0.0
      %877 = vmatpush2.xpose.msra.mxu0 0.0
      %878 = vmatprep.subr.mxu0 0.0
      %879 = vmatpush2.xpose.msra.mxu0 0.0
      %880 = vmatprep.subr.mxu0 0.0
      %881 = vmatpush2.xpose.msra.mxu0 0.0
      %882 = vmatprep.subr.mxu0 0.0
      %883 = vmatpush2.xpose.msra.mxu0 0.0
      %884 = vmatprep.subr.mxu0 0.0
      %885 = vmatpush2.xpose.msra.mxu0 0.0
      %886 = vmatprep.subr.mxu0 0.0
      %887 = vmatpush2.xpose.msra.mxu0 0.0
      %888 = vmatprep.subr.mxu0 0.0
      %889 = vmatpush2.xpose.msra.mxu0 0.0
      %890 = vmatprep.subr.mxu0 0.0
      %891 = vmatpush2.xpose.msra.mxu0 0.0
      %892 = vmatprep.subr.mxu0 0.0
      %893 = vmatpush2.xpose.msra.mxu0 0.0
      %894 = vmatprep.subr.mxu0 0.0
      %895 = vmatpush2.xpose.msra.mxu0 0.0
      %896 = vmatprep.subr.mxu0 0.0
      %897 = vmatpush2.xpose.msra.mxu0 0.0
      %898 = vmatprep.subr.mxu0 0.0
      %899 = vmatpush2.xpose.msra.mxu0 0.0
      %900 = vmatprep.subr.mxu0 0.0
      %901 = vmatpush2.xpose.msra.mxu0 0.0
      %902 = vmatprep.subr.mxu0 0.0
      %903 = vmatpush2.xpose.msra.mxu0 0.0
      %904 = vmatprep.mubr.f32.mxu0 0.0
      %905 = vmatmul.mubr.f32.gmra.mxu0 %v793
      %v906 = vpop.f32.mrf.mxu0
      %v907 = vadd.f32 0.0, %v906
      %v908 = vpop.f32.mrf.mxu0
      %909 = vmatprep.mubr.f32.mxu0 0.0
      %910 = vmatmul.mubr.f32.gmra.mxu0 %v796
      %v911 = vpop.f32.mrf.mxu0
      %v912 = vadd.f32 0.0, %v911
      %v913 = vpop.f32.mrf.mxu0
      %914 = vmatprep.mubr.f32.mxu0 0.0
      %915 = vmatmul.mubr.f32.gmra.mxu0 %v799
      %v916 = vpop.f32.mrf.mxu0
      %v917 = vadd.f32 0.0, %v916
      %v918 = vpop.f32.mrf.mxu0
      %919 = vmatprep.mubr.f32.mxu0 0.0
      %920 = vmatmul.mubr.f32.gmra.mxu0 %v802
      %v921 = vpop.f32.mrf.mxu0
      %v922 = vadd.f32 0.0, %v921
      %v923 = vpop.f32.mrf.mxu0
      %924 = vmatprep.mubr.f32.mxu0 0.0
      %925 = vmatmul.mubr.f32.gmra.mxu0 %v805
      %v926 = vpop.f32.mrf.mxu0
      %v927 = vadd.f32 0.0, %v926
      %v928 = vpop.f32.mrf.mxu0
      %929 = vmatprep.mubr.f32.mxu0 0.0
      %930 = vmatmul.mubr.f32.gmra.mxu0 %v808
      %v931 = vpop.f32.mrf.mxu0
      %v932 = vadd.f32 0.0, %v931
      %v933 = vpop.f32.mrf.mxu0
      %934 = vmatprep.mubr.f32.mxu0 0.0
      %935 = vmatmul.mubr.f32.gmra.mxu0 %v811
      %v936 = vpop.f32.mrf.mxu0
      %v937 = vadd.f32 0.0, %v936
      %v938 = vpop.f32.mrf.mxu0
      %939 = vmatprep.mubr.f32.mxu0 0.0
      %940 = vmatmul.mubr.f32.gmra.mxu0 %v814
      %v941 = vpop.f32.mrf.mxu0
      %v942 = vadd.f32 0.0, %v941
      %v943 = vpop.f32.mrf.mxu0
      %944 = vdwg.mxu0
      %vm945 = vcmask 523264
      %v946 = vsel %vm945, %v754, -inf
      %947 = vmax.xlane.f32.xlu0 %v946
      %v948 = vpop.xlane.xlu0 %947
      %v949 = vsel %vm945, %v759, -inf
      %950 = vmax.xlane.f32.xlu0 %v949
      %v951 = vpop.xlane.xlu0 %950
      %v952 = vsel %vm945, %v764, -inf
      %953 = vmax.xlane.f32.xlu0 %v952
      %v954 = vpop.xlane.xlu0 %953
      %v955 = vsel %vm945, %v769, -inf
      %956 = vmax.xlane.f32.xlu0 %v955
      %v957 = vpop.xlane.xlu0 %956
      %v958 = vsel %vm945, %v774, -inf
      %959 = vmax.xlane.f32.xlu0 %v958
      %v960 = vpop.xlane.xlu0 %959
      %v961 = vsel %vm945, %v779, -inf
      %962 = vmax.xlane.f32.xlu0 %v961
      %v963 = vpop.xlane.xlu0 %962
      %v964 = vsel %vm945, %v784, -inf
      %965 = vmax.xlane.f32.xlu0 %v964
      %v966 = vpop.xlane.xlu0 %965
      %v967 = vsel %vm945, %v789, -inf
      %968 = vmax.xlane.f32.xlu0 %v967
      %v969 = vpop.xlane.xlu0 %968
      %v970 = vsel %vm945, %v907, -inf
      %971 = vmax.xlane.f32.xlu0 %v970
      %v972 = vpop.xlane.xlu0 %971
      %v973 = vsel %vm945, %v912, -inf
      %974 = vmax.xlane.f32.xlu0 %v973
      %v975 = vpop.xlane.xlu0 %974
      %v976 = vsel %vm945, %v917, -inf
      %977 = vmax.xlane.f32.xlu0 %v976
      %v978 = vpop.xlane.xlu0 %977
      %v979 = vsel %vm945, %v922, -inf
      %980 = vmax.xlane.f32.xlu0 %v979
      %v981 = vpop.xlane.xlu0 %980
      %v982 = vsel %vm945, %v927, -inf
      %983 = vmax.xlane.f32.xlu0 %v982
      %v984 = vpop.xlane.xlu0 %983
      %v985 = vsel %vm945, %v932, -inf
      %986 = vmax.xlane.f32.xlu0 %v985
      %v987 = vpop.xlane.xlu0 %986
      %v988 = vsel %vm945, %v937, -inf
      %989 = vmax.xlane.f32.xlu0 %v988
      %v990 = vpop.xlane.xlu0 %989
      %v991 = vsel %vm945, %v942, -inf
      %992 = vmax.xlane.f32.xlu0 %v991
      %v993 = vpop.xlane.xlu0 %992
      %v994 = vsub.f32 %v754, %v948
      %v995 = vsub.f32 %v759, %v951
      %v996 = vsub.f32 %v764, %v954
      %v997 = vsub.f32 %v769, %v957
      %v998 = vsub.f32 %v774, %v960
      %v999 = vsub.f32 %v779, %v963
      %v1000 = vsub.f32 %v784, %v966
      %v1001 = vsub.f32 %v789, %v969
      %v1002 = vsub.f32 %v907, %v972
      %v1003 = vsub.f32 %v912, %v975
      %v1004 = vsub.f32 %v917, %v978
      %v1005 = vsub.f32 %v922, %v981
      %v1006 = vsub.f32 %v927, %v984
      %v1007 = vsub.f32 %v932, %v987
      %v1008 = vsub.f32 %v937, %v990
      %v1009 = vsub.f32 %v942, %v993
      %v1010 = vmul.f32 %v994, 1.442695
      %v1011 = vpow.pop %v1010
      %v1012 = vmul.f32 %v995, 1.442695
      %v1013 = vpow.pop %v1012
      %v1014 = vmul.f32 %v996, 1.442695
      %v1015 = vpow.pop %v1014
      %v1016 = vmul.f32 %v997, 1.442695
      %v1017 = vpow.pop %v1016
      %v1018 = vmul.f32 %v998, 1.442695
      %v1019 = vpow.pop %v1018
      %v1020 = vmul.f32 %v999, 1.442695
      %v1021 = vpow.pop %v1020
      %v1022 = vmul.f32 %v1000, 1.442695
      %v1023 = vpow.pop %v1022
      %v1024 = vmul.f32 %v1001, 1.442695
      %v1025 = vpow.pop %v1024
      %v1026 = vmul.f32 %v1002, 1.442695
      %v1027 = vpow.pop %v1026
      %v1028 = vmul.f32 %v1003, 1.442695
      %v1029 = vpow.pop %v1028
      %v1030 = vmul.f32 %v1004, 1.442695
      %v1031 = vpow.pop %v1030
      %v1032 = vmul.f32 %v1005, 1.442695
      %v1033 = vpow.pop %v1032
      %v1034 = vmul.f32 %v1006, 1.442695
      %v1035 = vpow.pop %v1034
      %v1036 = vmul.f32 %v1007, 1.442695
      %v1037 = vpow.pop %v1036
      %v1038 = vmul.f32 %v1008, 1.442695
      %v1039 = vpow.pop %v1038
      %v1040 = vmul.f32 %v1009, 1.442695
      %v1041 = vpow.pop %v1040
      %v1042 = vsel %vm945, %v1011, 0.0
      %1043 = vadd.xlane.f32.xlu0 %v1042
      %v1044 = vpop.xlane.xlu0 %1043
      %v1045 = vsel %vm945, %v1013, 0.0
      %1046 = vadd.xlane.f32.xlu0 %v1045
      %v1047 = vpop.xlane.xlu0 %1046
      %v1048 = vsel %vm945, %v1015, 0.0
      %1049 = vadd.xlane.f32.xlu0 %v1048
      %v1050 = vpop.xlane.xlu0 %1049
      %v1051 = vsel %vm945, %v1017, 0.0
      %1052 = vadd.xlane.f32.xlu0 %v1051
      %v1053 = vpop.xlane.xlu0 %1052
      %v1054 = vsel %vm945, %v1019, 0.0
      %1055 = vadd.xlane.f32.xlu0 %v1054
      %v1056 = vpop.xlane.xlu0 %1055
      %v1057 = vsel %vm945, %v1021, 0.0
      %1058 = vadd.xlane.f32.xlu0 %v1057
      %v1059 = vpop.xlane.xlu0 %1058
      %v1060 = vsel %vm945, %v1023, 0.0
      %1061 = vadd.xlane.f32.xlu0 %v1060
      %v1062 = vpop.xlane.xlu0 %1061
      %v1063 = vsel %vm945, %v1025, 0.0
      %1064 = vadd.xlane.f32.xlu0 %v1063
      %v1065 = vpop.xlane.xlu0 %1064
      %v1066 = vsel %vm945, %v1027, 0.0
      %1067 = vadd.xlane.f32.xlu0 %v1066
      %v1068 = vpop.xlane.xlu0 %1067
      %v1069 = vsel %vm945, %v1029, 0.0
      %1070 = vadd.xlane.f32.xlu0 %v1069
      %v1071 = vpop.xlane.xlu0 %1070
      %v1072 = vsel %vm945, %v1031, 0.0
      %1073 = vadd.xlane.f32.xlu0 %v1072
      %v1074 = vpop.xlane.xlu0 %1073
      %v1075 = vsel %vm945, %v1033, 0.0
      %1076 = vadd.xlane.f32.xlu0 %v1075
      %v1077 = vpop.xlane.xlu0 %1076
      %v1078 = vsel %vm945, %v1035, 0.0
      %1079 = vadd.xlane.f32.xlu0 %v1078
      %v1080 = vpop.xlane.xlu0 %1079
      %v1081 = vsel %vm945, %v1037, 0.0
      %1082 = vadd.xlane.f32.xlu0 %v1081
      %v1083 = vpop.xlane.xlu0 %1082
      %v1084 = vsel %vm945, %v1039, 0.0
      %1085 = vadd.xlane.f32.xlu0 %v1084
      %v1086 = vpop.xlane.xlu0 %1085
      %v1087 = vsel %vm945, %v1041, 0.0
      %1088 = vadd.xlane.f32.xlu0 %v1087
      %v1089 = vpop.xlane.xlu0 %1088
      %v1090 = vrcp.pop %v1044
      %v1091 = vmul.f32 %v1011, %v1090
      %v1092 = vrcp.pop %v1047
      %v1093 = vmul.f32 %v1013, %v1092
      %v1094 = vrcp.pop %v1050
      %v1095 = vmul.f32 %v1015, %v1094
      %v1096 = vrcp.pop %v1053
      %v1097 = vmul.f32 %v1017, %v1096
      %v1098 = vrcp.pop %v1056
      %v1099 = vmul.f32 %v1019, %v1098
      %v1100 = vrcp.pop %v1059
      %v1101 = vmul.f32 %v1021, %v1100
      %v1102 = vrcp.pop %v1062
      %v1103 = vmul.f32 %v1023, %v1102
      %v1104 = vrcp.pop %v1065
      %v1105 = vmul.f32 %v1025, %v1104
      %v1106 = vrcp.pop %v1068
      %v1107 = vmul.f32 %v1027, %v1106
      %v1108 = vrcp.pop %v1071
      %v1109 = vmul.f32 %v1029, %v1108
      %v1110 = vrcp.pop %v1074
      %v1111 = vmul.f32 %v1031, %v1110
      %v1112 = vrcp.pop %v1077
      %v1113 = vmul.f32 %v1033, %v1112
      %v1114 = vrcp.pop %v1080
      %v1115 = vmul.f32 %v1035, %v1114
      %v1116 = vrcp.pop %v1083
      %v1117 = vmul.f32 %v1037, %v1116
      %v1118 = vrcp.pop %v1086
      %v1119 = vmul.f32 %v1039, %v1118
      %v1120 = vrcp.pop %v1089
      %v1121 = vmul.f32 %v1041, %v1120
      %v1123 = vsel %vm945, %v1091, 0
      %v1126 = vsel %vm945, %v1093, 0
      %v1129 = vsel %vm945, %v1095, 0
      %v1132 = vsel %vm945, %v1097, 0
      %v1135 = vsel %vm945, %v1099, 0
      %v1138 = vsel %vm945, %v1101, 0
      %v1141 = vsel %vm945, %v1103, 0
      %v1144 = vsel %vm945, %v1105, 0
      %1146 = vmatprep.subr.mxu0 0.0
      %1147 = vmatpush1.msra.mxu0 0.0
      %1148 = vmatprep.subr.mxu0 0.0
      %1149 = vmatpush1.msra.mxu0 0.0
      %1150 = vmatprep.subr.mxu0 0.0
      %1151 = vmatpush1.msra.mxu0 0.0
      %1152 = vmatprep.subr.mxu0 0.0
      %1153 = vmatpush1.msra.mxu0 0.0
      %1154 = vmatprep.subr.mxu0 0.0
      %1155 = vmatpush1.msra.mxu0 0.0
      %1156 = vmatprep.subr.mxu0 0.0
      %1157 = vmatpush1.msra.mxu0 0.0
      %1158 = vmatprep.subr.mxu0 0.0
      %1159 = vmatpush1.msra.mxu0 0.0
      %1160 = vmatprep.subr.mxu0 0.0
      %1161 = vmatpush1.msra.mxu0 0.0
      %1162 = vmatprep.subr.mxu0 0.0
      %1163 = vmatpush1.msra.mxu0 %v579
      %1164 = vmatprep.subr.mxu0 0.0
      %1165 = vmatpush1.msra.mxu0 %v574
      %1166 = vmatprep.subr.mxu0 0.0
      %1167 = vmatpush1.msra.mxu0 %v569
      %1168 = vmatprep.subr.mxu0 0.0
      %1169 = vmatpush1.msra.mxu0 %v564
      %1170 = vmatprep.subr.mxu0 0.0
      %1171 = vmatpush1.msra.mxu0 %v559
      %1172 = vmatprep.subr.mxu0 0.0
      %1173 = vmatpush1.msra.mxu0 %v554
      %1174 = vmatprep.subr.mxu0 0.0
      %1175 = vmatpush1.msra.mxu0 %v549
      %1176 = vmatprep.subr.mxu0 0.0
      %1177 = vmatpush1.msra.mxu0 %v544
      %1178 = vmatprep.subr.mxu0 0.0
      %1179 = vmatpush2.msra.mxu0 0.0
      %1180 = vmatprep.subr.mxu0 0.0
      %1181 = vmatpush2.msra.mxu0 0.0
      %1182 = vmatprep.subr.mxu0 0.0
      %1183 = vmatpush2.msra.mxu0 0.0
      %1184 = vmatprep.subr.mxu0 0.0
      %1185 = vmatpush2.msra.mxu0 0.0
      %1186 = vmatprep.subr.mxu0 0.0
      %1187 = vmatpush2.msra.mxu0 0.0
      %1188 = vmatprep.subr.mxu0 0.0
      %1189 = vmatpush2.msra.mxu0 0.0
      %1190 = vmatprep.subr.mxu0 0.0
      %1191 = vmatpush2.msra.mxu0 0.0
      %1192 = vmatprep.subr.mxu0 0.0
      %1193 = vmatpush2.msra.mxu0 0.0
      %1194 = vmatprep.subr.mxu0 0.0
      %1195 = vmatpush2.msra.mxu0 0.0
      %1196 = vmatprep.subr.mxu0 0.0
      %1197 = vmatpush2.msra.mxu0 0.0
      %1198 = vmatprep.subr.mxu0 0.0
      %1199 = vmatpush2.msra.mxu0 0.0
      %1200 = vmatprep.subr.mxu0 0.0
      %1201 = vmatpush2.msra.mxu0 0.0
      %1202 = vmatprep.subr.mxu0 0.0
      %1203 = vmatpush2.msra.mxu0 0.0
      %1204 = vmatprep.subr.mxu0 0.0
      %1205 = vmatpush2.msra.mxu0 0.0
      %1206 = vmatprep.subr.mxu0 0.0
      %1207 = vmatpush2.msra.mxu0 0.0
      %1208 = vmatprep.subr.mxu0 0.0
      %1209 = vmatpush2.msra.mxu0 0.0
      %1210 = vmatprep.mubr.f32.mxu0 0.0
      %1211 = vmatmul.mubr.f32.gmra.mxu0 %v1123
      %v1212 = vpop.f32.mrf.mxu0
      %v1213 = vadd.f32 0.0, %v1212
      %v1214 = vpop.f32.mrf.mxu0
      %1215 = vmatprep.mubr.f32.mxu0 0.0
      %1216 = vmatmul.mubr.f32.gmra.mxu0 %v1126
      %v1217 = vpop.f32.mrf.mxu0
      %v1218 = vadd.f32 0.0, %v1217
      %v1219 = vpop.f32.mrf.mxu0
      %1220 = vmatprep.mubr.f32.mxu0 0.0
      %1221 = vmatmul.mubr.f32.gmra.mxu0 %v1129
      %v1222 = vpop.f32.mrf.mxu0
      %v1223 = vadd.f32 0.0, %v1222
      %v1224 = vpop.f32.mrf.mxu0
      %1225 = vmatprep.mubr.f32.mxu0 0.0
      %1226 = vmatmul.mubr.f32.gmra.mxu0 %v1132
      %v1227 = vpop.f32.mrf.mxu0
      %v1228 = vadd.f32 0.0, %v1227
      %v1229 = vpop.f32.mrf.mxu0
      %1230 = vmatprep.mubr.f32.mxu0 0.0
      %1231 = vmatmul.mubr.f32.gmra.mxu0 %v1135
      %v1232 = vpop.f32.mrf.mxu0
      %v1233 = vadd.f32 0.0, %v1232
      %v1234 = vpop.f32.mrf.mxu0
      %1235 = vmatprep.mubr.f32.mxu0 0.0
      %1236 = vmatmul.mubr.f32.gmra.mxu0 %v1138
      %v1237 = vpop.f32.mrf.mxu0
      %v1238 = vadd.f32 0.0, %v1237
      %v1239 = vpop.f32.mrf.mxu0
      %1240 = vmatprep.mubr.f32.mxu0 0.0
      %1241 = vmatmul.mubr.f32.gmra.mxu0 %v1141
      %v1242 = vpop.f32.mrf.mxu0
      %v1243 = vadd.f32 0.0, %v1242
      %v1244 = vpop.f32.mrf.mxu0
      %1245 = vmatprep.mubr.f32.mxu0 0.0
      %1246 = vmatmul.mubr.f32.gmra.mxu0 %v1144
      %v1247 = vpop.f32.mrf.mxu0
      %v1248 = vadd.f32 0.0, %v1247
      %v1249 = vpop.f32.mrf.mxu0
      %1250 = vdwg.mxu0
      %v1252 = vsel %vm945, %v1107, 0
      %v1255 = vsel %vm945, %v1109, 0
      %v1258 = vsel %vm945, %v1111, 0
      %v1261 = vsel %vm945, %v1113, 0
      %v1264 = vsel %vm945, %v1115, 0
      %v1267 = vsel %vm945, %v1117, 0
      %v1270 = vsel %vm945, %v1119, 0
      %v1273 = vsel %vm945, %v1121, 0
      %1275 = vmatprep.subr.mxu0 0.0
      %1276 = vmatpush1.msra.mxu0 0.0
      %1277 = vmatprep.subr.mxu0 0.0
      %1278 = vmatpush1.msra.mxu0 0.0
      %1279 = vmatprep.subr.mxu0 0.0
      %1280 = vmatpush1.msra.mxu0 0.0
      %1281 = vmatprep.subr.mxu0 0.0
      %1282 = vmatpush1.msra.mxu0 0.0
      %1283 = vmatprep.subr.mxu0 0.0
      %1284 = vmatpush1.msra.mxu0 0.0
      %1285 = vmatprep.subr.mxu0 0.0
      %1286 = vmatpush1.msra.mxu0 0.0
      %1287 = vmatprep.subr.mxu0 0.0
      %1288 = vmatpush1.msra.mxu0 0.0
      %1289 = vmatprep.subr.mxu0 0.0
      %1290 = vmatpush1.msra.mxu0 0.0
      %1291 = vmatprep.subr.mxu0 0.0
      %1292 = vmatpush1.msra.mxu0 %v619
      %1293 = vmatprep.subr.mxu0 0.0
      %1294 = vmatpush1.msra.mxu0 %v614
      %1295 = vmatprep.subr.mxu0 0.0
      %1296 = vmatpush1.msra.mxu0 %v609
      %1297 = vmatprep.subr.mxu0 0.0
      %1298 = vmatpush1.msra.mxu0 %v604
      %1299 = vmatprep.subr.mxu0 0.0
      %1300 = vmatpush1.msra.mxu0 %v599
      %1301 = vmatprep.subr.mxu0 0.0
      %1302 = vmatpush1.msra.mxu0 %v594
      %1303 = vmatprep.subr.mxu0 0.0
      %1304 = vmatpush1.msra.mxu0 %v589
      %1305 = vmatprep.subr.mxu0 0.0
      %1306 = vmatpush1.msra.mxu0 %v584
      %1307 = vmatprep.subr.mxu0 0.0
      %1308 = vmatpush2.msra.mxu0 0.0
      %1309 = vmatprep.subr.mxu0 0.0
      %1310 = vmatpush2.msra.mxu0 0.0
      %1311 = vmatprep.subr.mxu0 0.0
      %1312 = vmatpush2.msra.mxu0 0.0
      %1313 = vmatprep.subr.mxu0 0.0
      %1314 = vmatpush2.msra.mxu0 0.0
      %1315 = vmatprep.subr.mxu0 0.0
      %1316 = vmatpush2.msra.mxu0 0.0
      %1317 = vmatprep.subr.mxu0 0.0
      %1318 = vmatpush2.msra.mxu0 0.0
      %1319 = vmatprep.subr.mxu0 0.0
      %1320 = vmatpush2.msra.mxu0 0.0
      %1321 = vmatprep.subr.mxu0 0.0
      %1322 = vmatpush2.msra.mxu0 0.0
      %1323 = vmatprep.subr.mxu0 0.0
      %1324 = vmatpush2.msra.mxu0 0.0
      %1325 = vmatprep.subr.mxu0 0.0
      %1326 = vmatpush2.msra.mxu0 0.0
      %1327 = vmatprep.subr.mxu0 0.0
      %1328 = vmatpush2.msra.mxu0 0.0
      %1329 = vmatprep.subr.mxu0 0.0
      %1330 = vmatpush2.msra.mxu0 0.0
      %1331 = vmatprep.subr.mxu0 0.0
      %1332 = vmatpush2.msra.mxu0 0.0
      %1333 = vmatprep.subr.mxu0 0.0
      %1334 = vmatpush2.msra.mxu0 0.0
      %1335 = vmatprep.subr.mxu0 0.0
      %1336 = vmatpush2.msra.mxu0 0.0
      %1337 = vmatprep.subr.mxu0 0.0
      %1338 = vmatpush2.msra.mxu0 0.0
      %1339 = vmatprep.mubr.f32.mxu0 0.0
      %1340 = vmatmul.mubr.f32.gmra.mxu0 %v1252
      %v1341 = vpop.f32.mrf.mxu0
      %v1342 = vadd.f32 0.0, %v1341
      %v1343 = vpop.f32.mrf.mxu0
      %1344 = vmatprep.mubr.f32.mxu0 0.0
      %1345 = vmatmul.mubr.f32.gmra.mxu0 %v1255
      %v1346 = vpop.f32.mrf.mxu0
      %v1347 = vadd.f32 0.0, %v1346
      %v1348 = vpop.f32.mrf.mxu0
      %1349 = vmatprep.mubr.f32.mxu0 0.0
      %1350 = vmatmul.mubr.f32.gmra.mxu0 %v1258
      %v1351 = vpop.f32.mrf.mxu0
      %v1352 = vadd.f32 0.0, %v1351
      %v1353 = vpop.f32.mrf.mxu0
      %1354 = vmatprep.mubr.f32.mxu0 0.0
      %1355 = vmatmul.mubr.f32.gmra.mxu0 %v1261
      %v1356 = vpop.f32.mrf.mxu0
      %v1357 = vadd.f32 0.0, %v1356
      %v1358 = vpop.f32.mrf.mxu0
      %1359 = vmatprep.mubr.f32.mxu0 0.0
      %1360 = vmatmul.mubr.f32.gmra.mxu0 %v1264
      %v1361 = vpop.f32.mrf.mxu0
      %v1362 = vadd.f32 0.0, %v1361
      %v1363 = vpop.f32.mrf.mxu0
      %1364 = vmatprep.mubr.f32.mxu0 0.0
      %1365 = vmatmul.mubr.f32.gmra.mxu0 %v1267
      %v1366 = vpop.f32.mrf.mxu0
      %v1367 = vadd.f32 0.0, %v1366
      %v1368 = vpop.f32.mrf.mxu0
      %1369 = vmatprep.mubr.f32.mxu0 0.0
      %1370 = vmatmul.mubr.f32.gmra.mxu0 %v1270
      %v1371 = vpop.f32.mrf.mxu0
      %v1372 = vadd.f32 0.0, %v1371
      %v1373 = vpop.f32.mrf.mxu0
      %1374 = vmatprep.mubr.f32.mxu0 0.0
      %1375 = vmatmul.mubr.f32.gmra.mxu0 %v1273
      %v1376 = vpop.f32.mrf.mxu0
      %v1377 = vadd.f32 0.0, %v1376
      %v1378 = vpop.f32.mrf.mxu0
      %1379 = vdwg.mxu0
      %1380 = vst.msk [vmem:[%s204] sm:$0xff] %vm638, %v1213
      %1381 = vst.msk [vmem:[%s204 + $0x8] sm:$0xff] %vm638, %v1218
      %1382 = vst.msk [vmem:[%s204 + $0x10] sm:$0xff] %vm638, %v1223
      %1383 = vst.msk [vmem:[%s204 + $0x18] sm:$0xff] %vm638, %v1228
      %1384 = vst.msk [vmem:[%s204 + $0x20] sm:$0xff] %vm638, %v1233
      %1385 = vst.msk [vmem:[%s204 + $0x28] sm:$0xff] %vm638, %v1238
      %1386 = vst.msk [vmem:[%s204 + $0x30] sm:$0xff] %vm638, %v1243
      %1387 = vst.msk [vmem:[%s204 + $0x38] sm:$0xff] %vm638, %v1248
      %1388 = vst.msk [vmem:[%s204 + $0x40] sm:$0xff] %vm638, %v1342
      %1389 = vst.msk [vmem:[%s204 + $0x48] sm:$0xff] %vm638, %v1347
      %1390 = vst.msk [vmem:[%s204 + $0x50] sm:$0xff] %vm638, %v1352
      %1391 = vst.msk [vmem:[%s204 + $0x58] sm:$0xff] %vm638, %v1357
      %1392 = vst.msk [vmem:[%s204 + $0x60] sm:$0xff] %vm638, %v1362
      %1393 = vst.msk [vmem:[%s204 + $0x68] sm:$0xff] %vm638, %v1367
      %1394 = vst.msk [vmem:[%s204 + $0x70] sm:$0xff] %vm638, %v1372
      %1395 = vst.msk [vmem:[%s204 + $0x78] sm:$0xff] %vm638, %v1377
      %1396 = vrot.lane.b32.xlu0 %v622, 112
      %v1397 = vpop.permute.xlu0 %1396
      %1398 = vrot.lane.b32.xlu0 %v623, 112
      %v1399 = vpop.permute.xlu0 %1398
      %1400 = vrot.lane.b32.xlu0 %v624, 112
      %v1401 = vpop.permute.xlu0 %1400
      %1402 = vrot.lane.b32.xlu0 %v625, 112
      %v1403 = vpop.permute.xlu0 %1402
      %1404 = vrot.lane.b32.xlu0 %v626, 112
      %v1405 = vpop.permute.xlu0 %1404
      %1406 = vrot.lane.b32.xlu0 %v627, 112
      %v1407 = vpop.permute.xlu0 %1406
      %1408 = vrot.lane.b32.xlu0 %v628, 112
      %v1409 = vpop.permute.xlu0 %1408
      %1410 = vrot.lane.b32.xlu0 %v629, 112
      %v1411 = vpop.permute.xlu0 %1410
      %1412 = vrot.lane.b32.xlu0 %v385, 112
      %v1413 = vpop.permute.xlu0 %1412
      %1414 = vrot.lane.b32.xlu0 %v391, 112
      %v1415 = vpop.permute.xlu0 %1414
      %1416 = vrot.lane.b32.xlu0 %v397, 112
      %v1417 = vpop.permute.xlu0 %1416
      %1418 = vrot.lane.b32.xlu0 %v403, 112
      %v1419 = vpop.permute.xlu0 %1418
      %1420 = vrot.lane.b32.xlu0 %v409, 112
      %v1421 = vpop.permute.xlu0 %1420
      %1422 = vrot.lane.b32.xlu0 %v415, 112
      %v1423 = vpop.permute.xlu0 %1422
      %1424 = vrot.lane.b32.xlu0 %v421, 112
      %v1425 = vpop.permute.xlu0 %1424
      %1426 = vrot.lane.b32.xlu0 %v427, 112
      %v1427 = vpop.permute.xlu0 %1426
      %v1428 = vsel %vm638, %v1397, 0
      %v1430 = vsel %vm638, %v1399, 0
      %v1432 = vsel %vm638, %v1401, 0
      %v1434 = vsel %vm638, %v1403, 0
      %v1436 = vsel %vm638, %v1405, 0
      %v1438 = vsel %vm638, %v1407, 0
      %v1440 = vsel %vm638, %v1409, 0
      %v1442 = vsel %vm638, %v1411, 0
      %v1444 = vsel %vm638, %v1413, 0
      %v1446 = vsel %vm638, %v1415, 0
      %v1448 = vsel %vm638, %v1417, 0
      %v1450 = vsel %vm638, %v1419, 0
      %v1452 = vsel %vm638, %v1421, 0
      %v1454 = vsel %vm638, %v1423, 0
      %v1456 = vsel %vm638, %v1425, 0
      %v1458 = vsel %vm638, %v1427, 0
      %1460 = vmatprep.subr.mxu0 0.0
      %1461 = vmatpush1.xpose.msra.mxu0 0.0
      %1462 = vmatprep.subr.mxu0 0.0
      %1463 = vmatpush1.xpose.msra.mxu0 0.0
      %1464 = vmatprep.subr.mxu0 0.0
      %1465 = vmatpush1.xpose.msra.mxu0 0.0
      %1466 = vmatprep.subr.mxu0 0.0
      %1467 = vmatpush1.xpose.msra.mxu0 0.0
      %1468 = vmatprep.subr.mxu0 0.0
      %1469 = vmatpush1.xpose.msra.mxu0 0.0
      %1470 = vmatprep.subr.mxu0 0.0
      %1471 = vmatpush1.xpose.msra.mxu0 0.0
      %1472 = vmatprep.subr.mxu0 0.0
      %1473 = vmatpush1.xpose.msra.mxu0 0.0
      %1474 = vmatprep.subr.mxu0 0.0
      %1475 = vmatpush1.xpose.msra.mxu0 0.0
      %1476 = vmatprep.subr.mxu0 0.0
      %1477 = vmatpush1.xpose.msra.mxu0 %v1458
      %1478 = vmatprep.subr.mxu0 0.0
      %1479 = vmatpush1.xpose.msra.mxu0 %v1456
      %1480 = vmatprep.subr.mxu0 0.0
      %1481 = vmatpush1.xpose.msra.mxu0 %v1454
      %1482 = vmatprep.subr.mxu0 0.0
      %1483 = vmatpush1.xpose.msra.mxu0 %v1452
      %1484 = vmatprep.subr.mxu0 0.0
      %1485 = vmatpush1.xpose.msra.mxu0 %v1450
      %1486 = vmatprep.subr.mxu0 0.0
      %1487 = vmatpush1.xpose.msra.mxu0 %v1448
      %1488 = vmatprep.subr.mxu0 0.0
      %1489 = vmatpush1.xpose.msra.mxu0 %v1446
      %1490 = vmatprep.subr.mxu0 0.0
      %1491 = vmatpush1.xpose.msra.mxu0 %v1444
      %1492 = vmatprep.subr.mxu0 0.0
      %1493 = vmatpush2.xpose.msra.mxu0 0.0
      %1494 = vmatprep.subr.mxu0 0.0
      %1495 = vmatpush2.xpose.msra.mxu0 0.0
      %1496 = vmatprep.subr.mxu0 0.0
      %1497 = vmatpush2.xpose.msra.mxu0 0.0
      %1498 = vmatprep.subr.mxu0 0.0
      %1499 = vmatpush2.xpose.msra.mxu0 0.0
      %1500 = vmatprep.subr.mxu0 0.0
      %1501 = vmatpush2.xpose.msra.mxu0 0.0
      %1502 = vmatprep.subr.mxu0 0.0
      %1503 = vmatpush2.xpose.msra.mxu0 0.0
      %1504 = vmatprep.subr.mxu0 0.0
      %1505 = vmatpush2.xpose.msra.mxu0 0.0
      %1506 = vmatprep.subr.mxu0 0.0
      %1507 = vmatpush2.xpose.msra.mxu0 0.0
      %1508 = vmatprep.subr.mxu0 0.0
      %1509 = vmatpush2.xpose.msra.mxu0 0.0
      %1510 = vmatprep.subr.mxu0 0.0
      %1511 = vmatpush2.xpose.msra.mxu0 0.0
      %1512 = vmatprep.subr.mxu0 0.0
      %1513 = vmatpush2.xpose.msra.mxu0 0.0
      %1514 = vmatprep.subr.mxu0 0.0
      %1515 = vmatpush2.xpose.msra.mxu0 0.0
      %1516 = vmatprep.subr.mxu0 0.0
      %1517 = vmatpush2.xpose.msra.mxu0 0.0
      %1518 = vmatprep.subr.mxu0 0.0
      %1519 = vmatpush2.xpose.msra.mxu0 0.0
      %1520 = vmatprep.subr.mxu0 0.0
      %1521 = vmatpush2.xpose.msra.mxu0 0.0
      %1522 = vmatprep.subr.mxu0 0.0
      %1523 = vmatpush2.xpose.msra.mxu0 0.0
      %1524 = vmatprep.mubr.f32.mxu0 0.0
      %1525 = vmatmul.mubr.f32.gmra.mxu0 %v1428
      %v1526 = vpop.f32.mrf.mxu0
      %v1527 = vadd.f32 0.0, %v1526
      %v1528 = vpop.f32.mrf.mxu0
      %1529 = vmatprep.mubr.f32.mxu0 0.0
      %1530 = vmatmul.mubr.f32.gmra.mxu0 %v1430
      %v1531 = vpop.f32.mrf.mxu0
      %v1532 = vadd.f32 0.0, %v1531
      %v1533 = vpop.f32.mrf.mxu0
      %1534 = vmatprep.mubr.f32.mxu0 0.0
      %1535 = vmatmul.mubr.f32.gmra.mxu0 %v1432
      %v1536 = vpop.f32.mrf.mxu0
      %v1537 = vadd.f32 0.0, %v1536
      %v1538 = vpop.f32.mrf.mxu0
      %1539 = vmatprep.mubr.f32.mxu0 0.0
      %1540 = vmatmul.mubr.f32.gmra.mxu0 %v1434
      %v1541 = vpop.f32.mrf.mxu0
      %v1542 = vadd.f32 0.0, %v1541
      %v1543 = vpop.f32.mrf.mxu0
      %1544 = vmatprep.mubr.f32.mxu0 0.0
      %1545 = vmatmul.mubr.f32.gmra.mxu0 %v1436
      %v1546 = vpop.f32.mrf.mxu0
      %v1547 = vadd.f32 0.0, %v1546
      %v1548 = vpop.f32.mrf.mxu0
      %1549 = vmatprep.mubr.f32.mxu0 0.0
      %1550 = vmatmul.mubr.f32.gmra.mxu0 %v1438
      %v1551 = vpop.f32.mrf.mxu0
      %v1552 = vadd.f32 0.0, %v1551
      %v1553 = vpop.f32.mrf.mxu0
      %1554 = vmatprep.mubr.f32.mxu0 0.0
      %1555 = vmatmul.mubr.f32.gmra.mxu0 %v1440
      %v1556 = vpop.f32.mrf.mxu0
      %v1557 = vadd.f32 0.0, %v1556
      %v1558 = vpop.f32.mrf.mxu0
      %1559 = vmatprep.mubr.f32.mxu0 0.0
      %1560 = vmatmul.mubr.f32.gmra.mxu0 %v1442
      %v1561 = vpop.f32.mrf.mxu0
      %v1562 = vadd.f32 0.0, %v1561
      %v1563 = vpop.f32.mrf.mxu0
      %1564 = vdwg.mxu0
      %1565 = vrot.lane.b32.xlu0 %v630, 112
      %v1566 = vpop.permute.xlu0 %1565
      %1567 = vrot.lane.b32.xlu0 %v631, 112
      %v1568 = vpop.permute.xlu0 %1567
      %1569 = vrot.lane.b32.xlu0 %v632, 112
      %v1570 = vpop.permute.xlu0 %1569
      %1571 = vrot.lane.b32.xlu0 %v633, 112
      %v1572 = vpop.permute.xlu0 %1571
      %1573 = vrot.lane.b32.xlu0 %v634, 112
      %v1574 = vpop.permute.xlu0 %1573
      %1575 = vrot.lane.b32.xlu0 %v635, 112
      %v1576 = vpop.permute.xlu0 %1575
      %1577 = vrot.lane.b32.xlu0 %v636, 112
      %v1578 = vpop.permute.xlu0 %1577
      %1579 = vrot.lane.b32.xlu0 %v637, 112
      %v1580 = vpop.permute.xlu0 %1579
      %1581 = vrot.lane.b32.xlu0 %v433, 112
      %v1582 = vpop.permute.xlu0 %1581
      %1583 = vrot.lane.b32.xlu0 %v439, 112
      %v1584 = vpop.permute.xlu0 %1583
      %1585 = vrot.lane.b32.xlu0 %v445, 112
      %v1586 = vpop.permute.xlu0 %1585
      %1587 = vrot.lane.b32.xlu0 %v451, 112
      %v1588 = vpop.permute.xlu0 %1587
      %1589 = vrot.lane.b32.xlu0 %v457, 112
      %v1590 = vpop.permute.xlu0 %1589
      %1591 = vrot.lane.b32.xlu0 %v463, 112
      %v1592 = vpop.permute.xlu0 %1591
      %1593 = vrot.lane.b32.xlu0 %v469, 112
      %v1594 = vpop.permute.xlu0 %1593
      %1595 = vrot.lane.b32.xlu0 %v475, 112
      %v1596 = vpop.permute.xlu0 %1595
      %v1597 = vsel %vm638, %v1566, 0
      %v1599 = vsel %vm638, %v1568, 0
      %v1601 = vsel %vm638, %v1570, 0
      %v1603 = vsel %vm638, %v1572, 0
      %v1605 = vsel %vm638, %v1574, 0
      %v1607 = vsel %vm638, %v1576, 0
      %v1609 = vsel %vm638, %v1578, 0
      %v1611 = vsel %vm638, %v1580, 0
      %v1613 = vsel %vm638, %v1582, 0
      %v1615 = vsel %vm638, %v1584, 0
      %v1617 = vsel %vm638, %v1586, 0
      %v1619 = vsel %vm638, %v1588, 0
      %v1621 = vsel %vm638, %v1590, 0
      %v1623 = vsel %vm638, %v1592, 0
      %v1625 = vsel %vm638, %v1594, 0
      %v1627 = vsel %vm638, %v1596, 0
      %1629 = vmatprep.subr.mxu0 0.0
      %1630 = vmatpush1.xpose.msra.mxu0 0.0
      %1631 = vmatprep.subr.mxu0 0.0
      %1632 = vmatpush1.xpose.msra.mxu0 0.0
      %1633 = vmatprep.subr.mxu0 0.0
      %1634 = vmatpush1.xpose.msra.mxu0 0.0
      %1635 = vmatprep.subr.mxu0 0.0
      %1636 = vmatpush1.xpose.msra.mxu0 0.0
      %1637 = vmatprep.subr.mxu0 0.0
      %1638 = vmatpush1.xpose.msra.mxu0 0.0
      %1639 = vmatprep.subr.mxu0 0.0
      %1640 = vmatpush1.xpose.msra.mxu0 0.0
      %1641 = vmatprep.subr.mxu0 0.0
      %1642 = vmatpush1.xpose.msra.mxu0 0.0
      %1643 = vmatprep.subr.mxu0 0.0
      %1644 = vmatpush1.xpose.msra.mxu0 0.0
      %1645 = vmatprep.subr.mxu0 0.0
      %1646 = vmatpush1.xpose.msra.mxu0 %v1627
      %1647 = vmatprep.subr.mxu0 0.0
      %1648 = vmatpush1.xpose.msra.mxu0 %v1625
      %1649 = vmatprep.subr.mxu0 0.0
      %1650 = vmatpush1.xpose.msra.mxu0 %v1623
      %1651 = vmatprep.subr.mxu0 0.0
      %1652 = vmatpush1.xpose.msra.mxu0 %v1621
      %1653 = vmatprep.subr.mxu0 0.0
      %1654 = vmatpush1.xpose.msra.mxu0 %v1619
      %1655 = vmatprep.subr.mxu0 0.0
      %1656 = vmatpush1.xpose.msra.mxu0 %v1617
      %1657 = vmatprep.subr.mxu0 0.0
      %1658 = vmatpush1.xpose.msra.mxu0 %v1615
      %1659 = vmatprep.subr.mxu0 0.0
      %1660 = vmatpush1.xpose.msra.mxu0 %v1613
      %1661 = vmatprep.subr.mxu0 0.0
      %1662 = vmatpush2.xpose.msra.mxu0 0.0
      %1663 = vmatprep.subr.mxu0 0.0
      %1664 = vmatpush2.xpose.msra.mxu0 0.0
      %1665 = vmatprep.subr.mxu0 0.0
      %1666 = vmatpush2.xpose.msra.mxu0 0.0
      %1667 = vmatprep.subr.mxu0 0.0
      %1668 = vmatpush2.xpose.msra.mxu0 0.0
      %1669 = vmatprep.subr.mxu0 0.0
      %1670 = vmatpush2.xpose.msra.mxu0 0.0
      %1671 = vmatprep.subr.mxu0 0.0
      %1672 = vmatpush2.xpose.msra.mxu0 0.0
      %1673 = vmatprep.subr.mxu0 0.0
      %1674 = vmatpush2.xpose.msra.mxu0 0.0
      %1675 = vmatprep.subr.mxu0 0.0
      %1676 = vmatpush2.xpose.msra.mxu0 0.0
      %1677 = vmatprep.subr.mxu0 0.0
      %1678 = vmatpush2.xpose.msra.mxu0 0.0
      %1679 = vmatprep.subr.mxu0 0.0
      %1680 = vmatpush2.xpose.msra.mxu0 0.0
      %1681 = vmatprep.subr.mxu0 0.0
      %1682 = vmatpush2.xpose.msra.mxu0 0.0
      %1683 = vmatprep.subr.mxu0 0.0
      %1684 = vmatpush2.xpose.msra.mxu0 0.0
      %1685 = vmatprep.subr.mxu0 0.0
      %1686 = vmatpush2.xpose.msra.mxu0 0.0
      %1687 = vmatprep.subr.mxu0 0.0
      %1688 = vmatpush2.xpose.msra.mxu0 0.0
      %1689 = vmatprep.subr.mxu0 0.0
      %1690 = vmatpush2.xpose.msra.mxu0 0.0
      %1691 = vmatprep.subr.mxu0 0.0
      %1692 = vmatpush2.xpose.msra.mxu0 0.0
      %1693 = vmatprep.mubr.f32.mxu0 0.0
      %1694 = vmatmul.mubr.f32.gmra.mxu0 %v1597
      %v1695 = vpop.f32.mrf.mxu0
      %v1696 = vadd.f32 0.0, %v1695
      %v1697 = vpop.f32.mrf.mxu0
      %1698 = vmatprep.mubr.f32.mxu0 0.0
      %1699 = vmatmul.mubr.f32.gmra.mxu0 %v1599
      %v1700 = vpop.f32.mrf.mxu0
      %v1701 = vadd.f32 0.0, %v1700
      %v1702 = vpop.f32.mrf.mxu0
      %1703 = vmatprep.mubr.f32.mxu0 0.0
      %1704 = vmatmul.mubr.f32.gmra.mxu0 %v1601
      %v1705 = vpop.f32.mrf.mxu0
      %v1706 = vadd.f32 0.0, %v1705
      %v1707 = vpop.f32.mrf.mxu0
      %1708 = vmatprep.mubr.f32.mxu0 0.0
      %1709 = vmatmul.mubr.f32.gmra.mxu0 %v1603
      %v1710 = vpop.f32.mrf.mxu0
      %v1711 = vadd.f32 0.0, %v1710
      %v1712 = vpop.f32.mrf.mxu0
      %1713 = vmatprep.mubr.f32.mxu0 0.0
      %1714 = vmatmul.mubr.f32.gmra.mxu0 %v1605
      %v1715 = vpop.f32.mrf.mxu0
      %v1716 = vadd.f32 0.0, %v1715
      %v1717 = vpop.f32.mrf.mxu0
      %1718 = vmatprep.mubr.f32.mxu0 0.0
      %1719 = vmatmul.mubr.f32.gmra.mxu0 %v1607
      %v1720 = vpop.f32.mrf.mxu0
      %v1721 = vadd.f32 0.0, %v1720
      %v1722 = vpop.f32.mrf.mxu0
      %1723 = vmatprep.mubr.f32.mxu0 0.0
      %1724 = vmatmul.mubr.f32.gmra.mxu0 %v1609
      %v1725 = vpop.f32.mrf.mxu0
      %v1726 = vadd.f32 0.0, %v1725
      %v1727 = vpop.f32.mrf.mxu0
      %1728 = vmatprep.mubr.f32.mxu0 0.0
      %1729 = vmatmul.mubr.f32.gmra.mxu0 %v1611
      %v1730 = vpop.f32.mrf.mxu0
      %v1731 = vadd.f32 0.0, %v1730
      %v1732 = vpop.f32.mrf.mxu0
      %1733 = vdwg.mxu0
      %v1734 = vsel %vm945, %v1527, -inf
      %1735 = vmax.xlane.f32.xlu0 %v1734
      %v1736 = vpop.xlane.xlu0 %1735
      %v1737 = vsel %vm945, %v1532, -inf
      %1738 = vmax.xlane.f32.xlu0 %v1737
      %v1739 = vpop.xlane.xlu0 %1738
      %v1740 = vsel %vm945, %v1537, -inf
      %1741 = vmax.xlane.f32.xlu0 %v1740
      %v1742 = vpop.xlane.xlu0 %1741
      %v1743 = vsel %vm945, %v1542, -inf
      %1744 = vmax.xlane.f32.xlu0 %v1743
      %v1745 = vpop.xlane.xlu0 %1744
      %v1746 = vsel %vm945, %v1547, -inf
      %1747 = vmax.xlane.f32.xlu0 %v1746
      %v1748 = vpop.xlane.xlu0 %1747
      %v1749 = vsel %vm945, %v1552, -inf
      %1750 = vmax.xlane.f32.xlu0 %v1749
      %v1751 = vpop.xlane.xlu0 %1750
      %v1752 = vsel %vm945, %v1557, -inf
      %1753 = vmax.xlane.f32.xlu0 %v1752
      %v1754 = vpop.xlane.xlu0 %1753
      %v1755 = vsel %vm945, %v1562, -inf
      %1756 = vmax.xlane.f32.xlu0 %v1755
      %v1757 = vpop.xlane.xlu0 %1756
      %v1758 = vsel %vm945, %v1696, -inf
      %1759 = vmax.xlane.f32.xlu0 %v1758
      %v1760 = vpop.xlane.xlu0 %1759
      %v1761 = vsel %vm945, %v1701, -inf
      %1762 = vmax.xlane.f32.xlu0 %v1761
      %v1763 = vpop.xlane.xlu0 %1762
      %v1764 = vsel %vm945, %v1706, -inf
      %1765 = vmax.xlane.f32.xlu0 %v1764
      %v1766 = vpop.xlane.xlu0 %1765
      %v1767 = vsel %vm945, %v1711, -inf
      %1768 = vmax.xlane.f32.xlu0 %v1767
      %v1769 = vpop.xlane.xlu0 %1768
      %v1770 = vsel %vm945, %v1716, -inf
      %1771 = vmax.xlane.f32.xlu0 %v1770
      %v1772 = vpop.xlane.xlu0 %1771
      %v1773 = vsel %vm945, %v1721, -inf
      %1774 = vmax.xlane.f32.xlu0 %v1773
      %v1775 = vpop.xlane.xlu0 %1774
      %v1776 = vsel %vm945, %v1726, -inf
      %1777 = vmax.xlane.f32.xlu0 %v1776
      %v1778 = vpop.xlane.xlu0 %1777
      %v1779 = vsel %vm945, %v1731, -inf
      %1780 = vmax.xlane.f32.xlu0 %v1779
      %v1781 = vpop.xlane.xlu0 %1780
      %v1782 = vsub.f32 %v1527, %v1736
      %v1783 = vsub.f32 %v1532, %v1739
      %v1784 = vsub.f32 %v1537, %v1742
      %v1785 = vsub.f32 %v1542, %v1745
      %v1786 = vsub.f32 %v1547, %v1748
      %v1787 = vsub.f32 %v1552, %v1751
      %v1788 = vsub.f32 %v1557, %v1754
      %v1789 = vsub.f32 %v1562, %v1757
      %v1790 = vsub.f32 %v1696, %v1760
      %v1791 = vsub.f32 %v1701, %v1763
      %v1792 = vsub.f32 %v1706, %v1766
      %v1793 = vsub.f32 %v1711, %v1769
      %v1794 = vsub.f32 %v1716, %v1772
      %v1795 = vsub.f32 %v1721, %v1775
      %v1796 = vsub.f32 %v1726, %v1778
      %v1797 = vsub.f32 %v1731, %v1781
      %v1798 = vmul.f32 %v1782, 1.442695
      %v1799 = vpow.pop %v1798
      %v1800 = vmul.f32 %v1783, 1.442695
      %v1801 = vpow.pop %v1800
      %v1802 = vmul.f32 %v1784, 1.442695
      %v1803 = vpow.pop %v1802
      %v1804 = vmul.f32 %v1785, 1.442695
      %v1805 = vpow.pop %v1804
      %v1806 = vmul.f32 %v1786, 1.442695
      %v1807 = vpow.pop %v1806
      %v1808 = vmul.f32 %v1787, 1.442695
      %v1809 = vpow.pop %v1808
      %v1810 = vmul.f32 %v1788, 1.442695
      %v1811 = vpow.pop %v1810
      %v1812 = vmul.f32 %v1789, 1.442695
      %v1813 = vpow.pop %v1812
      %v1814 = vmul.f32 %v1790, 1.442695
      %v1815 = vpow.pop %v1814
      %v1816 = vmul.f32 %v1791, 1.442695
      %v1817 = vpow.pop %v1816
      %v1818 = vmul.f32 %v1792, 1.442695
      %v1819 = vpow.pop %v1818
      %v1820 = vmul.f32 %v1793, 1.442695
      %v1821 = vpow.pop %v1820
      %v1822 = vmul.f32 %v1794, 1.442695
      %v1823 = vpow.pop %v1822
      %v1824 = vmul.f32 %v1795, 1.442695
      %v1825 = vpow.pop %v1824
      %v1826 = vmul.f32 %v1796, 1.442695
      %v1827 = vpow.pop %v1826
      %v1828 = vmul.f32 %v1797, 1.442695
      %v1829 = vpow.pop %v1828
      %v1830 = vsel %vm945, %v1799, 0.0
      %1831 = vadd.xlane.f32.xlu0 %v1830
      %v1832 = vpop.xlane.xlu0 %1831
      %v1833 = vsel %vm945, %v1801, 0.0
      %1834 = vadd.xlane.f32.xlu0 %v1833
      %v1835 = vpop.xlane.xlu0 %1834
      %v1836 = vsel %vm945, %v1803, 0.0
      %1837 = vadd.xlane.f32.xlu0 %v1836
      %v1838 = vpop.xlane.xlu0 %1837
      %v1839 = vsel %vm945, %v1805, 0.0
      %1840 = vadd.xlane.f32.xlu0 %v1839
      %v1841 = vpop.xlane.xlu0 %1840
      %v1842 = vsel %vm945, %v1807, 0.0
      %1843 = vadd.xlane.f32.xlu0 %v1842
      %v1844 = vpop.xlane.xlu0 %1843
      %v1845 = vsel %vm945, %v1809, 0.0
      %1846 = vadd.xlane.f32.xlu0 %v1845
      %v1847 = vpop.xlane.xlu0 %1846
      %v1848 = vsel %vm945, %v1811, 0.0
      %1849 = vadd.xlane.f32.xlu0 %v1848
      %v1850 = vpop.xlane.xlu0 %1849
      %v1851 = vsel %vm945, %v1813, 0.0
      %1852 = vadd.xlane.f32.xlu0 %v1851
      %v1853 = vpop.xlane.xlu0 %1852
      %v1854 = vsel %vm945, %v1815, 0.0
      %1855 = vadd.xlane.f32.xlu0 %v1854
      %v1856 = vpop.xlane.xlu0 %1855
      %v1857 = vsel %vm945, %v1817, 0.0
      %1858 = vadd.xlane.f32.xlu0 %v1857
      %v1859 = vpop.xlane.xlu0 %1858
      %v1860 = vsel %vm945, %v1819, 0.0
      %1861 = vadd.xlane.f32.xlu0 %v1860
      %v1862 = vpop.xlane.xlu0 %1861
      %v1863 = vsel %vm945, %v1821, 0.0
      %1864 = vadd.xlane.f32.xlu0 %v1863
      %v1865 = vpop.xlane.xlu0 %1864
      %v1866 = vsel %vm945, %v1823, 0.0
      %1867 = vadd.xlane.f32.xlu0 %v1866
      %v1868 = vpop.xlane.xlu0 %1867
      %v1869 = vsel %vm945, %v1825, 0.0
      %1870 = vadd.xlane.f32.xlu0 %v1869
      %v1871 = vpop.xlane.xlu0 %1870
      %v1872 = vsel %vm945, %v1827, 0.0
      %1873 = vadd.xlane.f32.xlu0 %v1872
      %v1874 = vpop.xlane.xlu0 %1873
      %v1875 = vsel %vm945, %v1829, 0.0
      %1876 = vadd.xlane.f32.xlu0 %v1875
      %v1877 = vpop.xlane.xlu0 %1876
      %v1878 = vrcp.pop %v1832
      %v1879 = vmul.f32 %v1799, %v1878
      %v1880 = vrcp.pop %v1835
      %v1881 = vmul.f32 %v1801, %v1880
      %v1882 = vrcp.pop %v1838
      %v1883 = vmul.f32 %v1803, %v1882
      %v1884 = vrcp.pop %v1841
      %v1885 = vmul.f32 %v1805, %v1884
      %v1886 = vrcp.pop %v1844
      %v1887 = vmul.f32 %v1807, %v1886
      %v1888 = vrcp.pop %v1847
      %v1889 = vmul.f32 %v1809, %v1888
      %v1890 = vrcp.pop %v1850
      %v1891 = vmul.f32 %v1811, %v1890
      %v1892 = vrcp.pop %v1853
      %v1893 = vmul.f32 %v1813, %v1892
      %v1894 = vrcp.pop %v1856
      %v1895 = vmul.f32 %v1815, %v1894
      %v1896 = vrcp.pop %v1859
      %v1897 = vmul.f32 %v1817, %v1896
      %v1898 = vrcp.pop %v1862
      %v1899 = vmul.f32 %v1819, %v1898
      %v1900 = vrcp.pop %v1865
      %v1901 = vmul.f32 %v1821, %v1900
      %v1902 = vrcp.pop %v1868
      %v1903 = vmul.f32 %v1823, %v1902
      %v1904 = vrcp.pop %v1871
      %v1905 = vmul.f32 %v1825, %v1904
      %v1906 = vrcp.pop %v1874
      %v1907 = vmul.f32 %v1827, %v1906
      %v1908 = vrcp.pop %v1877
      %v1909 = vmul.f32 %v1829, %v1908
      %1918 = vrot.lane.b32.xlu0 %v544, 112
      %v1919 = vpop.permute.xlu0 %1918
      %1920 = vrot.lane.b32.xlu0 %v549, 112
      %v1921 = vpop.permute.xlu0 %1920
      %1922 = vrot.lane.b32.xlu0 %v554, 112
      %v1923 = vpop.permute.xlu0 %1922
      %1924 = vrot.lane.b32.xlu0 %v559, 112
      %v1925 = vpop.permute.xlu0 %1924
      %1926 = vrot.lane.b32.xlu0 %v564, 112
      %v1927 = vpop.permute.xlu0 %1926
      %1928 = vrot.lane.b32.xlu0 %v569, 112
      %v1929 = vpop.permute.xlu0 %1928
      %1930 = vrot.lane.b32.xlu0 %v574, 112
      %v1931 = vpop.permute.xlu0 %1930
      %1932 = vrot.lane.b32.xlu0 %v579, 112
      %v1933 = vpop.permute.xlu0 %1932
      %v1943 = vsel %vm945, %v1879, 0
      %v1946 = vsel %vm945, %v1881, 0
      %v1949 = vsel %vm945, %v1883, 0
      %v1952 = vsel %vm945, %v1885, 0
      %v1955 = vsel %vm945, %v1887, 0
      %v1958 = vsel %vm945, %v1889, 0
      %v1961 = vsel %vm945, %v1891, 0
      %v1964 = vsel %vm945, %v1893, 0
      %1966 = vmatprep.subr.mxu0 0.0
      %1967 = vmatpush1.msra.mxu0 0.0
      %1968 = vmatprep.subr.mxu0 0.0
      %1969 = vmatpush1.msra.mxu0 0.0
      %1970 = vmatprep.subr.mxu0 0.0
      %1971 = vmatpush1.msra.mxu0 0.0
      %1972 = vmatprep.subr.mxu0 0.0
      %1973 = vmatpush1.msra.mxu0 0.0
      %1974 = vmatprep.subr.mxu0 0.0
      %1975 = vmatpush1.msra.mxu0 0.0
      %1976 = vmatprep.subr.mxu0 0.0
      %1977 = vmatpush1.msra.mxu0 0.0
      %1978 = vmatprep.subr.mxu0 0.0
      %1979 = vmatpush1.msra.mxu0 0.0
      %1980 = vmatprep.subr.mxu0 0.0
      %1981 = vmatpush1.msra.mxu0 0.0
      %1982 = vmatprep.subr.mxu0 0.0
      %1983 = vmatpush1.msra.mxu0 %v1933
      %1984 = vmatprep.subr.mxu0 0.0
      %1985 = vmatpush1.msra.mxu0 %v1931
      %1986 = vmatprep.subr.mxu0 0.0
      %1987 = vmatpush1.msra.mxu0 %v1929
      %1988 = vmatprep.subr.mxu0 0.0
      %1989 = vmatpush1.msra.mxu0 %v1927
      %1990 = vmatprep.subr.mxu0 0.0
      %1991 = vmatpush1.msra.mxu0 %v1925
      %1992 = vmatprep.subr.mxu0 0.0
      %1993 = vmatpush1.msra.mxu0 %v1923
      %1994 = vmatprep.subr.mxu0 0.0
      %1995 = vmatpush1.msra.mxu0 %v1921
      %1996 = vmatprep.subr.mxu0 0.0
      %1997 = vmatpush1.msra.mxu0 %v1919
      %1998 = vmatprep.subr.mxu0 0.0
      %1999 = vmatpush2.msra.mxu0 0.0
      %2000 = vmatprep.subr.mxu0 0.0
      %2001 = vmatpush2.msra.mxu0 0.0
      %2002 = vmatprep.subr.mxu0 0.0
      %2003 = vmatpush2.msra.mxu0 0.0
      %2004 = vmatprep.subr.mxu0 0.0
      %2005 = vmatpush2.msra.mxu0 0.0
      %2006 = vmatprep.subr.mxu0 0.0
      %2007 = vmatpush2.msra.mxu0 0.0
      %2008 = vmatprep.subr.mxu0 0.0
      %2009 = vmatpush2.msra.mxu0 0.0
      %2010 = vmatprep.subr.mxu0 0.0
      %2011 = vmatpush2.msra.mxu0 0.0
      %2012 = vmatprep.subr.mxu0 0.0
      %2013 = vmatpush2.msra.mxu0 0.0
      %2014 = vmatprep.subr.mxu0 0.0
      %2015 = vmatpush2.msra.mxu0 0.0
      %2016 = vmatprep.subr.mxu0 0.0
      %2017 = vmatpush2.msra.mxu0 0.0
      %2018 = vmatprep.subr.mxu0 0.0
      %2019 = vmatpush2.msra.mxu0 0.0
      %2020 = vmatprep.subr.mxu0 0.0
      %2021 = vmatpush2.msra.mxu0 0.0
      %2022 = vmatprep.subr.mxu0 0.0
      %2023 = vmatpush2.msra.mxu0 0.0
      %2024 = vmatprep.subr.mxu0 0.0
      %2025 = vmatpush2.msra.mxu0 0.0
      %2026 = vmatprep.subr.mxu0 0.0
      %2027 = vmatpush2.msra.mxu0 0.0
      %2028 = vmatprep.subr.mxu0 0.0
      %2029 = vmatpush2.msra.mxu0 0.0
      %2030 = vmatprep.mubr.f32.mxu0 0.0
      %2031 = vmatmul.mubr.f32.gmra.mxu0 %v1943
      %v2032 = vpop.f32.mrf.mxu0
      %v2033 = vadd.f32 0.0, %v2032
      %v2034 = vpop.f32.mrf.mxu0
      %2035 = vmatprep.mubr.f32.mxu0 0.0
      %2036 = vmatmul.mubr.f32.gmra.mxu0 %v1946
      %v2037 = vpop.f32.mrf.mxu0
      %v2038 = vadd.f32 0.0, %v2037
      %v2039 = vpop.f32.mrf.mxu0
      %2040 = vmatprep.mubr.f32.mxu0 0.0
      %2041 = vmatmul.mubr.f32.gmra.mxu0 %v1949
      %v2042 = vpop.f32.mrf.mxu0
      %v2043 = vadd.f32 0.0, %v2042
      %v2044 = vpop.f32.mrf.mxu0
      %2045 = vmatprep.mubr.f32.mxu0 0.0
      %2046 = vmatmul.mubr.f32.gmra.mxu0 %v1952
      %v2047 = vpop.f32.mrf.mxu0
      %v2048 = vadd.f32 0.0, %v2047
      %v2049 = vpop.f32.mrf.mxu0
      %2050 = vmatprep.mubr.f32.mxu0 0.0
      %2051 = vmatmul.mubr.f32.gmra.mxu0 %v1955
      %v2052 = vpop.f32.mrf.mxu0
      %v2053 = vadd.f32 0.0, %v2052
      %v2054 = vpop.f32.mrf.mxu0
      %2055 = vmatprep.mubr.f32.mxu0 0.0
      %2056 = vmatmul.mubr.f32.gmra.mxu0 %v1958
      %v2057 = vpop.f32.mrf.mxu0
      %v2058 = vadd.f32 0.0, %v2057
      %v2059 = vpop.f32.mrf.mxu0
      %2060 = vmatprep.mubr.f32.mxu0 0.0
      %2061 = vmatmul.mubr.f32.gmra.mxu0 %v1961
      %v2062 = vpop.f32.mrf.mxu0
      %v2063 = vadd.f32 0.0, %v2062
      %v2064 = vpop.f32.mrf.mxu0
      %2065 = vmatprep.mubr.f32.mxu0 0.0
      %2066 = vmatmul.mubr.f32.gmra.mxu0 %v1964
      %v2067 = vpop.f32.mrf.mxu0
      %v2068 = vadd.f32 0.0, %v2067
      %v2069 = vpop.f32.mrf.mxu0
      %2070 = vdwg.mxu0
      %2079 = vrot.lane.b32.xlu0 %v584, 112
      %v2080 = vpop.permute.xlu0 %2079
      %2081 = vrot.lane.b32.xlu0 %v589, 112
      %v2082 = vpop.permute.xlu0 %2081
      %2083 = vrot.lane.b32.xlu0 %v594, 112
      %v2084 = vpop.permute.xlu0 %2083
      %2085 = vrot.lane.b32.xlu0 %v599, 112
      %v2086 = vpop.permute.xlu0 %2085
      %2087 = vrot.lane.b32.xlu0 %v604, 112
      %v2088 = vpop.permute.xlu0 %2087
      %2089 = vrot.lane.b32.xlu0 %v609, 112
      %v2090 = vpop.permute.xlu0 %2089
      %2091 = vrot.lane.b32.xlu0 %v614, 112
      %v2092 = vpop.permute.xlu0 %2091
      %2093 = vrot.lane.b32.xlu0 %v619, 112
      %v2094 = vpop.permute.xlu0 %2093
      %v2104 = vsel %vm945, %v1895, 0
      %v2107 = vsel %vm945, %v1897, 0
      %v2110 = vsel %vm945, %v1899, 0
      %v2113 = vsel %vm945, %v1901, 0
      %v2116 = vsel %vm945, %v1903, 0
      %v2119 = vsel %vm945, %v1905, 0
      %v2122 = vsel %vm945, %v1907, 0
      %v2125 = vsel %vm945, %v1909, 0
      %2127 = vmatprep.subr.mxu0 0.0
      %2128 = vmatpush1.msra.mxu0 0.0
      %2129 = vmatprep.subr.mxu0 0.0
      %2130 = vmatpush1.msra.mxu0 0.0
      %2131 = vmatprep.subr.mxu0 0.0
      %2132 = vmatpush1.msra.mxu0 0.0
      %2133 = vmatprep.subr.mxu0 0.0
      %2134 = vmatpush1.msra.mxu0 0.0
      %2135 = vmatprep.subr.mxu0 0.0
      %2136 = vmatpush1.msra.mxu0 0.0
      %2137 = vmatprep.subr.mxu0 0.0
      %2138 = vmatpush1.msra.mxu0 0.0
      %2139 = vmatprep.subr.mxu0 0.0
      %2140 = vmatpush1.msra.mxu0 0.0
      %2141 = vmatprep.subr.mxu0 0.0
      %2142 = vmatpush1.msra.mxu0 0.0
      %2143 = vmatprep.subr.mxu0 0.0
      %2144 = vmatpush1.msra.mxu0 %v2094
      %2145 = vmatprep.subr.mxu0 0.0
      %2146 = vmatpush1.msra.mxu0 %v2092
      %2147 = vmatprep.subr.mxu0 0.0
      %2148 = vmatpush1.msra.mxu0 %v2090
      %2149 = vmatprep.subr.mxu0 0.0
      %2150 = vmatpush1.msra.mxu0 %v2088
      %2151 = vmatprep.subr.mxu0 0.0
      %2152 = vmatpush1.msra.mxu0 %v2086
      %2153 = vmatprep.subr.mxu0 0.0
      %2154 = vmatpush1.msra.mxu0 %v2084
      %2155 = vmatprep.subr.mxu0 0.0
      %2156 = vmatpush1.msra.mxu0 %v2082
      %2157 = vmatprep.subr.mxu0 0.0
      %2158 = vmatpush1.msra.mxu0 %v2080
      %2159 = vmatprep.subr.mxu0 0.0
      %2160 = vmatpush2.msra.mxu0 0.0
      %2161 = vmatprep.subr.mxu0 0.0
      %2162 = vmatpush2.msra.mxu0 0.0
      %2163 = vmatprep.subr.mxu0 0.0
      %2164 = vmatpush2.msra.mxu0 0.0
      %2165 = vmatprep.subr.mxu0 0.0
      %2166 = vmatpush2.msra.mxu0 0.0
      %2167 = vmatprep.subr.mxu0 0.0
      %2168 = vmatpush2.msra.mxu0 0.0
      %2169 = vmatprep.subr.mxu0 0.0
      %2170 = vmatpush2.msra.mxu0 0.0
      %2171 = vmatprep.subr.mxu0 0.0
      %2172 = vmatpush2.msra.mxu0 0.0
      %2173 = vmatprep.subr.mxu0 0.0
      %2174 = vmatpush2.msra.mxu0 0.0
      %2175 = vmatprep.subr.mxu0 0.0
      %2176 = vmatpush2.msra.mxu0 0.0
      %2177 = vmatprep.subr.mxu0 0.0
      %2178 = vmatpush2.msra.mxu0 0.0
      %2179 = vmatprep.subr.mxu0 0.0
      %2180 = vmatpush2.msra.mxu0 0.0
      %2181 = vmatprep.subr.mxu0 0.0
      %2182 = vmatpush2.msra.mxu0 0.0
      %2183 = vmatprep.subr.mxu0 0.0
      %2184 = vmatpush2.msra.mxu0 0.0
      %2185 = vmatprep.subr.mxu0 0.0
      %2186 = vmatpush2.msra.mxu0 0.0
      %2187 = vmatprep.subr.mxu0 0.0
      %2188 = vmatpush2.msra.mxu0 0.0
      %2189 = vmatprep.subr.mxu0 0.0
      %2190 = vmatpush2.msra.mxu0 0.0
      %2191 = vmatprep.mubr.f32.mxu0 0.0
      %2192 = vmatmul.mubr.f32.gmra.mxu0 %v2104
      %v2193 = vpop.f32.mrf.mxu0
      %v2194 = vadd.f32 0.0, %v2193
      %v2195 = vpop.f32.mrf.mxu0
      %2196 = vmatprep.mubr.f32.mxu0 0.0
      %2197 = vmatmul.mubr.f32.gmra.mxu0 %v2107
      %v2198 = vpop.f32.mrf.mxu0
      %v2199 = vadd.f32 0.0, %v2198
      %v2200 = vpop.f32.mrf.mxu0
      %2201 = vmatprep.mubr.f32.mxu0 0.0
      %2202 = vmatmul.mubr.f32.gmra.mxu0 %v2110
      %v2203 = vpop.f32.mrf.mxu0
      %v2204 = vadd.f32 0.0, %v2203
      %v2205 = vpop.f32.mrf.mxu0
      %2206 = vmatprep.mubr.f32.mxu0 0.0
      %2207 = vmatmul.mubr.f32.gmra.mxu0 %v2113
      %v2208 = vpop.f32.mrf.mxu0
      %v2209 = vadd.f32 0.0, %v2208
      %v2210 = vpop.f32.mrf.mxu0
      %2211 = vmatprep.mubr.f32.mxu0 0.0
      %2212 = vmatmul.mubr.f32.gmra.mxu0 %v2116
      %v2213 = vpop.f32.mrf.mxu0
      %v2214 = vadd.f32 0.0, %v2213
      %v2215 = vpop.f32.mrf.mxu0
      %2216 = vmatprep.mubr.f32.mxu0 0.0
      %2217 = vmatmul.mubr.f32.gmra.mxu0 %v2119
      %v2218 = vpop.f32.mrf.mxu0
      %v2219 = vadd.f32 0.0, %v2218
      %v2220 = vpop.f32.mrf.mxu0
      %2221 = vmatprep.mubr.f32.mxu0 0.0
      %2222 = vmatmul.mubr.f32.gmra.mxu0 %v2122
      %v2223 = vpop.f32.mrf.mxu0
      %v2224 = vadd.f32 0.0, %v2223
      %v2225 = vpop.f32.mrf.mxu0
      %2226 = vmatprep.mubr.f32.mxu0 0.0
      %2227 = vmatmul.mubr.f32.gmra.mxu0 %v2125
      %v2228 = vpop.f32.mrf.mxu0
      %v2229 = vadd.f32 0.0, %v2228
      %v2230 = vpop.f32.mrf.mxu0
      %2231 = vdwg.mxu0
      %2248 = vrot.lane.b32.xlu0 %v2033, 16
      %v2249 = vpop.permute.xlu0 %2248
      %2250 = vrot.lane.b32.xlu0 %v2038, 16
      %v2251 = vpop.permute.xlu0 %2250
      %2252 = vrot.lane.b32.xlu0 %v2043, 16
      %v2253 = vpop.permute.xlu0 %2252
      %2254 = vrot.lane.b32.xlu0 %v2048, 16
      %v2255 = vpop.permute.xlu0 %2254
      %2256 = vrot.lane.b32.xlu0 %v2053, 16
      %v2257 = vpop.permute.xlu0 %2256
      %2258 = vrot.lane.b32.xlu0 %v2058, 16
      %v2259 = vpop.permute.xlu0 %2258
      %2260 = vrot.lane.b32.xlu0 %v2063, 16
      %v2261 = vpop.permute.xlu0 %2260
      %2262 = vrot.lane.b32.xlu0 %v2068, 16
      %v2263 = vpop.permute.xlu0 %2262
      %2264 = vrot.lane.b32.xlu0 %v2194, 16
      %v2265 = vpop.permute.xlu0 %2264
      %2266 = vrot.lane.b32.xlu0 %v2199, 16
      %v2267 = vpop.permute.xlu0 %2266
      %2268 = vrot.lane.b32.xlu0 %v2204, 16
      %v2269 = vpop.permute.xlu0 %2268
      %2270 = vrot.lane.b32.xlu0 %v2209, 16
      %v2271 = vpop.permute.xlu0 %2270
      %2272 = vrot.lane.b32.xlu0 %v2214, 16
      %v2273 = vpop.permute.xlu0 %2272
      %2274 = vrot.lane.b32.xlu0 %v2219, 16
      %v2275 = vpop.permute.xlu0 %2274
      %2276 = vrot.lane.b32.xlu0 %v2224, 16
      %v2277 = vpop.permute.xlu0 %2276
      %2278 = vrot.lane.b32.xlu0 %v2229, 16
      %v2279 = vpop.permute.xlu0 %2278
      %vm2296 = vcmask 261248
      %2297 = vst.msk [vmem:[%s204] sm:$0xff] %vm2296, %v2249
      %2298 = vst.msk [vmem:[%s204 + $0x8] sm:$0xff] %vm2296, %v2251
      %2299 = vst.msk [vmem:[%s204 + $0x10] sm:$0xff] %vm2296, %v2253
      %2300 = vst.msk [vmem:[%s204 + $0x18] sm:$0xff] %vm2296, %v2255
      %2301 = vst.msk [vmem:[%s204 + $0x20] sm:$0xff] %vm2296, %v2257
      %2302 = vst.msk [vmem:[%s204 + $0x28] sm:$0xff] %vm2296, %v2259
      %2303 = vst.msk [vmem:[%s204 + $0x30] sm:$0xff] %vm2296, %v2261
      %2304 = vst.msk [vmem:[%s204 + $0x38] sm:$0xff] %vm2296, %v2263
      %2305 = vst.msk [vmem:[%s204 + $0x40] sm:$0xff] %vm2296, %v2265
      %2306 = vst.msk [vmem:[%s204 + $0x48] sm:$0xff] %vm2296, %v2267
      %2307 = vst.msk [vmem:[%s204 + $0x50] sm:$0xff] %vm2296, %v2269
      %2308 = vst.msk [vmem:[%s204 + $0x58] sm:$0xff] %vm2296, %v2271
      %2309 = vst.msk [vmem:[%s204 + $0x60] sm:$0xff] %vm2296, %v2273
      %2310 = vst.msk [vmem:[%s204 + $0x68] sm:$0xff] %vm2296, %v2275
      %2311 = vst.msk [vmem:[%s204 + $0x70] sm:$0xff] %vm2296, %v2277
      %2312 = vst.msk [vmem:[%s204 + $0x78] sm:$0xff] %vm2296, %v2279
      %2313 = vrot.lane.b32.xlu0 %v622, 96
      %v2314 = vpop.permute.xlu0 %2313
      %2315 = vrot.lane.b32.xlu0 %v623, 96
      %v2316 = vpop.permute.xlu0 %2315
      %2317 = vrot.lane.b32.xlu0 %v624, 96
      %v2318 = vpop.permute.xlu0 %2317
      %2319 = vrot.lane.b32.xlu0 %v625, 96
      %v2320 = vpop.permute.xlu0 %2319
      %2321 = vrot.lane.b32.xlu0 %v626, 96
      %v2322 = vpop.permute.xlu0 %2321
      %2323 = vrot.lane.b32.xlu0 %v627, 96
      %v2324 = vpop.permute.xlu0 %2323
      %2325 = vrot.lane.b32.xlu0 %v628, 96
      %v2326 = vpop.permute.xlu0 %2325
      %2327 = vrot.lane.b32.xlu0 %v629, 96
      %v2328 = vpop.permute.xlu0 %2327
      %2329 = vrot.lane.b32.xlu0 %v385, 96
      %v2330 = vpop.permute.xlu0 %2329
      %2331 = vrot.lane.b32.xlu0 %v391, 96
      %v2332 = vpop.permute.xlu0 %2331
      %2333 = vrot.lane.b32.xlu0 %v397, 96
      %v2334 = vpop.permute.xlu0 %2333
      %2335 = vrot.lane.b32.xlu0 %v403, 96
      %v2336 = vpop.permute.xlu0 %2335
      %2337 = vrot.lane.b32.xlu0 %v409, 96
      %v2338 = vpop.permute.xlu0 %2337
      %2339 = vrot.lane.b32.xlu0 %v415, 96
      %v2340 = vpop.permute.xlu0 %2339
      %2341 = vrot.lane.b32.xlu0 %v421, 96
      %v2342 = vpop.permute.xlu0 %2341
      %2343 = vrot.lane.b32.xlu0 %v427, 96
      %v2344 = vpop.permute.xlu0 %2343
      %v2345 = vsel %vm638, %v2314, 0
      %v2347 = vsel %vm638, %v2316, 0
      %v2349 = vsel %vm638, %v2318, 0
      %v2351 = vsel %vm638, %v2320, 0
      %v2353 = vsel %vm638, %v2322, 0
      %v2355 = vsel %vm638, %v2324, 0
      %v2357 = vsel %vm638, %v2326, 0
      %v2359 = vsel %vm638, %v2328, 0
      %v2361 = vsel %vm638, %v2330, 0
      %v2363 = vsel %vm638, %v2332, 0
      %v2365 = vsel %vm638, %v2334, 0
      %v2367 = vsel %vm638, %v2336, 0
      %v2369 = vsel %vm638, %v2338, 0
      %v2371 = vsel %vm638, %v2340, 0
      %v2373 = vsel %vm638, %v2342, 0
      %v2375 = vsel %vm638, %v2344, 0
      %2377 = vmatprep.subr.mxu0 0.0
      %2378 = vmatpush1.xpose.msra.mxu0 0.0
      %2379 = vmatprep.subr.mxu0 0.0
      %2380 = vmatpush1.xpose.msra.mxu0 0.0
      %2381 = vmatprep.subr.mxu0 0.0
      %2382 = vmatpush1.xpose.msra.mxu0 0.0
      %2383 = vmatprep.subr.mxu0 0.0
      %2384 = vmatpush1.xpose.msra.mxu0 0.0
      %2385 = vmatprep.subr.mxu0 0.0
      %2386 = vmatpush1.xpose.msra.mxu0 0.0
      %2387 = vmatprep.subr.mxu0 0.0
      %2388 = vmatpush1.xpose.msra.mxu0 0.0
      %2389 = vmatprep.subr.mxu0 0.0
      %2390 = vmatpush1.xpose.msra.mxu0 0.0
      %2391 = vmatprep.subr.mxu0 0.0
      %2392 = vmatpush1.xpose.msra.mxu0 0.0
      %2393 = vmatprep.subr.mxu0 0.0
      %2394 = vmatpush1.xpose.msra.mxu0 %v2375
      %2395 = vmatprep.subr.mxu0 0.0
      %2396 = vmatpush1.xpose.msra.mxu0 %v2373
      %2397 = vmatprep.subr.mxu0 0.0
      %2398 = vmatpush1.xpose.msra.mxu0 %v2371
      %2399 = vmatprep.subr.mxu0 0.0
      %2400 = vmatpush1.xpose.msra.mxu0 %v2369
      %2401 = vmatprep.subr.mxu0 0.0
      %2402 = vmatpush1.xpose.msra.mxu0 %v2367
      %2403 = vmatprep.subr.mxu0 0.0
      %2404 = vmatpush1.xpose.msra.mxu0 %v2365
      %2405 = vmatprep.subr.mxu0 0.0
      %2406 = vmatpush1.xpose.msra.mxu0 %v2363
      %2407 = vmatprep.subr.mxu0 0.0
      %2408 = vmatpush1.xpose.msra.mxu0 %v2361
      %2409 = vmatprep.subr.mxu0 0.0
      %2410 = vmatpush2.xpose.msra.mxu0 0.0
      %2411 = vmatprep.subr.mxu0 0.0
      %2412 = vmatpush2.xpose.msra.mxu0 0.0
      %2413 = vmatprep.subr.mxu0 0.0
      %2414 = vmatpush2.xpose.msra.mxu0 0.0
      %2415 = vmatprep.subr.mxu0 0.0
      %2416 = vmatpush2.xpose.msra.mxu0 0.0
      %2417 = vmatprep.subr.mxu0 0.0
      %2418 = vmatpush2.xpose.msra.mxu0 0.0
      %2419 = vmatprep.subr.mxu0 0.0
      %2420 = vmatpush2.xpose.msra.mxu0 0.0
      %2421 = vmatprep.subr.mxu0 0.0
      %2422 = vmatpush2.xpose.msra.mxu0 0.0
      %2423 = vmatprep.subr.mxu0 0.0
      %2424 = vmatpush2.xpose.msra.mxu0 0.0
      %2425 = vmatprep.subr.mxu0 0.0
      %2426 = vmatpush2.xpose.msra.mxu0 0.0
      %2427 = vmatprep.subr.mxu0 0.0
      %2428 = vmatpush2.xpose.msra.mxu0 0.0
      %2429 = vmatprep.subr.mxu0 0.0
      %2430 = vmatpush2.xpose.msra.mxu0 0.0
      %2431 = vmatprep.subr.mxu0 0.0
      %2432 = vmatpush2.xpose.msra.mxu0 0.0
      %2433 = vmatprep.subr.mxu0 0.0
      %2434 = vmatpush2.xpose.msra.mxu0 0.0
      %2435 = vmatprep.subr.mxu0 0.0
      %2436 = vmatpush2.xpose.msra.mxu0 0.0
      %2437 = vmatprep.subr.mxu0 0.0
      %2438 = vmatpush2.xpose.msra.mxu0 0.0
      %2439 = vmatprep.subr.mxu0 0.0
      %2440 = vmatpush2.xpose.msra.mxu0 0.0
      %2441 = vmatprep.mubr.f32.mxu0 0.0
      %2442 = vmatmul.mubr.f32.gmra.mxu0 %v2345
      %v2443 = vpop.f32.mrf.mxu0
      %v2444 = vadd.f32 0.0, %v2443
      %v2445 = vpop.f32.mrf.mxu0
      %2446 = vmatprep.mubr.f32.mxu0 0.0
      %2447 = vmatmul.mubr.f32.gmra.mxu0 %v2347
      %v2448 = vpop.f32.mrf.mxu0
      %v2449 = vadd.f32 0.0, %v2448
      %v2450 = vpop.f32.mrf.mxu0
      %2451 = vmatprep.mubr.f32.mxu0 0.0
      %2452 = vmatmul.mubr.f32.gmra.mxu0 %v2349
      %v2453 = vpop.f32.mrf.mxu0
      %v2454 = vadd.f32 0.0, %v2453
      %v2455 = vpop.f32.mrf.mxu0
      %2456 = vmatprep.mubr.f32.mxu0 0.0
      %2457 = vmatmul.mubr.f32.gmra.mxu0 %v2351
      %v2458 = vpop.f32.mrf.mxu0
      %v2459 = vadd.f32 0.0, %v2458
      %v2460 = vpop.f32.mrf.mxu0
      %2461 = vmatprep.mubr.f32.mxu0 0.0
      %2462 = vmatmul.mubr.f32.gmra.mxu0 %v2353
      %v2463 = vpop.f32.mrf.mxu0
      %v2464 = vadd.f32 0.0, %v2463
      %v2465 = vpop.f32.mrf.mxu0
      %2466 = vmatprep.mubr.f32.mxu0 0.0
      %2467 = vmatmul.mubr.f32.gmra.mxu0 %v2355
      %v2468 = vpop.f32.mrf.mxu0
      %v2469 = vadd.f32 0.0, %v2468
      %v2470 = vpop.f32.mrf.mxu0
      %2471 = vmatprep.mubr.f32.mxu0 0.0
      %2472 = vmatmul.mubr.f32.gmra.mxu0 %v2357
      %v2473 = vpop.f32.mrf.mxu0
      %v2474 = vadd.f32 0.0, %v2473
      %v2475 = vpop.f32.mrf.mxu0
      %2476 = vmatprep.mubr.f32.mxu0 0.0
      %2477 = vmatmul.mubr.f32.gmra.mxu0 %v2359
      %v2478 = vpop.f32.mrf.mxu0
      %v2479 = vadd.f32 0.0, %v2478
      %v2480 = vpop.f32.mrf.mxu0
      %2481 = vdwg.mxu0
      %2482 = vrot.lane.b32.xlu0 %v630, 96
      %v2483 = vpop.permute.xlu0 %2482
      %2484 = vrot.lane.b32.xlu0 %v631, 96
      %v2485 = vpop.permute.xlu0 %2484
      %2486 = vrot.lane.b32.xlu0 %v632, 96
      %v2487 = vpop.permute.xlu0 %2486
      %2488 = vrot.lane.b32.xlu0 %v633, 96
      %v2489 = vpop.permute.xlu0 %2488
      %2490 = vrot.lane.b32.xlu0 %v634, 96
      %v2491 = vpop.permute.xlu0 %2490
      %2492 = vrot.lane.b32.xlu0 %v635, 96
      %v2493 = vpop.permute.xlu0 %2492
      %2494 = vrot.lane.b32.xlu0 %v636, 96
      %v2495 = vpop.permute.xlu0 %2494
      %2496 = vrot.lane.b32.xlu0 %v637, 96
      %v2497 = vpop.permute.xlu0 %2496
      %2498 = vrot.lane.b32.xlu0 %v433, 96
      %v2499 = vpop.permute.xlu0 %2498
      %2500 = vrot.lane.b32.xlu0 %v439, 96
      %v2501 = vpop.permute.xlu0 %2500
      %2502 = vrot.lane.b32.xlu0 %v445, 96
      %v2503 = vpop.permute.xlu0 %2502
      %2504 = vrot.lane.b32.xlu0 %v451, 96
      %v2505 = vpop.permute.xlu0 %2504
      %2506 = vrot.lane.b32.xlu0 %v457, 96
      %v2507 = vpop.permute.xlu0 %2506
      %2508 = vrot.lane.b32.xlu0 %v463, 96
      %v2509 = vpop.permute.xlu0 %2508
      %2510 = vrot.lane.b32.xlu0 %v469, 96
      %v2511 = vpop.permute.xlu0 %2510
      %2512 = vrot.lane.b32.xlu0 %v475, 96
      %v2513 = vpop.permute.xlu0 %2512
      %v2514 = vsel %vm638, %v2483, 0
      %v2516 = vsel %vm638, %v2485, 0
      %v2518 = vsel %vm638, %v2487, 0
      %v2520 = vsel %vm638, %v2489, 0
      %v2522 = vsel %vm638, %v2491, 0
      %v2524 = vsel %vm638, %v2493, 0
      %v2526 = vsel %vm638, %v2495, 0
      %v2528 = vsel %vm638, %v2497, 0
      %v2530 = vsel %vm638, %v2499, 0
      %v2532 = vsel %vm638, %v2501, 0
      %v2534 = vsel %vm638, %v2503, 0
      %v2536 = vsel %vm638, %v2505, 0
      %v2538 = vsel %vm638, %v2507, 0
      %v2540 = vsel %vm638, %v2509, 0
      %v2542 = vsel %vm638, %v2511, 0
      %v2544 = vsel %vm638, %v2513, 0
      %2546 = vmatprep.subr.mxu0 0.0
      %2547 = vmatpush1.xpose.msra.mxu0 0.0
      %2548 = vmatprep.subr.mxu0 0.0
      %2549 = vmatpush1.xpose.msra.mxu0 0.0
      %2550 = vmatprep.subr.mxu0 0.0
      %2551 = vmatpush1.xpose.msra.mxu0 0.0
      %2552 = vmatprep.subr.mxu0 0.0
      %2553 = vmatpush1.xpose.msra.mxu0 0.0
      %2554 = vmatprep.subr.mxu0 0.0
      %2555 = vmatpush1.xpose.msra.mxu0 0.0
      %2556 = vmatprep.subr.mxu0 0.0
      %2557 = vmatpush1.xpose.msra.mxu0 0.0
      %2558 = vmatprep.subr.mxu0 0.0
      %2559 = vmatpush1.xpose.msra.mxu0 0.0
      %2560 = vmatprep.subr.mxu0 0.0
      %2561 = vmatpush1.xpose.msra.mxu0 0.0
      %2562 = vmatprep.subr.mxu0 0.0
      %2563 = vmatpush1.xpose.msra.mxu0 %v2544
      %2564 = vmatprep.subr.mxu0 0.0
      %2565 = vmatpush1.xpose.msra.mxu0 %v2542
      %2566 = vmatprep.subr.mxu0 0.0
      %2567 = vmatpush1.xpose.msra.mxu0 %v2540
      %2568 = vmatprep.subr.mxu0 0.0
      %2569 = vmatpush1.xpose.msra.mxu0 %v2538
      %2570 = vmatprep.subr.mxu0 0.0
      %2571 = vmatpush1.xpose.msra.mxu0 %v2536
      %2572 = vmatprep.subr.mxu0 0.0
      %2573 = vmatpush1.xpose.msra.mxu0 %v2534
      %2574 = vmatprep.subr.mxu0 0.0
      %2575 = vmatpush1.xpose.msra.mxu0 %v2532
      %2576 = vmatprep.subr.mxu0 0.0
      %2577 = vmatpush1.xpose.msra.mxu0 %v2530
      %2578 = vmatprep.subr.mxu0 0.0
      %2579 = vmatpush2.xpose.msra.mxu0 0.0
      %2580 = vmatprep.subr.mxu0 0.0
      %2581 = vmatpush2.xpose.msra.mxu0 0.0
      %2582 = vmatprep.subr.mxu0 0.0
      %2583 = vmatpush2.xpose.msra.mxu0 0.0
      %2584 = vmatprep.subr.mxu0 0.0
      %2585 = vmatpush2.xpose.msra.mxu0 0.0
      %2586 = vmatprep.subr.mxu0 0.0
      %2587 = vmatpush2.xpose.msra.mxu0 0.0
      %2588 = vmatprep.subr.mxu0 0.0
      %2589 = vmatpush2.xpose.msra.mxu0 0.0
      %2590 = vmatprep.subr.mxu0 0.0
      %2591 = vmatpush2.xpose.msra.mxu0 0.0
      %2592 = vmatprep.subr.mxu0 0.0
      %2593 = vmatpush2.xpose.msra.mxu0 0.0
      %2594 = vmatprep.subr.mxu0 0.0
      %2595 = vmatpush2.xpose.msra.mxu0 0.0
      %2596 = vmatprep.subr.mxu0 0.0
      %2597 = vmatpush2.xpose.msra.mxu0 0.0
      %2598 = vmatprep.subr.mxu0 0.0
      %2599 = vmatpush2.xpose.msra.mxu0 0.0
      %2600 = vmatprep.subr.mxu0 0.0
      %2601 = vmatpush2.xpose.msra.mxu0 0.0
      %2602 = vmatprep.subr.mxu0 0.0
      %2603 = vmatpush2.xpose.msra.mxu0 0.0
      %2604 = vmatprep.subr.mxu0 0.0
      %2605 = vmatpush2.xpose.msra.mxu0 0.0
      %2606 = vmatprep.subr.mxu0 0.0
      %2607 = vmatpush2.xpose.msra.mxu0 0.0
      %2608 = vmatprep.subr.mxu0 0.0
      %2609 = vmatpush2.xpose.msra.mxu0 0.0
      %2610 = vmatprep.mubr.f32.mxu0 0.0
      %2611 = vmatmul.mubr.f32.gmra.mxu0 %v2514
      %v2612 = vpop.f32.mrf.mxu0
      %v2613 = vadd.f32 0.0, %v2612
      %v2614 = vpop.f32.mrf.mxu0
      %2615 = vmatprep.mubr.f32.mxu0 0.0
      %2616 = vmatmul.mubr.f32.gmra.mxu0 %v2516
      %v2617 = vpop.f32.mrf.mxu0
      %v2618 = vadd.f32 0.0, %v2617
      %v2619 = vpop.f32.mrf.mxu0
      %2620 = vmatprep.mubr.f32.mxu0 0.0
      %2621 = vmatmul.mubr.f32.gmra.mxu0 %v2518
      %v2622 = vpop.f32.mrf.mxu0
      %v2623 = vadd.f32 0.0, %v2622
      %v2624 = vpop.f32.mrf.mxu0
      %2625 = vmatprep.mubr.f32.mxu0 0.0
      %2626 = vmatmul.mubr.f32.gmra.mxu0 %v2520
      %v2627 = vpop.f32.mrf.mxu0
      %v2628 = vadd.f32 0.0, %v2627
      %v2629 = vpop.f32.mrf.mxu0
      %2630 = vmatprep.mubr.f32.mxu0 0.0
      %2631 = vmatmul.mubr.f32.gmra.mxu0 %v2522
      %v2632 = vpop.f32.mrf.mxu0
      %v2633 = vadd.f32 0.0, %v2632
      %v2634 = vpop.f32.mrf.mxu0
      %2635 = vmatprep.mubr.f32.mxu0 0.0
      %2636 = vmatmul.mubr.f32.gmra.mxu0 %v2524
      %v2637 = vpop.f32.mrf.mxu0
      %v2638 = vadd.f32 0.0, %v2637
      %v2639 = vpop.f32.mrf.mxu0
      %2640 = vmatprep.mubr.f32.mxu0 0.0
      %2641 = vmatmul.mubr.f32.gmra.mxu0 %v2526
      %v2642 = vpop.f32.mrf.mxu0
      %v2643 = vadd.f32 0.0, %v2642
      %v2644 = vpop.f32.mrf.mxu0
      %2645 = vmatprep.mubr.f32.mxu0 0.0
      %2646 = vmatmul.mubr.f32.gmra.mxu0 %v2528
      %v2647 = vpop.f32.mrf.mxu0
      %v2648 = vadd.f32 0.0, %v2647
      %v2649 = vpop.f32.mrf.mxu0
      %2650 = vdwg.mxu0
      %v2651 = vsel %vm945, %v2444, -inf
      %2652 = vmax.xlane.f32.xlu0 %v2651
      %v2653 = vpop.xlane.xlu0 %2652
      %v2654 = vsel %vm945, %v2449, -inf
      %2655 = vmax.xlane.f32.xlu0 %v2654
      %v2656 = vpop.xlane.xlu0 %2655
      %v2657 = vsel %vm945, %v2454, -inf
      %2658 = vmax.xlane.f32.xlu0 %v2657
      %v2659 = vpop.xlane.xlu0 %2658
      %v2660 = vsel %vm945, %v2459, -inf
      %2661 = vmax.xlane.f32.xlu0 %v2660
      %v2662 = vpop.xlane.xlu0 %2661
      %v2663 = vsel %vm945, %v2464, -inf
      %2664 = vmax.xlane.f32.xlu0 %v2663
      %v2665 = vpop.xlane.xlu0 %2664
      %v2666 = vsel %vm945, %v2469, -inf
      %2667 = vmax.xlane.f32.xlu0 %v2666
      %v2668 = vpop.xlane.xlu0 %2667
      %v2669 = vsel %vm945, %v2474, -inf
      %2670 = vmax.xlane.f32.xlu0 %v2669
      %v2671 = vpop.xlane.xlu0 %2670
      %v2672 = vsel %vm945, %v2479, -inf
      %2673 = vmax.xlane.f32.xlu0 %v2672
      %v2674 = vpop.xlane.xlu0 %2673
      %v2675 = vsel %vm945, %v2613, -inf
      %2676 = vmax.xlane.f32.xlu0 %v2675
      %v2677 = vpop.xlane.xlu0 %2676
      %v2678 = vsel %vm945, %v2618, -inf
      %2679 = vmax.xlane.f32.xlu0 %v2678
      %v2680 = vpop.xlane.xlu0 %2679
      %v2681 = vsel %vm945, %v2623, -inf
      %2682 = vmax.xlane.f32.xlu0 %v2681
      %v2683 = vpop.xlane.xlu0 %2682
      %v2684 = vsel %vm945, %v2628, -inf
      %2685 = vmax.xlane.f32.xlu0 %v2684
      %v2686 = vpop.xlane.xlu0 %2685
      %v2687 = vsel %vm945, %v2633, -inf
      %2688 = vmax.xlane.f32.xlu0 %v2687
      %v2689 = vpop.xlane.xlu0 %2688
      %v2690 = vsel %vm945, %v2638, -inf
      %2691 = vmax.xlane.f32.xlu0 %v2690
      %v2692 = vpop.xlane.xlu0 %2691
      %v2693 = vsel %vm945, %v2643, -inf
      %2694 = vmax.xlane.f32.xlu0 %v2693
      %v2695 = vpop.xlane.xlu0 %2694
      %v2696 = vsel %vm945, %v2648, -inf
      %2697 = vmax.xlane.f32.xlu0 %v2696
      %v2698 = vpop.xlane.xlu0 %2697
      %v2699 = vsub.f32 %v2444, %v2653
      %v2700 = vsub.f32 %v2449, %v2656
      %v2701 = vsub.f32 %v2454, %v2659
      %v2702 = vsub.f32 %v2459, %v2662
      %v2703 = vsub.f32 %v2464, %v2665
      %v2704 = vsub.f32 %v2469, %v2668
      %v2705 = vsub.f32 %v2474, %v2671
      %v2706 = vsub.f32 %v2479, %v2674
      %v2707 = vsub.f32 %v2613, %v2677
      %v2708 = vsub.f32 %v2618, %v2680
      %v2709 = vsub.f32 %v2623, %v2683
      %v2710 = vsub.f32 %v2628, %v2686
      %v2711 = vsub.f32 %v2633, %v2689
      %v2712 = vsub.f32 %v2638, %v2692
      %v2713 = vsub.f32 %v2643, %v2695
      %v2714 = vsub.f32 %v2648, %v2698
      %v2715 = vmul.f32 %v2699, 1.442695
      %v2716 = vpow.pop %v2715
      %v2717 = vmul.f32 %v2700, 1.442695
      %v2718 = vpow.pop %v2717
      %v2719 = vmul.f32 %v2701, 1.442695
      %v2720 = vpow.pop %v2719
      %v2721 = vmul.f32 %v2702, 1.442695
      %v2722 = vpow.pop %v2721
      %v2723 = vmul.f32 %v2703, 1.442695
      %v2724 = vpow.pop %v2723
      %v2725 = vmul.f32 %v2704, 1.442695
      %v2726 = vpow.pop %v2725
      %v2727 = vmul.f32 %v2705, 1.442695
      %v2728 = vpow.pop %v2727
      %v2729 = vmul.f32 %v2706, 1.442695
      %v2730 = vpow.pop %v2729
      %v2731 = vmul.f32 %v2707, 1.442695
      %v2732 = vpow.pop %v2731
      %v2733 = vmul.f32 %v2708, 1.442695
      %v2734 = vpow.pop %v2733
      %v2735 = vmul.f32 %v2709, 1.442695
      %v2736 = vpow.pop %v2735
      %v2737 = vmul.f32 %v2710, 1.442695
      %v2738 = vpow.pop %v2737
      %v2739 = vmul.f32 %v2711, 1.442695
      %v2740 = vpow.pop %v2739
      %v2741 = vmul.f32 %v2712, 1.442695
      %v2742 = vpow.pop %v2741
      %v2743 = vmul.f32 %v2713, 1.442695
      %v2744 = vpow.pop %v2743
      %v2745 = vmul.f32 %v2714, 1.442695
      %v2746 = vpow.pop %v2745
      %v2747 = vsel %vm945, %v2716, 0.0
      %2748 = vadd.xlane.f32.xlu0 %v2747
      %v2749 = vpop.xlane.xlu0 %2748
      %v2750 = vsel %vm945, %v2718, 0.0
      %2751 = vadd.xlane.f32.xlu0 %v2750
      %v2752 = vpop.xlane.xlu0 %2751
      %v2753 = vsel %vm945, %v2720, 0.0
      %2754 = vadd.xlane.f32.xlu0 %v2753
      %v2755 = vpop.xlane.xlu0 %2754
      %v2756 = vsel %vm945, %v2722, 0.0
      %2757 = vadd.xlane.f32.xlu0 %v2756
      %v2758 = vpop.xlane.xlu0 %2757
      %v2759 = vsel %vm945, %v2724, 0.0
      %2760 = vadd.xlane.f32.xlu0 %v2759
      %v2761 = vpop.xlane.xlu0 %2760
      %v2762 = vsel %vm945, %v2726, 0.0
      %2763 = vadd.xlane.f32.xlu0 %v2762
      %v2764 = vpop.xlane.xlu0 %2763
      %v2765 = vsel %vm945, %v2728, 0.0
      %2766 = vadd.xlane.f32.xlu0 %v2765
      %v2767 = vpop.xlane.xlu0 %2766
      %v2768 = vsel %vm945, %v2730, 0.0
      %2769 = vadd.xlane.f32.xlu0 %v2768
      %v2770 = vpop.xlane.xlu0 %2769
      %v2771 = vsel %vm945, %v2732, 0.0
      %2772 = vadd.xlane.f32.xlu0 %v2771
      %v2773 = vpop.xlane.xlu0 %2772
      %v2774 = vsel %vm945, %v2734, 0.0
      %2775 = vadd.xlane.f32.xlu0 %v2774
      %v2776 = vpop.xlane.xlu0 %2775
      %v2777 = vsel %vm945, %v2736, 0.0
      %2778 = vadd.xlane.f32.xlu0 %v2777
      %v2779 = vpop.xlane.xlu0 %2778
      %v2780 = vsel %vm945, %v2738, 0.0
      %2781 = vadd.xlane.f32.xlu0 %v2780
      %v2782 = vpop.xlane.xlu0 %2781
      %v2783 = vsel %vm945, %v2740, 0.0
      %2784 = vadd.xlane.f32.xlu0 %v2783
      %v2785 = vpop.xlane.xlu0 %2784
      %v2786 = vsel %vm945, %v2742, 0.0
      %2787 = vadd.xlane.f32.xlu0 %v2786
      %v2788 = vpop.xlane.xlu0 %2787
      %v2789 = vsel %vm945, %v2744, 0.0
      %2790 = vadd.xlane.f32.xlu0 %v2789
      %v2791 = vpop.xlane.xlu0 %2790
      %v2792 = vsel %vm945, %v2746, 0.0
      %2793 = vadd.xlane.f32.xlu0 %v2792
      %v2794 = vpop.xlane.xlu0 %2793
      %v2795 = vrcp.pop %v2749
      %v2796 = vmul.f32 %v2716, %v2795
      %v2797 = vrcp.pop %v2752
      %v2798 = vmul.f32 %v2718, %v2797
      %v2799 = vrcp.pop %v2755
      %v2800 = vmul.f32 %v2720, %v2799
      %v2801 = vrcp.pop %v2758
      %v2802 = vmul.f32 %v2722, %v2801
      %v2803 = vrcp.pop %v2761
      %v2804 = vmul.f32 %v2724, %v2803
      %v2805 = vrcp.pop %v2764
      %v2806 = vmul.f32 %v2726, %v2805
      %v2807 = vrcp.pop %v2767
      %v2808 = vmul.f32 %v2728, %v2807
      %v2809 = vrcp.pop %v2770
      %v2810 = vmul.f32 %v2730, %v2809
      %v2811 = vrcp.pop %v2773
      %v2812 = vmul.f32 %v2732, %v2811
      %v2813 = vrcp.pop %v2776
      %v2814 = vmul.f32 %v2734, %v2813
      %v2815 = vrcp.pop %v2779
      %v2816 = vmul.f32 %v2736, %v2815
      %v2817 = vrcp.pop %v2782
      %v2818 = vmul.f32 %v2738, %v2817
      %v2819 = vrcp.pop %v2785
      %v2820 = vmul.f32 %v2740, %v2819
      %v2821 = vrcp.pop %v2788
      %v2822 = vmul.f32 %v2742, %v2821
      %v2823 = vrcp.pop %v2791
      %v2824 = vmul.f32 %v2744, %v2823
      %v2825 = vrcp.pop %v2794
      %v2826 = vmul.f32 %v2746, %v2825
      %2827 = vrot.lane.b32.xlu0 %v544, 96
      %v2828 = vpop.permute.xlu0 %2827
      %2829 = vrot.lane.b32.xlu0 %v549, 96
      %v2830 = vpop.permute.xlu0 %2829
      %2831 = vrot.lane.b32.xlu0 %v554, 96
      %v2832 = vpop.permute.xlu0 %2831
      %2833 = vrot.lane.b32.xlu0 %v559, 96
      %v2834 = vpop.permute.xlu0 %2833
      %2835 = vrot.lane.b32.xlu0 %v564, 96
      %v2836 = vpop.permute.xlu0 %2835
      %2837 = vrot.lane.b32.xlu0 %v569, 96
      %v2838 = vpop.permute.xlu0 %2837
      %2839 = vrot.lane.b32.xlu0 %v574, 96
      %v2840 = vpop.permute.xlu0 %2839
      %2841 = vrot.lane.b32.xlu0 %v579, 96
      %v2842 = vpop.permute.xlu0 %2841
      %v2852 = vsel %vm945, %v2796, 0
      %v2855 = vsel %vm945, %v2798, 0
      %v2858 = vsel %vm945, %v2800, 0
      %v2861 = vsel %vm945, %v2802, 0
      %v2864 = vsel %vm945, %v2804, 0
      %v2867 = vsel %vm945, %v2806, 0
      %v2870 = vsel %vm945, %v2808, 0
      %v2873 = vsel %vm945, %v2810, 0
      %2875 = vmatprep.subr.mxu0 0.0
      %2876 = vmatpush1.msra.mxu0 0.0
      %2877 = vmatprep.subr.mxu0 0.0
      %2878 = vmatpush1.msra.mxu0 0.0
      %2879 = vmatprep.subr.mxu0 0.0
      %2880 = vmatpush1.msra.mxu0 0.0
      %2881 = vmatprep.subr.mxu0 0.0
      %2882 = vmatpush1.msra.mxu0 0.0
      %2883 = vmatprep.subr.mxu0 0.0
      %2884 = vmatpush1.msra.mxu0 0.0
      %2885 = vmatprep.subr.mxu0 0.0
      %2886 = vmatpush1.msra.mxu0 0.0
      %2887 = vmatprep.subr.mxu0 0.0
      %2888 = vmatpush1.msra.mxu0 0.0
      %2889 = vmatprep.subr.mxu0 0.0
      %2890 = vmatpush1.msra.mxu0 0.0
      %2891 = vmatprep.subr.mxu0 0.0
      %2892 = vmatpush1.msra.mxu0 %v2842
      %2893 = vmatprep.subr.mxu0 0.0
      %2894 = vmatpush1.msra.mxu0 %v2840
      %2895 = vmatprep.subr.mxu0 0.0
      %2896 = vmatpush1.msra.mxu0 %v2838
      %2897 = vmatprep.subr.mxu0 0.0
      %2898 = vmatpush1.msra.mxu0 %v2836
      %2899 = vmatprep.subr.mxu0 0.0
      %2900 = vmatpush1.msra.mxu0 %v2834
      %2901 = vmatprep.subr.mxu0 0.0
      %2902 = vmatpush1.msra.mxu0 %v2832
      %2903 = vmatprep.subr.mxu0 0.0
      %2904 = vmatpush1.msra.mxu0 %v2830
      %2905 = vmatprep.subr.mxu0 0.0
      %2906 = vmatpush1.msra.mxu0 %v2828
      %2907 = vmatprep.subr.mxu0 0.0
      %2908 = vmatpush2.msra.mxu0 0.0
      %2909 = vmatprep.subr.mxu0 0.0
      %2910 = vmatpush2.msra.mxu0 0.0
      %2911 = vmatprep.subr.mxu0 0.0
      %2912 = vmatpush2.msra.mxu0 0.0
      %2913 = vmatprep.subr.mxu0 0.0
      %2914 = vmatpush2.msra.mxu0 0.0
      %2915 = vmatprep.subr.mxu0 0.0
      %2916 = vmatpush2.msra.mxu0 0.0
      %2917 = vmatprep.subr.mxu0 0.0
      %2918 = vmatpush2.msra.mxu0 0.0
      %2919 = vmatprep.subr.mxu0 0.0
      %2920 = vmatpush2.msra.mxu0 0.0
      %2921 = vmatprep.subr.mxu0 0.0
      %2922 = vmatpush2.msra.mxu0 0.0
      %2923 = vmatprep.subr.mxu0 0.0
      %2924 = vmatpush2.msra.mxu0 0.0
      %2925 = vmatprep.subr.mxu0 0.0
      %2926 = vmatpush2.msra.mxu0 0.0
      %2927 = vmatprep.subr.mxu0 0.0
      %2928 = vmatpush2.msra.mxu0 0.0
      %2929 = vmatprep.subr.mxu0 0.0
      %2930 = vmatpush2.msra.mxu0 0.0
      %2931 = vmatprep.subr.mxu0 0.0
      %2932 = vmatpush2.msra.mxu0 0.0
      %2933 = vmatprep.subr.mxu0 0.0
      %2934 = vmatpush2.msra.mxu0 0.0
      %2935 = vmatprep.subr.mxu0 0.0
      %2936 = vmatpush2.msra.mxu0 0.0
      %2937 = vmatprep.subr.mxu0 0.0
      %2938 = vmatpush2.msra.mxu0 0.0
      %2939 = vmatprep.mubr.f32.mxu0 0.0
      %2940 = vmatmul.mubr.f32.gmra.mxu0 %v2852
      %v2941 = vpop.f32.mrf.mxu0
      %v2942 = vadd.f32 0.0, %v2941
      %v2943 = vpop.f32.mrf.mxu0
      %2944 = vmatprep.mubr.f32.mxu0 0.0
      %2945 = vmatmul.mubr.f32.gmra.mxu0 %v2855
      %v2946 = vpop.f32.mrf.mxu0
      %v2947 = vadd.f32 0.0, %v2946
      %v2948 = vpop.f32.mrf.mxu0
      %2949 = vmatprep.mubr.f32.mxu0 0.0
      %2950 = vmatmul.mubr.f32.gmra.mxu0 %v2858
      %v2951 = vpop.f32.mrf.mxu0
      %v2952 = vadd.f32 0.0, %v2951
      %v2953 = vpop.f32.mrf.mxu0
      %2954 = vmatprep.mubr.f32.mxu0 0.0
      %2955 = vmatmul.mubr.f32.gmra.mxu0 %v2861
      %v2956 = vpop.f32.mrf.mxu0
      %v2957 = vadd.f32 0.0, %v2956
      %v2958 = vpop.f32.mrf.mxu0
      %2959 = vmatprep.mubr.f32.mxu0 0.0
      %2960 = vmatmul.mubr.f32.gmra.mxu0 %v2864
      %v2961 = vpop.f32.mrf.mxu0
      %v2962 = vadd.f32 0.0, %v2961
      %v2963 = vpop.f32.mrf.mxu0
      %2964 = vmatprep.mubr.f32.mxu0 0.0
      %2965 = vmatmul.mubr.f32.gmra.mxu0 %v2867
      %v2966 = vpop.f32.mrf.mxu0
      %v2967 = vadd.f32 0.0, %v2966
      %v2968 = vpop.f32.mrf.mxu0
      %2969 = vmatprep.mubr.f32.mxu0 0.0
      %2970 = vmatmul.mubr.f32.gmra.mxu0 %v2870
      %v2971 = vpop.f32.mrf.mxu0
      %v2972 = vadd.f32 0.0, %v2971
      %v2973 = vpop.f32.mrf.mxu0
      %2974 = vmatprep.mubr.f32.mxu0 0.0
      %2975 = vmatmul.mubr.f32.gmra.mxu0 %v2873
      %v2976 = vpop.f32.mrf.mxu0
      %v2977 = vadd.f32 0.0, %v2976
      %v2978 = vpop.f32.mrf.mxu0
      %2979 = vdwg.mxu0
      %2980 = vrot.lane.b32.xlu0 %v584, 96
      %v2981 = vpop.permute.xlu0 %2980
      %2982 = vrot.lane.b32.xlu0 %v589, 96
      %v2983 = vpop.permute.xlu0 %2982
      %2984 = vrot.lane.b32.xlu0 %v594, 96
      %v2985 = vpop.permute.xlu0 %2984
      %2986 = vrot.lane.b32.xlu0 %v599, 96
      %v2987 = vpop.permute.xlu0 %2986
      %2988 = vrot.lane.b32.xlu0 %v604, 96
      %v2989 = vpop.permute.xlu0 %2988
      %2990 = vrot.lane.b32.xlu0 %v609, 96
      %v2991 = vpop.permute.xlu0 %2990
      %2992 = vrot.lane.b32.xlu0 %v614, 96
      %v2993 = vpop.permute.xlu0 %2992
      %2994 = vrot.lane.b32.xlu0 %v619, 96
      %v2995 = vpop.permute.xlu0 %2994
      %v3005 = vsel %vm945, %v2812, 0
      %v3008 = vsel %vm945, %v2814, 0
      %v3011 = vsel %vm945, %v2816, 0
      %v3014 = vsel %vm945, %v2818, 0
      %v3017 = vsel %vm945, %v2820, 0
      %v3020 = vsel %vm945, %v2822, 0
      %v3023 = vsel %vm945, %v2824, 0
      %v3026 = vsel %vm945, %v2826, 0
      %3028 = vmatprep.subr.mxu0 0.0
      %3029 = vmatpush1.msra.mxu0 0.0
      %3030 = vmatprep.subr.mxu0 0.0
      %3031 = vmatpush1.msra.mxu0 0.0
      %3032 = vmatprep.subr.mxu0 0.0
      %3033 = vmatpush1.msra.mxu0 0.0
      %3034 = vmatprep.subr.mxu0 0.0
      %3035 = vmatpush1.msra.mxu0 0.0
      %3036 = vmatprep.subr.mxu0 0.0
      %3037 = vmatpush1.msra.mxu0 0.0
      %3038 = vmatprep.subr.mxu0 0.0
      %3039 = vmatpush1.msra.mxu0 0.0
      %3040 = vmatprep.subr.mxu0 0.0
      %3041 = vmatpush1.msra.mxu0 0.0
      %3042 = vmatprep.subr.mxu0 0.0
      %3043 = vmatpush1.msra.mxu0 0.0
      %3044 = vmatprep.subr.mxu0 0.0
      %3045 = vmatpush1.msra.mxu0 %v2995
      %3046 = vmatprep.subr.mxu0 0.0
      %3047 = vmatpush1.msra.mxu0 %v2993
      %3048 = vmatprep.subr.mxu0 0.0
      %3049 = vmatpush1.msra.mxu0 %v2991
      %3050 = vmatprep.subr.mxu0 0.0
      %3051 = vmatpush1.msra.mxu0 %v2989
      %3052 = vmatprep.subr.mxu0 0.0
      %3053 = vmatpush1.msra.mxu0 %v2987
      %3054 = vmatprep.subr.mxu0 0.0
      %3055 = vmatpush1.msra.mxu0 %v2985
      %3056 = vmatprep.subr.mxu0 0.0
      %3057 = vmatpush1.msra.mxu0 %v2983
      %3058 = vmatprep.subr.mxu0 0.0
      %3059 = vmatpush1.msra.mxu0 %v2981
      %3060 = vmatprep.subr.mxu0 0.0
      %3061 = vmatpush2.msra.mxu0 0.0
      %3062 = vmatprep.subr.mxu0 0.0
      %3063 = vmatpush2.msra.mxu0 0.0
      %3064 = vmatprep.subr.mxu0 0.0
      %3065 = vmatpush2.msra.mxu0 0.0
      %3066 = vmatprep.subr.mxu0 0.0
      %3067 = vmatpush2.msra.mxu0 0.0
      %3068 = vmatprep.subr.mxu0 0.0
      %3069 = vmatpush2.msra.mxu0 0.0
      %3070 = vmatprep.subr.mxu0 0.0
      %3071 = vmatpush2.msra.mxu0 0.0
      %3072 = vmatprep.subr.mxu0 0.0
      %3073 = vmatpush2.msra.mxu0 0.0
      %3074 = vmatprep.subr.mxu0 0.0
      %3075 = vmatpush2.msra.mxu0 0.0
      %3076 = vmatprep.subr.mxu0 0.0
      %3077 = vmatpush2.msra.mxu0 0.0
      %3078 = vmatprep.subr.mxu0 0.0
      %3079 = vmatpush2.msra.mxu0 0.0
      %3080 = vmatprep.subr.mxu0 0.0
      %3081 = vmatpush2.msra.mxu0 0.0
      %3082 = vmatprep.subr.mxu0 0.0
      %3083 = vmatpush2.msra.mxu0 0.0
      %3084 = vmatprep.subr.mxu0 0.0
      %3085 = vmatpush2.msra.mxu0 0.0
      %3086 = vmatprep.subr.mxu0 0.0
      %3087 = vmatpush2.msra.mxu0 0.0
      %3088 = vmatprep.subr.mxu0 0.0
      %3089 = vmatpush2.msra.mxu0 0.0
      %3090 = vmatprep.subr.mxu0 0.0
      %3091 = vmatpush2.msra.mxu0 0.0
      %3092 = vmatprep.mubr.f32.mxu0 0.0
      %3093 = vmatmul.mubr.f32.gmra.mxu0 %v3005
      %v3094 = vpop.f32.mrf.mxu0
      %v3095 = vadd.f32 0.0, %v3094
      %v3096 = vpop.f32.mrf.mxu0
      %3097 = vmatprep.mubr.f32.mxu0 0.0
      %3098 = vmatmul.mubr.f32.gmra.mxu0 %v3008
      %v3099 = vpop.f32.mrf.mxu0
      %v3100 = vadd.f32 0.0, %v3099
      %v3101 = vpop.f32.mrf.mxu0
      %3102 = vmatprep.mubr.f32.mxu0 0.0
      %3103 = vmatmul.mubr.f32.gmra.mxu0 %v3011
      %v3104 = vpop.f32.mrf.mxu0
      %v3105 = vadd.f32 0.0, %v3104
      %v3106 = vpop.f32.mrf.mxu0
      %3107 = vmatprep.mubr.f32.mxu0 0.0
      %3108 = vmatmul.mubr.f32.gmra.mxu0 %v3014
      %v3109 = vpop.f32.mrf.mxu0
      %v3110 = vadd.f32 0.0, %v3109
      %v3111 = vpop.f32.mrf.mxu0
      %3112 = vmatprep.mubr.f32.mxu0 0.0
      %3113 = vmatmul.mubr.f32.gmra.mxu0 %v3017
      %v3114 = vpop.f32.mrf.mxu0
      %v3115 = vadd.f32 0.0, %v3114
      %v3116 = vpop.f32.mrf.mxu0
      %3117 = vmatprep.mubr.f32.mxu0 0.0
      %3118 = vmatmul.mubr.f32.gmra.mxu0 %v3020
      %v3119 = vpop.f32.mrf.mxu0
      %v3120 = vadd.f32 0.0, %v3119
      %v3121 = vpop.f32.mrf.mxu0
      %3122 = vmatprep.mubr.f32.mxu0 0.0
      %3123 = vmatmul.mubr.f32.gmra.mxu0 %v3023
      %v3124 = vpop.f32.mrf.mxu0
      %v3125 = vadd.f32 0.0, %v3124
      %v3126 = vpop.f32.mrf.mxu0
      %3127 = vmatprep.mubr.f32.mxu0 0.0
      %3128 = vmatmul.mubr.f32.gmra.mxu0 %v3026
      %v3129 = vpop.f32.mrf.mxu0
      %v3130 = vadd.f32 0.0, %v3129
      %v3131 = vpop.f32.mrf.mxu0
      %3132 = vdwg.mxu0
      %3149 = vrot.lane.b32.xlu0 %v2942, 32
      %v3150 = vpop.permute.xlu0 %3149
      %3151 = vrot.lane.b32.xlu0 %v2947, 32
      %v3152 = vpop.permute.xlu0 %3151
      %3153 = vrot.lane.b32.xlu0 %v2952, 32
      %v3154 = vpop.permute.xlu0 %3153
      %3155 = vrot.lane.b32.xlu0 %v2957, 32
      %v3156 = vpop.permute.xlu0 %3155
      %3157 = vrot.lane.b32.xlu0 %v2962, 32
      %v3158 = vpop.permute.xlu0 %3157
      %3159 = vrot.lane.b32.xlu0 %v2967, 32
      %v3160 = vpop.permute.xlu0 %3159
      %3161 = vrot.lane.b32.xlu0 %v2972, 32
      %v3162 = vpop.permute.xlu0 %3161
      %3163 = vrot.lane.b32.xlu0 %v2977, 32
      %v3164 = vpop.permute.xlu0 %3163
      %3165 = vrot.lane.b32.xlu0 %v3095, 32
      %v3166 = vpop.permute.xlu0 %3165
      %3167 = vrot.lane.b32.xlu0 %v3100, 32
      %v3168 = vpop.permute.xlu0 %3167
      %3169 = vrot.lane.b32.xlu0 %v3105, 32
      %v3170 = vpop.permute.xlu0 %3169
      %3171 = vrot.lane.b32.xlu0 %v3110, 32
      %v3172 = vpop.permute.xlu0 %3171
      %3173 = vrot.lane.b32.xlu0 %v3115, 32
      %v3174 = vpop.permute.xlu0 %3173
      %3175 = vrot.lane.b32.xlu0 %v3120, 32
      %v3176 = vpop.permute.xlu0 %3175
      %3177 = vrot.lane.b32.xlu0 %v3125, 32
      %v3178 = vpop.permute.xlu0 %3177
      %3179 = vrot.lane.b32.xlu0 %v3130, 32
      %v3180 = vpop.permute.xlu0 %3179
      %vm3197 = vcmask 392448
      %3198 = vst.msk [vmem:[%s204] sm:$0xff] %vm3197, %v3150
      %3199 = vst.msk [vmem:[%s204 + $0x8] sm:$0xff] %vm3197, %v3152
      %3200 = vst.msk [vmem:[%s204 + $0x10] sm:$0xff] %vm3197, %v3154
      %3201 = vst.msk [vmem:[%s204 + $0x18] sm:$0xff] %vm3197, %v3156
      %3202 = vst.msk [vmem:[%s204 + $0x20] sm:$0xff] %vm3197, %v3158
      %3203 = vst.msk [vmem:[%s204 + $0x28] sm:$0xff] %vm3197, %v3160
      %3204 = vst.msk [vmem:[%s204 + $0x30] sm:$0xff] %vm3197, %v3162
      %3205 = vst.msk [vmem:[%s204 + $0x38] sm:$0xff] %vm3197, %v3164
      %3206 = vst.msk [vmem:[%s204 + $0x40] sm:$0xff] %vm3197, %v3166
      %3207 = vst.msk [vmem:[%s204 + $0x48] sm:$0xff] %vm3197, %v3168
      %3208 = vst.msk [vmem:[%s204 + $0x50] sm:$0xff] %vm3197, %v3170
      %3209 = vst.msk [vmem:[%s204 + $0x58] sm:$0xff] %vm3197, %v3172
      %3210 = vst.msk [vmem:[%s204 + $0x60] sm:$0xff] %vm3197, %v3174
      %3211 = vst.msk [vmem:[%s204 + $0x68] sm:$0xff] %vm3197, %v3176
      %3212 = vst.msk [vmem:[%s204 + $0x70] sm:$0xff] %vm3197, %v3178
      %3213 = vst.msk [vmem:[%s204 + $0x78] sm:$0xff] %vm3197, %v3180
      %3214 = vrot.lane.b32.xlu0 %v622, 80
      %v3215 = vpop.permute.xlu0 %3214
      %3216 = vrot.lane.b32.xlu0 %v623, 80
      %v3217 = vpop.permute.xlu0 %3216
      %3218 = vrot.lane.b32.xlu0 %v624, 80
      %v3219 = vpop.permute.xlu0 %3218
      %3220 = vrot.lane.b32.xlu0 %v625, 80
      %v3221 = vpop.permute.xlu0 %3220
      %3222 = vrot.lane.b32.xlu0 %v626, 80
      %v3223 = vpop.permute.xlu0 %3222
      %3224 = vrot.lane.b32.xlu0 %v627, 80
      %v3225 = vpop.permute.xlu0 %3224
      %3226 = vrot.lane.b32.xlu0 %v628, 80
      %v3227 = vpop.permute.xlu0 %3226
      %3228 = vrot.lane.b32.xlu0 %v629, 80
      %v3229 = vpop.permute.xlu0 %3228
      %3230 = vrot.lane.b32.xlu0 %v385, 80
      %v3231 = vpop.permute.xlu0 %3230
      %3232 = vrot.lane.b32.xlu0 %v391, 80
      %v3233 = vpop.permute.xlu0 %3232
      %3234 = vrot.lane.b32.xlu0 %v397, 80
      %v3235 = vpop.permute.xlu0 %3234
      %3236 = vrot.lane.b32.xlu0 %v403, 80
      %v3237 = vpop.permute.xlu0 %3236
      %3238 = vrot.lane.b32.xlu0 %v409, 80
      %v3239 = vpop.permute.xlu0 %3238
      %3240 = vrot.lane.b32.xlu0 %v415, 80
      %v3241 = vpop.permute.xlu0 %3240
      %3242 = vrot.lane.b32.xlu0 %v421, 80
      %v3243 = vpop.permute.xlu0 %3242
      %3244 = vrot.lane.b32.xlu0 %v427, 80
      %v3245 = vpop.permute.xlu0 %3244
      %v3246 = vsel %vm638, %v3215, 0
      %v3248 = vsel %vm638, %v3217, 0
      %v3250 = vsel %vm638, %v3219, 0
      %v3252 = vsel %vm638, %v3221, 0
      %v3254 = vsel %vm638, %v3223, 0
      %v3256 = vsel %vm638, %v3225, 0
      %v3258 = vsel %vm638, %v3227, 0
      %v3260 = vsel %vm638, %v3229, 0
      %v3262 = vsel %vm638, %v3231, 0
      %v3264 = vsel %vm638, %v3233, 0
      %v3266 = vsel %vm638, %v3235, 0
      %v3268 = vsel %vm638, %v3237, 0
      %v3270 = vsel %vm638, %v3239, 0
      %v3272 = vsel %vm638, %v3241, 0
      %v3274 = vsel %vm638, %v3243, 0
      %v3276 = vsel %vm638, %v3245, 0
      %3278 = vmatprep.subr.mxu0 0.0
      %3279 = vmatpush1.xpose.msra.mxu0 0.0
      %3280 = vmatprep.subr.mxu0 0.0
      %3281 = vmatpush1.xpose.msra.mxu0 0.0
      %3282 = vmatprep.subr.mxu0 0.0
      %3283 = vmatpush1.xpose.msra.mxu0 0.0
      %3284 = vmatprep.subr.mxu0 0.0
      %3285 = vmatpush1.xpose.msra.mxu0 0.0
      %3286 = vmatprep.subr.mxu0 0.0
      %3287 = vmatpush1.xpose.msra.mxu0 0.0
      %3288 = vmatprep.subr.mxu0 0.0
      %3289 = vmatpush1.xpose.msra.mxu0 0.0
      %3290 = vmatprep.subr.mxu0 0.0
      %3291 = vmatpush1.xpose.msra.mxu0 0.0
      %3292 = vmatprep.subr.mxu0 0.0
      %3293 = vmatpush1.xpose.msra.mxu0 0.0
      %3294 = vmatprep.subr.mxu0 0.0
      %3295 = vmatpush1.xpose.msra.mxu0 %v3276
      %3296 = vmatprep.subr.mxu0 0.0
      %3297 = vmatpush1.xpose.msra.mxu0 %v3274
      %3298 = vmatprep.subr.mxu0 0.0
      %3299 = vmatpush1.xpose.msra.mxu0 %v3272
      %3300 = vmatprep.subr.mxu0 0.0
      %3301 = vmatpush1.xpose.msra.mxu0 %v3270
      %3302 = vmatprep.subr.mxu0 0.0
      %3303 = vmatpush1.xpose.msra.mxu0 %v3268
      %3304 = vmatprep.subr.mxu0 0.0
      %3305 = vmatpush1.xpose.msra.mxu0 %v3266
      %3306 = vmatprep.subr.mxu0 0.0
      %3307 = vmatpush1.xpose.msra.mxu0 %v3264
      %3308 = vmatprep.subr.mxu0 0.0
      %3309 = vmatpush1.xpose.msra.mxu0 %v3262
      %3310 = vmatprep.subr.mxu0 0.0
      %3311 = vmatpush2.xpose.msra.mxu0 0.0
      %3312 = vmatprep.subr.mxu0 0.0
      %3313 = vmatpush2.xpose.msra.mxu0 0.0
      %3314 = vmatprep.subr.mxu0 0.0
      %3315 = vmatpush2.xpose.msra.mxu0 0.0
      %3316 = vmatprep.subr.mxu0 0.0
      %3317 = vmatpush2.xpose.msra.mxu0 0.0
      %3318 = vmatprep.subr.mxu0 0.0
      %3319 = vmatpush2.xpose.msra.mxu0 0.0
      %3320 = vmatprep.subr.mxu0 0.0
      %3321 = vmatpush2.xpose.msra.mxu0 0.0
      %3322 = vmatprep.subr.mxu0 0.0
      %3323 = vmatpush2.xpose.msra.mxu0 0.0
      %3324 = vmatprep.subr.mxu0 0.0
      %3325 = vmatpush2.xpose.msra.mxu0 0.0
      %3326 = vmatprep.subr.mxu0 0.0
      %3327 = vmatpush2.xpose.msra.mxu0 0.0
      %3328 = vmatprep.subr.mxu0 0.0
      %3329 = vmatpush2.xpose.msra.mxu0 0.0
      %3330 = vmatprep.subr.mxu0 0.0
      %3331 = vmatpush2.xpose.msra.mxu0 0.0
      %3332 = vmatprep.subr.mxu0 0.0
      %3333 = vmatpush2.xpose.msra.mxu0 0.0
      %3334 = vmatprep.subr.mxu0 0.0
      %3335 = vmatpush2.xpose.msra.mxu0 0.0
      %3336 = vmatprep.subr.mxu0 0.0
      %3337 = vmatpush2.xpose.msra.mxu0 0.0
      %3338 = vmatprep.subr.mxu0 0.0
      %3339 = vmatpush2.xpose.msra.mxu0 0.0
      %3340 = vmatprep.subr.mxu0 0.0
      %3341 = vmatpush2.xpose.msra.mxu0 0.0
      %3342 = vmatprep.mubr.f32.mxu0 0.0
      %3343 = vmatmul.mubr.f32.gmra.mxu0 %v3246
      %v3344 = vpop.f32.mrf.mxu0
      %v3345 = vadd.f32 0.0, %v3344
      %v3346 = vpop.f32.mrf.mxu0
      %3347 = vmatprep.mubr.f32.mxu0 0.0
      %3348 = vmatmul.mubr.f32.gmra.mxu0 %v3248
      %v3349 = vpop.f32.mrf.mxu0
      %v3350 = vadd.f32 0.0, %v3349
      %v3351 = vpop.f32.mrf.mxu0
      %3352 = vmatprep.mubr.f32.mxu0 0.0
      %3353 = vmatmul.mubr.f32.gmra.mxu0 %v3250
      %v3354 = vpop.f32.mrf.mxu0
      %v3355 = vadd.f32 0.0, %v3354
      %v3356 = vpop.f32.mrf.mxu0
      %3357 = vmatprep.mubr.f32.mxu0 0.0
      %3358 = vmatmul.mubr.f32.gmra.mxu0 %v3252
      %v3359 = vpop.f32.mrf.mxu0
      %v3360 = vadd.f32 0.0, %v3359
      %v3361 = vpop.f32.mrf.mxu0
      %3362 = vmatprep.mubr.f32.mxu0 0.0
      %3363 = vmatmul.mubr.f32.gmra.mxu0 %v3254
      %v3364 = vpop.f32.mrf.mxu0
      %v3365 = vadd.f32 0.0, %v3364
      %v3366 = vpop.f32.mrf.mxu0
      %3367 = vmatprep.mubr.f32.mxu0 0.0
      %3368 = vmatmul.mubr.f32.gmra.mxu0 %v3256
      %v3369 = vpop.f32.mrf.mxu0
      %v3370 = vadd.f32 0.0, %v3369
      %v3371 = vpop.f32.mrf.mxu0
      %3372 = vmatprep.mubr.f32.mxu0 0.0
      %3373 = vmatmul.mubr.f32.gmra.mxu0 %v3258
      %v3374 = vpop.f32.mrf.mxu0
      %v3375 = vadd.f32 0.0, %v3374
      %v3376 = vpop.f32.mrf.mxu0
      %3377 = vmatprep.mubr.f32.mxu0 0.0
      %3378 = vmatmul.mubr.f32.gmra.mxu0 %v3260
      %v3379 = vpop.f32.mrf.mxu0
      %v3380 = vadd.f32 0.0, %v3379
      %v3381 = vpop.f32.mrf.mxu0
      %3382 = vdwg.mxu0
      %3383 = vrot.lane.b32.xlu0 %v630, 80
      %v3384 = vpop.permute.xlu0 %3383
      %3385 = vrot.lane.b32.xlu0 %v631, 80
      %v3386 = vpop.permute.xlu0 %3385
      %3387 = vrot.lane.b32.xlu0 %v632, 80
      %v3388 = vpop.permute.xlu0 %3387
      %3389 = vrot.lane.b32.xlu0 %v633, 80
      %v3390 = vpop.permute.xlu0 %3389
      %3391 = vrot.lane.b32.xlu0 %v634, 80
      %v3392 = vpop.permute.xlu0 %3391
      %3393 = vrot.lane.b32.xlu0 %v635, 80
      %v3394 = vpop.permute.xlu0 %3393
      %3395 = vrot.lane.b32.xlu0 %v636, 80
      %v3396 = vpop.permute.xlu0 %3395
      %3397 = vrot.lane.b32.xlu0 %v637, 80
      %v3398 = vpop.permute.xlu0 %3397
      %3399 = vrot.lane.b32.xlu0 %v433, 80
      %v3400 = vpop.permute.xlu0 %3399
      %3401 = vrot.lane.b32.xlu0 %v439, 80
      %v3402 = vpop.permute.xlu0 %3401
      %3403 = vrot.lane.b32.xlu0 %v445, 80
      %v3404 = vpop.permute.xlu0 %3403
      %3405 = vrot.lane.b32.xlu0 %v451, 80
      %v3406 = vpop.permute.xlu0 %3405
      %3407 = vrot.lane.b32.xlu0 %v457, 80
      %v3408 = vpop.permute.xlu0 %3407
      %3409 = vrot.lane.b32.xlu0 %v463, 80
      %v3410 = vpop.permute.xlu0 %3409
      %3411 = vrot.lane.b32.xlu0 %v469, 80
      %v3412 = vpop.permute.xlu0 %3411
      %3413 = vrot.lane.b32.xlu0 %v475, 80
      %v3414 = vpop.permute.xlu0 %3413
      %v3415 = vsel %vm638, %v3384, 0
      %v3417 = vsel %vm638, %v3386, 0
      %v3419 = vsel %vm638, %v3388, 0
      %v3421 = vsel %vm638, %v3390, 0
      %v3423 = vsel %vm638, %v3392, 0
      %v3425 = vsel %vm638, %v3394, 0
      %v3427 = vsel %vm638, %v3396, 0
      %v3429 = vsel %vm638, %v3398, 0
      %v3431 = vsel %vm638, %v3400, 0
      %v3433 = vsel %vm638, %v3402, 0
      %v3435 = vsel %vm638, %v3404, 0
      %v3437 = vsel %vm638, %v3406, 0
      %v3439 = vsel %vm638, %v3408, 0
      %v3441 = vsel %vm638, %v3410, 0
      %v3443 = vsel %vm638, %v3412, 0
      %v3445 = vsel %vm638, %v3414, 0
      %3447 = vmatprep.subr.mxu0 0.0
      %3448 = vmatpush1.xpose.msra.mxu0 0.0
      %3449 = vmatprep.subr.mxu0 0.0
      %3450 = vmatpush1.xpose.msra.mxu0 0.0
      %3451 = vmatprep.subr.mxu0 0.0
      %3452 = vmatpush1.xpose.msra.mxu0 0.0
      %3453 = vmatprep.subr.mxu0 0.0
      %3454 = vmatpush1.xpose.msra.mxu0 0.0
      %3455 = vmatprep.subr.mxu0 0.0
      %3456 = vmatpush1.xpose.msra.mxu0 0.0
      %3457 = vmatprep.subr.mxu0 0.0
      %3458 = vmatpush1.xpose.msra.mxu0 0.0
      %3459 = vmatprep.subr.mxu0 0.0
      %3460 = vmatpush1.xpose.msra.mxu0 0.0
      %3461 = vmatprep.subr.mxu0 0.0
      %3462 = vmatpush1.xpose.msra.mxu0 0.0
      %3463 = vmatprep.subr.mxu0 0.0
      %3464 = vmatpush1.xpose.msra.mxu0 %v3445
      %3465 = vmatprep.subr.mxu0 0.0
      %3466 = vmatpush1.xpose.msra.mxu0 %v3443
      %3467 = vmatprep.subr.mxu0 0.0
      %3468 = vmatpush1.xpose.msra.mxu0 %v3441
      %3469 = vmatprep.subr.mxu0 0.0
      %3470 = vmatpush1.xpose.msra.mxu0 %v3439
      %3471 = vmatprep.subr.mxu0 0.0
      %3472 = vmatpush1.xpose.msra.mxu0 %v3437
      %3473 = vmatprep.subr.mxu0 0.0
      %3474 = vmatpush1.xpose.msra.mxu0 %v3435
      %3475 = vmatprep.subr.mxu0 0.0
      %3476 = vmatpush1.xpose.msra.mxu0 %v3433
      %3477 = vmatprep.subr.mxu0 0.0
      %3478 = vmatpush1.xpose.msra.mxu0 %v3431
      %3479 = vmatprep.subr.mxu0 0.0
      %3480 = vmatpush2.xpose.msra.mxu0 0.0
      %3481 = vmatprep.subr.mxu0 0.0
      %3482 = vmatpush2.xpose.msra.mxu0 0.0
      %3483 = vmatprep.subr.mxu0 0.0
      %3484 = vmatpush2.xpose.msra.mxu0 0.0
      %3485 = vmatprep.subr.mxu0 0.0
      %3486 = vmatpush2.xpose.msra.mxu0 0.0
      %3487 = vmatprep.subr.mxu0 0.0
      %3488 = vmatpush2.xpose.msra.mxu0 0.0
      %3489 = vmatprep.subr.mxu0 0.0
      %3490 = vmatpush2.xpose.msra.mxu0 0.0
      %3491 = vmatprep.subr.mxu0 0.0
      %3492 = vmatpush2.xpose.msra.mxu0 0.0
      %3493 = vmatprep.subr.mxu0 0.0
      %3494 = vmatpush2.xpose.msra.mxu0 0.0
      %3495 = vmatprep.subr.mxu0 0.0
      %3496 = vmatpush2.xpose.msra.mxu0 0.0
      %3497 = vmatprep.subr.mxu0 0.0
      %3498 = vmatpush2.xpose.msra.mxu0 0.0
      %3499 = vmatprep.subr.mxu0 0.0
      %3500 = vmatpush2.xpose.msra.mxu0 0.0
      %3501 = vmatprep.subr.mxu0 0.0
      %3502 = vmatpush2.xpose.msra.mxu0 0.0
      %3503 = vmatprep.subr.mxu0 0.0
      %3504 = vmatpush2.xpose.msra.mxu0 0.0
      %3505 = vmatprep.subr.mxu0 0.0
      %3506 = vmatpush2.xpose.msra.mxu0 0.0
      %3507 = vmatprep.subr.mxu0 0.0
      %3508 = vmatpush2.xpose.msra.mxu0 0.0
      %3509 = vmatprep.subr.mxu0 0.0
      %3510 = vmatpush2.xpose.msra.mxu0 0.0
      %3511 = vmatprep.mubr.f32.mxu0 0.0
      %3512 = vmatmul.mubr.f32.gmra.mxu0 %v3415
      %v3513 = vpop.f32.mrf.mxu0
      %v3514 = vadd.f32 0.0, %v3513
      %v3515 = vpop.f32.mrf.mxu0
      %3516 = vmatprep.mubr.f32.mxu0 0.0
      %3517 = vmatmul.mubr.f32.gmra.mxu0 %v3417
      %v3518 = vpop.f32.mrf.mxu0
      %v3519 = vadd.f32 0.0, %v3518
      %v3520 = vpop.f32.mrf.mxu0
      %3521 = vmatprep.mubr.f32.mxu0 0.0
      %3522 = vmatmul.mubr.f32.gmra.mxu0 %v3419
      %v3523 = vpop.f32.mrf.mxu0
      %v3524 = vadd.f32 0.0, %v3523
      %v3525 = vpop.f32.mrf.mxu0
      %3526 = vmatprep.mubr.f32.mxu0 0.0
      %3527 = vmatmul.mubr.f32.gmra.mxu0 %v3421
      %v3528 = vpop.f32.mrf.mxu0
      %v3529 = vadd.f32 0.0, %v3528
      %v3530 = vpop.f32.mrf.mxu0
      %3531 = vmatprep.mubr.f32.mxu0 0.0
      %3532 = vmatmul.mubr.f32.gmra.mxu0 %v3423
      %v3533 = vpop.f32.mrf.mxu0
      %v3534 = vadd.f32 0.0, %v3533
      %v3535 = vpop.f32.mrf.mxu0
      %3536 = vmatprep.mubr.f32.mxu0 0.0
      %3537 = vmatmul.mubr.f32.gmra.mxu0 %v3425
      %v3538 = vpop.f32.mrf.mxu0
      %v3539 = vadd.f32 0.0, %v3538
      %v3540 = vpop.f32.mrf.mxu0
      %3541 = vmatprep.mubr.f32.mxu0 0.0
      %3542 = vmatmul.mubr.f32.gmra.mxu0 %v3427
      %v3543 = vpop.f32.mrf.mxu0
      %v3544 = vadd.f32 0.0, %v3543
      %v3545 = vpop.f32.mrf.mxu0
      %3546 = vmatprep.mubr.f32.mxu0 0.0
      %3547 = vmatmul.mubr.f32.gmra.mxu0 %v3429
      %v3548 = vpop.f32.mrf.mxu0
      %v3549 = vadd.f32 0.0, %v3548
      %v3550 = vpop.f32.mrf.mxu0
      %3551 = vdwg.mxu0
      %v3552 = vsel %vm945, %v3345, -inf
      %3553 = vmax.xlane.f32.xlu0 %v3552
      %v3554 = vpop.xlane.xlu0 %3553
      %v3555 = vsel %vm945, %v3350, -inf
      %3556 = vmax.xlane.f32.xlu0 %v3555
      %v3557 = vpop.xlane.xlu0 %3556
      %v3558 = vsel %vm945, %v3355, -inf
      %3559 = vmax.xlane.f32.xlu0 %v3558
      %v3560 = vpop.xlane.xlu0 %3559
      %v3561 = vsel %vm945, %v3360, -inf
      %3562 = vmax.xlane.f32.xlu0 %v3561
      %v3563 = vpop.xlane.xlu0 %3562
      %v3564 = vsel %vm945, %v3365, -inf
      %3565 = vmax.xlane.f32.xlu0 %v3564
      %v3566 = vpop.xlane.xlu0 %3565
      %v3567 = vsel %vm945, %v3370, -inf
      %3568 = vmax.xlane.f32.xlu0 %v3567
      %v3569 = vpop.xlane.xlu0 %3568
      %v3570 = vsel %vm945, %v3375, -inf
      %3571 = vmax.xlane.f32.xlu0 %v3570
      %v3572 = vpop.xlane.xlu0 %3571
      %v3573 = vsel %vm945, %v3380, -inf
      %3574 = vmax.xlane.f32.xlu0 %v3573
      %v3575 = vpop.xlane.xlu0 %3574
      %v3576 = vsel %vm945, %v3514, -inf
      %3577 = vmax.xlane.f32.xlu0 %v3576
      %v3578 = vpop.xlane.xlu0 %3577
      %v3579 = vsel %vm945, %v3519, -inf
      %3580 = vmax.xlane.f32.xlu0 %v3579
      %v3581 = vpop.xlane.xlu0 %3580
      %v3582 = vsel %vm945, %v3524, -inf
      %3583 = vmax.xlane.f32.xlu0 %v3582
      %v3584 = vpop.xlane.xlu0 %3583
      %v3585 = vsel %vm945, %v3529, -inf
      %3586 = vmax.xlane.f32.xlu0 %v3585
      %v3587 = vpop.xlane.xlu0 %3586
      %v3588 = vsel %vm945, %v3534, -inf
      %3589 = vmax.xlane.f32.xlu0 %v3588
      %v3590 = vpop.xlane.xlu0 %3589
      %v3591 = vsel %vm945, %v3539, -inf
      %3592 = vmax.xlane.f32.xlu0 %v3591
      %v3593 = vpop.xlane.xlu0 %3592
      %v3594 = vsel %vm945, %v3544, -inf
      %3595 = vmax.xlane.f32.xlu0 %v3594
      %v3596 = vpop.xlane.xlu0 %3595
      %v3597 = vsel %vm945, %v3549, -inf
      %3598 = vmax.xlane.f32.xlu0 %v3597
      %v3599 = vpop.xlane.xlu0 %3598
      %v3600 = vsub.f32 %v3345, %v3554
      %v3601 = vsub.f32 %v3350, %v3557
      %v3602 = vsub.f32 %v3355, %v3560
      %v3603 = vsub.f32 %v3360, %v3563
      %v3604 = vsub.f32 %v3365, %v3566
      %v3605 = vsub.f32 %v3370, %v3569
      %v3606 = vsub.f32 %v3375, %v3572
      %v3607 = vsub.f32 %v3380, %v3575
      %v3608 = vsub.f32 %v3514, %v3578
      %v3609 = vsub.f32 %v3519, %v3581
      %v3610 = vsub.f32 %v3524, %v3584
      %v3611 = vsub.f32 %v3529, %v3587
      %v3612 = vsub.f32 %v3534, %v3590
      %v3613 = vsub.f32 %v3539, %v3593
      %v3614 = vsub.f32 %v3544, %v3596
      %v3615 = vsub.f32 %v3549, %v3599
      %v3616 = vmul.f32 %v3600, 1.442695
      %v3617 = vpow.pop %v3616
      %v3618 = vmul.f32 %v3601, 1.442695
      %v3619 = vpow.pop %v3618
      %v3620 = vmul.f32 %v3602, 1.442695
      %v3621 = vpow.pop %v3620
      %v3622 = vmul.f32 %v3603, 1.442695
      %v3623 = vpow.pop %v3622
      %v3624 = vmul.f32 %v3604, 1.442695
      %v3625 = vpow.pop %v3624
      %v3626 = vmul.f32 %v3605, 1.442695
      %v3627 = vpow.pop %v3626
      %v3628 = vmul.f32 %v3606, 1.442695
      %v3629 = vpow.pop %v3628
      %v3630 = vmul.f32 %v3607, 1.442695
      %v3631 = vpow.pop %v3630
      %v3632 = vmul.f32 %v3608, 1.442695
      %v3633 = vpow.pop %v3632
      %v3634 = vmul.f32 %v3609, 1.442695
      %v3635 = vpow.pop %v3634
      %v3636 = vmul.f32 %v3610, 1.442695
      %v3637 = vpow.pop %v3636
      %v3638 = vmul.f32 %v3611, 1.442695
      %v3639 = vpow.pop %v3638
      %v3640 = vmul.f32 %v3612, 1.442695
      %v3641 = vpow.pop %v3640
      %v3642 = vmul.f32 %v3613, 1.442695
      %v3643 = vpow.pop %v3642
      %v3644 = vmul.f32 %v3614, 1.442695
      %v3645 = vpow.pop %v3644
      %v3646 = vmul.f32 %v3615, 1.442695
      %v3647 = vpow.pop %v3646
      %v3648 = vsel %vm945, %v3617, 0.0
      %3649 = vadd.xlane.f32.xlu0 %v3648
      %v3650 = vpop.xlane.xlu0 %3649
      %v3651 = vsel %vm945, %v3619, 0.0
      %3652 = vadd.xlane.f32.xlu0 %v3651
      %v3653 = vpop.xlane.xlu0 %3652
      %v3654 = vsel %vm945, %v3621, 0.0
      %3655 = vadd.xlane.f32.xlu0 %v3654
      %v3656 = vpop.xlane.xlu0 %3655
      %v3657 = vsel %vm945, %v3623, 0.0
      %3658 = vadd.xlane.f32.xlu0 %v3657
      %v3659 = vpop.xlane.xlu0 %3658
      %v3660 = vsel %vm945, %v3625, 0.0
      %3661 = vadd.xlane.f32.xlu0 %v3660
      %v3662 = vpop.xlane.xlu0 %3661
      %v3663 = vsel %vm945, %v3627, 0.0
      %3664 = vadd.xlane.f32.xlu0 %v3663
      %v3665 = vpop.xlane.xlu0 %3664
      %v3666 = vsel %vm945, %v3629, 0.0
      %3667 = vadd.xlane.f32.xlu0 %v3666
      %v3668 = vpop.xlane.xlu0 %3667
      %v3669 = vsel %vm945, %v3631, 0.0
      %3670 = vadd.xlane.f32.xlu0 %v3669
      %v3671 = vpop.xlane.xlu0 %3670
      %v3672 = vsel %vm945, %v3633, 0.0
      %3673 = vadd.xlane.f32.xlu0 %v3672
      %v3674 = vpop.xlane.xlu0 %3673
      %v3675 = vsel %vm945, %v3635, 0.0
      %3676 = vadd.xlane.f32.xlu0 %v3675
      %v3677 = vpop.xlane.xlu0 %3676
      %v3678 = vsel %vm945, %v3637, 0.0
      %3679 = vadd.xlane.f32.xlu0 %v3678
      %v3680 = vpop.xlane.xlu0 %3679
      %v3681 = vsel %vm945, %v3639, 0.0
      %3682 = vadd.xlane.f32.xlu0 %v3681
      %v3683 = vpop.xlane.xlu0 %3682
      %v3684 = vsel %vm945, %v3641, 0.0
      %3685 = vadd.xlane.f32.xlu0 %v3684
      %v3686 = vpop.xlane.xlu0 %3685
      %v3687 = vsel %vm945, %v3643, 0.0
      %3688 = vadd.xlane.f32.xlu0 %v3687
      %v3689 = vpop.xlane.xlu0 %3688
      %v3690 = vsel %vm945, %v3645, 0.0
      %3691 = vadd.xlane.f32.xlu0 %v3690
      %v3692 = vpop.xlane.xlu0 %3691
      %v3693 = vsel %vm945, %v3647, 0.0
      %3694 = vadd.xlane.f32.xlu0 %v3693
      %v3695 = vpop.xlane.xlu0 %3694
      %v3696 = vrcp.pop %v3650
      %v3697 = vmul.f32 %v3617, %v3696
      %v3698 = vrcp.pop %v3653
      %v3699 = vmul.f32 %v3619, %v3698
      %v3700 = vrcp.pop %v3656
      %v3701 = vmul.f32 %v3621, %v3700
      %v3702 = vrcp.pop %v3659
      %v3703 = vmul.f32 %v3623, %v3702
      %v3704 = vrcp.pop %v3662
      %v3705 = vmul.f32 %v3625, %v3704
      %v3706 = vrcp.pop %v3665
      %v3707 = vmul.f32 %v3627, %v3706
      %v3708 = vrcp.pop %v3668
      %v3709 = vmul.f32 %v3629, %v3708
      %v3710 = vrcp.pop %v3671
      %v3711 = vmul.f32 %v3631, %v3710
      %v3712 = vrcp.pop %v3674
      %v3713 = vmul.f32 %v3633, %v3712
      %v3714 = vrcp.pop %v3677
      %v3715 = vmul.f32 %v3635, %v3714
      %v3716 = vrcp.pop %v3680
      %v3717 = vmul.f32 %v3637, %v3716
      %v3718 = vrcp.pop %v3683
      %v3719 = vmul.f32 %v3639, %v3718
      %v3720 = vrcp.pop %v3686
      %v3721 = vmul.f32 %v3641, %v3720
      %v3722 = vrcp.pop %v3689
      %v3723 = vmul.f32 %v3643, %v3722
      %v3724 = vrcp.pop %v3692
      %v3725 = vmul.f32 %v3645, %v3724
      %v3726 = vrcp.pop %v3695
      %v3727 = vmul.f32 %v3647, %v3726
      %3728 = vrot.lane.b32.xlu0 %v544, 80
      %v3729 = vpop.permute.xlu0 %3728
      %3730 = vrot.lane.b32.xlu0 %v549, 80
      %v3731 = vpop.permute.xlu0 %3730
      %3732 = vrot.lane.b32.xlu0 %v554, 80
      %v3733 = vpop.permute.xlu0 %3732
      %3734 = vrot.lane.b32.xlu0 %v559, 80
      %v3735 = vpop.permute.xlu0 %3734
      %3736 = vrot.lane.b32.xlu0 %v564, 80
      %v3737 = vpop.permute.xlu0 %3736
      %3738 = vrot.lane.b32.xlu0 %v569, 80
      %v3739 = vpop.permute.xlu0 %3738
      %3740 = vrot.lane.b32.xlu0 %v574, 80
      %v3741 = vpop.permute.xlu0 %3740
      %3742 = vrot.lane.b32.xlu0 %v579, 80
      %v3743 = vpop.permute.xlu0 %3742
      %v3753 = vsel %vm945, %v3697, 0
      %v3756 = vsel %vm945, %v3699, 0
      %v3759 = vsel %vm945, %v3701, 0
      %v3762 = vsel %vm945, %v3703, 0
      %v3765 = vsel %vm945, %v3705, 0
      %v3768 = vsel %vm945, %v3707, 0
      %v3771 = vsel %vm945, %v3709, 0
      %v3774 = vsel %vm945, %v3711, 0
      %3776 = vmatprep.subr.mxu0 0.0
      %3777 = vmatpush1.msra.mxu0 0.0
      %3778 = vmatprep.subr.mxu0 0.0
      %3779 = vmatpush1.msra.mxu0 0.0
      %3780 = vmatprep.subr.mxu0 0.0
      %3781 = vmatpush1.msra.mxu0 0.0
      %3782 = vmatprep.subr.mxu0 0.0
      %3783 = vmatpush1.msra.mxu0 0.0
      %3784 = vmatprep.subr.mxu0 0.0
      %3785 = vmatpush1.msra.mxu0 0.0
      %3786 = vmatprep.subr.mxu0 0.0
      %3787 = vmatpush1.msra.mxu0 0.0
      %3788 = vmatprep.subr.mxu0 0.0
      %3789 = vmatpush1.msra.mxu0 0.0
      %3790 = vmatprep.subr.mxu0 0.0
      %3791 = vmatpush1.msra.mxu0 0.0
      %3792 = vmatprep.subr.mxu0 0.0
      %3793 = vmatpush1.msra.mxu0 %v3743
      %3794 = vmatprep.subr.mxu0 0.0
      %3795 = vmatpush1.msra.mxu0 %v3741
      %3796 = vmatprep.subr.mxu0 0.0
      %3797 = vmatpush1.msra.mxu0 %v3739
      %3798 = vmatprep.subr.mxu0 0.0
      %3799 = vmatpush1.msra.mxu0 %v3737
      %3800 = vmatprep.subr.mxu0 0.0
      %3801 = vmatpush1.msra.mxu0 %v3735
      %3802 = vmatprep.subr.mxu0 0.0
      %3803 = vmatpush1.msra.mxu0 %v3733
      %3804 = vmatprep.subr.mxu0 0.0
      %3805 = vmatpush1.msra.mxu0 %v3731
      %3806 = vmatprep.subr.mxu0 0.0
      %3807 = vmatpush1.msra.mxu0 %v3729
      %3808 = vmatprep.subr.mxu0 0.0
      %3809 = vmatpush2.msra.mxu0 0.0
      %3810 = vmatprep.subr.mxu0 0.0
      %3811 = vmatpush2.msra.mxu0 0.0
      %3812 = vmatprep.subr.mxu0 0.0
      %3813 = vmatpush2.msra.mxu0 0.0
      %3814 = vmatprep.subr.mxu0 0.0
      %3815 = vmatpush2.msra.mxu0 0.0
      %3816 = vmatprep.subr.mxu0 0.0
      %3817 = vmatpush2.msra.mxu0 0.0
      %3818 = vmatprep.subr.mxu0 0.0
      %3819 = vmatpush2.msra.mxu0 0.0
      %3820 = vmatprep.subr.mxu0 0.0
      %3821 = vmatpush2.msra.mxu0 0.0
      %3822 = vmatprep.subr.mxu0 0.0
      %3823 = vmatpush2.msra.mxu0 0.0
      %3824 = vmatprep.subr.mxu0 0.0
      %3825 = vmatpush2.msra.mxu0 0.0
      %3826 = vmatprep.subr.mxu0 0.0
      %3827 = vmatpush2.msra.mxu0 0.0
      %3828 = vmatprep.subr.mxu0 0.0
      %3829 = vmatpush2.msra.mxu0 0.0
      %3830 = vmatprep.subr.mxu0 0.0
      %3831 = vmatpush2.msra.mxu0 0.0
      %3832 = vmatprep.subr.mxu0 0.0
      %3833 = vmatpush2.msra.mxu0 0.0
      %3834 = vmatprep.subr.mxu0 0.0
      %3835 = vmatpush2.msra.mxu0 0.0
      %3836 = vmatprep.subr.mxu0 0.0
      %3837 = vmatpush2.msra.mxu0 0.0
      %3838 = vmatprep.subr.mxu0 0.0
      %3839 = vmatpush2.msra.mxu0 0.0
      %3840 = vmatprep.mubr.f32.mxu0 0.0
      %3841 = vmatmul.mubr.f32.gmra.mxu0 %v3753
      %v3842 = vpop.f32.mrf.mxu0
      %v3843 = vadd.f32 0.0, %v3842
      %v3844 = vpop.f32.mrf.mxu0
      %3845 = vmatprep.mubr.f32.mxu0 0.0
      %3846 = vmatmul.mubr.f32.gmra.mxu0 %v3756
      %v3847 = vpop.f32.mrf.mxu0
      %v3848 = vadd.f32 0.0, %v3847
      %v3849 = vpop.f32.mrf.mxu0
      %3850 = vmatprep.mubr.f32.mxu0 0.0
      %3851 = vmatmul.mubr.f32.gmra.mxu0 %v3759
      %v3852 = vpop.f32.mrf.mxu0
      %v3853 = vadd.f32 0.0, %v3852
      %v3854 = vpop.f32.mrf.mxu0
      %3855 = vmatprep.mubr.f32.mxu0 0.0
      %3856 = vmatmul.mubr.f32.gmra.mxu0 %v3762
      %v3857 = vpop.f32.mrf.mxu0
      %v3858 = vadd.f32 0.0, %v3857
      %v3859 = vpop.f32.mrf.mxu0
      %3860 = vmatprep.mubr.f32.mxu0 0.0
      %3861 = vmatmul.mubr.f32.gmra.mxu0 %v3765
      %v3862 = vpop.f32.mrf.mxu0
      %v3863 = vadd.f32 0.0, %v3862
      %v3864 = vpop.f32.mrf.mxu0
      %3865 = vmatprep.mubr.f32.mxu0 0.0
      %3866 = vmatmul.mubr.f32.gmra.mxu0 %v3768
      %v3867 = vpop.f32.mrf.mxu0
      %v3868 = vadd.f32 0.0, %v3867
      %v3869 = vpop.f32.mrf.mxu0
      %3870 = vmatprep.mubr.f32.mxu0 0.0
      %3871 = vmatmul.mubr.f32.gmra.mxu0 %v3771
      %v3872 = vpop.f32.mrf.mxu0
      %v3873 = vadd.f32 0.0, %v3872
      %v3874 = vpop.f32.mrf.mxu0
      %3875 = vmatprep.mubr.f32.mxu0 0.0
      %3876 = vmatmul.mubr.f32.gmra.mxu0 %v3774
      %v3877 = vpop.f32.mrf.mxu0
      %v3878 = vadd.f32 0.0, %v3877
      %v3879 = vpop.f32.mrf.mxu0
      %3880 = vdwg.mxu0
      %3881 = vrot.lane.b32.xlu0 %v584, 80
      %v3882 = vpop.permute.xlu0 %3881
      %3883 = vrot.lane.b32.xlu0 %v589, 80
      %v3884 = vpop.permute.xlu0 %3883
      %3885 = vrot.lane.b32.xlu0 %v594, 80
      %v3886 = vpop.permute.xlu0 %3885
      %3887 = vrot.lane.b32.xlu0 %v599, 80
      %v3888 = vpop.permute.xlu0 %3887
      %3889 = vrot.lane.b32.xlu0 %v604, 80
      %v3890 = vpop.permute.xlu0 %3889
      %3891 = vrot.lane.b32.xlu0 %v609, 80
      %v3892 = vpop.permute.xlu0 %3891
      %3893 = vrot.lane.b32.xlu0 %v614, 80
      %v3894 = vpop.permute.xlu0 %3893
      %3895 = vrot.lane.b32.xlu0 %v619, 80
      %v3896 = vpop.permute.xlu0 %3895
      %v3906 = vsel %vm945, %v3713, 0
      %v3909 = vsel %vm945, %v3715, 0
      %v3912 = vsel %vm945, %v3717, 0
      %v3915 = vsel %vm945, %v3719, 0
      %v3918 = vsel %vm945, %v3721, 0
      %v3921 = vsel %vm945, %v3723, 0
      %v3924 = vsel %vm945, %v3725, 0
      %v3927 = vsel %vm945, %v3727, 0
      %3929 = vmatprep.subr.mxu0 0.0
      %3930 = vmatpush1.msra.mxu0 0.0
      %3931 = vmatprep.subr.mxu0 0.0
      %3932 = vmatpush1.msra.mxu0 0.0
      %3933 = vmatprep.subr.mxu0 0.0
      %3934 = vmatpush1.msra.mxu0 0.0
      %3935 = vmatprep.subr.mxu0 0.0
      %3936 = vmatpush1.msra.mxu0 0.0
      %3937 = vmatprep.subr.mxu0 0.0
      %3938 = vmatpush1.msra.mxu0 0.0
      %3939 = vmatprep.subr.mxu0 0.0
      %3940 = vmatpush1.msra.mxu0 0.0
      %3941 = vmatprep.subr.mxu0 0.0
      %3942 = vmatpush1.msra.mxu0 0.0
      %3943 = vmatprep.subr.mxu0 0.0
      %3944 = vmatpush1.msra.mxu0 0.0
      %3945 = vmatprep.subr.mxu0 0.0
      %3946 = vmatpush1.msra.mxu0 %v3896
      %3947 = vmatprep.subr.mxu0 0.0
      %3948 = vmatpush1.msra.mxu0 %v3894
      %3949 = vmatprep.subr.mxu0 0.0
      %3950 = vmatpush1.msra.mxu0 %v3892
      %3951 = vmatprep.subr.mxu0 0.0
      %3952 = vmatpush1.msra.mxu0 %v3890
      %3953 = vmatprep.subr.mxu0 0.0
      %3954 = vmatpush1.msra.mxu0 %v3888
      %3955 = vmatprep.subr.mxu0 0.0
      %3956 = vmatpush1.msra.mxu0 %v3886
      %3957 = vmatprep.subr.mxu0 0.0
      %3958 = vmatpush1.msra.mxu0 %v3884
      %3959 = vmatprep.subr.mxu0 0.0
      %3960 = vmatpush1.msra.mxu0 %v3882
      %3961 = vmatprep.subr.mxu0 0.0
      %3962 = vmatpush2.msra.mxu0 0.0
      %3963 = vmatprep.subr.mxu0 0.0
      %3964 = vmatpush2.msra.mxu0 0.0
      %3965 = vmatprep.subr.mxu0 0.0
      %3966 = vmatpush2.msra.mxu0 0.0
      %3967 = vmatprep.subr.mxu0 0.0
      %3968 = vmatpush2.msra.mxu0 0.0
      %3969 = vmatprep.subr.mxu0 0.0
      %3970 = vmatpush2.msra.mxu0 0.0
      %3971 = vmatprep.subr.mxu0 0.0
      %3972 = vmatpush2.msra.mxu0 0.0
      %3973 = vmatprep.subr.mxu0 0.0
      %3974 = vmatpush2.msra.mxu0 0.0
      %3975 = vmatprep.subr.mxu0 0.0
      %3976 = vmatpush2.msra.mxu0 0.0
      %3977 = vmatprep.subr.mxu0 0.0
      %3978 = vmatpush2.msra.mxu0 0.0
      %3979 = vmatprep.subr.mxu0 0.0
      %3980 = vmatpush2.msra.mxu0 0.0
      %3981 = vmatprep.subr.mxu0 0.0
      %3982 = vmatpush2.msra.mxu0 0.0
      %3983 = vmatprep.subr.mxu0 0.0
      %3984 = vmatpush2.msra.mxu0 0.0
      %3985 = vmatprep.subr.mxu0 0.0
      %3986 = vmatpush2.msra.mxu0 0.0
      %3987 = vmatprep.subr.mxu0 0.0
      %3988 = vmatpush2.msra.mxu0 0.0
      %3989 = vmatprep.subr.mxu0 0.0
      %3990 = vmatpush2.msra.mxu0 0.0
      %3991 = vmatprep.subr.mxu0 0.0
      %3992 = vmatpush2.msra.mxu0 0.0
      %3993 = vmatprep.mubr.f32.mxu0 0.0
      %3994 = vmatmul.mubr.f32.gmra.mxu0 %v3906
      %v3995 = vpop.f32.mrf.mxu0
      %v3996 = vadd.f32 0.0, %v3995
      %v3997 = vpop.f32.mrf.mxu0
      %3998 = vmatprep.mubr.f32.mxu0 0.0
      %3999 = vmatmul.mubr.f32.gmra.mxu0 %v3909
      %v4000 = vpop.f32.mrf.mxu0
      %v4001 = vadd.f32 0.0, %v4000
      %v4002 = vpop.f32.mrf.mxu0
      %4003 = vmatprep.mubr.f32.mxu0 0.0
      %4004 = vmatmul.mubr.f32.gmra.mxu0 %v3912
      %v4005 = vpop.f32.mrf.mxu0
      %v4006 = vadd.f32 0.0, %v4005
      %v4007 = vpop.f32.mrf.mxu0
      %4008 = vmatprep.mubr.f32.mxu0 0.0
      %4009 = vmatmul.mubr.f32.gmra.mxu0 %v3915
      %v4010 = vpop.f32.mrf.mxu0
      %v4011 = vadd.f32 0.0, %v4010
      %v4012 = vpop.f32.mrf.mxu0
      %4013 = vmatprep.mubr.f32.mxu0 0.0
      %4014 = vmatmul.mubr.f32.gmra.mxu0 %v3918
      %v4015 = vpop.f32.mrf.mxu0
      %v4016 = vadd.f32 0.0, %v4015
      %v4017 = vpop.f32.mrf.mxu0
      %4018 = vmatprep.mubr.f32.mxu0 0.0
      %4019 = vmatmul.mubr.f32.gmra.mxu0 %v3921
      %v4020 = vpop.f32.mrf.mxu0
      %v4021 = vadd.f32 0.0, %v4020
      %v4022 = vpop.f32.mrf.mxu0
      %4023 = vmatprep.mubr.f32.mxu0 0.0
      %4024 = vmatmul.mubr.f32.gmra.mxu0 %v3924
      %v4025 = vpop.f32.mrf.mxu0
      %v4026 = vadd.f32 0.0, %v4025
      %v4027 = vpop.f32.mrf.mxu0
      %4028 = vmatprep.mubr.f32.mxu0 0.0
      %4029 = vmatmul.mubr.f32.gmra.mxu0 %v3927
      %v4030 = vpop.f32.mrf.mxu0
      %v4031 = vadd.f32 0.0, %v4030
      %v4032 = vpop.f32.mrf.mxu0
      %4033 = vdwg.mxu0
      %4050 = vrot.lane.b32.xlu0 %v3843, 48
      %v4051 = vpop.permute.xlu0 %4050
      %4052 = vrot.lane.b32.xlu0 %v3848, 48
      %v4053 = vpop.permute.xlu0 %4052
      %4054 = vrot.lane.b32.xlu0 %v3853, 48
      %v4055 = vpop.permute.xlu0 %4054
      %4056 = vrot.lane.b32.xlu0 %v3858, 48
      %v4057 = vpop.permute.xlu0 %4056
      %4058 = vrot.lane.b32.xlu0 %v3863, 48
      %v4059 = vpop.permute.xlu0 %4058
      %4060 = vrot.lane.b32.xlu0 %v3868, 48
      %v4061 = vpop.permute.xlu0 %4060
      %4062 = vrot.lane.b32.xlu0 %v3873, 48
      %v4063 = vpop.permute.xlu0 %4062
      %4064 = vrot.lane.b32.xlu0 %v3878, 48
      %v4065 = vpop.permute.xlu0 %4064
      %4066 = vrot.lane.b32.xlu0 %v3996, 48
      %v4067 = vpop.permute.xlu0 %4066
      %4068 = vrot.lane.b32.xlu0 %v4001, 48
      %v4069 = vpop.permute.xlu0 %4068
      %4070 = vrot.lane.b32.xlu0 %v4006, 48
      %v4071 = vpop.permute.xlu0 %4070
      %4072 = vrot.lane.b32.xlu0 %v4011, 48
      %v4073 = vpop.permute.xlu0 %4072
      %4074 = vrot.lane.b32.xlu0 %v4016, 48
      %v4075 = vpop.permute.xlu0 %4074
      %4076 = vrot.lane.b32.xlu0 %v4021, 48
      %v4077 = vpop.permute.xlu0 %4076
      %4078 = vrot.lane.b32.xlu0 %v4026, 48
      %v4079 = vpop.permute.xlu0 %4078
      %4080 = vrot.lane.b32.xlu0 %v4031, 48
      %v4081 = vpop.permute.xlu0 %4080
      %vm4098 = vcmask 523648
      %4099 = vst.msk [vmem:[%s204] sm:$0xff] %vm4098, %v4051
      %4100 = vst.msk [vmem:[%s204 + $0x8] sm:$0xff] %vm4098, %v4053
      %4101 = vst.msk [vmem:[%s204 + $0x10] sm:$0xff] %vm4098, %v4055
      %4102 = vst.msk [vmem:[%s204 + $0x18] sm:$0xff] %vm4098, %v4057
      %4103 = vst.msk [vmem:[%s204 + $0x20] sm:$0xff] %vm4098, %v4059
      %4104 = vst.msk [vmem:[%s204 + $0x28] sm:$0xff] %vm4098, %v4061
      %4105 = vst.msk [vmem:[%s204 + $0x30] sm:$0xff] %vm4098, %v4063
      %4106 = vst.msk [vmem:[%s204 + $0x38] sm:$0xff] %vm4098, %v4065
      %4107 = vst.msk [vmem:[%s204 + $0x40] sm:$0xff] %vm4098, %v4067
      %4108 = vst.msk [vmem:[%s204 + $0x48] sm:$0xff] %vm4098, %v4069
      %4109 = vst.msk [vmem:[%s204 + $0x50] sm:$0xff] %vm4098, %v4071
      %4110 = vst.msk [vmem:[%s204 + $0x58] sm:$0xff] %vm4098, %v4073
      %4111 = vst.msk [vmem:[%s204 + $0x60] sm:$0xff] %vm4098, %v4075
      %4112 = vst.msk [vmem:[%s204 + $0x68] sm:$0xff] %vm4098, %v4077
      %4113 = vst.msk [vmem:[%s204 + $0x70] sm:$0xff] %vm4098, %v4079
      %4114 = vst.msk [vmem:[%s204 + $0x78] sm:$0xff] %vm4098, %v4081
      %4115 = vrot.lane.b32.xlu0 %v622, 64
      %v4116 = vpop.permute.xlu0 %4115
      %4117 = vrot.lane.b32.xlu0 %v623, 64
      %v4118 = vpop.permute.xlu0 %4117
      %4119 = vrot.lane.b32.xlu0 %v624, 64
      %v4120 = vpop.permute.xlu0 %4119
      %4121 = vrot.lane.b32.xlu0 %v625, 64
      %v4122 = vpop.permute.xlu0 %4121
      %4123 = vrot.lane.b32.xlu0 %v626, 64
      %v4124 = vpop.permute.xlu0 %4123
      %4125 = vrot.lane.b32.xlu0 %v627, 64
      %v4126 = vpop.permute.xlu0 %4125
      %4127 = vrot.lane.b32.xlu0 %v628, 64
      %v4128 = vpop.permute.xlu0 %4127
      %4129 = vrot.lane.b32.xlu0 %v629, 64
      %v4130 = vpop.permute.xlu0 %4129
      %4131 = vrot.lane.b32.xlu0 %v385, 64
      %v4132 = vpop.permute.xlu0 %4131
      %4133 = vrot.lane.b32.xlu0 %v391, 64
      %v4134 = vpop.permute.xlu0 %4133
      %4135 = vrot.lane.b32.xlu0 %v397, 64
      %v4136 = vpop.permute.xlu0 %4135
      %4137 = vrot.lane.b32.xlu0 %v403, 64
      %v4138 = vpop.permute.xlu0 %4137
      %4139 = vrot.lane.b32.xlu0 %v409, 64
      %v4140 = vpop.permute.xlu0 %4139
      %4141 = vrot.lane.b32.xlu0 %v415, 64
      %v4142 = vpop.permute.xlu0 %4141
      %4143 = vrot.lane.b32.xlu0 %v421, 64
      %v4144 = vpop.permute.xlu0 %4143
      %4145 = vrot.lane.b32.xlu0 %v427, 64
      %v4146 = vpop.permute.xlu0 %4145
      %v4147 = vsel %vm638, %v4116, 0
      %v4149 = vsel %vm638, %v4118, 0
      %v4151 = vsel %vm638, %v4120, 0
      %v4153 = vsel %vm638, %v4122, 0
      %v4155 = vsel %vm638, %v4124, 0
      %v4157 = vsel %vm638, %v4126, 0
      %v4159 = vsel %vm638, %v4128, 0
      %v4161 = vsel %vm638, %v4130, 0
      %v4163 = vsel %vm638, %v4132, 0
      %v4165 = vsel %vm638, %v4134, 0
      %v4167 = vsel %vm638, %v4136, 0
      %v4169 = vsel %vm638, %v4138, 0
      %v4171 = vsel %vm638, %v4140, 0
      %v4173 = vsel %vm638, %v4142, 0
      %v4175 = vsel %vm638, %v4144, 0
      %v4177 = vsel %vm638, %v4146, 0
      %4179 = vmatprep.subr.mxu0 0.0
      %4180 = vmatpush1.xpose.msra.mxu0 0.0
      %4181 = vmatprep.subr.mxu0 0.0
      %4182 = vmatpush1.xpose.msra.mxu0 0.0
      %4183 = vmatprep.subr.mxu0 0.0
      %4184 = vmatpush1.xpose.msra.mxu0 0.0
      %4185 = vmatprep.subr.mxu0 0.0
      %4186 = vmatpush1.xpose.msra.mxu0 0.0
      %4187 = vmatprep.subr.mxu0 0.0
      %4188 = vmatpush1.xpose.msra.mxu0 0.0
      %4189 = vmatprep.subr.mxu0 0.0
      %4190 = vmatpush1.xpose.msra.mxu0 0.0
      %4191 = vmatprep.subr.mxu0 0.0
      %4192 = vmatpush1.xpose.msra.mxu0 0.0
      %4193 = vmatprep.subr.mxu0 0.0
      %4194 = vmatpush1.xpose.msra.mxu0 0.0
      %4195 = vmatprep.subr.mxu0 0.0
      %4196 = vmatpush1.xpose.msra.mxu0 %v4177
      %4197 = vmatprep.subr.mxu0 0.0
      %4198 = vmatpush1.xpose.msra.mxu0 %v4175
      %4199 = vmatprep.subr.mxu0 0.0
      %4200 = vmatpush1.xpose.msra.mxu0 %v4173
      %4201 = vmatprep.subr.mxu0 0.0
      %4202 = vmatpush1.xpose.msra.mxu0 %v4171
      %4203 = vmatprep.subr.mxu0 0.0
      %4204 = vmatpush1.xpose.msra.mxu0 %v4169
      %4205 = vmatprep.subr.mxu0 0.0
      %4206 = vmatpush1.xpose.msra.mxu0 %v4167
      %4207 = vmatprep.subr.mxu0 0.0
      %4208 = vmatpush1.xpose.msra.mxu0 %v4165
      %4209 = vmatprep.subr.mxu0 0.0
      %4210 = vmatpush1.xpose.msra.mxu0 %v4163
      %4211 = vmatprep.subr.mxu0 0.0
      %4212 = vmatpush2.xpose.msra.mxu0 0.0
      %4213 = vmatprep.subr.mxu0 0.0
      %4214 = vmatpush2.xpose.msra.mxu0 0.0
      %4215 = vmatprep.subr.mxu0 0.0
      %4216 = vmatpush2.xpose.msra.mxu0 0.0
      %4217 = vmatprep.subr.mxu0 0.0
      %4218 = vmatpush2.xpose.msra.mxu0 0.0
      %4219 = vmatprep.subr.mxu0 0.0
      %4220 = vmatpush2.xpose.msra.mxu0 0.0
      %4221 = vmatprep.subr.mxu0 0.0
      %4222 = vmatpush2.xpose.msra.mxu0 0.0
      %4223 = vmatprep.subr.mxu0 0.0
      %4224 = vmatpush2.xpose.msra.mxu0 0.0
      %4225 = vmatprep.subr.mxu0 0.0
      %4226 = vmatpush2.xpose.msra.mxu0 0.0
      %4227 = vmatprep.subr.mxu0 0.0
      %4228 = vmatpush2.xpose.msra.mxu0 0.0
      %4229 = vmatprep.subr.mxu0 0.0
      %4230 = vmatpush2.xpose.msra.mxu0 0.0
      %4231 = vmatprep.subr.mxu0 0.0
      %4232 = vmatpush2.xpose.msra.mxu0 0.0
      %4233 = vmatprep.subr.mxu0 0.0
      %4234 = vmatpush2.xpose.msra.mxu0 0.0
      %4235 = vmatprep.subr.mxu0 0.0
      %4236 = vmatpush2.xpose.msra.mxu0 0.0
      %4237 = vmatprep.subr.mxu0 0.0
      %4238 = vmatpush2.xpose.msra.mxu0 0.0
      %4239 = vmatprep.subr.mxu0 0.0
      %4240 = vmatpush2.xpose.msra.mxu0 0.0
      %4241 = vmatprep.subr.mxu0 0.0
      %4242 = vmatpush2.xpose.msra.mxu0 0.0
      %4243 = vmatprep.mubr.f32.mxu0 0.0
      %4244 = vmatmul.mubr.f32.gmra.mxu0 %v4147
      %v4245 = vpop.f32.mrf.mxu0
      %v4246 = vadd.f32 0.0, %v4245
      %v4247 = vpop.f32.mrf.mxu0
      %4248 = vmatprep.mubr.f32.mxu0 0.0
      %4249 = vmatmul.mubr.f32.gmra.mxu0 %v4149
      %v4250 = vpop.f32.mrf.mxu0
      %v4251 = vadd.f32 0.0, %v4250
      %v4252 = vpop.f32.mrf.mxu0
      %4253 = vmatprep.mubr.f32.mxu0 0.0
      %4254 = vmatmul.mubr.f32.gmra.mxu0 %v4151
      %v4255 = vpop.f32.mrf.mxu0
      %v4256 = vadd.f32 0.0, %v4255
      %v4257 = vpop.f32.mrf.mxu0
      %4258 = vmatprep.mubr.f32.mxu0 0.0
      %4259 = vmatmul.mubr.f32.gmra.mxu0 %v4153
      %v4260 = vpop.f32.mrf.mxu0
      %v4261 = vadd.f32 0.0, %v4260
      %v4262 = vpop.f32.mrf.mxu0
      %4263 = vmatprep.mubr.f32.mxu0 0.0
      %4264 = vmatmul.mubr.f32.gmra.mxu0 %v4155
      %v4265 = vpop.f32.mrf.mxu0
      %v4266 = vadd.f32 0.0, %v4265
      %v4267 = vpop.f32.mrf.mxu0
      %4268 = vmatprep.mubr.f32.mxu0 0.0
      %4269 = vmatmul.mubr.f32.gmra.mxu0 %v4157
      %v4270 = vpop.f32.mrf.mxu0
      %v4271 = vadd.f32 0.0, %v4270
      %v4272 = vpop.f32.mrf.mxu0
      %4273 = vmatprep.mubr.f32.mxu0 0.0
      %4274 = vmatmul.mubr.f32.gmra.mxu0 %v4159
      %v4275 = vpop.f32.mrf.mxu0
      %v4276 = vadd.f32 0.0, %v4275
      %v4277 = vpop.f32.mrf.mxu0
      %4278 = vmatprep.mubr.f32.mxu0 0.0
      %4279 = vmatmul.mubr.f32.gmra.mxu0 %v4161
      %v4280 = vpop.f32.mrf.mxu0
      %v4281 = vadd.f32 0.0, %v4280
      %v4282 = vpop.f32.mrf.mxu0
      %4283 = vdwg.mxu0
      %4284 = vrot.lane.b32.xlu0 %v630, 64
      %v4285 = vpop.permute.xlu0 %4284
      %4286 = vrot.lane.b32.xlu0 %v631, 64
      %v4287 = vpop.permute.xlu0 %4286
      %4288 = vrot.lane.b32.xlu0 %v632, 64
      %v4289 = vpop.permute.xlu0 %4288
      %4290 = vrot.lane.b32.xlu0 %v633, 64
      %v4291 = vpop.permute.xlu0 %4290
      %4292 = vrot.lane.b32.xlu0 %v634, 64
      %v4293 = vpop.permute.xlu0 %4292
      %4294 = vrot.lane.b32.xlu0 %v635, 64
      %v4295 = vpop.permute.xlu0 %4294
      %4296 = vrot.lane.b32.xlu0 %v636, 64
      %v4297 = vpop.permute.xlu0 %4296
      %4298 = vrot.lane.b32.xlu0 %v637, 64
      %v4299 = vpop.permute.xlu0 %4298
      %4300 = vrot.lane.b32.xlu0 %v433, 64
      %v4301 = vpop.permute.xlu0 %4300
      %4302 = vrot.lane.b32.xlu0 %v439, 64
      %v4303 = vpop.permute.xlu0 %4302
      %4304 = vrot.lane.b32.xlu0 %v445, 64
      %v4305 = vpop.permute.xlu0 %4304
      %4306 = vrot.lane.b32.xlu0 %v451, 64
      %v4307 = vpop.permute.xlu0 %4306
      %4308 = vrot.lane.b32.xlu0 %v457, 64
      %v4309 = vpop.permute.xlu0 %4308
      %4310 = vrot.lane.b32.xlu0 %v463, 64
      %v4311 = vpop.permute.xlu0 %4310
      %4312 = vrot.lane.b32.xlu0 %v469, 64
      %v4313 = vpop.permute.xlu0 %4312
      %4314 = vrot.lane.b32.xlu0 %v475, 64
      %v4315 = vpop.permute.xlu0 %4314
      %v4316 = vsel %vm638, %v4285, 0
      %v4318 = vsel %vm638, %v4287, 0
      %v4320 = vsel %vm638, %v4289, 0
      %v4322 = vsel %vm638, %v4291, 0
      %v4324 = vsel %vm638, %v4293, 0
      %v4326 = vsel %vm638, %v4295, 0
      %v4328 = vsel %vm638, %v4297, 0
      %v4330 = vsel %vm638, %v4299, 0
      %v4332 = vsel %vm638, %v4301, 0
      %v4334 = vsel %vm638, %v4303, 0
      %v4336 = vsel %vm638, %v4305, 0
      %v4338 = vsel %vm638, %v4307, 0
      %v4340 = vsel %vm638, %v4309, 0
      %v4342 = vsel %vm638, %v4311, 0
      %v4344 = vsel %vm638, %v4313, 0
      %v4346 = vsel %vm638, %v4315, 0
      %4348 = vmatprep.subr.mxu0 0.0
      %4349 = vmatpush1.xpose.msra.mxu0 0.0
      %4350 = vmatprep.subr.mxu0 0.0
      %4351 = vmatpush1.xpose.msra.mxu0 0.0
      %4352 = vmatprep.subr.mxu0 0.0
      %4353 = vmatpush1.xpose.msra.mxu0 0.0
      %4354 = vmatprep.subr.mxu0 0.0
      %4355 = vmatpush1.xpose.msra.mxu0 0.0
      %4356 = vmatprep.subr.mxu0 0.0
      %4357 = vmatpush1.xpose.msra.mxu0 0.0
      %4358 = vmatprep.subr.mxu0 0.0
      %4359 = vmatpush1.xpose.msra.mxu0 0.0
      %4360 = vmatprep.subr.mxu0 0.0
      %4361 = vmatpush1.xpose.msra.mxu0 0.0
      %4362 = vmatprep.subr.mxu0 0.0
      %4363 = vmatpush1.xpose.msra.mxu0 0.0
      %4364 = vmatprep.subr.mxu0 0.0
      %4365 = vmatpush1.xpose.msra.mxu0 %v4346
      %4366 = vmatprep.subr.mxu0 0.0
      %4367 = vmatpush1.xpose.msra.mxu0 %v4344
      %4368 = vmatprep.subr.mxu0 0.0
      %4369 = vmatpush1.xpose.msra.mxu0 %v4342
      %4370 = vmatprep.subr.mxu0 0.0
      %4371 = vmatpush1.xpose.msra.mxu0 %v4340
      %4372 = vmatprep.subr.mxu0 0.0
      %4373 = vmatpush1.xpose.msra.mxu0 %v4338
      %4374 = vmatprep.subr.mxu0 0.0
      %4375 = vmatpush1.xpose.msra.mxu0 %v4336
      %4376 = vmatprep.subr.mxu0 0.0
      %4377 = vmatpush1.xpose.msra.mxu0 %v4334
      %4378 = vmatprep.subr.mxu0 0.0
      %4379 = vmatpush1.xpose.msra.mxu0 %v4332
      %4380 = vmatprep.subr.mxu0 0.0
      %4381 = vmatpush2.xpose.msra.mxu0 0.0
      %4382 = vmatprep.subr.mxu0 0.0
      %4383 = vmatpush2.xpose.msra.mxu0 0.0
      %4384 = vmatprep.subr.mxu0 0.0
      %4385 = vmatpush2.xpose.msra.mxu0 0.0
      %4386 = vmatprep.subr.mxu0 0.0
      %4387 = vmatpush2.xpose.msra.mxu0 0.0
      %4388 = vmatprep.subr.mxu0 0.0
      %4389 = vmatpush2.xpose.msra.mxu0 0.0
      %4390 = vmatprep.subr.mxu0 0.0
      %4391 = vmatpush2.xpose.msra.mxu0 0.0
      %4392 = vmatprep.subr.mxu0 0.0
      %4393 = vmatpush2.xpose.msra.mxu0 0.0
      %4394 = vmatprep.subr.mxu0 0.0
      %4395 = vmatpush2.xpose.msra.mxu0 0.0
      %4396 = vmatprep.subr.mxu0 0.0
      %4397 = vmatpush2.xpose.msra.mxu0 0.0
      %4398 = vmatprep.subr.mxu0 0.0
      %4399 = vmatpush2.xpose.msra.mxu0 0.0
      %4400 = vmatprep.subr.mxu0 0.0
      %4401 = vmatpush2.xpose.msra.mxu0 0.0
      %4402 = vmatprep.subr.mxu0 0.0
      %4403 = vmatpush2.xpose.msra.mxu0 0.0
      %4404 = vmatprep.subr.mxu0 0.0
      %4405 = vmatpush2.xpose.msra.mxu0 0.0
      %4406 = vmatprep.subr.mxu0 0.0
      %4407 = vmatpush2.xpose.msra.mxu0 0.0
      %4408 = vmatprep.subr.mxu0 0.0
      %4409 = vmatpush2.xpose.msra.mxu0 0.0
      %4410 = vmatprep.subr.mxu0 0.0
      %4411 = vmatpush2.xpose.msra.mxu0 0.0
      %4412 = vmatprep.mubr.f32.mxu0 0.0
      %4413 = vmatmul.mubr.f32.gmra.mxu0 %v4316
      %v4414 = vpop.f32.mrf.mxu0
      %v4415 = vadd.f32 0.0, %v4414
      %v4416 = vpop.f32.mrf.mxu0
      %4417 = vmatprep.mubr.f32.mxu0 0.0
      %4418 = vmatmul.mubr.f32.gmra.mxu0 %v4318
      %v4419 = vpop.f32.mrf.mxu0
      %v4420 = vadd.f32 0.0, %v4419
      %v4421 = vpop.f32.mrf.mxu0
      %4422 = vmatprep.mubr.f32.mxu0 0.0
      %4423 = vmatmul.mubr.f32.gmra.mxu0 %v4320
      %v4424 = vpop.f32.mrf.mxu0
      %v4425 = vadd.f32 0.0, %v4424
      %v4426 = vpop.f32.mrf.mxu0
      %4427 = vmatprep.mubr.f32.mxu0 0.0
      %4428 = vmatmul.mubr.f32.gmra.mxu0 %v4322
      %v4429 = vpop.f32.mrf.mxu0
      %v4430 = vadd.f32 0.0, %v4429
      %v4431 = vpop.f32.mrf.mxu0
      %4432 = vmatprep.mubr.f32.mxu0 0.0
      %4433 = vmatmul.mubr.f32.gmra.mxu0 %v4324
      %v4434 = vpop.f32.mrf.mxu0
      %v4435 = vadd.f32 0.0, %v4434
      %v4436 = vpop.f32.mrf.mxu0
      %4437 = vmatprep.mubr.f32.mxu0 0.0
      %4438 = vmatmul.mubr.f32.gmra.mxu0 %v4326
      %v4439 = vpop.f32.mrf.mxu0
      %v4440 = vadd.f32 0.0, %v4439
      %v4441 = vpop.f32.mrf.mxu0
      %4442 = vmatprep.mubr.f32.mxu0 0.0
      %4443 = vmatmul.mubr.f32.gmra.mxu0 %v4328
      %v4444 = vpop.f32.mrf.mxu0
      %v4445 = vadd.f32 0.0, %v4444
      %v4446 = vpop.f32.mrf.mxu0
      %4447 = vmatprep.mubr.f32.mxu0 0.0
      %4448 = vmatmul.mubr.f32.gmra.mxu0 %v4330
      %v4449 = vpop.f32.mrf.mxu0
      %v4450 = vadd.f32 0.0, %v4449
      %v4451 = vpop.f32.mrf.mxu0
      %4452 = vdwg.mxu0
      %v4453 = vsel %vm945, %v4246, -inf
      %4454 = vmax.xlane.f32.xlu0 %v4453
      %v4455 = vpop.xlane.xlu0 %4454
      %v4456 = vsel %vm945, %v4251, -inf
      %4457 = vmax.xlane.f32.xlu0 %v4456
      %v4458 = vpop.xlane.xlu0 %4457
      %v4459 = vsel %vm945, %v4256, -inf
      %4460 = vmax.xlane.f32.xlu0 %v4459
      %v4461 = vpop.xlane.xlu0 %4460
      %v4462 = vsel %vm945, %v4261, -inf
      %4463 = vmax.xlane.f32.xlu0 %v4462
      %v4464 = vpop.xlane.xlu0 %4463
      %v4465 = vsel %vm945, %v4266, -inf
      %4466 = vmax.xlane.f32.xlu0 %v4465
      %v4467 = vpop.xlane.xlu0 %4466
      %v4468 = vsel %vm945, %v4271, -inf
      %4469 = vmax.xlane.f32.xlu0 %v4468
      %v4470 = vpop.xlane.xlu0 %4469
      %v4471 = vsel %vm945, %v4276, -inf
      %4472 = vmax.xlane.f32.xlu0 %v4471
      %v4473 = vpop.xlane.xlu0 %4472
      %v4474 = vsel %vm945, %v4281, -inf
      %4475 = vmax.xlane.f32.xlu0 %v4474
      %v4476 = vpop.xlane.xlu0 %4475
      %v4477 = vsel %vm945, %v4415, -inf
      %4478 = vmax.xlane.f32.xlu0 %v4477
      %v4479 = vpop.xlane.xlu0 %4478
      %v4480 = vsel %vm945, %v4420, -inf
      %4481 = vmax.xlane.f32.xlu0 %v4480
      %v4482 = vpop.xlane.xlu0 %4481
      %v4483 = vsel %vm945, %v4425, -inf
      %4484 = vmax.xlane.f32.xlu0 %v4483
      %v4485 = vpop.xlane.xlu0 %4484
      %v4486 = vsel %vm945, %v4430, -inf
      %4487 = vmax.xlane.f32.xlu0 %v4486
      %v4488 = vpop.xlane.xlu0 %4487
      %v4489 = vsel %vm945, %v4435, -inf
      %4490 = vmax.xlane.f32.xlu0 %v4489
      %v4491 = vpop.xlane.xlu0 %4490
      %v4492 = vsel %vm945, %v4440, -inf
      %4493 = vmax.xlane.f32.xlu0 %v4492
      %v4494 = vpop.xlane.xlu0 %4493
      %v4495 = vsel %vm945, %v4445, -inf
      %4496 = vmax.xlane.f32.xlu0 %v4495
      %v4497 = vpop.xlane.xlu0 %4496
      %v4498 = vsel %vm945, %v4450, -inf
      %4499 = vmax.xlane.f32.xlu0 %v4498
      %v4500 = vpop.xlane.xlu0 %4499
      %v4501 = vsub.f32 %v4246, %v4455
      %v4502 = vsub.f32 %v4251, %v4458
      %v4503 = vsub.f32 %v4256, %v4461
      %v4504 = vsub.f32 %v4261, %v4464
      %v4505 = vsub.f32 %v4266, %v4467
      %v4506 = vsub.f32 %v4271, %v4470
      %v4507 = vsub.f32 %v4276, %v4473
      %v4508 = vsub.f32 %v4281, %v4476
      %v4509 = vsub.f32 %v4415, %v4479
      %v4510 = vsub.f32 %v4420, %v4482
      %v4511 = vsub.f32 %v4425, %v4485
      %v4512 = vsub.f32 %v4430, %v4488
      %v4513 = vsub.f32 %v4435, %v4491
      %v4514 = vsub.f32 %v4440, %v4494
      %v4515 = vsub.f32 %v4445, %v4497
      %v4516 = vsub.f32 %v4450, %v4500
      %v4517 = vmul.f32 %v4501, 1.442695
      %v4518 = vpow.pop %v4517
      %v4519 = vmul.f32 %v4502, 1.442695
      %v4520 = vpow.pop %v4519
      %v4521 = vmul.f32 %v4503, 1.442695
      %v4522 = vpow.pop %v4521
      %v4523 = vmul.f32 %v4504, 1.442695
      %v4524 = vpow.pop %v4523
      %v4525 = vmul.f32 %v4505, 1.442695
      %v4526 = vpow.pop %v4525
      %v4527 = vmul.f32 %v4506, 1.442695
      %v4528 = vpow.pop %v4527
      %v4529 = vmul.f32 %v4507, 1.442695
      %v4530 = vpow.pop %v4529
      %v4531 = vmul.f32 %v4508, 1.442695
      %v4532 = vpow.pop %v4531
      %v4533 = vmul.f32 %v4509, 1.442695
      %v4534 = vpow.pop %v4533
      %v4535 = vmul.f32 %v4510, 1.442695
      %v4536 = vpow.pop %v4535
      %v4537 = vmul.f32 %v4511, 1.442695
      %v4538 = vpow.pop %v4537
      %v4539 = vmul.f32 %v4512, 1.442695
      %v4540 = vpow.pop %v4539
      %v4541 = vmul.f32 %v4513, 1.442695
      %v4542 = vpow.pop %v4541
      %v4543 = vmul.f32 %v4514, 1.442695
      %v4544 = vpow.pop %v4543
      %v4545 = vmul.f32 %v4515, 1.442695
      %v4546 = vpow.pop %v4545
      %v4547 = vmul.f32 %v4516, 1.442695
      %v4548 = vpow.pop %v4547
      %v4549 = vsel %vm945, %v4518, 0.0
      %4550 = vadd.xlane.f32.xlu0 %v4549
      %v4551 = vpop.xlane.xlu0 %4550
      %v4552 = vsel %vm945, %v4520, 0.0
      %4553 = vadd.xlane.f32.xlu0 %v4552
      %v4554 = vpop.xlane.xlu0 %4553
      %v4555 = vsel %vm945, %v4522, 0.0
      %4556 = vadd.xlane.f32.xlu0 %v4555
      %v4557 = vpop.xlane.xlu0 %4556
      %v4558 = vsel %vm945, %v4524, 0.0
      %4559 = vadd.xlane.f32.xlu0 %v4558
      %v4560 = vpop.xlane.xlu0 %4559
      %v4561 = vsel %vm945, %v4526, 0.0
      %4562 = vadd.xlane.f32.xlu0 %v4561
      %v4563 = vpop.xlane.xlu0 %4562
      %v4564 = vsel %vm945, %v4528, 0.0
      %4565 = vadd.xlane.f32.xlu0 %v4564
      %v4566 = vpop.xlane.xlu0 %4565
      %v4567 = vsel %vm945, %v4530, 0.0
      %4568 = vadd.xlane.f32.xlu0 %v4567
      %v4569 = vpop.xlane.xlu0 %4568
      %v4570 = vsel %vm945, %v4532, 0.0
      %4571 = vadd.xlane.f32.xlu0 %v4570
      %v4572 = vpop.xlane.xlu0 %4571
      %v4573 = vsel %vm945, %v4534, 0.0
      %4574 = vadd.xlane.f32.xlu0 %v4573
      %v4575 = vpop.xlane.xlu0 %4574
      %v4576 = vsel %vm945, %v4536, 0.0
      %4577 = vadd.xlane.f32.xlu0 %v4576
      %v4578 = vpop.xlane.xlu0 %4577
      %v4579 = vsel %vm945, %v4538, 0.0
      %4580 = vadd.xlane.f32.xlu0 %v4579
      %v4581 = vpop.xlane.xlu0 %4580
      %v4582 = vsel %vm945, %v4540, 0.0
      %4583 = vadd.xlane.f32.xlu0 %v4582
      %v4584 = vpop.xlane.xlu0 %4583
      %v4585 = vsel %vm945, %v4542, 0.0
      %4586 = vadd.xlane.f32.xlu0 %v4585
      %v4587 = vpop.xlane.xlu0 %4586
      %v4588 = vsel %vm945, %v4544, 0.0
      %4589 = vadd.xlane.f32.xlu0 %v4588
      %v4590 = vpop.xlane.xlu0 %4589
      %v4591 = vsel %vm945, %v4546, 0.0
      %4592 = vadd.xlane.f32.xlu0 %v4591
      %v4593 = vpop.xlane.xlu0 %4592
      %v4594 = vsel %vm945, %v4548, 0.0
      %4595 = vadd.xlane.f32.xlu0 %v4594
      %v4596 = vpop.xlane.xlu0 %4595
      %v4597 = vrcp.pop %v4551
      %v4598 = vmul.f32 %v4518, %v4597
      %v4599 = vrcp.pop %v4554
      %v4600 = vmul.f32 %v4520, %v4599
      %v4601 = vrcp.pop %v4557
      %v4602 = vmul.f32 %v4522, %v4601
      %v4603 = vrcp.pop %v4560
      %v4604 = vmul.f32 %v4524, %v4603
      %v4605 = vrcp.pop %v4563
      %v4606 = vmul.f32 %v4526, %v4605
      %v4607 = vrcp.pop %v4566
      %v4608 = vmul.f32 %v4528, %v4607
      %v4609 = vrcp.pop %v4569
      %v4610 = vmul.f32 %v4530, %v4609
      %v4611 = vrcp.pop %v4572
      %v4612 = vmul.f32 %v4532, %v4611
      %v4613 = vrcp.pop %v4575
      %v4614 = vmul.f32 %v4534, %v4613
      %v4615 = vrcp.pop %v4578
      %v4616 = vmul.f32 %v4536, %v4615
      %v4617 = vrcp.pop %v4581
      %v4618 = vmul.f32 %v4538, %v4617
      %v4619 = vrcp.pop %v4584
      %v4620 = vmul.f32 %v4540, %v4619
      %v4621 = vrcp.pop %v4587
      %v4622 = vmul.f32 %v4542, %v4621
      %v4623 = vrcp.pop %v4590
      %v4624 = vmul.f32 %v4544, %v4623
      %v4625 = vrcp.pop %v4593
      %v4626 = vmul.f32 %v4546, %v4625
      %v4627 = vrcp.pop %v4596
      %v4628 = vmul.f32 %v4548, %v4627
      %4629 = vrot.lane.b32.xlu0 %v544, 64
      %v4630 = vpop.permute.xlu0 %4629
      %4631 = vrot.lane.b32.xlu0 %v549, 64
      %v4632 = vpop.permute.xlu0 %4631
      %4633 = vrot.lane.b32.xlu0 %v554, 64
      %v4634 = vpop.permute.xlu0 %4633
      %4635 = vrot.lane.b32.xlu0 %v559, 64
      %v4636 = vpop.permute.xlu0 %4635
      %4637 = vrot.lane.b32.xlu0 %v564, 64
      %v4638 = vpop.permute.xlu0 %4637
      %4639 = vrot.lane.b32.xlu0 %v569, 64
      %v4640 = vpop.permute.xlu0 %4639
      %4641 = vrot.lane.b32.xlu0 %v574, 64
      %v4642 = vpop.permute.xlu0 %4641
      %4643 = vrot.lane.b32.xlu0 %v579, 64
      %v4644 = vpop.permute.xlu0 %4643
      %v4654 = vsel %vm945, %v4598, 0
      %v4657 = vsel %vm945, %v4600, 0
      %v4660 = vsel %vm945, %v4602, 0
      %v4663 = vsel %vm945, %v4604, 0
      %v4666 = vsel %vm945, %v4606, 0
      %v4669 = vsel %vm945, %v4608, 0
      %v4672 = vsel %vm945, %v4610, 0
      %v4675 = vsel %vm945, %v4612, 0
      %4677 = vmatprep.subr.mxu0 0.0
      %4678 = vmatpush1.msra.mxu0 0.0
      %4679 = vmatprep.subr.mxu0 0.0
      %4680 = vmatpush1.msra.mxu0 0.0
      %4681 = vmatprep.subr.mxu0 0.0
      %4682 = vmatpush1.msra.mxu0 0.0
      %4683 = vmatprep.subr.mxu0 0.0
      %4684 = vmatpush1.msra.mxu0 0.0
      %4685 = vmatprep.subr.mxu0 0.0
      %4686 = vmatpush1.msra.mxu0 0.0
      %4687 = vmatprep.subr.mxu0 0.0
      %4688 = vmatpush1.msra.mxu0 0.0
      %4689 = vmatprep.subr.mxu0 0.0
      %4690 = vmatpush1.msra.mxu0 0.0
      %4691 = vmatprep.subr.mxu0 0.0
      %4692 = vmatpush1.msra.mxu0 0.0
      %4693 = vmatprep.subr.mxu0 0.0
      %4694 = vmatpush1.msra.mxu0 %v4644
      %4695 = vmatprep.subr.mxu0 0.0
      %4696 = vmatpush1.msra.mxu0 %v4642
      %4697 = vmatprep.subr.mxu0 0.0
      %4698 = vmatpush1.msra.mxu0 %v4640
      %4699 = vmatprep.subr.mxu0 0.0
      %4700 = vmatpush1.msra.mxu0 %v4638
      %4701 = vmatprep.subr.mxu0 0.0
      %4702 = vmatpush1.msra.mxu0 %v4636
      %4703 = vmatprep.subr.mxu0 0.0
      %4704 = vmatpush1.msra.mxu0 %v4634
      %4705 = vmatprep.subr.mxu0 0.0
      %4706 = vmatpush1.msra.mxu0 %v4632
      %4707 = vmatprep.subr.mxu0 0.0
      %4708 = vmatpush1.msra.mxu0 %v4630
      %4709 = vmatprep.subr.mxu0 0.0
      %4710 = vmatpush2.msra.mxu0 0.0
      %4711 = vmatprep.subr.mxu0 0.0
      %4712 = vmatpush2.msra.mxu0 0.0
      %4713 = vmatprep.subr.mxu0 0.0
      %4714 = vmatpush2.msra.mxu0 0.0
      %4715 = vmatprep.subr.mxu0 0.0
      %4716 = vmatpush2.msra.mxu0 0.0
      %4717 = vmatprep.subr.mxu0 0.0
      %4718 = vmatpush2.msra.mxu0 0.0
      %4719 = vmatprep.subr.mxu0 0.0
      %4720 = vmatpush2.msra.mxu0 0.0
      %4721 = vmatprep.subr.mxu0 0.0
      %4722 = vmatpush2.msra.mxu0 0.0
      %4723 = vmatprep.subr.mxu0 0.0
      %4724 = vmatpush2.msra.mxu0 0.0
      %4725 = vmatprep.subr.mxu0 0.0
      %4726 = vmatpush2.msra.mxu0 0.0
      %4727 = vmatprep.subr.mxu0 0.0
      %4728 = vmatpush2.msra.mxu0 0.0
      %4729 = vmatprep.subr.mxu0 0.0
      %4730 = vmatpush2.msra.mxu0 0.0
      %4731 = vmatprep.subr.mxu0 0.0
      %4732 = vmatpush2.msra.mxu0 0.0
      %4733 = vmatprep.subr.mxu0 0.0
      %4734 = vmatpush2.msra.mxu0 0.0
      %4735 = vmatprep.subr.mxu0 0.0
      %4736 = vmatpush2.msra.mxu0 0.0
      %4737 = vmatprep.subr.mxu0 0.0
      %4738 = vmatpush2.msra.mxu0 0.0
      %4739 = vmatprep.subr.mxu0 0.0
      %4740 = vmatpush2.msra.mxu0 0.0
      %4741 = vmatprep.mubr.f32.mxu0 0.0
      %4742 = vmatmul.mubr.f32.gmra.mxu0 %v4654
      %v4743 = vpop.f32.mrf.mxu0
      %v4744 = vadd.f32 0.0, %v4743
      %v4745 = vpop.f32.mrf.mxu0
      %4746 = vmatprep.mubr.f32.mxu0 0.0
      %4747 = vmatmul.mubr.f32.gmra.mxu0 %v4657
      %v4748 = vpop.f32.mrf.mxu0
      %v4749 = vadd.f32 0.0, %v4748
      %v4750 = vpop.f32.mrf.mxu0
      %4751 = vmatprep.mubr.f32.mxu0 0.0
      %4752 = vmatmul.mubr.f32.gmra.mxu0 %v4660
      %v4753 = vpop.f32.mrf.mxu0
      %v4754 = vadd.f32 0.0, %v4753
      %v4755 = vpop.f32.mrf.mxu0
      %4756 = vmatprep.mubr.f32.mxu0 0.0
      %4757 = vmatmul.mubr.f32.gmra.mxu0 %v4663
      %v4758 = vpop.f32.mrf.mxu0
      %v4759 = vadd.f32 0.0, %v4758
      %v4760 = vpop.f32.mrf.mxu0
      %4761 = vmatprep.mubr.f32.mxu0 0.0
      %4762 = vmatmul.mubr.f32.gmra.mxu0 %v4666
      %v4763 = vpop.f32.mrf.mxu0
      %v4764 = vadd.f32 0.0, %v4763
      %v4765 = vpop.f32.mrf.mxu0
      %4766 = vmatprep.mubr.f32.mxu0 0.0
      %4767 = vmatmul.mubr.f32.gmra.mxu0 %v4669
      %v4768 = vpop.f32.mrf.mxu0
      %v4769 = vadd.f32 0.0, %v4768
      %v4770 = vpop.f32.mrf.mxu0
      %4771 = vmatprep.mubr.f32.mxu0 0.0
      %4772 = vmatmul.mubr.f32.gmra.mxu0 %v4672
      %v4773 = vpop.f32.mrf.mxu0
      %v4774 = vadd.f32 0.0, %v4773
      %v4775 = vpop.f32.mrf.mxu0
      %4776 = vmatprep.mubr.f32.mxu0 0.0
      %4777 = vmatmul.mubr.f32.gmra.mxu0 %v4675
      %v4778 = vpop.f32.mrf.mxu0
      %v4779 = vadd.f32 0.0, %v4778
      %v4780 = vpop.f32.mrf.mxu0
      %4781 = vdwg.mxu0
      %4782 = vrot.lane.b32.xlu0 %v584, 64
      %v4783 = vpop.permute.xlu0 %4782
      %4784 = vrot.lane.b32.xlu0 %v589, 64
      %v4785 = vpop.permute.xlu0 %4784
      %4786 = vrot.lane.b32.xlu0 %v594, 64
      %v4787 = vpop.permute.xlu0 %4786
      %4788 = vrot.lane.b32.xlu0 %v599, 64
      %v4789 = vpop.permute.xlu0 %4788
      %4790 = vrot.lane.b32.xlu0 %v604, 64
      %v4791 = vpop.permute.xlu0 %4790
      %4792 = vrot.lane.b32.xlu0 %v609, 64
      %v4793 = vpop.permute.xlu0 %4792
      %4794 = vrot.lane.b32.xlu0 %v614, 64
      %v4795 = vpop.permute.xlu0 %4794
      %4796 = vrot.lane.b32.xlu0 %v619, 64
      %v4797 = vpop.permute.xlu0 %4796
      %v4807 = vsel %vm945, %v4614, 0
      %v4810 = vsel %vm945, %v4616, 0
      %v4813 = vsel %vm945, %v4618, 0
      %v4816 = vsel %vm945, %v4620, 0
      %v4819 = vsel %vm945, %v4622, 0
      %v4822 = vsel %vm945, %v4624, 0
      %v4825 = vsel %vm945, %v4626, 0
      %v4828 = vsel %vm945, %v4628, 0
      %4830 = vmatprep.subr.mxu0 0.0
      %4831 = vmatpush1.msra.mxu0 0.0
      %4832 = vmatprep.subr.mxu0 0.0
      %4833 = vmatpush1.msra.mxu0 0.0
      %4834 = vmatprep.subr.mxu0 0.0
      %4835 = vmatpush1.msra.mxu0 0.0
      %4836 = vmatprep.subr.mxu0 0.0
      %4837 = vmatpush1.msra.mxu0 0.0
      %4838 = vmatprep.subr.mxu0 0.0
      %4839 = vmatpush1.msra.mxu0 0.0
      %4840 = vmatprep.subr.mxu0 0.0
      %4841 = vmatpush1.msra.mxu0 0.0
      %4842 = vmatprep.subr.mxu0 0.0
      %4843 = vmatpush1.msra.mxu0 0.0
      %4844 = vmatprep.subr.mxu0 0.0
      %4845 = vmatpush1.msra.mxu0 0.0
      %4846 = vmatprep.subr.mxu0 0.0
      %4847 = vmatpush1.msra.mxu0 %v4797
      %4848 = vmatprep.subr.mxu0 0.0
      %4849 = vmatpush1.msra.mxu0 %v4795
      %4850 = vmatprep.subr.mxu0 0.0
      %4851 = vmatpush1.msra.mxu0 %v4793
      %4852 = vmatprep.subr.mxu0 0.0
      %4853 = vmatpush1.msra.mxu0 %v4791
      %4854 = vmatprep.subr.mxu0 0.0
      %4855 = vmatpush1.msra.mxu0 %v4789
      %4856 = vmatprep.subr.mxu0 0.0
      %4857 = vmatpush1.msra.mxu0 %v4787
      %4858 = vmatprep.subr.mxu0 0.0
      %4859 = vmatpush1.msra.mxu0 %v4785
      %4860 = vmatprep.subr.mxu0 0.0
      %4861 = vmatpush1.msra.mxu0 %v4783
      %4862 = vmatprep.subr.mxu0 0.0
      %4863 = vmatpush2.msra.mxu0 0.0
      %4864 = vmatprep.subr.mxu0 0.0
      %4865 = vmatpush2.msra.mxu0 0.0
      %4866 = vmatprep.subr.mxu0 0.0
      %4867 = vmatpush2.msra.mxu0 0.0
      %4868 = vmatprep.subr.mxu0 0.0
      %4869 = vmatpush2.msra.mxu0 0.0
      %4870 = vmatprep.subr.mxu0 0.0
      %4871 = vmatpush2.msra.mxu0 0.0
      %4872 = vmatprep.subr.mxu0 0.0
      %4873 = vmatpush2.msra.mxu0 0.0
      %4874 = vmatprep.subr.mxu0 0.0
      %4875 = vmatpush2.msra.mxu0 0.0
      %4876 = vmatprep.subr.mxu0 0.0
      %4877 = vmatpush2.msra.mxu0 0.0
      %4878 = vmatprep.subr.mxu0 0.0
      %4879 = vmatpush2.msra.mxu0 0.0
      %4880 = vmatprep.subr.mxu0 0.0
      %4881 = vmatpush2.msra.mxu0 0.0
      %4882 = vmatprep.subr.mxu0 0.0
      %4883 = vmatpush2.msra.mxu0 0.0
      %4884 = vmatprep.subr.mxu0 0.0
      %4885 = vmatpush2.msra.mxu0 0.0
      %4886 = vmatprep.subr.mxu0 0.0
      %4887 = vmatpush2.msra.mxu0 0.0
      %4888 = vmatprep.subr.mxu0 0.0
      %4889 = vmatpush2.msra.mxu0 0.0
      %4890 = vmatprep.subr.mxu0 0.0
      %4891 = vmatpush2.msra.mxu0 0.0
      %4892 = vmatprep.subr.mxu0 0.0
      %4893 = vmatpush2.msra.mxu0 0.0
      %4894 = vmatprep.mubr.f32.mxu0 0.0
      %4895 = vmatmul.mubr.f32.gmra.mxu0 %v4807
      %v4896 = vpop.f32.mrf.mxu0
      %v4897 = vadd.f32 0.0, %v4896
      %v4898 = vpop.f32.mrf.mxu0
      %4899 = vmatprep.mubr.f32.mxu0 0.0
      %4900 = vmatmul.mubr.f32.gmra.mxu0 %v4810
      %v4901 = vpop.f32.mrf.mxu0
      %v4902 = vadd.f32 0.0, %v4901
      %v4903 = vpop.f32.mrf.mxu0
      %4904 = vmatprep.mubr.f32.mxu0 0.0
      %4905 = vmatmul.mubr.f32.gmra.mxu0 %v4813
      %v4906 = vpop.f32.mrf.mxu0
      %v4907 = vadd.f32 0.0, %v4906
      %v4908 = vpop.f32.mrf.mxu0
      %4909 = vmatprep.mubr.f32.mxu0 0.0
      %4910 = vmatmul.mubr.f32.gmra.mxu0 %v4816
      %v4911 = vpop.f32.mrf.mxu0
      %v4912 = vadd.f32 0.0, %v4911
      %v4913 = vpop.f32.mrf.mxu0
      %4914 = vmatprep.mubr.f32.mxu0 0.0
      %4915 = vmatmul.mubr.f32.gmra.mxu0 %v4819
      %v4916 = vpop.f32.mrf.mxu0
      %v4917 = vadd.f32 0.0, %v4916
      %v4918 = vpop.f32.mrf.mxu0
      %4919 = vmatprep.mubr.f32.mxu0 0.0
      %4920 = vmatmul.mubr.f32.gmra.mxu0 %v4822
      %v4921 = vpop.f32.mrf.mxu0
      %v4922 = vadd.f32 0.0, %v4921
      %v4923 = vpop.f32.mrf.mxu0
      %4924 = vmatprep.mubr.f32.mxu0 0.0
      %4925 = vmatmul.mubr.f32.gmra.mxu0 %v4825
      %v4926 = vpop.f32.mrf.mxu0
      %v4927 = vadd.f32 0.0, %v4926
      %v4928 = vpop.f32.mrf.mxu0
      %4929 = vmatprep.mubr.f32.mxu0 0.0
      %4930 = vmatmul.mubr.f32.gmra.mxu0 %v4828
      %v4931 = vpop.f32.mrf.mxu0
      %v4932 = vadd.f32 0.0, %v4931
      %v4933 = vpop.f32.mrf.mxu0
      %4934 = vdwg.mxu0
      %4951 = vrot.lane.b32.xlu0 %v4744, 64
      %v4952 = vpop.permute.xlu0 %4951
      %4953 = vrot.lane.b32.xlu0 %v4749, 64
      %v4954 = vpop.permute.xlu0 %4953
      %4955 = vrot.lane.b32.xlu0 %v4754, 64
      %v4956 = vpop.permute.xlu0 %4955
      %4957 = vrot.lane.b32.xlu0 %v4759, 64
      %v4958 = vpop.permute.xlu0 %4957
      %4959 = vrot.lane.b32.xlu0 %v4764, 64
      %v4960 = vpop.permute.xlu0 %4959
      %4961 = vrot.lane.b32.xlu0 %v4769, 64
      %v4962 = vpop.permute.xlu0 %4961
      %4963 = vrot.lane.b32.xlu0 %v4774, 64
      %v4964 = vpop.permute.xlu0 %4963
      %4965 = vrot.lane.b32.xlu0 %v4779, 64
      %v4966 = vpop.permute.xlu0 %4965
      %4967 = vrot.lane.b32.xlu0 %v4897, 64
      %v4968 = vpop.permute.xlu0 %4967
      %4969 = vrot.lane.b32.xlu0 %v4902, 64
      %v4970 = vpop.permute.xlu0 %4969
      %4971 = vrot.lane.b32.xlu0 %v4907, 64
      %v4972 = vpop.permute.xlu0 %4971
      %4973 = vrot.lane.b32.xlu0 %v4912, 64
      %v4974 = vpop.permute.xlu0 %4973
      %4975 = vrot.lane.b32.xlu0 %v4917, 64
      %v4976 = vpop.permute.xlu0 %4975
      %4977 = vrot.lane.b32.xlu0 %v4922, 64
      %v4978 = vpop.permute.xlu0 %4977
      %4979 = vrot.lane.b32.xlu0 %v4927, 64
      %v4980 = vpop.permute.xlu0 %4979
      %4981 = vrot.lane.b32.xlu0 %v4932, 64
      %v4982 = vpop.permute.xlu0 %4981
      %vm4999 = vcmask 654848
      %5000 = vst.msk [vmem:[%s204] sm:$0xff] %vm4999, %v4952
      %5001 = vst.msk [vmem:[%s204 + $0x8] sm:$0xff] %vm4999, %v4954
      %5002 = vst.msk [vmem:[%s204 + $0x10] sm:$0xff] %vm4999, %v4956
      %5003 = vst.msk [vmem:[%s204 + $0x18] sm:$0xff] %vm4999, %v4958
      %5004 = vst.msk [vmem:[%s204 + $0x20] sm:$0xff] %vm4999, %v4960
      %5005 = vst.msk [vmem:[%s204 + $0x28] sm:$0xff] %vm4999, %v4962
      %5006 = vst.msk [vmem:[%s204 + $0x30] sm:$0xff] %vm4999, %v4964
      %5007 = vst.msk [vmem:[%s204 + $0x38] sm:$0xff] %vm4999, %v4966
      %5008 = vst.msk [vmem:[%s204 + $0x40] sm:$0xff] %vm4999, %v4968
      %5009 = vst.msk [vmem:[%s204 + $0x48] sm:$0xff] %vm4999, %v4970
      %5010 = vst.msk [vmem:[%s204 + $0x50] sm:$0xff] %vm4999, %v4972
      %5011 = vst.msk [vmem:[%s204 + $0x58] sm:$0xff] %vm4999, %v4974
      %5012 = vst.msk [vmem:[%s204 + $0x60] sm:$0xff] %vm4999, %v4976
      %5013 = vst.msk [vmem:[%s204 + $0x68] sm:$0xff] %vm4999, %v4978
      %5014 = vst.msk [vmem:[%s204 + $0x70] sm:$0xff] %vm4999, %v4980
      %5015 = vst.msk [vmem:[%s204 + $0x78] sm:$0xff] %vm4999, %v4982
      %5016 = vrot.lane.b32.xlu0 %v622, 48
      %v5017 = vpop.permute.xlu0 %5016
      %5018 = vrot.lane.b32.xlu0 %v623, 48
      %v5019 = vpop.permute.xlu0 %5018
      %5020 = vrot.lane.b32.xlu0 %v624, 48
      %v5021 = vpop.permute.xlu0 %5020
      %5022 = vrot.lane.b32.xlu0 %v625, 48
      %v5023 = vpop.permute.xlu0 %5022
      %5024 = vrot.lane.b32.xlu0 %v626, 48
      %v5025 = vpop.permute.xlu0 %5024
      %5026 = vrot.lane.b32.xlu0 %v627, 48
      %v5027 = vpop.permute.xlu0 %5026
      %5028 = vrot.lane.b32.xlu0 %v628, 48
      %v5029 = vpop.permute.xlu0 %5028
      %5030 = vrot.lane.b32.xlu0 %v629, 48
      %v5031 = vpop.permute.xlu0 %5030
      %5032 = vrot.lane.b32.xlu0 %v385, 48
      %v5033 = vpop.permute.xlu0 %5032
      %5034 = vrot.lane.b32.xlu0 %v391, 48
      %v5035 = vpop.permute.xlu0 %5034
      %5036 = vrot.lane.b32.xlu0 %v397, 48
      %v5037 = vpop.permute.xlu0 %5036
      %5038 = vrot.lane.b32.xlu0 %v403, 48
      %v5039 = vpop.permute.xlu0 %5038
      %5040 = vrot.lane.b32.xlu0 %v409, 48
      %v5041 = vpop.permute.xlu0 %5040
      %5042 = vrot.lane.b32.xlu0 %v415, 48
      %v5043 = vpop.permute.xlu0 %5042
      %5044 = vrot.lane.b32.xlu0 %v421, 48
      %v5045 = vpop.permute.xlu0 %5044
      %5046 = vrot.lane.b32.xlu0 %v427, 48
      %v5047 = vpop.permute.xlu0 %5046
      %v5048 = vsel %vm638, %v5017, 0
      %v5050 = vsel %vm638, %v5019, 0
      %v5052 = vsel %vm638, %v5021, 0
      %v5054 = vsel %vm638, %v5023, 0
      %v5056 = vsel %vm638, %v5025, 0
      %v5058 = vsel %vm638, %v5027, 0
      %v5060 = vsel %vm638, %v5029, 0
      %v5062 = vsel %vm638, %v5031, 0
      %v5064 = vsel %vm638, %v5033, 0
      %v5066 = vsel %vm638, %v5035, 0
      %v5068 = vsel %vm638, %v5037, 0
      %v5070 = vsel %vm638, %v5039, 0
      %v5072 = vsel %vm638, %v5041, 0
      %v5074 = vsel %vm638, %v5043, 0
      %v5076 = vsel %vm638, %v5045, 0
      %v5078 = vsel %vm638, %v5047, 0
      %5080 = vmatprep.subr.mxu0 0.0
      %5081 = vmatpush1.xpose.msra.mxu0 0.0
      %5082 = vmatprep.subr.mxu0 0.0
      %5083 = vmatpush1.xpose.msra.mxu0 0.0
      %5084 = vmatprep.subr.mxu0 0.0
      %5085 = vmatpush1.xpose.msra.mxu0 0.0
      %5086 = vmatprep.subr.mxu0 0.0
      %5087 = vmatpush1.xpose.msra.mxu0 0.0
      %5088 = vmatprep.subr.mxu0 0.0
      %5089 = vmatpush1.xpose.msra.mxu0 0.0
      %5090 = vmatprep.subr.mxu0 0.0
      %5091 = vmatpush1.xpose.msra.mxu0 0.0
      %5092 = vmatprep.subr.mxu0 0.0
      %5093 = vmatpush1.xpose.msra.mxu0 0.0
      %5094 = vmatprep.subr.mxu0 0.0
      %5095 = vmatpush1.xpose.msra.mxu0 0.0
      %5096 = vmatprep.subr.mxu0 0.0
      %5097 = vmatpush1.xpose.msra.mxu0 %v5078
      %5098 = vmatprep.subr.mxu0 0.0
      %5099 = vmatpush1.xpose.msra.mxu0 %v5076
      %5100 = vmatprep.subr.mxu0 0.0
      %5101 = vmatpush1.xpose.msra.mxu0 %v5074
      %5102 = vmatprep.subr.mxu0 0.0
      %5103 = vmatpush1.xpose.msra.mxu0 %v5072
      %5104 = vmatprep.subr.mxu0 0.0
      %5105 = vmatpush1.xpose.msra.mxu0 %v5070
      %5106 = vmatprep.subr.mxu0 0.0
      %5107 = vmatpush1.xpose.msra.mxu0 %v5068
      %5108 = vmatprep.subr.mxu0 0.0
      %5109 = vmatpush1.xpose.msra.mxu0 %v5066
      %5110 = vmatprep.subr.mxu0 0.0
      %5111 = vmatpush1.xpose.msra.mxu0 %v5064
      %5112 = vmatprep.subr.mxu0 0.0
      %5113 = vmatpush2.xpose.msra.mxu0 0.0
      %5114 = vmatprep.subr.mxu0 0.0
      %5115 = vmatpush2.xpose.msra.mxu0 0.0
      %5116 = vmatprep.subr.mxu0 0.0
      %5117 = vmatpush2.xpose.msra.mxu0 0.0
      %5118 = vmatprep.subr.mxu0 0.0
      %5119 = vmatpush2.xpose.msra.mxu0 0.0
      %5120 = vmatprep.subr.mxu0 0.0
      %5121 = vmatpush2.xpose.msra.mxu0 0.0
      %5122 = vmatprep.subr.mxu0 0.0
      %5123 = vmatpush2.xpose.msra.mxu0 0.0
      %5124 = vmatprep.subr.mxu0 0.0
      %5125 = vmatpush2.xpose.msra.mxu0 0.0
      %5126 = vmatprep.subr.mxu0 0.0
      %5127 = vmatpush2.xpose.msra.mxu0 0.0
      %5128 = vmatprep.subr.mxu0 0.0
      %5129 = vmatpush2.xpose.msra.mxu0 0.0
      %5130 = vmatprep.subr.mxu0 0.0
      %5131 = vmatpush2.xpose.msra.mxu0 0.0
      %5132 = vmatprep.subr.mxu0 0.0
      %5133 = vmatpush2.xpose.msra.mxu0 0.0
      %5134 = vmatprep.subr.mxu0 0.0
      %5135 = vmatpush2.xpose.msra.mxu0 0.0
      %5136 = vmatprep.subr.mxu0 0.0
      %5137 = vmatpush2.xpose.msra.mxu0 0.0
      %5138 = vmatprep.subr.mxu0 0.0
      %5139 = vmatpush2.xpose.msra.mxu0 0.0
      %5140 = vmatprep.subr.mxu0 0.0
      %5141 = vmatpush2.xpose.msra.mxu0 0.0
      %5142 = vmatprep.subr.mxu0 0.0
      %5143 = vmatpush2.xpose.msra.mxu0 0.0
      %5144 = vmatprep.mubr.f32.mxu0 0.0
      %5145 = vmatmul.mubr.f32.gmra.mxu0 %v5048
      %v5146 = vpop.f32.mrf.mxu0
      %v5147 = vadd.f32 0.0, %v5146
      %v5148 = vpop.f32.mrf.mxu0
      %5149 = vmatprep.mubr.f32.mxu0 0.0
      %5150 = vmatmul.mubr.f32.gmra.mxu0 %v5050
      %v5151 = vpop.f32.mrf.mxu0
      %v5152 = vadd.f32 0.0, %v5151
      %v5153 = vpop.f32.mrf.mxu0
      %5154 = vmatprep.mubr.f32.mxu0 0.0
      %5155 = vmatmul.mubr.f32.gmra.mxu0 %v5052
      %v5156 = vpop.f32.mrf.mxu0
      %v5157 = vadd.f32 0.0, %v5156
      %v5158 = vpop.f32.mrf.mxu0
      %5159 = vmatprep.mubr.f32.mxu0 0.0
      %5160 = vmatmul.mubr.f32.gmra.mxu0 %v5054
      %v5161 = vpop.f32.mrf.mxu0
      %v5162 = vadd.f32 0.0, %v5161
      %v5163 = vpop.f32.mrf.mxu0
      %5164 = vmatprep.mubr.f32.mxu0 0.0
      %5165 = vmatmul.mubr.f32.gmra.mxu0 %v5056
      %v5166 = vpop.f32.mrf.mxu0
      %v5167 = vadd.f32 0.0, %v5166
      %v5168 = vpop.f32.mrf.mxu0
      %5169 = vmatprep.mubr.f32.mxu0 0.0
      %5170 = vmatmul.mubr.f32.gmra.mxu0 %v5058
      %v5171 = vpop.f32.mrf.mxu0
      %v5172 = vadd.f32 0.0, %v5171
      %v5173 = vpop.f32.mrf.mxu0
      %5174 = vmatprep.mubr.f32.mxu0 0.0
      %5175 = vmatmul.mubr.f32.gmra.mxu0 %v5060
      %v5176 = vpop.f32.mrf.mxu0
      %v5177 = vadd.f32 0.0, %v5176
      %v5178 = vpop.f32.mrf.mxu0
      %5179 = vmatprep.mubr.f32.mxu0 0.0
      %5180 = vmatmul.mubr.f32.gmra.mxu0 %v5062
      %v5181 = vpop.f32.mrf.mxu0
      %v5182 = vadd.f32 0.0, %v5181
      %v5183 = vpop.f32.mrf.mxu0
      %5184 = vdwg.mxu0
      %5185 = vrot.lane.b32.xlu0 %v630, 48
      %v5186 = vpop.permute.xlu0 %5185
      %5187 = vrot.lane.b32.xlu0 %v631, 48
      %v5188 = vpop.permute.xlu0 %5187
      %5189 = vrot.lane.b32.xlu0 %v632, 48
      %v5190 = vpop.permute.xlu0 %5189
      %5191 = vrot.lane.b32.xlu0 %v633, 48
      %v5192 = vpop.permute.xlu0 %5191
      %5193 = vrot.lane.b32.xlu0 %v634, 48
      %v5194 = vpop.permute.xlu0 %5193
      %5195 = vrot.lane.b32.xlu0 %v635, 48
      %v5196 = vpop.permute.xlu0 %5195
      %5197 = vrot.lane.b32.xlu0 %v636, 48
      %v5198 = vpop.permute.xlu0 %5197
      %5199 = vrot.lane.b32.xlu0 %v637, 48
      %v5200 = vpop.permute.xlu0 %5199
      %5201 = vrot.lane.b32.xlu0 %v433, 48
      %v5202 = vpop.permute.xlu0 %5201
      %5203 = vrot.lane.b32.xlu0 %v439, 48
      %v5204 = vpop.permute.xlu0 %5203
      %5205 = vrot.lane.b32.xlu0 %v445, 48
      %v5206 = vpop.permute.xlu0 %5205
      %5207 = vrot.lane.b32.xlu0 %v451, 48
      %v5208 = vpop.permute.xlu0 %5207
      %5209 = vrot.lane.b32.xlu0 %v457, 48
      %v5210 = vpop.permute.xlu0 %5209
      %5211 = vrot.lane.b32.xlu0 %v463, 48
      %v5212 = vpop.permute.xlu0 %5211
      %5213 = vrot.lane.b32.xlu0 %v469, 48
      %v5214 = vpop.permute.xlu0 %5213
      %5215 = vrot.lane.b32.xlu0 %v475, 48
      %v5216 = vpop.permute.xlu0 %5215
      %v5217 = vsel %vm638, %v5186, 0
      %v5219 = vsel %vm638, %v5188, 0
      %v5221 = vsel %vm638, %v5190, 0
      %v5223 = vsel %vm638, %v5192, 0
      %v5225 = vsel %vm638, %v5194, 0
      %v5227 = vsel %vm638, %v5196, 0
      %v5229 = vsel %vm638, %v5198, 0
      %v5231 = vsel %vm638, %v5200, 0
      %v5233 = vsel %vm638, %v5202, 0
      %v5235 = vsel %vm638, %v5204, 0
      %v5237 = vsel %vm638, %v5206, 0
      %v5239 = vsel %vm638, %v5208, 0
      %v5241 = vsel %vm638, %v5210, 0
      %v5243 = vsel %vm638, %v5212, 0
      %v5245 = vsel %vm638, %v5214, 0
      %v5247 = vsel %vm638, %v5216, 0
      %5249 = vmatprep.subr.mxu0 0.0
      %5250 = vmatpush1.xpose.msra.mxu0 0.0
      %5251 = vmatprep.subr.mxu0 0.0
      %5252 = vmatpush1.xpose.msra.mxu0 0.0
      %5253 = vmatprep.subr.mxu0 0.0
      %5254 = vmatpush1.xpose.msra.mxu0 0.0
      %5255 = vmatprep.subr.mxu0 0.0
      %5256 = vmatpush1.xpose.msra.mxu0 0.0
      %5257 = vmatprep.subr.mxu0 0.0
      %5258 = vmatpush1.xpose.msra.mxu0 0.0
      %5259 = vmatprep.subr.mxu0 0.0
      %5260 = vmatpush1.xpose.msra.mxu0 0.0
      %5261 = vmatprep.subr.mxu0 0.0
      %5262 = vmatpush1.xpose.msra.mxu0 0.0
      %5263 = vmatprep.subr.mxu0 0.0
      %5264 = vmatpush1.xpose.msra.mxu0 0.0
      %5265 = vmatprep.subr.mxu0 0.0
      %5266 = vmatpush1.xpose.msra.mxu0 %v5247
      %5267 = vmatprep.subr.mxu0 0.0
      %5268 = vmatpush1.xpose.msra.mxu0 %v5245
      %5269 = vmatprep.subr.mxu0 0.0
      %5270 = vmatpush1.xpose.msra.mxu0 %v5243
      %5271 = vmatprep.subr.mxu0 0.0
      %5272 = vmatpush1.xpose.msra.mxu0 %v5241
      %5273 = vmatprep.subr.mxu0 0.0
      %5274 = vmatpush1.xpose.msra.mxu0 %v5239
      %5275 = vmatprep.subr.mxu0 0.0
      %5276 = vmatpush1.xpose.msra.mxu0 %v5237
      %5277 = vmatprep.subr.mxu0 0.0
      %5278 = vmatpush1.xpose.msra.mxu0 %v5235
      %5279 = vmatprep.subr.mxu0 0.0
      %5280 = vmatpush1.xpose.msra.mxu0 %v5233
      %5281 = vmatprep.subr.mxu0 0.0
      %5282 = vmatpush2.xpose.msra.mxu0 0.0
      %5283 = vmatprep.subr.mxu0 0.0
      %5284 = vmatpush2.xpose.msra.mxu0 0.0
      %5285 = vmatprep.subr.mxu0 0.0
      %5286 = vmatpush2.xpose.msra.mxu0 0.0
      %5287 = vmatprep.subr.mxu0 0.0
      %5288 = vmatpush2.xpose.msra.mxu0 0.0
      %5289 = vmatprep.subr.mxu0 0.0
      %5290 = vmatpush2.xpose.msra.mxu0 0.0
      %5291 = vmatprep.subr.mxu0 0.0
      %5292 = vmatpush2.xpose.msra.mxu0 0.0
      %5293 = vmatprep.subr.mxu0 0.0
      %5294 = vmatpush2.xpose.msra.mxu0 0.0
      %5295 = vmatprep.subr.mxu0 0.0
      %5296 = vmatpush2.xpose.msra.mxu0 0.0
      %5297 = vmatprep.subr.mxu0 0.0
      %5298 = vmatpush2.xpose.msra.mxu0 0.0
      %5299 = vmatprep.subr.mxu0 0.0
      %5300 = vmatpush2.xpose.msra.mxu0 0.0
      %5301 = vmatprep.subr.mxu0 0.0
      %5302 = vmatpush2.xpose.msra.mxu0 0.0
      %5303 = vmatprep.subr.mxu0 0.0
      %5304 = vmatpush2.xpose.msra.mxu0 0.0
      %5305 = vmatprep.subr.mxu0 0.0
      %5306 = vmatpush2.xpose.msra.mxu0 0.0
      %5307 = vmatprep.subr.mxu0 0.0
      %5308 = vmatpush2.xpose.msra.mxu0 0.0
      %5309 = vmatprep.subr.mxu0 0.0
      %5310 = vmatpush2.xpose.msra.mxu0 0.0
      %5311 = vmatprep.subr.mxu0 0.0
      %5312 = vmatpush2.xpose.msra.mxu0 0.0
      %5313 = vmatprep.mubr.f32.mxu0 0.0
      %5314 = vmatmul.mubr.f32.gmra.mxu0 %v5217
      %v5315 = vpop.f32.mrf.mxu0
      %v5316 = vadd.f32 0.0, %v5315
      %v5317 = vpop.f32.mrf.mxu0
      %5318 = vmatprep.mubr.f32.mxu0 0.0
      %5319 = vmatmul.mubr.f32.gmra.mxu0 %v5219
      %v5320 = vpop.f32.mrf.mxu0
      %v5321 = vadd.f32 0.0, %v5320
      %v5322 = vpop.f32.mrf.mxu0
      %5323 = vmatprep.mubr.f32.mxu0 0.0
      %5324 = vmatmul.mubr.f32.gmra.mxu0 %v5221
      %v5325 = vpop.f32.mrf.mxu0
      %v5326 = vadd.f32 0.0, %v5325
      %v5327 = vpop.f32.mrf.mxu0
      %5328 = vmatprep.mubr.f32.mxu0 0.0
      %5329 = vmatmul.mubr.f32.gmra.mxu0 %v5223
      %v5330 = vpop.f32.mrf.mxu0
      %v5331 = vadd.f32 0.0, %v5330
      %v5332 = vpop.f32.mrf.mxu0
      %5333 = vmatprep.mubr.f32.mxu0 0.0
      %5334 = vmatmul.mubr.f32.gmra.mxu0 %v5225
      %v5335 = vpop.f32.mrf.mxu0
      %v5336 = vadd.f32 0.0, %v5335
      %v5337 = vpop.f32.mrf.mxu0
      %5338 = vmatprep.mubr.f32.mxu0 0.0
      %5339 = vmatmul.mubr.f32.gmra.mxu0 %v5227
      %v5340 = vpop.f32.mrf.mxu0
      %v5341 = vadd.f32 0.0, %v5340
      %v5342 = vpop.f32.mrf.mxu0
      %5343 = vmatprep.mubr.f32.mxu0 0.0
      %5344 = vmatmul.mubr.f32.gmra.mxu0 %v5229
      %v5345 = vpop.f32.mrf.mxu0
      %v5346 = vadd.f32 0.0, %v5345
      %v5347 = vpop.f32.mrf.mxu0
      %5348 = vmatprep.mubr.f32.mxu0 0.0
      %5349 = vmatmul.mubr.f32.gmra.mxu0 %v5231
      %v5350 = vpop.f32.mrf.mxu0
      %v5351 = vadd.f32 0.0, %v5350
      %v5352 = vpop.f32.mrf.mxu0
      %5353 = vdwg.mxu0
      %v5354 = vsel %vm945, %v5147, -inf
      %5355 = vmax.xlane.f32.xlu0 %v5354
      %v5356 = vpop.xlane.xlu0 %5355
      %v5357 = vsel %vm945, %v5152, -inf
      %5358 = vmax.xlane.f32.xlu0 %v5357
      %v5359 = vpop.xlane.xlu0 %5358
      %v5360 = vsel %vm945, %v5157, -inf
      %5361 = vmax.xlane.f32.xlu0 %v5360
      %v5362 = vpop.xlane.xlu0 %5361
      %v5363 = vsel %vm945, %v5162, -inf
      %5364 = vmax.xlane.f32.xlu0 %v5363
      %v5365 = vpop.xlane.xlu0 %5364
      %v5366 = vsel %vm945, %v5167, -inf
      %5367 = vmax.xlane.f32.xlu0 %v5366
      %v5368 = vpop.xlane.xlu0 %5367
      %v5369 = vsel %vm945, %v5172, -inf
      %5370 = vmax.xlane.f32.xlu0 %v5369
      %v5371 = vpop.xlane.xlu0 %5370
      %v5372 = vsel %vm945, %v5177, -inf
      %5373 = vmax.xlane.f32.xlu0 %v5372
      %v5374 = vpop.xlane.xlu0 %5373
      %v5375 = vsel %vm945, %v5182, -inf
      %5376 = vmax.xlane.f32.xlu0 %v5375
      %v5377 = vpop.xlane.xlu0 %5376
      %v5378 = vsel %vm945, %v5316, -inf
      %5379 = vmax.xlane.f32.xlu0 %v5378
      %v5380 = vpop.xlane.xlu0 %5379
      %v5381 = vsel %vm945, %v5321, -inf
      %5382 = vmax.xlane.f32.xlu0 %v5381
      %v5383 = vpop.xlane.xlu0 %5382
      %v5384 = vsel %vm945, %v5326, -inf
      %5385 = vmax.xlane.f32.xlu0 %v5384
      %v5386 = vpop.xlane.xlu0 %5385
      %v5387 = vsel %vm945, %v5331, -inf
      %5388 = vmax.xlane.f32.xlu0 %v5387
      %v5389 = vpop.xlane.xlu0 %5388
      %v5390 = vsel %vm945, %v5336, -inf
      %5391 = vmax.xlane.f32.xlu0 %v5390
      %v5392 = vpop.xlane.xlu0 %5391
      %v5393 = vsel %vm945, %v5341, -inf
      %5394 = vmax.xlane.f32.xlu0 %v5393
      %v5395 = vpop.xlane.xlu0 %5394
      %v5396 = vsel %vm945, %v5346, -inf
      %5397 = vmax.xlane.f32.xlu0 %v5396
      %v5398 = vpop.xlane.xlu0 %5397
      %v5399 = vsel %vm945, %v5351, -inf
      %5400 = vmax.xlane.f32.xlu0 %v5399
      %v5401 = vpop.xlane.xlu0 %5400
      %v5402 = vsub.f32 %v5147, %v5356
      %v5403 = vsub.f32 %v5152, %v5359
      %v5404 = vsub.f32 %v5157, %v5362
      %v5405 = vsub.f32 %v5162, %v5365
      %v5406 = vsub.f32 %v5167, %v5368
      %v5407 = vsub.f32 %v5172, %v5371
      %v5408 = vsub.f32 %v5177, %v5374
      %v5409 = vsub.f32 %v5182, %v5377
      %v5410 = vsub.f32 %v5316, %v5380
      %v5411 = vsub.f32 %v5321, %v5383
      %v5412 = vsub.f32 %v5326, %v5386
      %v5413 = vsub.f32 %v5331, %v5389
      %v5414 = vsub.f32 %v5336, %v5392
      %v5415 = vsub.f32 %v5341, %v5395
      %v5416 = vsub.f32 %v5346, %v5398
      %v5417 = vsub.f32 %v5351, %v5401
      %v5418 = vmul.f32 %v5402, 1.442695
      %v5419 = vpow.pop %v5418
      %v5420 = vmul.f32 %v5403, 1.442695
      %v5421 = vpow.pop %v5420
      %v5422 = vmul.f32 %v5404, 1.442695
      %v5423 = vpow.pop %v5422
      %v5424 = vmul.f32 %v5405, 1.442695
      %v5425 = vpow.pop %v5424
      %v5426 = vmul.f32 %v5406, 1.442695
      %v5427 = vpow.pop %v5426
      %v5428 = vmul.f32 %v5407, 1.442695
      %v5429 = vpow.pop %v5428
      %v5430 = vmul.f32 %v5408, 1.442695
      %v5431 = vpow.pop %v5430
      %v5432 = vmul.f32 %v5409, 1.442695
      %v5433 = vpow.pop %v5432
      %v5434 = vmul.f32 %v5410, 1.442695
      %v5435 = vpow.pop %v5434
      %v5436 = vmul.f32 %v5411, 1.442695
      %v5437 = vpow.pop %v5436
      %v5438 = vmul.f32 %v5412, 1.442695
      %v5439 = vpow.pop %v5438
      %v5440 = vmul.f32 %v5413, 1.442695
      %v5441 = vpow.pop %v5440
      %v5442 = vmul.f32 %v5414, 1.442695
      %v5443 = vpow.pop %v5442
      %v5444 = vmul.f32 %v5415, 1.442695
      %v5445 = vpow.pop %v5444
      %v5446 = vmul.f32 %v5416, 1.442695
      %v5447 = vpow.pop %v5446
      %v5448 = vmul.f32 %v5417, 1.442695
      %v5449 = vpow.pop %v5448
      %v5450 = vsel %vm945, %v5419, 0.0
      %5451 = vadd.xlane.f32.xlu0 %v5450
      %v5452 = vpop.xlane.xlu0 %5451
      %v5453 = vsel %vm945, %v5421, 0.0
      %5454 = vadd.xlane.f32.xlu0 %v5453
      %v5455 = vpop.xlane.xlu0 %5454
      %v5456 = vsel %vm945, %v5423, 0.0
      %5457 = vadd.xlane.f32.xlu0 %v5456
      %v5458 = vpop.xlane.xlu0 %5457
      %v5459 = vsel %vm945, %v5425, 0.0
      %5460 = vadd.xlane.f32.xlu0 %v5459
      %v5461 = vpop.xlane.xlu0 %5460
      %v5462 = vsel %vm945, %v5427, 0.0
      %5463 = vadd.xlane.f32.xlu0 %v5462
      %v5464 = vpop.xlane.xlu0 %5463
      %v5465 = vsel %vm945, %v5429, 0.0
      %5466 = vadd.xlane.f32.xlu0 %v5465
      %v5467 = vpop.xlane.xlu0 %5466
      %v5468 = vsel %vm945, %v5431, 0.0
      %5469 = vadd.xlane.f32.xlu0 %v5468
      %v5470 = vpop.xlane.xlu0 %5469
      %v5471 = vsel %vm945, %v5433, 0.0
      %5472 = vadd.xlane.f32.xlu0 %v5471
      %v5473 = vpop.xlane.xlu0 %5472
      %v5474 = vsel %vm945, %v5435, 0.0
      %5475 = vadd.xlane.f32.xlu0 %v5474
      %v5476 = vpop.xlane.xlu0 %5475
      %v5477 = vsel %vm945, %v5437, 0.0
      %5478 = vadd.xlane.f32.xlu0 %v5477
      %v5479 = vpop.xlane.xlu0 %5478
      %v5480 = vsel %vm945, %v5439, 0.0
      %5481 = vadd.xlane.f32.xlu0 %v5480
      %v5482 = vpop.xlane.xlu0 %5481
      %v5483 = vsel %vm945, %v5441, 0.0
      %5484 = vadd.xlane.f32.xlu0 %v5483
      %v5485 = vpop.xlane.xlu0 %5484
      %v5486 = vsel %vm945, %v5443, 0.0
      %5487 = vadd.xlane.f32.xlu0 %v5486
      %v5488 = vpop.xlane.xlu0 %5487
      %v5489 = vsel %vm945, %v5445, 0.0
      %5490 = vadd.xlane.f32.xlu0 %v5489
      %v5491 = vpop.xlane.xlu0 %5490
      %v5492 = vsel %vm945, %v5447, 0.0
      %5493 = vadd.xlane.f32.xlu0 %v5492
      %v5494 = vpop.xlane.xlu0 %5493
      %v5495 = vsel %vm945, %v5449, 0.0
      %5496 = vadd.xlane.f32.xlu0 %v5495
      %v5497 = vpop.xlane.xlu0 %5496
      %v5498 = vrcp.pop %v5452
      %v5499 = vmul.f32 %v5419, %v5498
      %v5500 = vrcp.pop %v5455
      %v5501 = vmul.f32 %v5421, %v5500
      %v5502 = vrcp.pop %v5458
      %v5503 = vmul.f32 %v5423, %v5502
      %v5504 = vrcp.pop %v5461
      %v5505 = vmul.f32 %v5425, %v5504
      %v5506 = vrcp.pop %v5464
      %v5507 = vmul.f32 %v5427, %v5506
      %v5508 = vrcp.pop %v5467
      %v5509 = vmul.f32 %v5429, %v5508
      %v5510 = vrcp.pop %v5470
      %v5511 = vmul.f32 %v5431, %v5510
      %v5512 = vrcp.pop %v5473
      %v5513 = vmul.f32 %v5433, %v5512
      %v5514 = vrcp.pop %v5476
      %v5515 = vmul.f32 %v5435, %v5514
      %v5516 = vrcp.pop %v5479
      %v5517 = vmul.f32 %v5437, %v5516
      %v5518 = vrcp.pop %v5482
      %v5519 = vmul.f32 %v5439, %v5518
      %v5520 = vrcp.pop %v5485
      %v5521 = vmul.f32 %v5441, %v5520
      %v5522 = vrcp.pop %v5488
      %v5523 = vmul.f32 %v5443, %v5522
      %v5524 = vrcp.pop %v5491
      %v5525 = vmul.f32 %v5445, %v5524
      %v5526 = vrcp.pop %v5494
      %v5527 = vmul.f32 %v5447, %v5526
      %v5528 = vrcp.pop %v5497
      %v5529 = vmul.f32 %v5449, %v5528
      %5530 = vrot.lane.b32.xlu0 %v544, 48
      %v5531 = vpop.permute.xlu0 %5530
      %5532 = vrot.lane.b32.xlu0 %v549, 48
      %v5533 = vpop.permute.xlu0 %5532
      %5534 = vrot.lane.b32.xlu0 %v554, 48
      %v5535 = vpop.permute.xlu0 %5534
      %5536 = vrot.lane.b32.xlu0 %v559, 48
      %v5537 = vpop.permute.xlu0 %5536
      %5538 = vrot.lane.b32.xlu0 %v564, 48
      %v5539 = vpop.permute.xlu0 %5538
      %5540 = vrot.lane.b32.xlu0 %v569, 48
      %v5541 = vpop.permute.xlu0 %5540
      %5542 = vrot.lane.b32.xlu0 %v574, 48
      %v5543 = vpop.permute.xlu0 %5542
      %5544 = vrot.lane.b32.xlu0 %v579, 48
      %v5545 = vpop.permute.xlu0 %5544
      %v5555 = vsel %vm945, %v5499, 0
      %v5558 = vsel %vm945, %v5501, 0
      %v5561 = vsel %vm945, %v5503, 0
      %v5564 = vsel %vm945, %v5505, 0
      %v5567 = vsel %vm945, %v5507, 0
      %v5570 = vsel %vm945, %v5509, 0
      %v5573 = vsel %vm945, %v5511, 0
      %v5576 = vsel %vm945, %v5513, 0
      %5578 = vmatprep.subr.mxu0 0.0
      %5579 = vmatpush1.msra.mxu0 0.0
      %5580 = vmatprep.subr.mxu0 0.0
      %5581 = vmatpush1.msra.mxu0 0.0
      %5582 = vmatprep.subr.mxu0 0.0
      %5583 = vmatpush1.msra.mxu0 0.0
      %5584 = vmatprep.subr.mxu0 0.0
      %5585 = vmatpush1.msra.mxu0 0.0
      %5586 = vmatprep.subr.mxu0 0.0
      %5587 = vmatpush1.msra.mxu0 0.0
      %5588 = vmatprep.subr.mxu0 0.0
      %5589 = vmatpush1.msra.mxu0 0.0
      %5590 = vmatprep.subr.mxu0 0.0
      %5591 = vmatpush1.msra.mxu0 0.0
      %5592 = vmatprep.subr.mxu0 0.0
      %5593 = vmatpush1.msra.mxu0 0.0
      %5594 = vmatprep.subr.mxu0 0.0
      %5595 = vmatpush1.msra.mxu0 %v5545
      %5596 = vmatprep.subr.mxu0 0.0
      %5597 = vmatpush1.msra.mxu0 %v5543
      %5598 = vmatprep.subr.mxu0 0.0
      %5599 = vmatpush1.msra.mxu0 %v5541
      %5600 = vmatprep.subr.mxu0 0.0
      %5601 = vmatpush1.msra.mxu0 %v5539
      %5602 = vmatprep.subr.mxu0 0.0
      %5603 = vmatpush1.msra.mxu0 %v5537
      %5604 = vmatprep.subr.mxu0 0.0
      %5605 = vmatpush1.msra.mxu0 %v5535
      %5606 = vmatprep.subr.mxu0 0.0
      %5607 = vmatpush1.msra.mxu0 %v5533
      %5608 = vmatprep.subr.mxu0 0.0
      %5609 = vmatpush1.msra.mxu0 %v5531
      %5610 = vmatprep.subr.mxu0 0.0
      %5611 = vmatpush2.msra.mxu0 0.0
      %5612 = vmatprep.subr.mxu0 0.0
      %5613 = vmatpush2.msra.mxu0 0.0
      %5614 = vmatprep.subr.mxu0 0.0
      %5615 = vmatpush2.msra.mxu0 0.0
      %5616 = vmatprep.subr.mxu0 0.0
      %5617 = vmatpush2.msra.mxu0 0.0
      %5618 = vmatprep.subr.mxu0 0.0
      %5619 = vmatpush2.msra.mxu0 0.0
      %5620 = vmatprep.subr.mxu0 0.0
      %5621 = vmatpush2.msra.mxu0 0.0
      %5622 = vmatprep.subr.mxu0 0.0
      %5623 = vmatpush2.msra.mxu0 0.0
      %5624 = vmatprep.subr.mxu0 0.0
      %5625 = vmatpush2.msra.mxu0 0.0
      %5626 = vmatprep.subr.mxu0 0.0
      %5627 = vmatpush2.msra.mxu0 0.0
      %5628 = vmatprep.subr.mxu0 0.0
      %5629 = vmatpush2.msra.mxu0 0.0
      %5630 = vmatprep.subr.mxu0 0.0
      %5631 = vmatpush2.msra.mxu0 0.0
      %5632 = vmatprep.subr.mxu0 0.0
      %5633 = vmatpush2.msra.mxu0 0.0
      %5634 = vmatprep.subr.mxu0 0.0
      %5635 = vmatpush2.msra.mxu0 0.0
      %5636 = vmatprep.subr.mxu0 0.0
      %5637 = vmatpush2.msra.mxu0 0.0
      %5638 = vmatprep.subr.mxu0 0.0
      %5639 = vmatpush2.msra.mxu0 0.0
      %5640 = vmatprep.subr.mxu0 0.0
      %5641 = vmatpush2.msra.mxu0 0.0
      %5642 = vmatprep.mubr.f32.mxu0 0.0
      %5643 = vmatmul.mubr.f32.gmra.mxu0 %v5555
      %v5644 = vpop.f32.mrf.mxu0
      %v5645 = vadd.f32 0.0, %v5644
      %v5646 = vpop.f32.mrf.mxu0
      %5647 = vmatprep.mubr.f32.mxu0 0.0
      %5648 = vmatmul.mubr.f32.gmra.mxu0 %v5558
      %v5649 = vpop.f32.mrf.mxu0
      %v5650 = vadd.f32 0.0, %v5649
      %v5651 = vpop.f32.mrf.mxu0
      %5652 = vmatprep.mubr.f32.mxu0 0.0
      %5653 = vmatmul.mubr.f32.gmra.mxu0 %v5561
      %v5654 = vpop.f32.mrf.mxu0
      %v5655 = vadd.f32 0.0, %v5654
      %v5656 = vpop.f32.mrf.mxu0
      %5657 = vmatprep.mubr.f32.mxu0 0.0
      %5658 = vmatmul.mubr.f32.gmra.mxu0 %v5564
      %v5659 = vpop.f32.mrf.mxu0
      %v5660 = vadd.f32 0.0, %v5659
      %v5661 = vpop.f32.mrf.mxu0
      %5662 = vmatprep.mubr.f32.mxu0 0.0
      %5663 = vmatmul.mubr.f32.gmra.mxu0 %v5567
      %v5664 = vpop.f32.mrf.mxu0
      %v5665 = vadd.f32 0.0, %v5664
      %v5666 = vpop.f32.mrf.mxu0
      %5667 = vmatprep.mubr.f32.mxu0 0.0
      %5668 = vmatmul.mubr.f32.gmra.mxu0 %v5570
      %v5669 = vpop.f32.mrf.mxu0
      %v5670 = vadd.f32 0.0, %v5669
      %v5671 = vpop.f32.mrf.mxu0
      %5672 = vmatprep.mubr.f32.mxu0 0.0
      %5673 = vmatmul.mubr.f32.gmra.mxu0 %v5573
      %v5674 = vpop.f32.mrf.mxu0
      %v5675 = vadd.f32 0.0, %v5674
      %v5676 = vpop.f32.mrf.mxu0
      %5677 = vmatprep.mubr.f32.mxu0 0.0
      %5678 = vmatmul.mubr.f32.gmra.mxu0 %v5576
      %v5679 = vpop.f32.mrf.mxu0
      %v5680 = vadd.f32 0.0, %v5679
      %v5681 = vpop.f32.mrf.mxu0
      %5682 = vdwg.mxu0
      %5683 = vrot.lane.b32.xlu0 %v584, 48
      %v5684 = vpop.permute.xlu0 %5683
      %5685 = vrot.lane.b32.xlu0 %v589, 48
      %v5686 = vpop.permute.xlu0 %5685
      %5687 = vrot.lane.b32.xlu0 %v594, 48
      %v5688 = vpop.permute.xlu0 %5687
      %5689 = vrot.lane.b32.xlu0 %v599, 48
      %v5690 = vpop.permute.xlu0 %5689
      %5691 = vrot.lane.b32.xlu0 %v604, 48
      %v5692 = vpop.permute.xlu0 %5691
      %5693 = vrot.lane.b32.xlu0 %v609, 48
      %v5694 = vpop.permute.xlu0 %5693
      %5695 = vrot.lane.b32.xlu0 %v614, 48
      %v5696 = vpop.permute.xlu0 %5695
      %5697 = vrot.lane.b32.xlu0 %v619, 48
      %v5698 = vpop.permute.xlu0 %5697
      %v5708 = vsel %vm945, %v5515, 0
      %v5711 = vsel %vm945, %v5517, 0
      %v5714 = vsel %vm945, %v5519, 0
      %v5717 = vsel %vm945, %v5521, 0
      %v5720 = vsel %vm945, %v5523, 0
      %v5723 = vsel %vm945, %v5525, 0
      %v5726 = vsel %vm945, %v5527, 0
      %v5729 = vsel %vm945, %v5529, 0
      %5731 = vmatprep.subr.mxu0 0.0
      %5732 = vmatpush1.msra.mxu0 0.0
      %5733 = vmatprep.subr.mxu0 0.0
      %5734 = vmatpush1.msra.mxu0 0.0
      %5735 = vmatprep.subr.mxu0 0.0
      %5736 = vmatpush1.msra.mxu0 0.0
      %5737 = vmatprep.subr.mxu0 0.0
      %5738 = vmatpush1.msra.mxu0 0.0
      %5739 = vmatprep.subr.mxu0 0.0
      %5740 = vmatpush1.msra.mxu0 0.0
      %5741 = vmatprep.subr.mxu0 0.0
      %5742 = vmatpush1.msra.mxu0 0.0
      %5743 = vmatprep.subr.mxu0 0.0
      %5744 = vmatpush1.msra.mxu0 0.0
      %5745 = vmatprep.subr.mxu0 0.0
      %5746 = vmatpush1.msra.mxu0 0.0
      %5747 = vmatprep.subr.mxu0 0.0
      %5748 = vmatpush1.msra.mxu0 %v5698
      %5749 = vmatprep.subr.mxu0 0.0
      %5750 = vmatpush1.msra.mxu0 %v5696
      %5751 = vmatprep.subr.mxu0 0.0
      %5752 = vmatpush1.msra.mxu0 %v5694
      %5753 = vmatprep.subr.mxu0 0.0
      %5754 = vmatpush1.msra.mxu0 %v5692
      %5755 = vmatprep.subr.mxu0 0.0
      %5756 = vmatpush1.msra.mxu0 %v5690
      %5757 = vmatprep.subr.mxu0 0.0
      %5758 = vmatpush1.msra.mxu0 %v5688
      %5759 = vmatprep.subr.mxu0 0.0
      %5760 = vmatpush1.msra.mxu0 %v5686
      %5761 = vmatprep.subr.mxu0 0.0
      %5762 = vmatpush1.msra.mxu0 %v5684
      %5763 = vmatprep.subr.mxu0 0.0
      %5764 = vmatpush2.msra.mxu0 0.0
      %5765 = vmatprep.subr.mxu0 0.0
      %5766 = vmatpush2.msra.mxu0 0.0
      %5767 = vmatprep.subr.mxu0 0.0
      %5768 = vmatpush2.msra.mxu0 0.0
      %5769 = vmatprep.subr.mxu0 0.0
      %5770 = vmatpush2.msra.mxu0 0.0
      %5771 = vmatprep.subr.mxu0 0.0
      %5772 = vmatpush2.msra.mxu0 0.0
      %5773 = vmatprep.subr.mxu0 0.0
      %5774 = vmatpush2.msra.mxu0 0.0
      %5775 = vmatprep.subr.mxu0 0.0
      %5776 = vmatpush2.msra.mxu0 0.0
      %5777 = vmatprep.subr.mxu0 0.0
      %5778 = vmatpush2.msra.mxu0 0.0
      %5779 = vmatprep.subr.mxu0 0.0
      %5780 = vmatpush2.msra.mxu0 0.0
      %5781 = vmatprep.subr.mxu0 0.0
      %5782 = vmatpush2.msra.mxu0 0.0
      %5783 = vmatprep.subr.mxu0 0.0
      %5784 = vmatpush2.msra.mxu0 0.0
      %5785 = vmatprep.subr.mxu0 0.0
      %5786 = vmatpush2.msra.mxu0 0.0
      %5787 = vmatprep.subr.mxu0 0.0
      %5788 = vmatpush2.msra.mxu0 0.0
      %5789 = vmatprep.subr.mxu0 0.0
      %5790 = vmatpush2.msra.mxu0 0.0
      %5791 = vmatprep.subr.mxu0 0.0
      %5792 = vmatpush2.msra.mxu0 0.0
      %5793 = vmatprep.subr.mxu0 0.0
      %5794 = vmatpush2.msra.mxu0 0.0
      %5795 = vmatprep.mubr.f32.mxu0 0.0
      %5796 = vmatmul.mubr.f32.gmra.mxu0 %v5708
      %v5797 = vpop.f32.mrf.mxu0
      %v5798 = vadd.f32 0.0, %v5797
      %v5799 = vpop.f32.mrf.mxu0
      %5800 = vmatprep.mubr.f32.mxu0 0.0
      %5801 = vmatmul.mubr.f32.gmra.mxu0 %v5711
      %v5802 = vpop.f32.mrf.mxu0
      %v5803 = vadd.f32 0.0, %v5802
      %v5804 = vpop.f32.mrf.mxu0
      %5805 = vmatprep.mubr.f32.mxu0 0.0
      %5806 = vmatmul.mubr.f32.gmra.mxu0 %v5714
      %v5807 = vpop.f32.mrf.mxu0
      %v5808 = vadd.f32 0.0, %v5807
      %v5809 = vpop.f32.mrf.mxu0
      %5810 = vmatprep.mubr.f32.mxu0 0.0
      %5811 = vmatmul.mubr.f32.gmra.mxu0 %v5717
      %v5812 = vpop.f32.mrf.mxu0
      %v5813 = vadd.f32 0.0, %v5812
      %v5814 = vpop.f32.mrf.mxu0
      %5815 = vmatprep.mubr.f32.mxu0 0.0
      %5816 = vmatmul.mubr.f32.gmra.mxu0 %v5720
      %v5817 = vpop.f32.mrf.mxu0
      %v5818 = vadd.f32 0.0, %v5817
      %v5819 = vpop.f32.mrf.mxu0
      %5820 = vmatprep.mubr.f32.mxu0 0.0
      %5821 = vmatmul.mubr.f32.gmra.mxu0 %v5723
      %v5822 = vpop.f32.mrf.mxu0
      %v5823 = vadd.f32 0.0, %v5822
      %v5824 = vpop.f32.mrf.mxu0
      %5825 = vmatprep.mubr.f32.mxu0 0.0
      %5826 = vmatmul.mubr.f32.gmra.mxu0 %v5726
      %v5827 = vpop.f32.mrf.mxu0
      %v5828 = vadd.f32 0.0, %v5827
      %v5829 = vpop.f32.mrf.mxu0
      %5830 = vmatprep.mubr.f32.mxu0 0.0
      %5831 = vmatmul.mubr.f32.gmra.mxu0 %v5729
      %v5832 = vpop.f32.mrf.mxu0
      %v5833 = vadd.f32 0.0, %v5832
      %v5834 = vpop.f32.mrf.mxu0
      %5835 = vdwg.mxu0
      %5852 = vrot.lane.b32.xlu0 %v5645, 80
      %v5853 = vpop.permute.xlu0 %5852
      %5854 = vrot.lane.b32.xlu0 %v5650, 80
      %v5855 = vpop.permute.xlu0 %5854
      %5856 = vrot.lane.b32.xlu0 %v5655, 80
      %v5857 = vpop.permute.xlu0 %5856
      %5858 = vrot.lane.b32.xlu0 %v5660, 80
      %v5859 = vpop.permute.xlu0 %5858
      %5860 = vrot.lane.b32.xlu0 %v5665, 80
      %v5861 = vpop.permute.xlu0 %5860
      %5862 = vrot.lane.b32.xlu0 %v5670, 80
      %v5863 = vpop.permute.xlu0 %5862
      %5864 = vrot.lane.b32.xlu0 %v5675, 80
      %v5865 = vpop.permute.xlu0 %5864
      %5866 = vrot.lane.b32.xlu0 %v5680, 80
      %v5867 = vpop.permute.xlu0 %5866
      %5868 = vrot.lane.b32.xlu0 %v5798, 80
      %v5869 = vpop.permute.xlu0 %5868
      %5870 = vrot.lane.b32.xlu0 %v5803, 80
      %v5871 = vpop.permute.xlu0 %5870
      %5872 = vrot.lane.b32.xlu0 %v5808, 80
      %v5873 = vpop.permute.xlu0 %5872
      %5874 = vrot.lane.b32.xlu0 %v5813, 80
      %v5875 = vpop.permute.xlu0 %5874
      %5876 = vrot.lane.b32.xlu0 %v5818, 80
      %v5877 = vpop.permute.xlu0 %5876
      %5878 = vrot.lane.b32.xlu0 %v5823, 80
      %v5879 = vpop.permute.xlu0 %5878
      %5880 = vrot.lane.b32.xlu0 %v5828, 80
      %v5881 = vpop.permute.xlu0 %5880
      %5882 = vrot.lane.b32.xlu0 %v5833, 80
      %v5883 = vpop.permute.xlu0 %5882
      %vm5900 = vcmask 786048
      %5901 = vst.msk [vmem:[%s204] sm:$0xff] %vm5900, %v5853
      %5902 = vst.msk [vmem:[%s204 + $0x8] sm:$0xff] %vm5900, %v5855
      %5903 = vst.msk [vmem:[%s204 + $0x10] sm:$0xff] %vm5900, %v5857
      %5904 = vst.msk [vmem:[%s204 + $0x18] sm:$0xff] %vm5900, %v5859
      %5905 = vst.msk [vmem:[%s204 + $0x20] sm:$0xff] %vm5900, %v5861
      %5906 = vst.msk [vmem:[%s204 + $0x28] sm:$0xff] %vm5900, %v5863
      %5907 = vst.msk [vmem:[%s204 + $0x30] sm:$0xff] %vm5900, %v5865
      %5908 = vst.msk [vmem:[%s204 + $0x38] sm:$0xff] %vm5900, %v5867
      %5909 = vst.msk [vmem:[%s204 + $0x40] sm:$0xff] %vm5900, %v5869
      %5910 = vst.msk [vmem:[%s204 + $0x48] sm:$0xff] %vm5900, %v5871
      %5911 = vst.msk [vmem:[%s204 + $0x50] sm:$0xff] %vm5900, %v5873
      %5912 = vst.msk [vmem:[%s204 + $0x58] sm:$0xff] %vm5900, %v5875
      %5913 = vst.msk [vmem:[%s204 + $0x60] sm:$0xff] %vm5900, %v5877
      %5914 = vst.msk [vmem:[%s204 + $0x68] sm:$0xff] %vm5900, %v5879
      %5915 = vst.msk [vmem:[%s204 + $0x70] sm:$0xff] %vm5900, %v5881
      %5916 = vst.msk [vmem:[%s204 + $0x78] sm:$0xff] %vm5900, %v5883
      %5917 = vrot.lane.b32.xlu0 %v622, 32
      %v5918 = vpop.permute.xlu0 %5917
      %5919 = vrot.lane.b32.xlu0 %v623, 32
      %v5920 = vpop.permute.xlu0 %5919
      %5921 = vrot.lane.b32.xlu0 %v624, 32
      %v5922 = vpop.permute.xlu0 %5921
      %5923 = vrot.lane.b32.xlu0 %v625, 32
      %v5924 = vpop.permute.xlu0 %5923
      %5925 = vrot.lane.b32.xlu0 %v626, 32
      %v5926 = vpop.permute.xlu0 %5925
      %5927 = vrot.lane.b32.xlu0 %v627, 32
      %v5928 = vpop.permute.xlu0 %5927
      %5929 = vrot.lane.b32.xlu0 %v628, 32
      %v5930 = vpop.permute.xlu0 %5929
      %5931 = vrot.lane.b32.xlu0 %v629, 32
      %v5932 = vpop.permute.xlu0 %5931
      %5933 = vrot.lane.b32.xlu0 %v385, 32
      %v5934 = vpop.permute.xlu0 %5933
      %5935 = vrot.lane.b32.xlu0 %v391, 32
      %v5936 = vpop.permute.xlu0 %5935
      %5937 = vrot.lane.b32.xlu0 %v397, 32
      %v5938 = vpop.permute.xlu0 %5937
      %5939 = vrot.lane.b32.xlu0 %v403, 32
      %v5940 = vpop.permute.xlu0 %5939
      %5941 = vrot.lane.b32.xlu0 %v409, 32
      %v5942 = vpop.permute.xlu0 %5941
      %5943 = vrot.lane.b32.xlu0 %v415, 32
      %v5944 = vpop.permute.xlu0 %5943
      %5945 = vrot.lane.b32.xlu0 %v421, 32
      %v5946 = vpop.permute.xlu0 %5945
      %5947 = vrot.lane.b32.xlu0 %v427, 32
      %v5948 = vpop.permute.xlu0 %5947
      %v5949 = vsel %vm638, %v5918, 0
      %v5951 = vsel %vm638, %v5920, 0
      %v5953 = vsel %vm638, %v5922, 0
      %v5955 = vsel %vm638, %v5924, 0
      %v5957 = vsel %vm638, %v5926, 0
      %v5959 = vsel %vm638, %v5928, 0
      %v5961 = vsel %vm638, %v5930, 0
      %v5963 = vsel %vm638, %v5932, 0
      %v5965 = vsel %vm638, %v5934, 0
      %v5967 = vsel %vm638, %v5936, 0
      %v5969 = vsel %vm638, %v5938, 0
      %v5971 = vsel %vm638, %v5940, 0
      %v5973 = vsel %vm638, %v5942, 0
      %v5975 = vsel %vm638, %v5944, 0
      %v5977 = vsel %vm638, %v5946, 0
      %v5979 = vsel %vm638, %v5948, 0
      %5981 = vmatprep.subr.mxu0 0.0
      %5982 = vmatpush1.xpose.msra.mxu0 0.0
      %5983 = vmatprep.subr.mxu0 0.0
      %5984 = vmatpush1.xpose.msra.mxu0 0.0
      %5985 = vmatprep.subr.mxu0 0.0
      %5986 = vmatpush1.xpose.msra.mxu0 0.0
      %5987 = vmatprep.subr.mxu0 0.0
      %5988 = vmatpush1.xpose.msra.mxu0 0.0
      %5989 = vmatprep.subr.mxu0 0.0
      %5990 = vmatpush1.xpose.msra.mxu0 0.0
      %5991 = vmatprep.subr.mxu0 0.0
      %5992 = vmatpush1.xpose.msra.mxu0 0.0
      %5993 = vmatprep.subr.mxu0 0.0
      %5994 = vmatpush1.xpose.msra.mxu0 0.0
      %5995 = vmatprep.subr.mxu0 0.0
      %5996 = vmatpush1.xpose.msra.mxu0 0.0
      %5997 = vmatprep.subr.mxu0 0.0
      %5998 = vmatpush1.xpose.msra.mxu0 %v5979
      %5999 = vmatprep.subr.mxu0 0.0
      %6000 = vmatpush1.xpose.msra.mxu0 %v5977
      %6001 = vmatprep.subr.mxu0 0.0
      %6002 = vmatpush1.xpose.msra.mxu0 %v5975
      %6003 = vmatprep.subr.mxu0 0.0
      %6004 = vmatpush1.xpose.msra.mxu0 %v5973
      %6005 = vmatprep.subr.mxu0 0.0
      %6006 = vmatpush1.xpose.msra.mxu0 %v5971
      %6007 = vmatprep.subr.mxu0 0.0
      %6008 = vmatpush1.xpose.msra.mxu0 %v5969
      %6009 = vmatprep.subr.mxu0 0.0
      %6010 = vmatpush1.xpose.msra.mxu0 %v5967
      %6011 = vmatprep.subr.mxu0 0.0
      %6012 = vmatpush1.xpose.msra.mxu0 %v5965
      %6013 = vmatprep.subr.mxu0 0.0
      %6014 = vmatpush2.xpose.msra.mxu0 0.0
      %6015 = vmatprep.subr.mxu0 0.0
      %6016 = vmatpush2.xpose.msra.mxu0 0.0
      %6017 = vmatprep.subr.mxu0 0.0
      %6018 = vmatpush2.xpose.msra.mxu0 0.0
      %6019 = vmatprep.subr.mxu0 0.0
      %6020 = vmatpush2.xpose.msra.mxu0 0.0
      %6021 = vmatprep.subr.mxu0 0.0
      %6022 = vmatpush2.xpose.msra.mxu0 0.0
      %6023 = vmatprep.subr.mxu0 0.0
      %6024 = vmatpush2.xpose.msra.mxu0 0.0
      %6025 = vmatprep.subr.mxu0 0.0
      %6026 = vmatpush2.xpose.msra.mxu0 0.0
      %6027 = vmatprep.subr.mxu0 0.0
      %6028 = vmatpush2.xpose.msra.mxu0 0.0
      %6029 = vmatprep.subr.mxu0 0.0
      %6030 = vmatpush2.xpose.msra.mxu0 0.0
      %6031 = vmatprep.subr.mxu0 0.0
      %6032 = vmatpush2.xpose.msra.mxu0 0.0
      %6033 = vmatprep.subr.mxu0 0.0
      %6034 = vmatpush2.xpose.msra.mxu0 0.0
      %6035 = vmatprep.subr.mxu0 0.0
      %6036 = vmatpush2.xpose.msra.mxu0 0.0
      %6037 = vmatprep.subr.mxu0 0.0
      %6038 = vmatpush2.xpose.msra.mxu0 0.0
      %6039 = vmatprep.subr.mxu0 0.0
      %6040 = vmatpush2.xpose.msra.mxu0 0.0
      %6041 = vmatprep.subr.mxu0 0.0
      %6042 = vmatpush2.xpose.msra.mxu0 0.0
      %6043 = vmatprep.subr.mxu0 0.0
      %6044 = vmatpush2.xpose.msra.mxu0 0.0
      %6045 = vmatprep.mubr.f32.mxu0 0.0
      %6046 = vmatmul.mubr.f32.gmra.mxu0 %v5949
      %v6047 = vpop.f32.mrf.mxu0
      %v6048 = vadd.f32 0.0, %v6047
      %v6049 = vpop.f32.mrf.mxu0
      %6050 = vmatprep.mubr.f32.mxu0 0.0
      %6051 = vmatmul.mubr.f32.gmra.mxu0 %v5951
      %v6052 = vpop.f32.mrf.mxu0
      %v6053 = vadd.f32 0.0, %v6052
      %v6054 = vpop.f32.mrf.mxu0
      %6055 = vmatprep.mubr.f32.mxu0 0.0
      %6056 = vmatmul.mubr.f32.gmra.mxu0 %v5953
      %v6057 = vpop.f32.mrf.mxu0
      %v6058 = vadd.f32 0.0, %v6057
      %v6059 = vpop.f32.mrf.mxu0
      %6060 = vmatprep.mubr.f32.mxu0 0.0
      %6061 = vmatmul.mubr.f32.gmra.mxu0 %v5955
      %v6062 = vpop.f32.mrf.mxu0
      %v6063 = vadd.f32 0.0, %v6062
      %v6064 = vpop.f32.mrf.mxu0
      %6065 = vmatprep.mubr.f32.mxu0 0.0
      %6066 = vmatmul.mubr.f32.gmra.mxu0 %v5957
      %v6067 = vpop.f32.mrf.mxu0
      %v6068 = vadd.f32 0.0, %v6067
      %v6069 = vpop.f32.mrf.mxu0
      %6070 = vmatprep.mubr.f32.mxu0 0.0
      %6071 = vmatmul.mubr.f32.gmra.mxu0 %v5959
      %v6072 = vpop.f32.mrf.mxu0
      %v6073 = vadd.f32 0.0, %v6072
      %v6074 = vpop.f32.mrf.mxu0
      %6075 = vmatprep.mubr.f32.mxu0 0.0
      %6076 = vmatmul.mubr.f32.gmra.mxu0 %v5961
      %v6077 = vpop.f32.mrf.mxu0
      %v6078 = vadd.f32 0.0, %v6077
      %v6079 = vpop.f32.mrf.mxu0
      %6080 = vmatprep.mubr.f32.mxu0 0.0
      %6081 = vmatmul.mubr.f32.gmra.mxu0 %v5963
      %v6082 = vpop.f32.mrf.mxu0
      %v6083 = vadd.f32 0.0, %v6082
      %v6084 = vpop.f32.mrf.mxu0
      %6085 = vdwg.mxu0
      %6086 = vrot.lane.b32.xlu0 %v630, 32
      %v6087 = vpop.permute.xlu0 %6086
      %6088 = vrot.lane.b32.xlu0 %v631, 32
      %v6089 = vpop.permute.xlu0 %6088
      %6090 = vrot.lane.b32.xlu0 %v632, 32
      %v6091 = vpop.permute.xlu0 %6090
      %6092 = vrot.lane.b32.xlu0 %v633, 32
      %v6093 = vpop.permute.xlu0 %6092
      %6094 = vrot.lane.b32.xlu0 %v634, 32
      %v6095 = vpop.permute.xlu0 %6094
      %6096 = vrot.lane.b32.xlu0 %v635, 32
      %v6097 = vpop.permute.xlu0 %6096
      %6098 = vrot.lane.b32.xlu0 %v636, 32
      %v6099 = vpop.permute.xlu0 %6098
      %6100 = vrot.lane.b32.xlu0 %v637, 32
      %v6101 = vpop.permute.xlu0 %6100
      %6102 = vrot.lane.b32.xlu0 %v433, 32
      %v6103 = vpop.permute.xlu0 %6102
      %6104 = vrot.lane.b32.xlu0 %v439, 32
      %v6105 = vpop.permute.xlu0 %6104
      %6106 = vrot.lane.b32.xlu0 %v445, 32
      %v6107 = vpop.permute.xlu0 %6106
      %6108 = vrot.lane.b32.xlu0 %v451, 32
      %v6109 = vpop.permute.xlu0 %6108
      %6110 = vrot.lane.b32.xlu0 %v457, 32
      %v6111 = vpop.permute.xlu0 %6110
      %6112 = vrot.lane.b32.xlu0 %v463, 32
      %v6113 = vpop.permute.xlu0 %6112
      %6114 = vrot.lane.b32.xlu0 %v469, 32
      %v6115 = vpop.permute.xlu0 %6114
      %6116 = vrot.lane.b32.xlu0 %v475, 32
      %v6117 = vpop.permute.xlu0 %6116
      %v6118 = vsel %vm638, %v6087, 0
      %v6120 = vsel %vm638, %v6089, 0
      %v6122 = vsel %vm638, %v6091, 0
      %v6124 = vsel %vm638, %v6093, 0
      %v6126 = vsel %vm638, %v6095, 0
      %v6128 = vsel %vm638, %v6097, 0
      %v6130 = vsel %vm638, %v6099, 0
      %v6132 = vsel %vm638, %v6101, 0
      %v6134 = vsel %vm638, %v6103, 0
      %v6136 = vsel %vm638, %v6105, 0
      %v6138 = vsel %vm638, %v6107, 0
      %v6140 = vsel %vm638, %v6109, 0
      %v6142 = vsel %vm638, %v6111, 0
      %v6144 = vsel %vm638, %v6113, 0
      %v6146 = vsel %vm638, %v6115, 0
      %v6148 = vsel %vm638, %v6117, 0
      %6150 = vmatprep.subr.mxu0 0.0
      %6151 = vmatpush1.xpose.msra.mxu0 0.0
      %6152 = vmatprep.subr.mxu0 0.0
      %6153 = vmatpush1.xpose.msra.mxu0 0.0
      %6154 = vmatprep.subr.mxu0 0.0
      %6155 = vmatpush1.xpose.msra.mxu0 0.0
      %6156 = vmatprep.subr.mxu0 0.0
      %6157 = vmatpush1.xpose.msra.mxu0 0.0
      %6158 = vmatprep.subr.mxu0 0.0
      %6159 = vmatpush1.xpose.msra.mxu0 0.0
      %6160 = vmatprep.subr.mxu0 0.0
      %6161 = vmatpush1.xpose.msra.mxu0 0.0
      %6162 = vmatprep.subr.mxu0 0.0
      %6163 = vmatpush1.xpose.msra.mxu0 0.0
      %6164 = vmatprep.subr.mxu0 0.0
      %6165 = vmatpush1.xpose.msra.mxu0 0.0
      %6166 = vmatprep.subr.mxu0 0.0
      %6167 = vmatpush1.xpose.msra.mxu0 %v6148
      %6168 = vmatprep.subr.mxu0 0.0
      %6169 = vmatpush1.xpose.msra.mxu0 %v6146
      %6170 = vmatprep.subr.mxu0 0.0
      %6171 = vmatpush1.xpose.msra.mxu0 %v6144
      %6172 = vmatprep.subr.mxu0 0.0
      %6173 = vmatpush1.xpose.msra.mxu0 %v6142
      %6174 = vmatprep.subr.mxu0 0.0
      %6175 = vmatpush1.xpose.msra.mxu0 %v6140
      %6176 = vmatprep.subr.mxu0 0.0
      %6177 = vmatpush1.xpose.msra.mxu0 %v6138
      %6178 = vmatprep.subr.mxu0 0.0
      %6179 = vmatpush1.xpose.msra.mxu0 %v6136
      %6180 = vmatprep.subr.mxu0 0.0
      %6181 = vmatpush1.xpose.msra.mxu0 %v6134
      %6182 = vmatprep.subr.mxu0 0.0
      %6183 = vmatpush2.xpose.msra.mxu0 0.0
      %6184 = vmatprep.subr.mxu0 0.0
      %6185 = vmatpush2.xpose.msra.mxu0 0.0
      %6186 = vmatprep.subr.mxu0 0.0
      %6187 = vmatpush2.xpose.msra.mxu0 0.0
      %6188 = vmatprep.subr.mxu0 0.0
      %6189 = vmatpush2.xpose.msra.mxu0 0.0
      %6190 = vmatprep.subr.mxu0 0.0
      %6191 = vmatpush2.xpose.msra.mxu0 0.0
      %6192 = vmatprep.subr.mxu0 0.0
      %6193 = vmatpush2.xpose.msra.mxu0 0.0
      %6194 = vmatprep.subr.mxu0 0.0
      %6195 = vmatpush2.xpose.msra.mxu0 0.0
      %6196 = vmatprep.subr.mxu0 0.0
      %6197 = vmatpush2.xpose.msra.mxu0 0.0
      %6198 = vmatprep.subr.mxu0 0.0
      %6199 = vmatpush2.xpose.msra.mxu0 0.0
      %6200 = vmatprep.subr.mxu0 0.0
      %6201 = vmatpush2.xpose.msra.mxu0 0.0
      %6202 = vmatprep.subr.mxu0 0.0
      %6203 = vmatpush2.xpose.msra.mxu0 0.0
      %6204 = vmatprep.subr.mxu0 0.0
      %6205 = vmatpush2.xpose.msra.mxu0 0.0
      %6206 = vmatprep.subr.mxu0 0.0
      %6207 = vmatpush2.xpose.msra.mxu0 0.0
      %6208 = vmatprep.subr.mxu0 0.0
      %6209 = vmatpush2.xpose.msra.mxu0 0.0
      %6210 = vmatprep.subr.mxu0 0.0
      %6211 = vmatpush2.xpose.msra.mxu0 0.0
      %6212 = vmatprep.subr.mxu0 0.0
      %6213 = vmatpush2.xpose.msra.mxu0 0.0
      %6214 = vmatprep.mubr.f32.mxu0 0.0
      %6215 = vmatmul.mubr.f32.gmra.mxu0 %v6118
      %v6216 = vpop.f32.mrf.mxu0
      %v6217 = vadd.f32 0.0, %v6216
      %v6218 = vpop.f32.mrf.mxu0
      %6219 = vmatprep.mubr.f32.mxu0 0.0
      %6220 = vmatmul.mubr.f32.gmra.mxu0 %v6120
      %v6221 = vpop.f32.mrf.mxu0
      %v6222 = vadd.f32 0.0, %v6221
      %v6223 = vpop.f32.mrf.mxu0
      %6224 = vmatprep.mubr.f32.mxu0 0.0
      %6225 = vmatmul.mubr.f32.gmra.mxu0 %v6122
      %v6226 = vpop.f32.mrf.mxu0
      %v6227 = vadd.f32 0.0, %v6226
      %v6228 = vpop.f32.mrf.mxu0
      %6229 = vmatprep.mubr.f32.mxu0 0.0
      %6230 = vmatmul.mubr.f32.gmra.mxu0 %v6124
      %v6231 = vpop.f32.mrf.mxu0
      %v6232 = vadd.f32 0.0, %v6231
      %v6233 = vpop.f32.mrf.mxu0
      %6234 = vmatprep.mubr.f32.mxu0 0.0
      %6235 = vmatmul.mubr.f32.gmra.mxu0 %v6126
      %v6236 = vpop.f32.mrf.mxu0
      %v6237 = vadd.f32 0.0, %v6236
      %v6238 = vpop.f32.mrf.mxu0
      %6239 = vmatprep.mubr.f32.mxu0 0.0
      %6240 = vmatmul.mubr.f32.gmra.mxu0 %v6128
      %v6241 = vpop.f32.mrf.mxu0
      %v6242 = vadd.f32 0.0, %v6241
      %v6243 = vpop.f32.mrf.mxu0
      %6244 = vmatprep.mubr.f32.mxu0 0.0
      %6245 = vmatmul.mubr.f32.gmra.mxu0 %v6130
      %v6246 = vpop.f32.mrf.mxu0
      %v6247 = vadd.f32 0.0, %v6246
      %v6248 = vpop.f32.mrf.mxu0
      %6249 = vmatprep.mubr.f32.mxu0 0.0
      %6250 = vmatmul.mubr.f32.gmra.mxu0 %v6132
      %v6251 = vpop.f32.mrf.mxu0
      %v6252 = vadd.f32 0.0, %v6251
      %v6253 = vpop.f32.mrf.mxu0
      %6254 = vdwg.mxu0
      %v6255 = vsel %vm945, %v6048, -inf
      %6256 = vmax.xlane.f32.xlu0 %v6255
      %v6257 = vpop.xlane.xlu0 %6256
      %v6258 = vsel %vm945, %v6053, -inf
      %6259 = vmax.xlane.f32.xlu0 %v6258
      %v6260 = vpop.xlane.xlu0 %6259
      %v6261 = vsel %vm945, %v6058, -inf
      %6262 = vmax.xlane.f32.xlu0 %v6261
      %v6263 = vpop.xlane.xlu0 %6262
      %v6264 = vsel %vm945, %v6063, -inf
      %6265 = vmax.xlane.f32.xlu0 %v6264
      %v6266 = vpop.xlane.xlu0 %6265
      %v6267 = vsel %vm945, %v6068, -inf
      %6268 = vmax.xlane.f32.xlu0 %v6267
      %v6269 = vpop.xlane.xlu0 %6268
      %v6270 = vsel %vm945, %v6073, -inf
      %6271 = vmax.xlane.f32.xlu0 %v6270
      %v6272 = vpop.xlane.xlu0 %6271
      %v6273 = vsel %vm945, %v6078, -inf
      %6274 = vmax.xlane.f32.xlu0 %v6273
      %v6275 = vpop.xlane.xlu0 %6274
      %v6276 = vsel %vm945, %v6083, -inf
      %6277 = vmax.xlane.f32.xlu0 %v6276
      %v6278 = vpop.xlane.xlu0 %6277
      %v6279 = vsel %vm945, %v6217, -inf
      %6280 = vmax.xlane.f32.xlu0 %v6279
      %v6281 = vpop.xlane.xlu0 %6280
      %v6282 = vsel %vm945, %v6222, -inf
      %6283 = vmax.xlane.f32.xlu0 %v6282
      %v6284 = vpop.xlane.xlu0 %6283
      %v6285 = vsel %vm945, %v6227, -inf
      %6286 = vmax.xlane.f32.xlu0 %v6285
      %v6287 = vpop.xlane.xlu0 %6286
      %v6288 = vsel %vm945, %v6232, -inf
      %6289 = vmax.xlane.f32.xlu0 %v6288
      %v6290 = vpop.xlane.xlu0 %6289
      %v6291 = vsel %vm945, %v6237, -inf
      %6292 = vmax.xlane.f32.xlu0 %v6291
      %v6293 = vpop.xlane.xlu0 %6292
      %v6294 = vsel %vm945, %v6242, -inf
      %6295 = vmax.xlane.f32.xlu0 %v6294
      %v6296 = vpop.xlane.xlu0 %6295
      %v6297 = vsel %vm945, %v6247, -inf
      %6298 = vmax.xlane.f32.xlu0 %v6297
      %v6299 = vpop.xlane.xlu0 %6298
      %v6300 = vsel %vm945, %v6252, -inf
      %6301 = vmax.xlane.f32.xlu0 %v6300
      %v6302 = vpop.xlane.xlu0 %6301
      %v6303 = vsub.f32 %v6048, %v6257
      %v6304 = vsub.f32 %v6053, %v6260
      %v6305 = vsub.f32 %v6058, %v6263
      %v6306 = vsub.f32 %v6063, %v6266
      %v6307 = vsub.f32 %v6068, %v6269
      %v6308 = vsub.f32 %v6073, %v6272
      %v6309 = vsub.f32 %v6078, %v6275
      %v6310 = vsub.f32 %v6083, %v6278
      %v6311 = vsub.f32 %v6217, %v6281
      %v6312 = vsub.f32 %v6222, %v6284
      %v6313 = vsub.f32 %v6227, %v6287
      %v6314 = vsub.f32 %v6232, %v6290
      %v6315 = vsub.f32 %v6237, %v6293
      %v6316 = vsub.f32 %v6242, %v6296
      %v6317 = vsub.f32 %v6247, %v6299
      %v6318 = vsub.f32 %v6252, %v6302
      %v6319 = vmul.f32 %v6303, 1.442695
      %v6320 = vpow.pop %v6319
      %v6321 = vmul.f32 %v6304, 1.442695
      %v6322 = vpow.pop %v6321
      %v6323 = vmul.f32 %v6305, 1.442695
      %v6324 = vpow.pop %v6323
      %v6325 = vmul.f32 %v6306, 1.442695
      %v6326 = vpow.pop %v6325
      %v6327 = vmul.f32 %v6307, 1.442695
      %v6328 = vpow.pop %v6327
      %v6329 = vmul.f32 %v6308, 1.442695
      %v6330 = vpow.pop %v6329
      %v6331 = vmul.f32 %v6309, 1.442695
      %v6332 = vpow.pop %v6331
      %v6333 = vmul.f32 %v6310, 1.442695
      %v6334 = vpow.pop %v6333
      %v6335 = vmul.f32 %v6311, 1.442695
      %v6336 = vpow.pop %v6335
      %v6337 = vmul.f32 %v6312, 1.442695
      %v6338 = vpow.pop %v6337
      %v6339 = vmul.f32 %v6313, 1.442695
      %v6340 = vpow.pop %v6339
      %v6341 = vmul.f32 %v6314, 1.442695
      %v6342 = vpow.pop %v6341
      %v6343 = vmul.f32 %v6315, 1.442695
      %v6344 = vpow.pop %v6343
      %v6345 = vmul.f32 %v6316, 1.442695
      %v6346 = vpow.pop %v6345
      %v6347 = vmul.f32 %v6317, 1.442695
      %v6348 = vpow.pop %v6347
      %v6349 = vmul.f32 %v6318, 1.442695
      %v6350 = vpow.pop %v6349
      %v6351 = vsel %vm945, %v6320, 0.0
      %6352 = vadd.xlane.f32.xlu0 %v6351
      %v6353 = vpop.xlane.xlu0 %6352
      %v6354 = vsel %vm945, %v6322, 0.0
      %6355 = vadd.xlane.f32.xlu0 %v6354
      %v6356 = vpop.xlane.xlu0 %6355
      %v6357 = vsel %vm945, %v6324, 0.0
      %6358 = vadd.xlane.f32.xlu0 %v6357
      %v6359 = vpop.xlane.xlu0 %6358
      %v6360 = vsel %vm945, %v6326, 0.0
      %6361 = vadd.xlane.f32.xlu0 %v6360
      %v6362 = vpop.xlane.xlu0 %6361
      %v6363 = vsel %vm945, %v6328, 0.0
      %6364 = vadd.xlane.f32.xlu0 %v6363
      %v6365 = vpop.xlane.xlu0 %6364
      %v6366 = vsel %vm945, %v6330, 0.0
      %6367 = vadd.xlane.f32.xlu0 %v6366
      %v6368 = vpop.xlane.xlu0 %6367
      %v6369 = vsel %vm945, %v6332, 0.0
      %6370 = vadd.xlane.f32.xlu0 %v6369
      %v6371 = vpop.xlane.xlu0 %6370
      %v6372 = vsel %vm945, %v6334, 0.0
      %6373 = vadd.xlane.f32.xlu0 %v6372
      %v6374 = vpop.xlane.xlu0 %6373
      %v6375 = vsel %vm945, %v6336, 0.0
      %6376 = vadd.xlane.f32.xlu0 %v6375
      %v6377 = vpop.xlane.xlu0 %6376
      %v6378 = vsel %vm945, %v6338, 0.0
      %6379 = vadd.xlane.f32.xlu0 %v6378
      %v6380 = vpop.xlane.xlu0 %6379
      %v6381 = vsel %vm945, %v6340, 0.0
      %6382 = vadd.xlane.f32.xlu0 %v6381
      %v6383 = vpop.xlane.xlu0 %6382
      %v6384 = vsel %vm945, %v6342, 0.0
      %6385 = vadd.xlane.f32.xlu0 %v6384
      %v6386 = vpop.xlane.xlu0 %6385
      %v6387 = vsel %vm945, %v6344, 0.0
      %6388 = vadd.xlane.f32.xlu0 %v6387
      %v6389 = vpop.xlane.xlu0 %6388
      %v6390 = vsel %vm945, %v6346, 0.0
      %6391 = vadd.xlane.f32.xlu0 %v6390
      %v6392 = vpop.xlane.xlu0 %6391
      %v6393 = vsel %vm945, %v6348, 0.0
      %6394 = vadd.xlane.f32.xlu0 %v6393
      %v6395 = vpop.xlane.xlu0 %6394
      %v6396 = vsel %vm945, %v6350, 0.0
      %6397 = vadd.xlane.f32.xlu0 %v6396
      %v6398 = vpop.xlane.xlu0 %6397
      %v6399 = vrcp.pop %v6353
      %v6400 = vmul.f32 %v6320, %v6399
      %v6401 = vrcp.pop %v6356
      %v6402 = vmul.f32 %v6322, %v6401
      %v6403 = vrcp.pop %v6359
      %v6404 = vmul.f32 %v6324, %v6403
      %v6405 = vrcp.pop %v6362
      %v6406 = vmul.f32 %v6326, %v6405
      %v6407 = vrcp.pop %v6365
      %v6408 = vmul.f32 %v6328, %v6407
      %v6409 = vrcp.pop %v6368
      %v6410 = vmul.f32 %v6330, %v6409
      %v6411 = vrcp.pop %v6371
      %v6412 = vmul.f32 %v6332, %v6411
      %v6413 = vrcp.pop %v6374
      %v6414 = vmul.f32 %v6334, %v6413
      %v6415 = vrcp.pop %v6377
      %v6416 = vmul.f32 %v6336, %v6415
      %v6417 = vrcp.pop %v6380
      %v6418 = vmul.f32 %v6338, %v6417
      %v6419 = vrcp.pop %v6383
      %v6420 = vmul.f32 %v6340, %v6419
      %v6421 = vrcp.pop %v6386
      %v6422 = vmul.f32 %v6342, %v6421
      %v6423 = vrcp.pop %v6389
      %v6424 = vmul.f32 %v6344, %v6423
      %v6425 = vrcp.pop %v6392
      %v6426 = vmul.f32 %v6346, %v6425
      %v6427 = vrcp.pop %v6395
      %v6428 = vmul.f32 %v6348, %v6427
      %v6429 = vrcp.pop %v6398
      %v6430 = vmul.f32 %v6350, %v6429
      %6431 = vrot.lane.b32.xlu0 %v544, 32
      %v6432 = vpop.permute.xlu0 %6431
      %6433 = vrot.lane.b32.xlu0 %v549, 32
      %v6434 = vpop.permute.xlu0 %6433
      %6435 = vrot.lane.b32.xlu0 %v554, 32
      %v6436 = vpop.permute.xlu0 %6435
      %6437 = vrot.lane.b32.xlu0 %v559, 32
      %v6438 = vpop.permute.xlu0 %6437
      %6439 = vrot.lane.b32.xlu0 %v564, 32
      %v6440 = vpop.permute.xlu0 %6439
      %6441 = vrot.lane.b32.xlu0 %v569, 32
      %v6442 = vpop.permute.xlu0 %6441
      %6443 = vrot.lane.b32.xlu0 %v574, 32
      %v6444 = vpop.permute.xlu0 %6443
      %6445 = vrot.lane.b32.xlu0 %v579, 32
      %v6446 = vpop.permute.xlu0 %6445
      %v6456 = vsel %vm945, %v6400, 0
      %v6459 = vsel %vm945, %v6402, 0
      %v6462 = vsel %vm945, %v6404, 0
      %v6465 = vsel %vm945, %v6406, 0
      %v6468 = vsel %vm945, %v6408, 0
      %v6471 = vsel %vm945, %v6410, 0
      %v6474 = vsel %vm945, %v6412, 0
      %v6477 = vsel %vm945, %v6414, 0
      %6479 = vmatprep.subr.mxu0 0.0
      %6480 = vmatpush1.msra.mxu0 0.0
      %6481 = vmatprep.subr.mxu0 0.0
      %6482 = vmatpush1.msra.mxu0 0.0
      %6483 = vmatprep.subr.mxu0 0.0
      %6484 = vmatpush1.msra.mxu0 0.0
      %6485 = vmatprep.subr.mxu0 0.0
      %6486 = vmatpush1.msra.mxu0 0.0
      %6487 = vmatprep.subr.mxu0 0.0
      %6488 = vmatpush1.msra.mxu0 0.0
      %6489 = vmatprep.subr.mxu0 0.0
      %6490 = vmatpush1.msra.mxu0 0.0
      %6491 = vmatprep.subr.mxu0 0.0
      %6492 = vmatpush1.msra.mxu0 0.0
      %6493 = vmatprep.subr.mxu0 0.0
      %6494 = vmatpush1.msra.mxu0 0.0
      %6495 = vmatprep.subr.mxu0 0.0
      %6496 = vmatpush1.msra.mxu0 %v6446
      %6497 = vmatprep.subr.mxu0 0.0
      %6498 = vmatpush1.msra.mxu0 %v6444
      %6499 = vmatprep.subr.mxu0 0.0
      %6500 = vmatpush1.msra.mxu0 %v6442
      %6501 = vmatprep.subr.mxu0 0.0
      %6502 = vmatpush1.msra.mxu0 %v6440
      %6503 = vmatprep.subr.mxu0 0.0
      %6504 = vmatpush1.msra.mxu0 %v6438
      %6505 = vmatprep.subr.mxu0 0.0
      %6506 = vmatpush1.msra.mxu0 %v6436
      %6507 = vmatprep.subr.mxu0 0.0
      %6508 = vmatpush1.msra.mxu0 %v6434
      %6509 = vmatprep.subr.mxu0 0.0
      %6510 = vmatpush1.msra.mxu0 %v6432
      %6511 = vmatprep.subr.mxu0 0.0
      %6512 = vmatpush2.msra.mxu0 0.0
      %6513 = vmatprep.subr.mxu0 0.0
      %6514 = vmatpush2.msra.mxu0 0.0
      %6515 = vmatprep.subr.mxu0 0.0
      %6516 = vmatpush2.msra.mxu0 0.0
      %6517 = vmatprep.subr.mxu0 0.0
      %6518 = vmatpush2.msra.mxu0 0.0
      %6519 = vmatprep.subr.mxu0 0.0
      %6520 = vmatpush2.msra.mxu0 0.0
      %6521 = vmatprep.subr.mxu0 0.0
      %6522 = vmatpush2.msra.mxu0 0.0
      %6523 = vmatprep.subr.mxu0 0.0
      %6524 = vmatpush2.msra.mxu0 0.0
      %6525 = vmatprep.subr.mxu0 0.0
      %6526 = vmatpush2.msra.mxu0 0.0
      %6527 = vmatprep.subr.mxu0 0.0
      %6528 = vmatpush2.msra.mxu0 0.0
      %6529 = vmatprep.subr.mxu0 0.0
      %6530 = vmatpush2.msra.mxu0 0.0
      %6531 = vmatprep.subr.mxu0 0.0
      %6532 = vmatpush2.msra.mxu0 0.0
      %6533 = vmatprep.subr.mxu0 0.0
      %6534 = vmatpush2.msra.mxu0 0.0
      %6535 = vmatprep.subr.mxu0 0.0
      %6536 = vmatpush2.msra.mxu0 0.0
      %6537 = vmatprep.subr.mxu0 0.0
      %6538 = vmatpush2.msra.mxu0 0.0
      %6539 = vmatprep.subr.mxu0 0.0
      %6540 = vmatpush2.msra.mxu0 0.0
      %6541 = vmatprep.subr.mxu0 0.0
      %6542 = vmatpush2.msra.mxu0 0.0
      %6543 = vmatprep.mubr.f32.mxu0 0.0
      %6544 = vmatmul.mubr.f32.gmra.mxu0 %v6456
      %v6545 = vpop.f32.mrf.mxu0
      %v6546 = vadd.f32 0.0, %v6545
      %v6547 = vpop.f32.mrf.mxu0
      %6548 = vmatprep.mubr.f32.mxu0 0.0
      %6549 = vmatmul.mubr.f32.gmra.mxu0 %v6459
      %v6550 = vpop.f32.mrf.mxu0
      %v6551 = vadd.f32 0.0, %v6550
      %v6552 = vpop.f32.mrf.mxu0
      %6553 = vmatprep.mubr.f32.mxu0 0.0
      %6554 = vmatmul.mubr.f32.gmra.mxu0 %v6462
      %v6555 = vpop.f32.mrf.mxu0
      %v6556 = vadd.f32 0.0, %v6555
      %v6557 = vpop.f32.mrf.mxu0
      %6558 = vmatprep.mubr.f32.mxu0 0.0
      %6559 = vmatmul.mubr.f32.gmra.mxu0 %v6465
      %v6560 = vpop.f32.mrf.mxu0
      %v6561 = vadd.f32 0.0, %v6560
      %v6562 = vpop.f32.mrf.mxu0
      %6563 = vmatprep.mubr.f32.mxu0 0.0
      %6564 = vmatmul.mubr.f32.gmra.mxu0 %v6468
      %v6565 = vpop.f32.mrf.mxu0
      %v6566 = vadd.f32 0.0, %v6565
      %v6567 = vpop.f32.mrf.mxu0
      %6568 = vmatprep.mubr.f32.mxu0 0.0
      %6569 = vmatmul.mubr.f32.gmra.mxu0 %v6471
      %v6570 = vpop.f32.mrf.mxu0
      %v6571 = vadd.f32 0.0, %v6570
      %v6572 = vpop.f32.mrf.mxu0
      %6573 = vmatprep.mubr.f32.mxu0 0.0
      %6574 = vmatmul.mubr.f32.gmra.mxu0 %v6474
      %v6575 = vpop.f32.mrf.mxu0
      %v6576 = vadd.f32 0.0, %v6575
      %v6577 = vpop.f32.mrf.mxu0
      %6578 = vmatprep.mubr.f32.mxu0 0.0
      %6579 = vmatmul.mubr.f32.gmra.mxu0 %v6477
      %v6580 = vpop.f32.mrf.mxu0
      %v6581 = vadd.f32 0.0, %v6580
      %v6582 = vpop.f32.mrf.mxu0
      %6583 = vdwg.mxu0
      %6584 = vrot.lane.b32.xlu0 %v584, 32
      %v6585 = vpop.permute.xlu0 %6584
      %6586 = vrot.lane.b32.xlu0 %v589, 32
      %v6587 = vpop.permute.xlu0 %6586
      %6588 = vrot.lane.b32.xlu0 %v594, 32
      %v6589 = vpop.permute.xlu0 %6588
      %6590 = vrot.lane.b32.xlu0 %v599, 32
      %v6591 = vpop.permute.xlu0 %6590
      %6592 = vrot.lane.b32.xlu0 %v604, 32
      %v6593 = vpop.permute.xlu0 %6592
      %6594 = vrot.lane.b32.xlu0 %v609, 32
      %v6595 = vpop.permute.xlu0 %6594
      %6596 = vrot.lane.b32.xlu0 %v614, 32
      %v6597 = vpop.permute.xlu0 %6596
      %6598 = vrot.lane.b32.xlu0 %v619, 32
      %v6599 = vpop.permute.xlu0 %6598
      %v6609 = vsel %vm945, %v6416, 0
      %v6612 = vsel %vm945, %v6418, 0
      %v6615 = vsel %vm945, %v6420, 0
      %v6618 = vsel %vm945, %v6422, 0
      %v6621 = vsel %vm945, %v6424, 0
      %v6624 = vsel %vm945, %v6426, 0
      %v6627 = vsel %vm945, %v6428, 0
      %v6630 = vsel %vm945, %v6430, 0
      %6632 = vmatprep.subr.mxu0 0.0
      %6633 = vmatpush1.msra.mxu0 0.0
      %6634 = vmatprep.subr.mxu0 0.0
      %6635 = vmatpush1.msra.mxu0 0.0
      %6636 = vmatprep.subr.mxu0 0.0
      %6637 = vmatpush1.msra.mxu0 0.0
      %6638 = vmatprep.subr.mxu0 0.0
      %6639 = vmatpush1.msra.mxu0 0.0
      %6640 = vmatprep.subr.mxu0 0.0
      %6641 = vmatpush1.msra.mxu0 0.0
      %6642 = vmatprep.subr.mxu0 0.0
      %6643 = vmatpush1.msra.mxu0 0.0
      %6644 = vmatprep.subr.mxu0 0.0
      %6645 = vmatpush1.msra.mxu0 0.0
      %6646 = vmatprep.subr.mxu0 0.0
      %6647 = vmatpush1.msra.mxu0 0.0
      %6648 = vmatprep.subr.mxu0 0.0
      %6649 = vmatpush1.msra.mxu0 %v6599
      %6650 = vmatprep.subr.mxu0 0.0
      %6651 = vmatpush1.msra.mxu0 %v6597
      %6652 = vmatprep.subr.mxu0 0.0
      %6653 = vmatpush1.msra.mxu0 %v6595
      %6654 = vmatprep.subr.mxu0 0.0
      %6655 = vmatpush1.msra.mxu0 %v6593
      %6656 = vmatprep.subr.mxu0 0.0
      %6657 = vmatpush1.msra.mxu0 %v6591
      %6658 = vmatprep.subr.mxu0 0.0
      %6659 = vmatpush1.msra.mxu0 %v6589
      %6660 = vmatprep.subr.mxu0 0.0
      %6661 = vmatpush1.msra.mxu0 %v6587
      %6662 = vmatprep.subr.mxu0 0.0
      %6663 = vmatpush1.msra.mxu0 %v6585
      %6664 = vmatprep.subr.mxu0 0.0
      %6665 = vmatpush2.msra.mxu0 0.0
      %6666 = vmatprep.subr.mxu0 0.0
      %6667 = vmatpush2.msra.mxu0 0.0
      %6668 = vmatprep.subr.mxu0 0.0
      %6669 = vmatpush2.msra.mxu0 0.0
      %6670 = vmatprep.subr.mxu0 0.0
      %6671 = vmatpush2.msra.mxu0 0.0
      %6672 = vmatprep.subr.mxu0 0.0
      %6673 = vmatpush2.msra.mxu0 0.0
      %6674 = vmatprep.subr.mxu0 0.0
      %6675 = vmatpush2.msra.mxu0 0.0
      %6676 = vmatprep.subr.mxu0 0.0
      %6677 = vmatpush2.msra.mxu0 0.0
      %6678 = vmatprep.subr.mxu0 0.0
      %6679 = vmatpush2.msra.mxu0 0.0
      %6680 = vmatprep.subr.mxu0 0.0
      %6681 = vmatpush2.msra.mxu0 0.0
      %6682 = vmatprep.subr.mxu0 0.0
      %6683 = vmatpush2.msra.mxu0 0.0
      %6684 = vmatprep.subr.mxu0 0.0
      %6685 = vmatpush2.msra.mxu0 0.0
      %6686 = vmatprep.subr.mxu0 0.0
      %6687 = vmatpush2.msra.mxu0 0.0
      %6688 = vmatprep.subr.mxu0 0.0
      %6689 = vmatpush2.msra.mxu0 0.0
      %6690 = vmatprep.subr.mxu0 0.0
      %6691 = vmatpush2.msra.mxu0 0.0
      %6692 = vmatprep.subr.mxu0 0.0
      %6693 = vmatpush2.msra.mxu0 0.0
      %6694 = vmatprep.subr.mxu0 0.0
      %6695 = vmatpush2.msra.mxu0 0.0
      %6696 = vmatprep.mubr.f32.mxu0 0.0
      %6697 = vmatmul.mubr.f32.gmra.mxu0 %v6609
      %v6698 = vpop.f32.mrf.mxu0
      %v6699 = vadd.f32 0.0, %v6698
      %v6700 = vpop.f32.mrf.mxu0
      %6701 = vmatprep.mubr.f32.mxu0 0.0
      %6702 = vmatmul.mubr.f32.gmra.mxu0 %v6612
      %v6703 = vpop.f32.mrf.mxu0
      %v6704 = vadd.f32 0.0, %v6703
      %v6705 = vpop.f32.mrf.mxu0
      %6706 = vmatprep.mubr.f32.mxu0 0.0
      %6707 = vmatmul.mubr.f32.gmra.mxu0 %v6615
      %v6708 = vpop.f32.mrf.mxu0
      %v6709 = vadd.f32 0.0, %v6708
      %v6710 = vpop.f32.mrf.mxu0
      %6711 = vmatprep.mubr.f32.mxu0 0.0
      %6712 = vmatmul.mubr.f32.gmra.mxu0 %v6618
      %v6713 = vpop.f32.mrf.mxu0
      %v6714 = vadd.f32 0.0, %v6713
      %v6715 = vpop.f32.mrf.mxu0
      %6716 = vmatprep.mubr.f32.mxu0 0.0
      %6717 = vmatmul.mubr.f32.gmra.mxu0 %v6621
      %v6718 = vpop.f32.mrf.mxu0
      %v6719 = vadd.f32 0.0, %v6718
      %v6720 = vpop.f32.mrf.mxu0
      %6721 = vmatprep.mubr.f32.mxu0 0.0
      %6722 = vmatmul.mubr.f32.gmra.mxu0 %v6624
      %v6723 = vpop.f32.mrf.mxu0
      %v6724 = vadd.f32 0.0, %v6723
      %v6725 = vpop.f32.mrf.mxu0
      %6726 = vmatprep.mubr.f32.mxu0 0.0
      %6727 = vmatmul.mubr.f32.gmra.mxu0 %v6627
      %v6728 = vpop.f32.mrf.mxu0
      %v6729 = vadd.f32 0.0, %v6728
      %v6730 = vpop.f32.mrf.mxu0
      %6731 = vmatprep.mubr.f32.mxu0 0.0
      %6732 = vmatmul.mubr.f32.gmra.mxu0 %v6630
      %v6733 = vpop.f32.mrf.mxu0
      %v6734 = vadd.f32 0.0, %v6733
      %v6735 = vpop.f32.mrf.mxu0
      %6736 = vdwg.mxu0
      %6753 = vrot.lane.b32.xlu0 %v6546, 96
      %v6754 = vpop.permute.xlu0 %6753
      %6755 = vrot.lane.b32.xlu0 %v6551, 96
      %v6756 = vpop.permute.xlu0 %6755
      %6757 = vrot.lane.b32.xlu0 %v6556, 96
      %v6758 = vpop.permute.xlu0 %6757
      %6759 = vrot.lane.b32.xlu0 %v6561, 96
      %v6760 = vpop.permute.xlu0 %6759
      %6761 = vrot.lane.b32.xlu0 %v6566, 96
      %v6762 = vpop.permute.xlu0 %6761
      %6763 = vrot.lane.b32.xlu0 %v6571, 96
      %v6764 = vpop.permute.xlu0 %6763
      %6765 = vrot.lane.b32.xlu0 %v6576, 96
      %v6766 = vpop.permute.xlu0 %6765
      %6767 = vrot.lane.b32.xlu0 %v6581, 96
      %v6768 = vpop.permute.xlu0 %6767
      %6769 = vrot.lane.b32.xlu0 %v6699, 96
      %v6770 = vpop.permute.xlu0 %6769
      %6771 = vrot.lane.b32.xlu0 %v6704, 96
      %v6772 = vpop.permute.xlu0 %6771
      %6773 = vrot.lane.b32.xlu0 %v6709, 96
      %v6774 = vpop.permute.xlu0 %6773
      %6775 = vrot.lane.b32.xlu0 %v6714, 96
      %v6776 = vpop.permute.xlu0 %6775
      %6777 = vrot.lane.b32.xlu0 %v6719, 96
      %v6778 = vpop.permute.xlu0 %6777
      %6779 = vrot.lane.b32.xlu0 %v6724, 96
      %v6780 = vpop.permute.xlu0 %6779
      %6781 = vrot.lane.b32.xlu0 %v6729, 96
      %v6782 = vpop.permute.xlu0 %6781
      %6783 = vrot.lane.b32.xlu0 %v6734, 96
      %v6784 = vpop.permute.xlu0 %6783
      %vm6801 = vcmask 917248
      %6802 = vst.msk [vmem:[%s204] sm:$0xff] %vm6801, %v6754
      %6803 = vst.msk [vmem:[%s204 + $0x8] sm:$0xff] %vm6801, %v6756
      %6804 = vst.msk [vmem:[%s204 + $0x10] sm:$0xff] %vm6801, %v6758
      %6805 = vst.msk [vmem:[%s204 + $0x18] sm:$0xff] %vm6801, %v6760
      %6806 = vst.msk [vmem:[%s204 + $0x20] sm:$0xff] %vm6801, %v6762
      %6807 = vst.msk [vmem:[%s204 + $0x28] sm:$0xff] %vm6801, %v6764
      %6808 = vst.msk [vmem:[%s204 + $0x30] sm:$0xff] %vm6801, %v6766
      %6809 = vst.msk [vmem:[%s204 + $0x38] sm:$0xff] %vm6801, %v6768
      %6810 = vst.msk [vmem:[%s204 + $0x40] sm:$0xff] %vm6801, %v6770
      %6811 = vst.msk [vmem:[%s204 + $0x48] sm:$0xff] %vm6801, %v6772
      %6812 = vst.msk [vmem:[%s204 + $0x50] sm:$0xff] %vm6801, %v6774
      %6813 = vst.msk [vmem:[%s204 + $0x58] sm:$0xff] %vm6801, %v6776
      %6814 = vst.msk [vmem:[%s204 + $0x60] sm:$0xff] %vm6801, %v6778
      %6815 = vst.msk [vmem:[%s204 + $0x68] sm:$0xff] %vm6801, %v6780
      %6816 = vst.msk [vmem:[%s204 + $0x70] sm:$0xff] %vm6801, %v6782
      %6817 = vst.msk [vmem:[%s204 + $0x78] sm:$0xff] %vm6801, %v6784
      %6818 = vrot.lane.b32.xlu0 %v622, 16
      %v6819 = vpop.permute.xlu0 %6818
      %6820 = vrot.lane.b32.xlu0 %v623, 16
      %v6821 = vpop.permute.xlu0 %6820
      %6822 = vrot.lane.b32.xlu0 %v624, 16
      %v6823 = vpop.permute.xlu0 %6822
      %6824 = vrot.lane.b32.xlu0 %v625, 16
      %v6825 = vpop.permute.xlu0 %6824
      %6826 = vrot.lane.b32.xlu0 %v626, 16
      %v6827 = vpop.permute.xlu0 %6826
      %6828 = vrot.lane.b32.xlu0 %v627, 16
      %v6829 = vpop.permute.xlu0 %6828
      %6830 = vrot.lane.b32.xlu0 %v628, 16
      %v6831 = vpop.permute.xlu0 %6830
      %6832 = vrot.lane.b32.xlu0 %v629, 16
      %v6833 = vpop.permute.xlu0 %6832
      %6834 = vrot.lane.b32.xlu0 %v385, 16
      %v6835 = vpop.permute.xlu0 %6834
      %6836 = vrot.lane.b32.xlu0 %v391, 16
      %v6837 = vpop.permute.xlu0 %6836
      %6838 = vrot.lane.b32.xlu0 %v397, 16
      %v6839 = vpop.permute.xlu0 %6838
      %6840 = vrot.lane.b32.xlu0 %v403, 16
      %v6841 = vpop.permute.xlu0 %6840
      %6842 = vrot.lane.b32.xlu0 %v409, 16
      %v6843 = vpop.permute.xlu0 %6842
      %6844 = vrot.lane.b32.xlu0 %v415, 16
      %v6845 = vpop.permute.xlu0 %6844
      %6846 = vrot.lane.b32.xlu0 %v421, 16
      %v6847 = vpop.permute.xlu0 %6846
      %6848 = vrot.lane.b32.xlu0 %v427, 16
      %v6849 = vpop.permute.xlu0 %6848
      %v6850 = vsel %vm638, %v6819, 0
      %v6852 = vsel %vm638, %v6821, 0
      %v6854 = vsel %vm638, %v6823, 0
      %v6856 = vsel %vm638, %v6825, 0
      %v6858 = vsel %vm638, %v6827, 0
      %v6860 = vsel %vm638, %v6829, 0
      %v6862 = vsel %vm638, %v6831, 0
      %v6864 = vsel %vm638, %v6833, 0
      %v6866 = vsel %vm638, %v6835, 0
      %v6868 = vsel %vm638, %v6837, 0
      %v6870 = vsel %vm638, %v6839, 0
      %v6872 = vsel %vm638, %v6841, 0
      %v6874 = vsel %vm638, %v6843, 0
      %v6876 = vsel %vm638, %v6845, 0
      %v6878 = vsel %vm638, %v6847, 0
      %v6880 = vsel %vm638, %v6849, 0
      %6882 = vmatprep.subr.mxu0 0.0
      %6883 = vmatpush1.xpose.msra.mxu0 0.0
      %6884 = vmatprep.subr.mxu0 0.0
      %6885 = vmatpush1.xpose.msra.mxu0 0.0
      %6886 = vmatprep.subr.mxu0 0.0
      %6887 = vmatpush1.xpose.msra.mxu0 0.0
      %6888 = vmatprep.subr.mxu0 0.0
      %6889 = vmatpush1.xpose.msra.mxu0 0.0
      %6890 = vmatprep.subr.mxu0 0.0
      %6891 = vmatpush1.xpose.msra.mxu0 0.0
      %6892 = vmatprep.subr.mxu0 0.0
      %6893 = vmatpush1.xpose.msra.mxu0 0.0
      %6894 = vmatprep.subr.mxu0 0.0
      %6895 = vmatpush1.xpose.msra.mxu0 0.0
      %6896 = vmatprep.subr.mxu0 0.0
      %6897 = vmatpush1.xpose.msra.mxu0 0.0
      %6898 = vmatprep.subr.mxu0 0.0
      %6899 = vmatpush1.xpose.msra.mxu0 %v6880
      %6900 = vmatprep.subr.mxu0 0.0
      %6901 = vmatpush1.xpose.msra.mxu0 %v6878
      %6902 = vmatprep.subr.mxu0 0.0
      %6903 = vmatpush1.xpose.msra.mxu0 %v6876
      %6904 = vmatprep.subr.mxu0 0.0
      %6905 = vmatpush1.xpose.msra.mxu0 %v6874
      %6906 = vmatprep.subr.mxu0 0.0
      %6907 = vmatpush1.xpose.msra.mxu0 %v6872
      %6908 = vmatprep.subr.mxu0 0.0
      %6909 = vmatpush1.xpose.msra.mxu0 %v6870
      %6910 = vmatprep.subr.mxu0 0.0
      %6911 = vmatpush1.xpose.msra.mxu0 %v6868
      %6912 = vmatprep.subr.mxu0 0.0
      %6913 = vmatpush1.xpose.msra.mxu0 %v6866
      %6914 = vmatprep.subr.mxu0 0.0
      %6915 = vmatpush2.xpose.msra.mxu0 0.0
      %6916 = vmatprep.subr.mxu0 0.0
      %6917 = vmatpush2.xpose.msra.mxu0 0.0
      %6918 = vmatprep.subr.mxu0 0.0
      %6919 = vmatpush2.xpose.msra.mxu0 0.0
      %6920 = vmatprep.subr.mxu0 0.0
      %6921 = vmatpush2.xpose.msra.mxu0 0.0
      %6922 = vmatprep.subr.mxu0 0.0
      %6923 = vmatpush2.xpose.msra.mxu0 0.0
      %6924 = vmatprep.subr.mxu0 0.0
      %6925 = vmatpush2.xpose.msra.mxu0 0.0
      %6926 = vmatprep.subr.mxu0 0.0
      %6927 = vmatpush2.xpose.msra.mxu0 0.0
      %6928 = vmatprep.subr.mxu0 0.0
      %6929 = vmatpush2.xpose.msra.mxu0 0.0
      %6930 = vmatprep.subr.mxu0 0.0
      %6931 = vmatpush2.xpose.msra.mxu0 0.0
      %6932 = vmatprep.subr.mxu0 0.0
      %6933 = vmatpush2.xpose.msra.mxu0 0.0
      %6934 = vmatprep.subr.mxu0 0.0
      %6935 = vmatpush2.xpose.msra.mxu0 0.0
      %6936 = vmatprep.subr.mxu0 0.0
      %6937 = vmatpush2.xpose.msra.mxu0 0.0
      %6938 = vmatprep.subr.mxu0 0.0
      %6939 = vmatpush2.xpose.msra.mxu0 0.0
      %6940 = vmatprep.subr.mxu0 0.0
      %6941 = vmatpush2.xpose.msra.mxu0 0.0
      %6942 = vmatprep.subr.mxu0 0.0
      %6943 = vmatpush2.xpose.msra.mxu0 0.0
      %6944 = vmatprep.subr.mxu0 0.0
      %6945 = vmatpush2.xpose.msra.mxu0 0.0
      %6946 = vmatprep.mubr.f32.mxu0 0.0
      %6947 = vmatmul.mubr.f32.gmra.mxu0 %v6850
      %v6948 = vpop.f32.mrf.mxu0
      %v6949 = vadd.f32 0.0, %v6948
      %v6950 = vpop.f32.mrf.mxu0
      %6951 = vmatprep.mubr.f32.mxu0 0.0
      %6952 = vmatmul.mubr.f32.gmra.mxu0 %v6852
      %v6953 = vpop.f32.mrf.mxu0
      %v6954 = vadd.f32 0.0, %v6953
      %v6955 = vpop.f32.mrf.mxu0
      %6956 = vmatprep.mubr.f32.mxu0 0.0
      %6957 = vmatmul.mubr.f32.gmra.mxu0 %v6854
      %v6958 = vpop.f32.mrf.mxu0
      %v6959 = vadd.f32 0.0, %v6958
      %v6960 = vpop.f32.mrf.mxu0
      %6961 = vmatprep.mubr.f32.mxu0 0.0
      %6962 = vmatmul.mubr.f32.gmra.mxu0 %v6856
      %v6963 = vpop.f32.mrf.mxu0
      %v6964 = vadd.f32 0.0, %v6963
      %v6965 = vpop.f32.mrf.mxu0
      %6966 = vmatprep.mubr.f32.mxu0 0.0
      %6967 = vmatmul.mubr.f32.gmra.mxu0 %v6858
      %v6968 = vpop.f32.mrf.mxu0
      %v6969 = vadd.f32 0.0, %v6968
      %v6970 = vpop.f32.mrf.mxu0
      %6971 = vmatprep.mubr.f32.mxu0 0.0
      %6972 = vmatmul.mubr.f32.gmra.mxu0 %v6860
      %v6973 = vpop.f32.mrf.mxu0
      %v6974 = vadd.f32 0.0, %v6973
      %v6975 = vpop.f32.mrf.mxu0
      %6976 = vmatprep.mubr.f32.mxu0 0.0
      %6977 = vmatmul.mubr.f32.gmra.mxu0 %v6862
      %v6978 = vpop.f32.mrf.mxu0
      %v6979 = vadd.f32 0.0, %v6978
      %v6980 = vpop.f32.mrf.mxu0
      %6981 = vmatprep.mubr.f32.mxu0 0.0
      %6982 = vmatmul.mubr.f32.gmra.mxu0 %v6864
      %v6983 = vpop.f32.mrf.mxu0
      %v6984 = vadd.f32 0.0, %v6983
      %v6985 = vpop.f32.mrf.mxu0
      %6986 = vdwg.mxu0
      %6987 = vrot.lane.b32.xlu0 %v630, 16
      %v6988 = vpop.permute.xlu0 %6987
      %6989 = vrot.lane.b32.xlu0 %v631, 16
      %v6990 = vpop.permute.xlu0 %6989
      %6991 = vrot.lane.b32.xlu0 %v632, 16
      %v6992 = vpop.permute.xlu0 %6991
      %6993 = vrot.lane.b32.xlu0 %v633, 16
      %v6994 = vpop.permute.xlu0 %6993
      %6995 = vrot.lane.b32.xlu0 %v634, 16
      %v6996 = vpop.permute.xlu0 %6995
      %6997 = vrot.lane.b32.xlu0 %v635, 16
      %v6998 = vpop.permute.xlu0 %6997
      %6999 = vrot.lane.b32.xlu0 %v636, 16
      %v7000 = vpop.permute.xlu0 %6999
      %7001 = vrot.lane.b32.xlu0 %v637, 16
      %v7002 = vpop.permute.xlu0 %7001
      %7003 = vrot.lane.b32.xlu0 %v433, 16
      %v7004 = vpop.permute.xlu0 %7003
      %7005 = vrot.lane.b32.xlu0 %v439, 16
      %v7006 = vpop.permute.xlu0 %7005
      %7007 = vrot.lane.b32.xlu0 %v445, 16
      %v7008 = vpop.permute.xlu0 %7007
      %7009 = vrot.lane.b32.xlu0 %v451, 16
      %v7010 = vpop.permute.xlu0 %7009
      %7011 = vrot.lane.b32.xlu0 %v457, 16
      %v7012 = vpop.permute.xlu0 %7011
      %7013 = vrot.lane.b32.xlu0 %v463, 16
      %v7014 = vpop.permute.xlu0 %7013
      %7015 = vrot.lane.b32.xlu0 %v469, 16
      %v7016 = vpop.permute.xlu0 %7015
      %7017 = vrot.lane.b32.xlu0 %v475, 16
      %v7018 = vpop.permute.xlu0 %7017
      %v7019 = vsel %vm638, %v6988, 0
      %v7021 = vsel %vm638, %v6990, 0
      %v7023 = vsel %vm638, %v6992, 0
      %v7025 = vsel %vm638, %v6994, 0
      %v7027 = vsel %vm638, %v6996, 0
      %v7029 = vsel %vm638, %v6998, 0
      %v7031 = vsel %vm638, %v7000, 0
      %v7033 = vsel %vm638, %v7002, 0
      %v7035 = vsel %vm638, %v7004, 0
      %v7037 = vsel %vm638, %v7006, 0
      %v7039 = vsel %vm638, %v7008, 0
      %v7041 = vsel %vm638, %v7010, 0
      %v7043 = vsel %vm638, %v7012, 0
      %v7045 = vsel %vm638, %v7014, 0
      %v7047 = vsel %vm638, %v7016, 0
      %v7049 = vsel %vm638, %v7018, 0
      %7051 = vmatprep.subr.mxu0 0.0
      %7052 = vmatpush1.xpose.msra.mxu0 0.0
      %7053 = vmatprep.subr.mxu0 0.0
      %7054 = vmatpush1.xpose.msra.mxu0 0.0
      %7055 = vmatprep.subr.mxu0 0.0
      %7056 = vmatpush1.xpose.msra.mxu0 0.0
      %7057 = vmatprep.subr.mxu0 0.0
      %7058 = vmatpush1.xpose.msra.mxu0 0.0
      %7059 = vmatprep.subr.mxu0 0.0
      %7060 = vmatpush1.xpose.msra.mxu0 0.0
      %7061 = vmatprep.subr.mxu0 0.0
      %7062 = vmatpush1.xpose.msra.mxu0 0.0
      %7063 = vmatprep.subr.mxu0 0.0
      %7064 = vmatpush1.xpose.msra.mxu0 0.0
      %7065 = vmatprep.subr.mxu0 0.0
      %7066 = vmatpush1.xpose.msra.mxu0 0.0
      %7067 = vmatprep.subr.mxu0 0.0
      %7068 = vmatpush1.xpose.msra.mxu0 %v7049
      %7069 = vmatprep.subr.mxu0 0.0
      %7070 = vmatpush1.xpose.msra.mxu0 %v7047
      %7071 = vmatprep.subr.mxu0 0.0
      %7072 = vmatpush1.xpose.msra.mxu0 %v7045
      %7073 = vmatprep.subr.mxu0 0.0
      %7074 = vmatpush1.xpose.msra.mxu0 %v7043
      %7075 = vmatprep.subr.mxu0 0.0
      %7076 = vmatpush1.xpose.msra.mxu0 %v7041
      %7077 = vmatprep.subr.mxu0 0.0
      %7078 = vmatpush1.xpose.msra.mxu0 %v7039
      %7079 = vmatprep.subr.mxu0 0.0
      %7080 = vmatpush1.xpose.msra.mxu0 %v7037
      %7081 = vmatprep.subr.mxu0 0.0
      %7082 = vmatpush1.xpose.msra.mxu0 %v7035
      %7083 = vmatprep.subr.mxu0 0.0
      %7084 = vmatpush2.xpose.msra.mxu0 0.0
      %7085 = vmatprep.subr.mxu0 0.0
      %7086 = vmatpush2.xpose.msra.mxu0 0.0
      %7087 = vmatprep.subr.mxu0 0.0
      %7088 = vmatpush2.xpose.msra.mxu0 0.0
      %7089 = vmatprep.subr.mxu0 0.0
      %7090 = vmatpush2.xpose.msra.mxu0 0.0
      %7091 = vmatprep.subr.mxu0 0.0
      %7092 = vmatpush2.xpose.msra.mxu0 0.0
      %7093 = vmatprep.subr.mxu0 0.0
      %7094 = vmatpush2.xpose.msra.mxu0 0.0
      %7095 = vmatprep.subr.mxu0 0.0
      %7096 = vmatpush2.xpose.msra.mxu0 0.0
      %7097 = vmatprep.subr.mxu0 0.0
      %7098 = vmatpush2.xpose.msra.mxu0 0.0
      %7099 = vmatprep.subr.mxu0 0.0
      %7100 = vmatpush2.xpose.msra.mxu0 0.0
      %7101 = vmatprep.subr.mxu0 0.0
      %7102 = vmatpush2.xpose.msra.mxu0 0.0
      %7103 = vmatprep.subr.mxu0 0.0
      %7104 = vmatpush2.xpose.msra.mxu0 0.0
      %7105 = vmatprep.subr.mxu0 0.0
      %7106 = vmatpush2.xpose.msra.mxu0 0.0
      %7107 = vmatprep.subr.mxu0 0.0
      %7108 = vmatpush2.xpose.msra.mxu0 0.0
      %7109 = vmatprep.subr.mxu0 0.0
      %7110 = vmatpush2.xpose.msra.mxu0 0.0
      %7111 = vmatprep.subr.mxu0 0.0
      %7112 = vmatpush2.xpose.msra.mxu0 0.0
      %7113 = vmatprep.subr.mxu0 0.0
      %7114 = vmatpush2.xpose.msra.mxu0 0.0
      %7115 = vmatprep.mubr.f32.mxu0 0.0
      %7116 = vmatmul.mubr.f32.gmra.mxu0 %v7019
      %v7117 = vpop.f32.mrf.mxu0
      %v7118 = vadd.f32 0.0, %v7117
      %v7119 = vpop.f32.mrf.mxu0
      %7120 = vmatprep.mubr.f32.mxu0 0.0
      %7121 = vmatmul.mubr.f32.gmra.mxu0 %v7021
      %v7122 = vpop.f32.mrf.mxu0
      %v7123 = vadd.f32 0.0, %v7122
      %v7124 = vpop.f32.mrf.mxu0
      %7125 = vmatprep.mubr.f32.mxu0 0.0
      %7126 = vmatmul.mubr.f32.gmra.mxu0 %v7023
      %v7127 = vpop.f32.mrf.mxu0
      %v7128 = vadd.f32 0.0, %v7127
      %v7129 = vpop.f32.mrf.mxu0
      %7130 = vmatprep.mubr.f32.mxu0 0.0
      %7131 = vmatmul.mubr.f32.gmra.mxu0 %v7025
      %v7132 = vpop.f32.mrf.mxu0
      %v7133 = vadd.f32 0.0, %v7132
      %v7134 = vpop.f32.mrf.mxu0
      %7135 = vmatprep.mubr.f32.mxu0 0.0
      %7136 = vmatmul.mubr.f32.gmra.mxu0 %v7027
      %v7137 = vpop.f32.mrf.mxu0
      %v7138 = vadd.f32 0.0, %v7137
      %v7139 = vpop.f32.mrf.mxu0
      %7140 = vmatprep.mubr.f32.mxu0 0.0
      %7141 = vmatmul.mubr.f32.gmra.mxu0 %v7029
      %v7142 = vpop.f32.mrf.mxu0
      %v7143 = vadd.f32 0.0, %v7142
      %v7144 = vpop.f32.mrf.mxu0
      %7145 = vmatprep.mubr.f32.mxu0 0.0
      %7146 = vmatmul.mubr.f32.gmra.mxu0 %v7031
      %v7147 = vpop.f32.mrf.mxu0
      %v7148 = vadd.f32 0.0, %v7147
      %v7149 = vpop.f32.mrf.mxu0
      %7150 = vmatprep.mubr.f32.mxu0 0.0
      %7151 = vmatmul.mubr.f32.gmra.mxu0 %v7033
      %v7152 = vpop.f32.mrf.mxu0
      %v7153 = vadd.f32 0.0, %v7152
      %v7154 = vpop.f32.mrf.mxu0
      %7155 = vdwg.mxu0
      %v7156 = vsel %vm945, %v6949, -inf
      %7157 = vmax.xlane.f32.xlu0 %v7156
      %v7158 = vpop.xlane.xlu0 %7157
      %v7159 = vsel %vm945, %v6954, -inf
      %7160 = vmax.xlane.f32.xlu0 %v7159
      %v7161 = vpop.xlane.xlu0 %7160
      %v7162 = vsel %vm945, %v6959, -inf
      %7163 = vmax.xlane.f32.xlu0 %v7162
      %v7164 = vpop.xlane.xlu0 %7163
      %v7165 = vsel %vm945, %v6964, -inf
      %7166 = vmax.xlane.f32.xlu0 %v7165
      %v7167 = vpop.xlane.xlu0 %7166
      %v7168 = vsel %vm945, %v6969, -inf
      %7169 = vmax.xlane.f32.xlu0 %v7168
      %v7170 = vpop.xlane.xlu0 %7169
      %v7171 = vsel %vm945, %v6974, -inf
      %7172 = vmax.xlane.f32.xlu0 %v7171
      %v7173 = vpop.xlane.xlu0 %7172
      %v7174 = vsel %vm945, %v6979, -inf
      %7175 = vmax.xlane.f32.xlu0 %v7174
      %v7176 = vpop.xlane.xlu0 %7175
      %v7177 = vsel %vm945, %v6984, -inf
      %7178 = vmax.xlane.f32.xlu0 %v7177
      %v7179 = vpop.xlane.xlu0 %7178
      %v7180 = vsel %vm945, %v7118, -inf
      %7181 = vmax.xlane.f32.xlu0 %v7180
      %v7182 = vpop.xlane.xlu0 %7181
      %v7183 = vsel %vm945, %v7123, -inf
      %7184 = vmax.xlane.f32.xlu0 %v7183
      %v7185 = vpop.xlane.xlu0 %7184
      %v7186 = vsel %vm945, %v7128, -inf
      %7187 = vmax.xlane.f32.xlu0 %v7186
      %v7188 = vpop.xlane.xlu0 %7187
      %v7189 = vsel %vm945, %v7133, -inf
      %7190 = vmax.xlane.f32.xlu0 %v7189
      %v7191 = vpop.xlane.xlu0 %7190
      %v7192 = vsel %vm945, %v7138, -inf
      %7193 = vmax.xlane.f32.xlu0 %v7192
      %v7194 = vpop.xlane.xlu0 %7193
      %v7195 = vsel %vm945, %v7143, -inf
      %7196 = vmax.xlane.f32.xlu0 %v7195
      %v7197 = vpop.xlane.xlu0 %7196
      %v7198 = vsel %vm945, %v7148, -inf
      %7199 = vmax.xlane.f32.xlu0 %v7198
      %v7200 = vpop.xlane.xlu0 %7199
      %v7201 = vsel %vm945, %v7153, -inf
      %7202 = vmax.xlane.f32.xlu0 %v7201
      %v7203 = vpop.xlane.xlu0 %7202
      %v7204 = vsub.f32 %v6949, %v7158
      %v7205 = vsub.f32 %v6954, %v7161
      %v7206 = vsub.f32 %v6959, %v7164
      %v7207 = vsub.f32 %v6964, %v7167
      %v7208 = vsub.f32 %v6969, %v7170
      %v7209 = vsub.f32 %v6974, %v7173
      %v7210 = vsub.f32 %v6979, %v7176
      %v7211 = vsub.f32 %v6984, %v7179
      %v7212 = vsub.f32 %v7118, %v7182
      %v7213 = vsub.f32 %v7123, %v7185
      %v7214 = vsub.f32 %v7128, %v7188
      %v7215 = vsub.f32 %v7133, %v7191
      %v7216 = vsub.f32 %v7138, %v7194
      %v7217 = vsub.f32 %v7143, %v7197
      %v7218 = vsub.f32 %v7148, %v7200
      %v7219 = vsub.f32 %v7153, %v7203
      %v7220 = vmul.f32 %v7204, 1.442695
      %v7221 = vpow.pop %v7220
      %v7222 = vmul.f32 %v7205, 1.442695
      %v7223 = vpow.pop %v7222
      %v7224 = vmul.f32 %v7206, 1.442695
      %v7225 = vpow.pop %v7224
      %v7226 = vmul.f32 %v7207, 1.442695
      %v7227 = vpow.pop %v7226
      %v7228 = vmul.f32 %v7208, 1.442695
      %v7229 = vpow.pop %v7228
      %v7230 = vmul.f32 %v7209, 1.442695
      %v7231 = vpow.pop %v7230
      %v7232 = vmul.f32 %v7210, 1.442695
      %v7233 = vpow.pop %v7232
      %v7234 = vmul.f32 %v7211, 1.442695
      %v7235 = vpow.pop %v7234
      %v7236 = vmul.f32 %v7212, 1.442695
      %v7237 = vpow.pop %v7236
      %v7238 = vmul.f32 %v7213, 1.442695
      %v7239 = vpow.pop %v7238
      %v7240 = vmul.f32 %v7214, 1.442695
      %v7241 = vpow.pop %v7240
      %v7242 = vmul.f32 %v7215, 1.442695
      %v7243 = vpow.pop %v7242
      %v7244 = vmul.f32 %v7216, 1.442695
      %v7245 = vpow.pop %v7244
      %v7246 = vmul.f32 %v7217, 1.442695
      %v7247 = vpow.pop %v7246
      %v7248 = vmul.f32 %v7218, 1.442695
      %v7249 = vpow.pop %v7248
      %v7250 = vmul.f32 %v7219, 1.442695
      %v7251 = vpow.pop %v7250
      %v7252 = vsel %vm945, %v7221, 0.0
      %7253 = vadd.xlane.f32.xlu0 %v7252
      %v7254 = vpop.xlane.xlu0 %7253
      %v7255 = vsel %vm945, %v7223, 0.0
      %7256 = vadd.xlane.f32.xlu0 %v7255
      %v7257 = vpop.xlane.xlu0 %7256
      %v7258 = vsel %vm945, %v7225, 0.0
      %7259 = vadd.xlane.f32.xlu0 %v7258
      %v7260 = vpop.xlane.xlu0 %7259
      %v7261 = vsel %vm945, %v7227, 0.0
      %7262 = vadd.xlane.f32.xlu0 %v7261
      %v7263 = vpop.xlane.xlu0 %7262
      %v7264 = vsel %vm945, %v7229, 0.0
      %7265 = vadd.xlane.f32.xlu0 %v7264
      %v7266 = vpop.xlane.xlu0 %7265
      %v7267 = vsel %vm945, %v7231, 0.0
      %7268 = vadd.xlane.f32.xlu0 %v7267
      %v7269 = vpop.xlane.xlu0 %7268
      %v7270 = vsel %vm945, %v7233, 0.0
      %7271 = vadd.xlane.f32.xlu0 %v7270
      %v7272 = vpop.xlane.xlu0 %7271
      %v7273 = vsel %vm945, %v7235, 0.0
      %7274 = vadd.xlane.f32.xlu0 %v7273
      %v7275 = vpop.xlane.xlu0 %7274
      %v7276 = vsel %vm945, %v7237, 0.0
      %7277 = vadd.xlane.f32.xlu0 %v7276
      %v7278 = vpop.xlane.xlu0 %7277
      %v7279 = vsel %vm945, %v7239, 0.0
      %7280 = vadd.xlane.f32.xlu0 %v7279
      %v7281 = vpop.xlane.xlu0 %7280
      %v7282 = vsel %vm945, %v7241, 0.0
      %7283 = vadd.xlane.f32.xlu0 %v7282
      %v7284 = vpop.xlane.xlu0 %7283
      %v7285 = vsel %vm945, %v7243, 0.0
      %7286 = vadd.xlane.f32.xlu0 %v7285
      %v7287 = vpop.xlane.xlu0 %7286
      %v7288 = vsel %vm945, %v7245, 0.0
      %7289 = vadd.xlane.f32.xlu0 %v7288
      %v7290 = vpop.xlane.xlu0 %7289
      %v7291 = vsel %vm945, %v7247, 0.0
      %7292 = vadd.xlane.f32.xlu0 %v7291
      %v7293 = vpop.xlane.xlu0 %7292
      %v7294 = vsel %vm945, %v7249, 0.0
      %7295 = vadd.xlane.f32.xlu0 %v7294
      %v7296 = vpop.xlane.xlu0 %7295
      %v7297 = vsel %vm945, %v7251, 0.0
      %7298 = vadd.xlane.f32.xlu0 %v7297
      %v7299 = vpop.xlane.xlu0 %7298
      %v7300 = vrcp.pop %v7254
      %v7301 = vmul.f32 %v7221, %v7300
      %v7302 = vrcp.pop %v7257
      %v7303 = vmul.f32 %v7223, %v7302
      %v7304 = vrcp.pop %v7260
      %v7305 = vmul.f32 %v7225, %v7304
      %v7306 = vrcp.pop %v7263
      %v7307 = vmul.f32 %v7227, %v7306
      %v7308 = vrcp.pop %v7266
      %v7309 = vmul.f32 %v7229, %v7308
      %v7310 = vrcp.pop %v7269
      %v7311 = vmul.f32 %v7231, %v7310
      %v7312 = vrcp.pop %v7272
      %v7313 = vmul.f32 %v7233, %v7312
      %v7314 = vrcp.pop %v7275
      %v7315 = vmul.f32 %v7235, %v7314
      %v7316 = vrcp.pop %v7278
      %v7317 = vmul.f32 %v7237, %v7316
      %v7318 = vrcp.pop %v7281
      %v7319 = vmul.f32 %v7239, %v7318
      %v7320 = vrcp.pop %v7284
      %v7321 = vmul.f32 %v7241, %v7320
      %v7322 = vrcp.pop %v7287
      %v7323 = vmul.f32 %v7243, %v7322
      %v7324 = vrcp.pop %v7290
      %v7325 = vmul.f32 %v7245, %v7324
      %v7326 = vrcp.pop %v7293
      %v7327 = vmul.f32 %v7247, %v7326
      %v7328 = vrcp.pop %v7296
      %v7329 = vmul.f32 %v7249, %v7328
      %v7330 = vrcp.pop %v7299
      %v7331 = vmul.f32 %v7251, %v7330
      %7332 = vrot.lane.b32.xlu0 %v544, 16
      %v7333 = vpop.permute.xlu0 %7332
      %7334 = vrot.lane.b32.xlu0 %v549, 16
      %v7335 = vpop.permute.xlu0 %7334
      %7336 = vrot.lane.b32.xlu0 %v554, 16
      %v7337 = vpop.permute.xlu0 %7336
      %7338 = vrot.lane.b32.xlu0 %v559, 16
      %v7339 = vpop.permute.xlu0 %7338
      %7340 = vrot.lane.b32.xlu0 %v564, 16
      %v7341 = vpop.permute.xlu0 %7340
      %7342 = vrot.lane.b32.xlu0 %v569, 16
      %v7343 = vpop.permute.xlu0 %7342
      %7344 = vrot.lane.b32.xlu0 %v574, 16
      %v7345 = vpop.permute.xlu0 %7344
      %7346 = vrot.lane.b32.xlu0 %v579, 16
      %v7347 = vpop.permute.xlu0 %7346
      %v7357 = vsel %vm945, %v7301, 0
      %v7360 = vsel %vm945, %v7303, 0
      %v7363 = vsel %vm945, %v7305, 0
      %v7366 = vsel %vm945, %v7307, 0
      %v7369 = vsel %vm945, %v7309, 0
      %v7372 = vsel %vm945, %v7311, 0
      %v7375 = vsel %vm945, %v7313, 0
      %v7378 = vsel %vm945, %v7315, 0
      %7380 = vmatprep.subr.mxu0 0.0
      %7381 = vmatpush1.msra.mxu0 0.0
      %7382 = vmatprep.subr.mxu0 0.0
      %7383 = vmatpush1.msra.mxu0 0.0
      %7384 = vmatprep.subr.mxu0 0.0
      %7385 = vmatpush1.msra.mxu0 0.0
      %7386 = vmatprep.subr.mxu0 0.0
      %7387 = vmatpush1.msra.mxu0 0.0
      %7388 = vmatprep.subr.mxu0 0.0
      %7389 = vmatpush1.msra.mxu0 0.0
      %7390 = vmatprep.subr.mxu0 0.0
      %7391 = vmatpush1.msra.mxu0 0.0
      %7392 = vmatprep.subr.mxu0 0.0
      %7393 = vmatpush1.msra.mxu0 0.0
      %7394 = vmatprep.subr.mxu0 0.0
      %7395 = vmatpush1.msra.mxu0 0.0
      %7396 = vmatprep.subr.mxu0 0.0
      %7397 = vmatpush1.msra.mxu0 %v7347
      %7398 = vmatprep.subr.mxu0 0.0
      %7399 = vmatpush1.msra.mxu0 %v7345
      %7400 = vmatprep.subr.mxu0 0.0
      %7401 = vmatpush1.msra.mxu0 %v7343
      %7402 = vmatprep.subr.mxu0 0.0
      %7403 = vmatpush1.msra.mxu0 %v7341
      %7404 = vmatprep.subr.mxu0 0.0
      %7405 = vmatpush1.msra.mxu0 %v7339
      %7406 = vmatprep.subr.mxu0 0.0
      %7407 = vmatpush1.msra.mxu0 %v7337
      %7408 = vmatprep.subr.mxu0 0.0
      %7409 = vmatpush1.msra.mxu0 %v7335
      %7410 = vmatprep.subr.mxu0 0.0
      %7411 = vmatpush1.msra.mxu0 %v7333
      %7412 = vmatprep.subr.mxu0 0.0
      %7413 = vmatpush2.msra.mxu0 0.0
      %7414 = vmatprep.subr.mxu0 0.0
      %7415 = vmatpush2.msra.mxu0 0.0
      %7416 = vmatprep.subr.mxu0 0.0
      %7417 = vmatpush2.msra.mxu0 0.0
      %7418 = vmatprep.subr.mxu0 0.0
      %7419 = vmatpush2.msra.mxu0 0.0
      %7420 = vmatprep.subr.mxu0 0.0
      %7421 = vmatpush2.msra.mxu0 0.0
      %7422 = vmatprep.subr.mxu0 0.0
      %7423 = vmatpush2.msra.mxu0 0.0
      %7424 = vmatprep.subr.mxu0 0.0
      %7425 = vmatpush2.msra.mxu0 0.0
      %7426 = vmatprep.subr.mxu0 0.0
      %7427 = vmatpush2.msra.mxu0 0.0
      %7428 = vmatprep.subr.mxu0 0.0
      %7429 = vmatpush2.msra.mxu0 0.0
      %7430 = vmatprep.subr.mxu0 0.0
      %7431 = vmatpush2.msra.mxu0 0.0
      %7432 = vmatprep.subr.mxu0 0.0
      %7433 = vmatpush2.msra.mxu0 0.0
      %7434 = vmatprep.subr.mxu0 0.0
      %7435 = vmatpush2.msra.mxu0 0.0
      %7436 = vmatprep.subr.mxu0 0.0
      %7437 = vmatpush2.msra.mxu0 0.0
      %7438 = vmatprep.subr.mxu0 0.0
      %7439 = vmatpush2.msra.mxu0 0.0
      %7440 = vmatprep.subr.mxu0 0.0
      %7441 = vmatpush2.msra.mxu0 0.0
      %7442 = vmatprep.subr.mxu0 0.0
      %7443 = vmatpush2.msra.mxu0 0.0
      %7444 = vmatprep.mubr.f32.mxu0 0.0
      %7445 = vmatmul.mubr.f32.gmra.mxu0 %v7357
      %v7446 = vpop.f32.mrf.mxu0
      %v7447 = vadd.f32 0.0, %v7446
      %v7448 = vpop.f32.mrf.mxu0
      %7449 = vmatprep.mubr.f32.mxu0 0.0
      %7450 = vmatmul.mubr.f32.gmra.mxu0 %v7360
      %v7451 = vpop.f32.mrf.mxu0
      %v7452 = vadd.f32 0.0, %v7451
      %v7453 = vpop.f32.mrf.mxu0
      %7454 = vmatprep.mubr.f32.mxu0 0.0
      %7455 = vmatmul.mubr.f32.gmra.mxu0 %v7363
      %v7456 = vpop.f32.mrf.mxu0
      %v7457 = vadd.f32 0.0, %v7456
      %v7458 = vpop.f32.mrf.mxu0
      %7459 = vmatprep.mubr.f32.mxu0 0.0
      %7460 = vmatmul.mubr.f32.gmra.mxu0 %v7366
      %v7461 = vpop.f32.mrf.mxu0
      %v7462 = vadd.f32 0.0, %v7461
      %v7463 = vpop.f32.mrf.mxu0
      %7464 = vmatprep.mubr.f32.mxu0 0.0
      %7465 = vmatmul.mubr.f32.gmra.mxu0 %v7369
      %v7466 = vpop.f32.mrf.mxu0
      %v7467 = vadd.f32 0.0, %v7466
      %v7468 = vpop.f32.mrf.mxu0
      %7469 = vmatprep.mubr.f32.mxu0 0.0
      %7470 = vmatmul.mubr.f32.gmra.mxu0 %v7372
      %v7471 = vpop.f32.mrf.mxu0
      %v7472 = vadd.f32 0.0, %v7471
      %v7473 = vpop.f32.mrf.mxu0
      %7474 = vmatprep.mubr.f32.mxu0 0.0
      %7475 = vmatmul.mubr.f32.gmra.mxu0 %v7375
      %v7476 = vpop.f32.mrf.mxu0
      %v7477 = vadd.f32 0.0, %v7476
      %v7478 = vpop.f32.mrf.mxu0
      %7479 = vmatprep.mubr.f32.mxu0 0.0
      %7480 = vmatmul.mubr.f32.gmra.mxu0 %v7378
      %v7481 = vpop.f32.mrf.mxu0
      %v7482 = vadd.f32 0.0, %v7481
      %v7483 = vpop.f32.mrf.mxu0
      %7484 = vdwg.mxu0
      %7485 = vrot.lane.b32.xlu0 %v584, 16
      %v7486 = vpop.permute.xlu0 %7485
      %7487 = vrot.lane.b32.xlu0 %v589, 16
      %v7488 = vpop.permute.xlu0 %7487
      %7489 = vrot.lane.b32.xlu0 %v594, 16
      %v7490 = vpop.permute.xlu0 %7489
      %7491 = vrot.lane.b32.xlu0 %v599, 16
      %v7492 = vpop.permute.xlu0 %7491
      %7493 = vrot.lane.b32.xlu0 %v604, 16
      %v7494 = vpop.permute.xlu0 %7493
      %7495 = vrot.lane.b32.xlu0 %v609, 16
      %v7496 = vpop.permute.xlu0 %7495
      %7497 = vrot.lane.b32.xlu0 %v614, 16
      %v7498 = vpop.permute.xlu0 %7497
      %7499 = vrot.lane.b32.xlu0 %v619, 16
      %v7500 = vpop.permute.xlu0 %7499
      %v7510 = vsel %vm945, %v7317, 0
      %v7513 = vsel %vm945, %v7319, 0
      %v7516 = vsel %vm945, %v7321, 0
      %v7519 = vsel %vm945, %v7323, 0
      %v7522 = vsel %vm945, %v7325, 0
      %v7525 = vsel %vm945, %v7327, 0
      %v7528 = vsel %vm945, %v7329, 0
      %v7531 = vsel %vm945, %v7331, 0
      %7533 = vmatprep.subr.mxu0 0.0
      %7534 = vmatpush1.msra.mxu0 0.0
      %7535 = vmatprep.subr.mxu0 0.0
      %7536 = vmatpush1.msra.mxu0 0.0
      %7537 = vmatprep.subr.mxu0 0.0
      %7538 = vmatpush1.msra.mxu0 0.0
      %7539 = vmatprep.subr.mxu0 0.0
      %7540 = vmatpush1.msra.mxu0 0.0
      %7541 = vmatprep.subr.mxu0 0.0
      %7542 = vmatpush1.msra.mxu0 0.0
      %7543 = vmatprep.subr.mxu0 0.0
      %7544 = vmatpush1.msra.mxu0 0.0
      %7545 = vmatprep.subr.mxu0 0.0
      %7546 = vmatpush1.msra.mxu0 0.0
      %7547 = vmatprep.subr.mxu0 0.0
      %7548 = vmatpush1.msra.mxu0 0.0
      %7549 = vmatprep.subr.mxu0 0.0
      %7550 = vmatpush1.msra.mxu0 %v7500
      %7551 = vmatprep.subr.mxu0 0.0
      %7552 = vmatpush1.msra.mxu0 %v7498
      %7553 = vmatprep.subr.mxu0 0.0
      %7554 = vmatpush1.msra.mxu0 %v7496
      %7555 = vmatprep.subr.mxu0 0.0
      %7556 = vmatpush1.msra.mxu0 %v7494
      %7557 = vmatprep.subr.mxu0 0.0
      %7558 = vmatpush1.msra.mxu0 %v7492
      %7559 = vmatprep.subr.mxu0 0.0
      %7560 = vmatpush1.msra.mxu0 %v7490
      %7561 = vmatprep.subr.mxu0 0.0
      %7562 = vmatpush1.msra.mxu0 %v7488
      %7563 = vmatprep.subr.mxu0 0.0
      %7564 = vmatpush1.msra.mxu0 %v7486
      %7565 = vmatprep.subr.mxu0 0.0
      %7566 = vmatpush2.msra.mxu0 0.0
      %7567 = vmatprep.subr.mxu0 0.0
      %7568 = vmatpush2.msra.mxu0 0.0
      %7569 = vmatprep.subr.mxu0 0.0
      %7570 = vmatpush2.msra.mxu0 0.0
      %7571 = vmatprep.subr.mxu0 0.0
      %7572 = vmatpush2.msra.mxu0 0.0
      %7573 = vmatprep.subr.mxu0 0.0
      %7574 = vmatpush2.msra.mxu0 0.0
      %7575 = vmatprep.subr.mxu0 0.0
      %7576 = vmatpush2.msra.mxu0 0.0
      %7577 = vmatprep.subr.mxu0 0.0
      %7578 = vmatpush2.msra.mxu0 0.0
      %7579 = vmatprep.subr.mxu0 0.0
      %7580 = vmatpush2.msra.mxu0 0.0
      %7581 = vmatprep.subr.mxu0 0.0
      %7582 = vmatpush2.msra.mxu0 0.0
      %7583 = vmatprep.subr.mxu0 0.0
      %7584 = vmatpush2.msra.mxu0 0.0
      %7585 = vmatprep.subr.mxu0 0.0
      %7586 = vmatpush2.msra.mxu0 0.0
      %7587 = vmatprep.subr.mxu0 0.0
      %7588 = vmatpush2.msra.mxu0 0.0
      %7589 = vmatprep.subr.mxu0 0.0
      %7590 = vmatpush2.msra.mxu0 0.0
      %7591 = vmatprep.subr.mxu0 0.0
      %7592 = vmatpush2.msra.mxu0 0.0
      %7593 = vmatprep.subr.mxu0 0.0
      %7594 = vmatpush2.msra.mxu0 0.0
      %7595 = vmatprep.subr.mxu0 0.0
      %7596 = vmatpush2.msra.mxu0 0.0
      %7597 = vmatprep.mubr.f32.mxu0 0.0
      %7598 = vmatmul.mubr.f32.gmra.mxu0 %v7510
      %v7599 = vpop.f32.mrf.mxu0
      %v7600 = vadd.f32 0.0, %v7599
      %v7601 = vpop.f32.mrf.mxu0
      %7602 = vmatprep.mubr.f32.mxu0 0.0
      %7603 = vmatmul.mubr.f32.gmra.mxu0 %v7513
      %v7604 = vpop.f32.mrf.mxu0
      %v7605 = vadd.f32 0.0, %v7604
      %v7606 = vpop.f32.mrf.mxu0
      %7607 = vmatprep.mubr.f32.mxu0 0.0
      %7608 = vmatmul.mubr.f32.gmra.mxu0 %v7516
      %v7609 = vpop.f32.mrf.mxu0
      %v7610 = vadd.f32 0.0, %v7609
      %v7611 = vpop.f32.mrf.mxu0
      %7612 = vmatprep.mubr.f32.mxu0 0.0
      %7613 = vmatmul.mubr.f32.gmra.mxu0 %v7519
      %v7614 = vpop.f32.mrf.mxu0
      %v7615 = vadd.f32 0.0, %v7614
      %v7616 = vpop.f32.mrf.mxu0
      %7617 = vmatprep.mubr.f32.mxu0 0.0
      %7618 = vmatmul.mubr.f32.gmra.mxu0 %v7522
      %v7619 = vpop.f32.mrf.mxu0
      %v7620 = vadd.f32 0.0, %v7619
      %v7621 = vpop.f32.mrf.mxu0
      %7622 = vmatprep.mubr.f32.mxu0 0.0
      %7623 = vmatmul.mubr.f32.gmra.mxu0 %v7525
      %v7624 = vpop.f32.mrf.mxu0
      %v7625 = vadd.f32 0.0, %v7624
      %v7626 = vpop.f32.mrf.mxu0
      %7627 = vmatprep.mubr.f32.mxu0 0.0
      %7628 = vmatmul.mubr.f32.gmra.mxu0 %v7528
      %v7629 = vpop.f32.mrf.mxu0
      %v7630 = vadd.f32 0.0, %v7629
      %v7631 = vpop.f32.mrf.mxu0
      %7632 = vmatprep.mubr.f32.mxu0 0.0
      %7633 = vmatmul.mubr.f32.gmra.mxu0 %v7531
      %v7634 = vpop.f32.mrf.mxu0
      %v7635 = vadd.f32 0.0, %v7634
      %v7636 = vpop.f32.mrf.mxu0
      %7637 = vdwg.mxu0
      %7654 = vrot.lane.b32.xlu0 %v7447, 112
      %v7655 = vpop.permute.xlu0 %7654
      %7656 = vrot.lane.b32.xlu0 %v7452, 112
      %v7657 = vpop.permute.xlu0 %7656
      %7658 = vrot.lane.b32.xlu0 %v7457, 112
      %v7659 = vpop.permute.xlu0 %7658
      %7660 = vrot.lane.b32.xlu0 %v7462, 112
      %v7661 = vpop.permute.xlu0 %7660
      %7662 = vrot.lane.b32.xlu0 %v7467, 112
      %v7663 = vpop.permute.xlu0 %7662
      %7664 = vrot.lane.b32.xlu0 %v7472, 112
      %v7665 = vpop.permute.xlu0 %7664
      %7666 = vrot.lane.b32.xlu0 %v7477, 112
      %v7667 = vpop.permute.xlu0 %7666
      %7668 = vrot.lane.b32.xlu0 %v7482, 112
      %v7669 = vpop.permute.xlu0 %7668
      %7670 = vrot.lane.b32.xlu0 %v7600, 112
      %v7671 = vpop.permute.xlu0 %7670
      %7672 = vrot.lane.b32.xlu0 %v7605, 112
      %v7673 = vpop.permute.xlu0 %7672
      %7674 = vrot.lane.b32.xlu0 %v7610, 112
      %v7675 = vpop.permute.xlu0 %7674
      %7676 = vrot.lane.b32.xlu0 %v7615, 112
      %v7677 = vpop.permute.xlu0 %7676
      %7678 = vrot.lane.b32.xlu0 %v7620, 112
      %v7679 = vpop.permute.xlu0 %7678
      %7680 = vrot.lane.b32.xlu0 %v7625, 112
      %v7681 = vpop.permute.xlu0 %7680
      %7682 = vrot.lane.b32.xlu0 %v7630, 112
      %v7683 = vpop.permute.xlu0 %7682
      %7684 = vrot.lane.b32.xlu0 %v7635, 112
      %v7685 = vpop.permute.xlu0 %7684
      %vm7702 = vcmask 1048448
      %7703 = vst.msk [vmem:[%s204] sm:$0xff] %vm7702, %v7655
      %7704 = vst.msk [vmem:[%s204 + $0x8] sm:$0xff] %vm7702, %v7657
      %7705 = vst.msk [vmem:[%s204 + $0x10] sm:$0xff] %vm7702, %v7659
      %7706 = vst.msk [vmem:[%s204 + $0x18] sm:$0xff] %vm7702, %v7661
      %7707 = vst.msk [vmem:[%s204 + $0x20] sm:$0xff] %vm7702, %v7663
      %7708 = vst.msk [vmem:[%s204 + $0x28] sm:$0xff] %vm7702, %v7665
      %7709 = vst.msk [vmem:[%s204 + $0x30] sm:$0xff] %vm7702, %v7667
      %7710 = vst.msk [vmem:[%s204 + $0x38] sm:$0xff] %vm7702, %v7669
      %7711 = vst.msk [vmem:[%s204 + $0x40] sm:$0xff] %vm7702, %v7671
      %7712 = vst.msk [vmem:[%s204 + $0x48] sm:$0xff] %vm7702, %v7673
      %7713 = vst.msk [vmem:[%s204 + $0x50] sm:$0xff] %vm7702, %v7675
      %7714 = vst.msk [vmem:[%s204 + $0x58] sm:$0xff] %vm7702, %v7677
      %7715 = vst.msk [vmem:[%s204 + $0x60] sm:$0xff] %vm7702, %v7679
      %7716 = vst.msk [vmem:[%s204 + $0x68] sm:$0xff] %vm7702, %v7681
      %7717 = vst.msk [vmem:[%s204 + $0x70] sm:$0xff] %vm7702, %v7683
      %7718 = vst.msk [vmem:[%s204 + $0x78] sm:$0xff] %vm7702, %v7685
      %s7719 = smul.u32 2, %s15
      %p7720 = scmp.lt.s32.totalorder %s7719, 3
      %s7721 = scalar_select %p7720, %s7719, 3
      %s7722 = smul.addr %s7721, 8
      %s7723 = smul.addr %s7722, 8
      %s7724 = scalar_lea.vmem %s4, %s7723
      // Predicated region
      $region37: #{encoder_forward.12} parent=35 // pred_check
        %p7725 = pneg %p122
      $region38: #{encoder_forward.12} parent=35 // pred_check_branch
        %7727 = sbr.rel (%p7725) target = $region40
      $region39: #{encoder_forward.12} parent=35 // pred_region
        %s7728 = smul.u32 2, %s15
      $region40: #{encoder_forward.12} parent=35 // pred_fallthru
        _
    $region36: #{encoder_forward.12} parent=5 // pred_fallthru
      _
    %p7729 = scmp.le.s32.totalorder 2, %s10
    // Predicated region
    $region41: #{encoder_forward.12} parent=5 // pred_check
      %p7730 = pneg %p7729
    $region42: #{encoder_forward.12} parent=5 // pred_check_branch
      %7732 = sbr.rel (%p7730) target = $region44
    $region43: #{encoder_forward.12} parent=5 // pred_region
      %s7733 = ssub.s32 %s10, 2
      // Predicated region
      $region45: #{encoder_forward.12} parent=43 // pred_check
        %p7734 = pneg %p128
      $region46: #{encoder_forward.12} parent=43 // pred_check_branch
        %7736 = sbr.rel (%p7734) target = $region48
      $region47: #{encoder_forward.12} parent=43 // pred_region
        %s7737 = smul.u32 2, %s16
        %p7738 = scmp.lt.s32.totalorder %s7737, 3
        %s7739 = scalar_select %p7738, %s7737, 3
        %s7740 = smul.addr %s7739, 8
        %s7741 = smul.addr %s7740, 8
        %s7742 = scalar_lea.vmem %s4, %s7741
      $region48: #{encoder_forward.12} parent=43 // pred_fallthru
        _
    $region44: #{encoder_forward.12} parent=5 // pred_fallthru
      _
  $region6: #{encoder_forward.12} parent=0 // loop_footer
    %s14 = sadd.s32 1, %s10
  $region7: #{encoder_forward.12} parent=0 // loop_footer_branch
    %9 = sbr.rel target = $region3
  $region8: #{encoder_forward.12} parent=0 // loop_exit
    _

</llo_original>
